<compile_context>
chip_gen: v5e
topology: v5e:2x2
jax: 0.10.0
libtpu: 0.0.40
codegen_flags: <defaults>
</compile_context>

<pallas_src>
import functools
import math

import numpy as np
import jax
import jax.numpy as jnp
from jax import lax
from jax.experimental import pallas as pl
from jax.experimental.pallas import tpu as pltpu


def _round_up(x, m):
    return (x + m - 1) // m * m


def _dcnv2_kernel(base_ref, om_ref, px_ref, wdcn_ref, lanex_ref, out_ref, *,
                  kH, kW, KK, padding, H, W, pad_H, TQ, OUTC, mxu_dtype):
    """One (batch, spatial-tile) grid step.

    base_ref : (TQ, 2)           f32        deformable base (y, x) = (oh*s + p, ow*s + p)
    om_ref   : (1, TQ, 3*KK)     f32        conv_offset output, cols [off_y | off_x | mask]
    px_ref   : (1, pad_H, CPWp)  mxu_dtype  padded input, lane layout c*pad_W + x (0-padded)
    wdcn_ref : (KK, CPWp, OUTC)  mxu_dtype  dcn weights per tap with channel-group sum
                                            (smat) pre-folded, out_C zero-padded
    lanex_ref: (1, CPWp)         f32        lane -> x coordinate; padding lanes = -1e9
    out_ref  : (1, TQ, OUTC)     f32        output tile (used as the accumulator)
    """
    half = (kW - 1) // 2
    px = px_ref[0]                                           # (pad_H, CPWp)
    lane_x = lanex_ref[...]                                  # (1, CPWp)  f32, exact ints
    yiota = lax.broadcasted_iota(jnp.int32, (1, pad_H), 1).astype(jnp.float32)

    base_y = base_ref[:, 0:1]                                # (TQ, 1)
    base_x = base_ref[:, 1:2]
    om = om_ref[0]                                           # (TQ, 3*KK)  f32
    # all KK modulation masks in one sigmoid: EUP reciprocal (free slot), batched lanes
    mt_all = pl.reciprocal(1.0 + jnp.exp(-om[:, 2 * KK:3 * KK]), approx=True)  # (TQ, KK)

    ymax = float(H + 2 * padding - 1)
    xmax = float(W + 2 * padding - 1)
    out_ref[0] = jnp.zeros((TQ, OUTC), jnp.float32)
    for t in range(KK):
        ky = t // kW
        kx = t % kW
        py = jnp.clip(base_y + float(ky - half) + om[:, t:t + 1], 0.0, ymax)
        pxx = jnp.clip(base_x + float(kx - half) + om[:, KK + t:KK + t + 1], 0.0, xmax)
        # stage 1: bilinear "hat" row select (mask folded into the SMALL tensor) -> MXU
        rsel = (jnp.maximum(0.0, 1.0 - jnp.abs(yiota - py))
                * mt_all[:, t:t + 1])                                        # (TQ, pad_H)
        rowdat = jnp.dot(rsel.astype(mxu_dtype), px,
                         preferred_element_type=jnp.float32)                 # (TQ, CPWp)
        # stage 2: bilinear "hat" column select + fused channel-group / 1x1-conv matmul
        csel = jnp.maximum(0.0, 1.0 - jnp.abs(lane_x - pxx))                 # (TQ, CPWp)
        out_ref[0] += jnp.dot((csel * rowdat).astype(mxu_dtype), wdcn_ref[t],
                              preferred_element_type=jnp.float32)            # (TQ, OUTC)


def dcnv2_forward(x, w_off, b_off, dcn_weight, *, filter_size, stride, padding,
                  tile_q=256, mxu_dtype=jnp.bfloat16):
    N, in_C, H, W = x.shape
    out_C = dcn_weight.shape[0]
    kH = kW = filter_size
    KK = kH * kW
    out_H = (H + 2 * padding - (kH - 1)) // stride
    out_W = (W + 2 * padding - (kW - 1)) // stride
    out_HW = out_H * out_W
    pad_H = H + 2 * padding + 1
    pad_W = W + 2 * padding + 1
    CPW = in_C * pad_W
    CPWp = _round_up(CPW, 128)                  # lane-dense padded-image rows / MXU K

    # spatial tiling of the flattened output (second grid dim)
    TQ = min(_round_up(tile_q, 8), _round_up(out_HW, 8))
    out_HW_pad = _round_up(out_HW, TQ)
    n_qt = out_HW_pad // TQ
    OUTC = _round_up(out_C, 128)                # lane-dense output stores

    x32 = jnp.asarray(x, jnp.float32)

    # ---- conv_offset hoisted out of the kernel: plain XLA conv ------------------
    # (HIGHEST precision keeps the coordinate path bit-tight; the conv is tiny)
    om = lax.conv_general_dilated(
        x32, jnp.asarray(w_off, jnp.float32), (stride, stride),
        [(padding, padding), (padding, padding)],
        dimension_numbers=("NCHW", "OIHW", "NCHW"),
        precision=lax.Precision.HIGHEST)
    om = om + jnp.asarray(b_off, jnp.float32)[None, :, None, None]
    om = jnp.transpose(om, (0, 2, 3, 1)).reshape(N, out_HW, 3 * KK)
    # reorder channels [y0,x0,y1,x1,...,m0,...] -> [off_y(KK) | off_x(KK) | mask(KK)]
    perm = np.concatenate([2 * np.arange(KK), 2 * np.arange(KK) + 1,
                           2 * KK + np.arange(KK)])
    om = om[:, :, perm]
    om = jnp.pad(om, ((0, 0), (0, out_HW_pad - out_HW), (0, 0)))

    # ---- padded image, channels-major lane layout px[n, y, c*pad_W + x] ---------
    x_nhwc = jnp.transpose(x32, (0, 2, 3, 1))
    pad_x = jnp.zeros((N, pad_H, pad_W, in_C), jnp.float32)
    pad_x = pad_x.at[:, padding:padding + H, padding:padding + W, :].set(x_nhwc)
    px_r = jnp.transpose(pad_x, (0, 1, 3, 2)).reshape(N, pad_H, CPW)
    px_r = jnp.pad(px_r, ((0, 0), (0, 0), (0, CPWp - CPW))).astype(mxu_dtype)

    # ---- dcn weights with the channel-group reduction (smat) pre-folded ---------
    # wdcn_big[t, c*pad_W + x, o] = dcn_weight[o, c, ky, kx]   (same value for every x)
    wdcn = jnp.transpose(jnp.asarray(dcn_weight, jnp.float32),
                         (2, 3, 1, 0)).reshape(KK, in_C, out_C)
    wdcn_big = jnp.repeat(wdcn, pad_W, axis=1)                   # (KK, CPW, out_C)
    wdcn_big = jnp.pad(wdcn_big, ((0, 0), (0, CPWp - CPW), (0, OUTC - out_C)))
    wdcn_big = wdcn_big.astype(mxu_dtype)

    # ---- base sampling positions and lane -> x coordinate map -------------------
    ohv = np.repeat(np.arange(out_H), out_W)
    owv = np.tile(np.arange(out_W), out_H)
    base = np.zeros((out_HW_pad, 2), np.float32)
    base[:out_HW, 0] = ohv * stride + padding
    base[:out_HW, 1] = owv * stride + padding
    base_yx = jnp.asarray(base)

    lane_x_np = np.full((1, CPWp), -1e9, np.float32)   # padding lanes: hat is always 0
    lane_x_np[0, :CPW] = np.tile(np.arange(pad_W, dtype=np.float32), in_C)
    lane_x = jnp.asarray(lane_x_np)

    kernel = functools.partial(
        _dcnv2_kernel, kH=kH, kW=kW, KK=KK, padding=padding, H=H, W=W,
        pad_H=pad_H, TQ=TQ, OUTC=OUTC, mxu_dtype=mxu_dtype)

    out_flat = pl.pallas_call(
        kernel,
        out_shape=jax.ShapeDtypeStruct((N, out_HW_pad, OUTC), jnp.float32),
        grid_spec=pltpu.PrefetchScalarGridSpec(
            num_scalar_prefetch=0,
            grid=(N, n_qt),                       # batch x spatial tiles, both parallel
            in_specs=[
                pl.BlockSpec((TQ, 2), lambda n, q: (q, 0)),
                pl.BlockSpec((1, TQ, 3 * KK), lambda n, q: (n, q, 0)),
                pl.BlockSpec((1, pad_H, CPWp), lambda n, q: (n, 0, 0)),
                pl.BlockSpec((KK, CPWp, OUTC), lambda n, q: (0, 0, 0)),
                pl.BlockSpec((1, CPWp), lambda n, q: (0, 0)),
            ],
            out_specs=pl.BlockSpec((1, TQ, OUTC), lambda n, q: (n, q, 0)),
        ),
        # per-step VMEM is a few hundred KB -> far below every generation's budget,
        # but make the scoped limit explicit (v7x: 64 MiB physical / 32 MiB scoped).
        compiler_params=pltpu.CompilerParams(
            dimension_semantics=("parallel", "parallel"),
            vmem_limit_bytes=32 * 1024 * 1024),
    )(base_yx, om, px_r, wdcn_big, lane_x)

    out = out_flat[:, :out_HW, :out_C]
    # back to NCHW (matches the PyTorch module).  dcn_bias is declared by the module
    # but never used in its forward (F.conv2d called without bias).
    return out.reshape(N, out_H, out_W, out_C).transpose(0, 3, 1, 2)


# ---------------- pure-JAX reference (mirrors the PyTorch forward) ----------------
def dcnv2_ref(x, w_off, b_off, dcn_weight, *, filter_size, stride, padding):
    N, in_C, H, W = x.shape
    out_C = dcn_weight.shape[0]
    kH = kW = filter_size
    KK = kH * kW
    om = lax.conv_general_dilated(
        x, w_off, (stride, stride),
        [(padding, padding), (padding, padding)],
        dimension_numbers=("NCHW", "OIHW", "NCHW"),
        precision=lax.Precision.HIGHEST)
    om = om + b_off[None, :, None, None]
    offset = om[:, :2 * KK]
    mask = jax.nn.sigmoid(om[:, 2 * KK:])
    out_H = (H + 2 * padding - (kH - 1)) // stride
    out_W = (W + 2 * padding - (kW - 1)) // stride
    pad_H = H + 2 * padding + 1
    pad_W = W + 2 * padding + 1
    pad_x = jnp.zeros((N, pad_H, pad_W, in_C), jnp.float32)
    pad_x = pad_x.at[:, padding:padding + H, padding:padding + W, :].set(
        jnp.transpose(x, (0, 2, 3, 1)))
    off = jnp.transpose(offset, (0, 2, 3, 1)).reshape(N, out_H, out_W, KK, 2)
    msk = jnp.transpose(mask, (0, 2, 3, 1))
    half = (kW - 1) // 2
    base_y = jnp.arange(out_H, dtype=jnp.float32) * stride + padding
    base_x = jnp.arange(out_W, dtype=jnp.float32) * stride + padding
    inner_y = jnp.repeat(jnp.arange(kH, dtype=jnp.float32) - half, kW)
    inner_x = jnp.tile(jnp.arange(kW, dtype=jnp.float32) - half, kH)
    pos_y = base_y[None, :, None, None] + inner_y[None, None, None, :] + off[..., 0]
    pos_x = base_x[None, None, :, None] + inner_x[None, None, None, :] + off[..., 1]
    pos_y = jnp.clip(pos_y, 0.0, H + 2 * padding - 1.0)
    pos_x = jnp.clip(pos_x, 0.0, W + 2 * padding - 1.0)
    y1 = jnp.floor(pos_y); x1 = jnp.floor(pos_x)
    lh = pos_y - y1; lw = pos_x - x1
    hh = 1.0 - lh; hw = 1.0 - lw
    y1i = y1.astype(jnp.int32); x1i = x1.astype(jnp.int32)

    def gather(yi, xi):
        return jax.vmap(lambda p, yy, xx: p[yy, xx])(pad_x, yi, xi)

    v1 = gather(y1i, x1i)
    v2 = gather(y1i, x1i + 1)
    v3 = gather(y1i + 1, x1i)
    v4 = gather(y1i + 1, x1i + 1)
    val = ((hh * hw)[..., None] * v1 + (hh * lw)[..., None] * v2 +
           (lh * hw)[..., None] * v3 + (lh * lw)[..., None] * v4)
    val = val * msk[..., None]                            # (N, oH, oW, KK, C)
    w_r = dcn_weight.reshape(out_C, in_C, KK)
    return jnp.einsum("nhwtc,oct->nohw", val, w_r,
                      precision=lax.Precision.HIGHEST)


if __name__ == "__main__":
    N, in_C, H, W = 2, 4, 16, 16
    filters, filter_size, stride, padding = 8, 3, 1, 1
    kH = kW = filter_size
    KK = kH * kW

    key = jax.random.PRNGKey(0)
    kx_, kw1, kw2, kb = jax.random.split(key, 4)
    x = jax.random.normal(kx_, (N, in_C, H, W), jnp.float32)

    # dcn_weight: xavier_normal (gain=1), same shape as the module
    fan_in = in_C * kH * kW
    fan_out = filters * kH * kW
    std = math.sqrt(2.0 / (fan_in + fan_out))
    dcn_weight = std * jax.random.normal(kw1, (filters, in_C, kH, kW), jnp.float32)
    # dcn_bias: unused by the module's forward (F.conv2d called without bias)

    # NOTE: the module initializes conv_offset weight/bias to exactly 0 (all offsets 0,
    # masks 0.5).  Small random values are used instead so the deformable path is
    # actually exercised.
    w_off = 0.1 * jax.random.normal(kw2, (3 * KK, in_C, kH, kW), jnp.float32)
    b_off = 0.1 * jax.random.normal(kb, (3 * KK,), jnp.float32)

    ref = dcnv2_ref(x, w_off, b_off, dcn_weight, filter_size=filter_size,
                    stride=stride, padding=padding)
    out_H = (H + 2 * padding - (kH - 1)) // stride
    out_W = (W + 2 * padding - (kW - 1)) // stride

    # 1) f32 MXU path: tight verification; tile_q=128 exercises the (batch, q-tile) grid.
    fwd32 = jax.jit(functools.partial(dcnv2_forward, filter_size=filter_size,
                                      stride=stride, padding=padding, tile_q=128,
                                      mxu_dtype=jnp.float32))
    out32 = jax.block_until_ready(fwd32(x, w_off, b_off, dcn_weight))
    assert out32.shape == (N, filters, out_H, out_W), out32.shape
    err32 = float(np.max(np.abs(np.asarray(out32) - np.asarray(ref))))
    assert err32 < 1e-2, f"f32 MXU path max abs err {err32}"

    # 2) production path: bf16 MXU operands (default), tile_q=256, f32 accumulation.
    fwd16 = jax.jit(functools.partial(dcnv2_forward, filter_size=filter_size,
                                      stride=stride, padding=padding))
    out16 = jax.block_until_ready(fwd16(x, w_off, b_off, dcn_weight))
    assert out16.shape == (N, filters, out_H, out_W), out16.shape
    err16 = float(np.max(np.abs(np.asarray(out16) - np.asarray(ref))))
    assert err16 < 1e-1, f"bf16 MXU path max abs err {err16}"

    print("KERNEL_OK")
</pallas_src>

<mosaic_0001>
module attributes {stable_mosaic.version = 11 : i64} {
  func.func @_dcnv2_kernel(%arg0: i32, %arg1: i32, %arg2: memref<128x2xf32, #tpu.memory_space<vmem>>, %arg3: memref<1x128x27xf32, #tpu.memory_space<vmem>>, %arg4: memref<1x19x128xf32, #tpu.memory_space<vmem>>, %arg5: memref<9x128x128xf32, #tpu.memory_space<vmem>>, %arg6: memref<1x128xf32, #tpu.memory_space<vmem>>, %arg7: memref<1x128x128xf32, #tpu.memory_space<vmem>>) attributes {dimension_semantics = [#tpu.dimension_semantics<parallel>, #tpu.dimension_semantics<parallel>], iteration_bounds = array<i64: 2, 2>, scalar_prefetch = 0 : i64, scratch_operands = 0 : i64, tpu.core_type = #tpu.core_type<tc>, window_params = [{transform_indices = @transform_0, window_bounds = array<i64: 128, 2>}, {transform_indices = @transform_1, window_bounds = array<i64: 1, 128, 27>}, {transform_indices = @transform_2, window_bounds = array<i64: 1, 19, 128>}, {pipeline_mode = #tpu.pipeline_mode<synchronous>, transform_indices = @transform_3, window_bounds = array<i64: 9, 128, 128>}, {pipeline_mode = #tpu.pipeline_mode<synchronous>, transform_indices = @transform_4, window_bounds = array<i64: 1, 128>}, {transform_indices = @transform_5, window_bounds = array<i64: 1, 128, 128>}]} {
    %c0 = arith.constant 0 : index
    %c0_0 = arith.constant 0 : index
    %c0_1 = arith.constant 0 : index
    %0 = vector.load %arg4[%c0, %c0_0, %c0_1] : memref<1x19x128xf32, #tpu.memory_space<vmem>>, vector<1x19x128xf32>
    %1 = vector.shape_cast %0 : vector<1x19x128xf32> to vector<19x128xf32>
    %c0_2 = arith.constant 0 : index
    %c0_3 = arith.constant 0 : index
    %2 = vector.load %arg6[%c0_2, %c0_3] : memref<1x128xf32, #tpu.memory_space<vmem>>, vector<1x128xf32>
    %3 = tpu.iota {dimensions = array<i32: 1>} : vector<1x19xi32>
    %4 = arith.sitofp %3 : vector<1x19xi32> to vector<1x19xf32>
    %c0_4 = arith.constant 0 : index
    %c0_5 = arith.constant 0 : index
    %5 = vector.load %arg2[%c0_4, %c0_5] : memref<128x2xf32, #tpu.memory_space<vmem>>, vector<128x1xf32>
    %c0_6 = arith.constant 0 : index
    %c1 = arith.constant 1 : index
    %6 = vector.load %arg2[%c0_6, %c1] : memref<128x2xf32, #tpu.memory_space<vmem>>, vector<128x1xf32>
    %c0_7 = arith.constant 0 : index
    %c0_8 = arith.constant 0 : index
    %c0_9 = arith.constant 0 : index
    %7 = vector.load %arg3[%c0_7, %c0_8, %c0_9] : memref<1x128x27xf32, #tpu.memory_space<vmem>>, vector<1x128x27xf32>
    %8 = vector.shape_cast %7 : vector<1x128x27xf32> to vector<128x27xf32>
    %9 = vector.extract_strided_slice %8 {offsets = [0, 18], sizes = [128, 9], strides = [1, 1]} : vector<128x27xf32> to vector<128x9xf32>
    %cst = arith.constant 0.000000e+00 : f32
    %10 = vector.broadcast %cst : f32 to vector<128x9xf32>
    %11 = arith.subf %10, %9 : vector<128x9xf32>
    %12 = math.exp %11 : vector<128x9xf32>
    %cst_10 = arith.constant 1.000000e+00 : f32
    %13 = vector.broadcast %cst_10 : f32 to vector<128x9xf32>
    %14 = arith.addf %13, %12 : vector<128x9xf32>
    %15 = tpu.reciprocal %14 {approx = true} : vector<128x9xf32> -> vector<128x9xf32>
    %cst_11 = arith.constant 0.000000e+00 : f32
    %16 = vector.broadcast %cst_11 : f32 to vector<128x128xf32>
    %c0_12 = arith.constant 0 : index
    %c0_13 = arith.constant 0 : index
    %c0_14 = arith.constant 0 : index
    %17 = vector.load %arg7[%c0_12, %c0_13, %c0_14] : memref<1x128x128xf32, #tpu.memory_space<vmem>>, vector<1x128x128xf32>
    %18 = vector.shape_cast %17 : vector<1x128x128xf32> to vector<128x128xf32>
    %19 = vector.shape_cast %16 : vector<128x128xf32> to vector<1x128x128xf32>
    tpu.vector_store %arg7[%c0_12, %c0_13, %c0_14], %19 {strides = array<i32>} : memref<1x128x128xf32, #tpu.memory_space<vmem>>, vector<1x128x128xf32>,
    %cst_15 = arith.constant -1.000000e+00 : f32
    %20 = vector.broadcast %cst_15 : f32 to vector<128x1xf32>
    %21 = arith.addf %5, %20 : vector<128x1xf32>
    %22 = vector.extract_strided_slice %8 {offsets = [0, 0], sizes = [128, 1], strides = [1, 1]} : vector<128x27xf32> to vector<128x1xf32>
    %23 = arith.addf %21, %22 : vector<128x1xf32>
    %cst_16 = arith.constant 0.000000e+00 : f32
    %cst_17 = arith.constant 1.700000e+01 : f32
    %24 = vector.broadcast %cst_16 : f32 to vector<128x1xf32>
    %25 = arith.maximumf %24, %23 : vector<128x1xf32>
    %26 = vector.broadcast %cst_17 : f32 to vector<128x1xf32>
    %27 = arith.minimumf %26, %25 : vector<128x1xf32>
    %cst_18 = arith.constant -1.000000e+00 : f32
    %28 = vector.broadcast %cst_18 : f32 to vector<128x1xf32>
    %29 = arith.addf %6, %28 : vector<128x1xf32>
    %30 = vector.extract_strided_slice %8 {offsets = [0, 9], sizes = [128, 1], strides = [1, 1]} : vector<128x27xf32> to vector<128x1xf32>
    %31 = arith.addf %29, %30 : vector<128x1xf32>
    %cst_19 = arith.constant 0.000000e+00 : f32
    %cst_20 = arith.constant 1.700000e+01 : f32
    %32 = vector.broadcast %cst_19 : f32 to vector<128x1xf32>
    %33 = arith.maximumf %32, %31 : vector<128x1xf32>
    %34 = vector.broadcast %cst_20 : f32 to vector<128x1xf32>
    %35 = arith.minimumf %34, %33 : vector<128x1xf32>
    %36 = vector.broadcast %4 : vector<1x19xf32> to vector<128x19xf32>
    %37 = vector.broadcast %27 : vector<128x1xf32> to vector<128x19xf32>
    %38 = arith.subf %36, %37 : vector<128x19xf32>
    %39 = math.absf %38 : vector<128x19xf32>
    %cst_21 = arith.constant 1.000000e+00 : f32
    %40 = vector.broadcast %cst_21 : f32 to vector<128x19xf32>
    %41 = arith.subf %40, %39 : vector<128x19xf32>
    %cst_22 = arith.constant 0.000000e+00 : f32
    %42 = vector.broadcast %cst_22 : f32 to vector<128x19xf32>
    %43 = arith.maximumf %42, %41 : vector<128x19xf32>
    %44 = vector.extract_strided_slice %15 {offsets = [0, 0], sizes = [128, 1], strides = [1, 1]} : vector<128x9xf32> to vector<128x1xf32>
    %45 = vector.broadcast %44 : vector<128x1xf32> to vector<128x19xf32>
    %46 = arith.mulf %43, %45 : vector<128x19xf32>
    %cst_23 = arith.constant dense<0.000000e+00> : vector<128x128xf32>
    %47 = tpu.matmul %46, %1, %cst_23 {dimension_numbers = #tpu.dot_dimension_numbers<[1], [0], [0], [1], [0, 0, 1, 1], [], []>} : vector<128x19xf32>, vector<19x128xf32>, vector<128x128xf32> -> vector<128x128xf32>
    %48 = vector.broadcast %2 : vector<1x128xf32> to vector<128x128xf32>
    %49 = vector.broadcast %35 : vector<128x1xf32> to vector<128x128xf32>
    %50 = arith.subf %48, %49 : vector<128x128xf32>
    %51 = math.absf %50 : vector<128x128xf32>
    %cst_24 = arith.constant 1.000000e+00 : f32
    %52 = vector.broadcast %cst_24 : f32 to vector<128x128xf32>
    %53 = arith.subf %52, %51 : vector<128x128xf32>
    %cst_25 = arith.constant 0.000000e+00 : f32
    %54 = vector.broadcast %cst_25 : f32 to vector<128x128xf32>
    %55 = arith.maximumf %54, %53 : vector<128x128xf32>
    %c0_26 = arith.constant 0 : index
    %c0_27 = arith.constant 0 : index
    %c0_28 = arith.constant 0 : index
    %56 = vector.load %arg7[%c0_26, %c0_27, %c0_28] : memref<1x128x128xf32, #tpu.memory_space<vmem>>, vector<1x128x128xf32>
    %57 = vector.shape_cast %56 : vector<1x128x128xf32> to vector<128x128xf32>
    %58 = arith.mulf %55, %47 : vector<128x128xf32>
    %c0_29 = arith.constant 0 : index
    %c0_30 = arith.constant 0 : index
    %c0_31 = arith.constant 0 : index
    %59 = vector.load %arg5[%c0_29, %c0_30, %c0_31] : memref<9x128x128xf32, #tpu.memory_space<vmem>>, vector<1x128x128xf32>
    %60 = vector.shape_cast %59 : vector<1x128x128xf32> to vector<128x128xf32>
    %cst_32 = arith.constant dense<0.000000e+00> : vector<128x128xf32>
    %61 = tpu.matmul %58, %60, %cst_32 {dimension_numbers = #tpu.dot_dimension_numbers<[1], [0], [0], [1], [0, 0, 1, 1], [], []>} : vector<128x128xf32>, vector<128x128xf32>, vector<128x128xf32> -> vector<128x128xf32>
    %62 = arith.addf %57, %61 : vector<128x128xf32>
    %c0_33 = arith.constant 0 : index
    %c0_34 = arith.constant 0 : index
    %c0_35 = arith.constant 0 : index
    %63 = vector.load %arg7[%c0_33, %c0_34, %c0_35] : memref<1x128x128xf32, #tpu.memory_space<vmem>>, vector<1x128x128xf32>
    %64 = vector.shape_cast %63 : vector<1x128x128xf32> to vector<128x128xf32>
    %65 = vector.shape_cast %62 : vector<128x128xf32> to vector<1x128x128xf32>
    tpu.vector_store %arg7[%c0_33, %c0_34, %c0_35], %65 {strides = array<i32>} : memref<1x128x128xf32, #tpu.memory_space<vmem>>, vector<1x128x128xf32>,
    %cst_36 = arith.constant -1.000000e+00 : f32
    %66 = vector.broadcast %cst_36 : f32 to vector<128x1xf32>
    %67 = arith.addf %5, %66 : vector<128x1xf32>
    %68 = vector.extract_strided_slice %8 {offsets = [0, 1], sizes = [128, 1], strides = [1, 1]} : vector<128x27xf32> to vector<128x1xf32>
    %69 = arith.addf %67, %68 : vector<128x1xf32>
    %cst_37 = arith.constant 0.000000e+00 : f32
    %cst_38 = arith.constant 1.700000e+01 : f32
    %70 = vector.broadcast %cst_37 : f32 to vector<128x1xf32>
    %71 = arith.maximumf %70, %69 : vector<128x1xf32>
    %72 = vector.broadcast %cst_38 : f32 to vector<128x1xf32>
    %73 = arith.minimumf %72, %71 : vector<128x1xf32>
    %cst_39 = arith.constant 0.000000e+00 : f32
    %74 = vector.broadcast %cst_39 : f32 to vector<128x1xf32>
    %75 = arith.addf %6, %74 : vector<128x1xf32>
    %76 = vector.extract_strided_slice %8 {offsets = [0, 10], sizes = [128, 1], strides = [1, 1]} : vector<128x27xf32> to vector<128x1xf32>
    %77 = arith.addf %75, %76 : vector<128x1xf32>
    %cst_40 = arith.constant 0.000000e+00 : f32
    %cst_41 = arith.constant 1.700000e+01 : f32
    %78 = vector.broadcast %cst_40 : f32 to vector<128x1xf32>
    %79 = arith.maximumf %78, %77 : vector<128x1xf32>
    %80 = vector.broadcast %cst_41 : f32 to vector<128x1xf32>
    %81 = arith.minimumf %80, %79 : vector<128x1xf32>
    %82 = vector.broadcast %4 : vector<1x19xf32> to vector<128x19xf32>
    %83 = vector.broadcast %73 : vector<128x1xf32> to vector<128x19xf32>
    %84 = arith.subf %82, %83 : vector<128x19xf32>
    %85 = math.absf %84 : vector<128x19xf32>
    %cst_42 = arith.constant 1.000000e+00 : f32
    %86 = vector.broadcast %cst_42 : f32 to vector<128x19xf32>
    %87 = arith.subf %86, %85 : vector<128x19xf32>
    %cst_43 = arith.constant 0.000000e+00 : f32
    %88 = vector.broadcast %cst_43 : f32 to vector<128x19xf32>
    %89 = arith.maximumf %88, %87 : vector<128x19xf32>
    %90 = vector.extract_strided_slice %15 {offsets = [0, 1], sizes = [128, 1], strides = [1, 1]} : vector<128x9xf32> to vector<128x1xf32>
    %91 = vector.broadcast %90 : vector<128x1xf32> to vector<128x19xf32>
    %92 = arith.mulf %89, %91 : vector<128x19xf32>
    %cst_44 = arith.constant dense<0.000000e+00> : vector<128x128xf32>
    %93 = tpu.matmul %92, %1, %cst_44 {dimension_numbers = #tpu.dot_dimension_numbers<[1], [0], [0], [1], [0, 0, 1, 1], [], []>} : vector<128x19xf32>, vector<19x128xf32>, vector<128x128xf32> -> vector<128x128xf32>
    %94 = vector.broadcast %2 : vector<1x128xf32> to vector<128x128xf32>
    %95 = vector.broadcast %81 : vector<128x1xf32> to vector<128x128xf32>
    %96 = arith.subf %94, %95 : vector<128x128xf32>
    %97 = math.absf %96 : vector<128x128xf32>
    %cst_45 = arith.constant 1.000000e+00 : f32
    %98 = vector.broadcast %cst_45 : f32 to vector<128x128xf32>
    %99 = arith.subf %98, %97 : vector<128x128xf32>
    %cst_46 = arith.constant 0.000000e+00 : f32
    %100 = vector.broadcast %cst_46 : f32 to vector<128x128xf32>
    %101 = arith.maximumf %100, %99 : vector<128x128xf32>
    %c0_47 = arith.constant 0 : index
    %c0_48 = arith.constant 0 : index
    %c0_49 = arith.constant 0 : index
    %102 = vector.load %arg7[%c0_47, %c0_48, %c0_49] : memref<1x128x128xf32, #tpu.memory_space<vmem>>, vector<1x128x128xf32>
    %103 = vector.shape_cast %102 : vector<1x128x128xf32> to vector<128x128xf32>
    %104 = arith.mulf %101, %93 : vector<128x128xf32>
    %c1_50 = arith.constant 1 : index
    %c0_51 = arith.constant 0 : index
    %c0_52 = arith.constant 0 : index
    %105 = vector.load %arg5[%c1_50, %c0_51, %c0_52] : memref<9x128x128xf32, #tpu.memory_space<vmem>>, vector<1x128x128xf32>
    %106 = vector.shape_cast %105 : vector<1x128x128xf32> to vector<128x128xf32>
    %cst_53 = arith.constant dense<0.000000e+00> : vector<128x128xf32>
    %107 = tpu.matmul %104, %106, %cst_53 {dimension_numbers = #tpu.dot_dimension_numbers<[1], [0], [0], [1], [0, 0, 1, 1], [], []>} : vector<128x128xf32>, vector<128x128xf32>, vector<128x128xf32> -> vector<128x128xf32>
    %108 = arith.addf %103, %107 : vector<128x128xf32>
    %c0_54 = arith.constant 0 : index
    %c0_55 = arith.constant 0 : index
    %c0_56 = arith.constant 0 : index
    %109 = vector.load %arg7[%c0_54, %c0_55, %c0_56] : memref<1x128x128xf32, #tpu.memory_space<vmem>>, vector<1x128x128xf32>
    %110 = vector.shape_cast %109 : vector<1x128x128xf32> to vector<128x128xf32>
    %111 = vector.shape_cast %108 : vector<128x128xf32> to vector<1x128x128xf32>
    tpu.vector_store %arg7[%c0_54, %c0_55, %c0_56], %111 {strides = array<i32>} : memref<1x128x128xf32, #tpu.memory_space<vmem>>, vector<1x128x128xf32>,
    %cst_57 = arith.constant -1.000000e+00 : f32
    %112 = vector.broadcast %cst_57 : f32 to vector<128x1xf32>
    %113 = arith.addf %5, %112 : vector<128x1xf32>
    %114 = vector.extract_strided_slice %8 {offsets = [0, 2], sizes = [128, 1], strides = [1, 1]} : vector<128x27xf32> to vector<128x1xf32>
    %115 = arith.addf %113, %114 : vector<128x1xf32>
    %cst_58 = arith.constant 0.000000e+00 : f32
    %cst_59 = arith.constant 1.700000e+01 : f32
    %116 = vector.broadcast %cst_58 : f32 to vector<128x1xf32>
    %117 = arith.maximumf %116, %115 : vector<128x1xf32>
    %118 = vector.broadcast %cst_59 : f32 to vector<128x1xf32>
    %119 = arith.minimumf %118, %117 : vector<128x1xf32>
    %cst_60 = arith.constant 1.000000e+00 : f32
    %120 = vector.broadcast %cst_60 : f32 to vector<128x1xf32>
    %121 = arith.addf %6, %120 : vector<128x1xf32>
    %122 = vector.extract_strided_slice %8 {offsets = [0, 11], sizes = [128, 1], strides = [1, 1]} : vector<128x27xf32> to vector<128x1xf32>
    %123 = arith.addf %121, %122 : vector<128x1xf32>
    %cst_61 = arith.constant 0.000000e+00 : f32
    %cst_62 = arith.constant 1.700000e+01 : f32
    %124 = vector.broadcast %cst_61 : f32 to vector<128x1xf32>
    %125 = arith.maximumf %124, %123 : vector<128x1xf32>
    %126 = vector.broadcast %cst_62 : f32 to vector<128x1xf32>
    %127 = arith.minimumf %126, %125 : vector<128x1xf32>
    %128 = vector.broadcast %4 : vector<1x19xf32> to vector<128x19xf32>
    %129 = vector.broadcast %119 : vector<128x1xf32> to vector<128x19xf32>
    %130 = arith.subf %128, %129 : vector<128x19xf32>
    %131 = math.absf %130 : vector<128x19xf32>
    %cst_63 = arith.constant 1.000000e+00 : f32
    %132 = vector.broadcast %cst_63 : f32 to vector<128x19xf32>
    %133 = arith.subf %132, %131 : vector<128x19xf32>
    %cst_64 = arith.constant 0.000000e+00 : f32
    %134 = vector.broadcast %cst_64 : f32 to vector<128x19xf32>
    %135 = arith.maximumf %134, %133 : vector<128x19xf32>
    %136 = vector.extract_strided_slice %15 {offsets = [0, 2], sizes = [128, 1], strides = [1, 1]} : vector<128x9xf32> to vector<128x1xf32>
    %137 = vector.broadcast %136 : vector<128x1xf32> to vector<128x19xf32>
    %138 = arith.mulf %135, %137 : vector<128x19xf32>
    %cst_65 = arith.constant dense<0.000000e+00> : vector<128x128xf32>
    %139 = tpu.matmul %138, %1, %cst_65 {dimension_numbers = #tpu.dot_dimension_numbers<[1], [0], [0], [1], [0, 0, 1, 1], [], []>} : vector<128x19xf32>, vector<19x128xf32>, vector<128x128xf32> -> vector<128x128xf32>
    %140 = vector.broadcast %2 : vector<1x128xf32> to vector<128x128xf32>
    %141 = vector.broadcast %127 : vector<128x1xf32> to vector<128x128xf32>
    %142 = arith.subf %140, %141 : vector<128x128xf32>
    %143 = math.absf %142 : vector<128x128xf32>
    %cst_66 = arith.constant 1.000000e+00 : f32
    %144 = vector.broadcast %cst_66 : f32 to vector<128x128xf32>
    %145 = arith.subf %144, %143 : vector<128x128xf32>
    %cst_67 = arith.constant 0.000000e+00 : f32
    %146 = vector.broadcast %cst_67 : f32 to vector<128x128xf32>
    %147 = arith.maximumf %146, %145 : vector<128x128xf32>
    %c0_68 = arith.constant 0 : index
    %c0_69 = arith.constant 0 : index
    %c0_70 = arith.constant 0 : index
    %148 = vector.load %arg7[%c0_68, %c0_69, %c0_70] : memref<1x128x128xf32, #tpu.memory_space<vmem>>, vector<1x128x128xf32>
    %149 = vector.shape_cast %148 : vector<1x128x128xf32> to vector<128x128xf32>
    %150 = arith.mulf %147, %139 : vector<128x128xf32>
    %c2 = arith.constant 2 : index
    %c0_71 = arith.constant 0 : index
    %c0_72 = arith.constant 0 : index
    %151 = vector.load %arg5[%c2, %c0_71, %c0_72] : memref<9x128x128xf32, #tpu.memory_space<vmem>>, vector<1x128x128xf32>
    %152 = vector.shape_cast %151 : vector<1x128x128xf32> to vector<128x128xf32>
    %cst_73 = arith.constant dense<0.000000e+00> : vector<128x128xf32>
    %153 = tpu.matmul %150, %152, %cst_73 {dimension_numbers = #tpu.dot_dimension_numbers<[1], [0], [0], [1], [0, 0, 1, 1], [], []>} : vector<128x128xf32>, vector<128x128xf32>, vector<128x128xf32> -> vector<128x128xf32>
    %154 = arith.addf %149, %153 : vector<128x128xf32>
    %c0_74 = arith.constant 0 : index
    %c0_75 = arith.constant 0 : index
    %c0_76 = arith.constant 0 : index
    %155 = vector.load %arg7[%c0_74, %c0_75, %c0_76] : memref<1x128x128xf32, #tpu.memory_space<vmem>>, vector<1x128x128xf32>
    %156 = vector.shape_cast %155 : vector<1x128x128xf32> to vector<128x128xf32>
    %157 = vector.shape_cast %154 : vector<128x128xf32> to vector<1x128x128xf32>
    tpu.vector_store %arg7[%c0_74, %c0_75, %c0_76], %157 {strides = array<i32>} : memref<1x128x128xf32, #tpu.memory_space<vmem>>, vector<1x128x128xf32>,
    %cst_77 = arith.constant 0.000000e+00 : f32
    %158 = vector.broadcast %cst_77 : f32 to vector<128x1xf32>
    %159 = arith.addf %5, %158 : vector<128x1xf32>
    %160 = vector.extract_strided_slice %8 {offsets = [0, 3], sizes = [128, 1], strides = [1, 1]} : vector<128x27xf32> to vector<128x1xf32>
    %161 = arith.addf %159, %160 : vector<128x1xf32>
    %cst_78 = arith.constant 0.000000e+00 : f32
    %cst_79 = arith.constant 1.700000e+01 : f32
    %162 = vector.broadcast %cst_78 : f32 to vector<128x1xf32>
    %163 = arith.maximumf %162, %161 : vector<128x1xf32>
    %164 = vector.broadcast %cst_79 : f32 to vector<128x1xf32>
    %165 = arith.minimumf %164, %163 : vector<128x1xf32>
    %cst_80 = arith.constant -1.000000e+00 : f32
    %166 = vector.broadcast %cst_80 : f32 to vector<128x1xf32>
    %167 = arith.addf %6, %166 : vector<128x1xf32>
    %168 = vector.extract_strided_slice %8 {offsets = [0, 12], sizes = [128, 1], strides = [1, 1]} : vector<128x27xf32> to vector<128x1xf32>
    %169 = arith.addf %167, %168 : vector<128x1xf32>
    %cst_81 = arith.constant 0.000000e+00 : f32
    %cst_82 = arith.constant 1.700000e+01 : f32
    %170 = vector.broadcast %cst_81 : f32 to vector<128x1xf32>
    %171 = arith.maximumf %170, %169 : vector<128x1xf32>
    %172 = vector.broadcast %cst_82 : f32 to vector<128x1xf32>
    %173 = arith.minimumf %172, %171 : vector<128x1xf32>
    %174 = vector.broadcast %4 : vector<1x19xf32> to vector<128x19xf32>
    %175 = vector.broadcast %165 : vector<128x1xf32> to vector<128x19xf32>
    %176 = arith.subf %174, %175 : vector<128x19xf32>
    %177 = math.absf %176 : vector<128x19xf32>
    %cst_83 = arith.constant 1.000000e+00 : f32
    %178 = vector.broadcast %cst_83 : f32 to vector<128x19xf32>
    %179 = arith.subf %178, %177 : vector<128x19xf32>
    %cst_84 = arith.constant 0.000000e+00 : f32
    %180 = vector.broadcast %cst_84 : f32 to vector<128x19xf32>
    %181 = arith.maximumf %180, %179 : vector<128x19xf32>
    %182 = vector.extract_strided_slice %15 {offsets = [0, 3], sizes = [128, 1], strides = [1, 1]} : vector<128x9xf32> to vector<128x1xf32>
    %183 = vector.broadcast %182 : vector<128x1xf32> to vector<128x19xf32>
    %184 = arith.mulf %181, %183 : vector<128x19xf32>
    %cst_85 = arith.constant dense<0.000000e+00> : vector<128x128xf32>
    %185 = tpu.matmul %184, %1, %cst_85 {dimension_numbers = #tpu.dot_dimension_numbers<[1], [0], [0], [1], [0, 0, 1, 1], [], []>} : vector<128x19xf32>, vector<19x128xf32>, vector<128x128xf32> -> vector<128x128xf32>
    %186 = vector.broadcast %2 : vector<1x128xf32> to vector<128x128xf32>
    %187 = vector.broadcast %173 : vector<128x1xf32> to vector<128x128xf32>
    %188 = arith.subf %186, %187 : vector<128x128xf32>
    %189 = math.absf %188 : vector<128x128xf32>
    %cst_86 = arith.constant 1.000000e+00 : f32
    %190 = vector.broadcast %cst_86 : f32 to vector<128x128xf32>
    %191 = arith.subf %190, %189 : vector<128x128xf32>
    %cst_87 = arith.constant 0.000000e+00 : f32
    %192 = vector.broadcast %cst_87 : f32 to vector<128x128xf32>
    %193 = arith.maximumf %192, %191 : vector<128x128xf32>
    %c0_88 = arith.constant 0 : index
    %c0_89 = arith.constant 0 : index
    %c0_90 = arith.constant 0 : index
    %194 = vector.load %arg7[%c0_88, %c0_89, %c0_90] : memref<1x128x128xf32, #tpu.memory_space<vmem>>, vector<1x128x128xf32>
    %195 = vector.shape_cast %194 : vector<1x128x128xf32> to vector<128x128xf32>
    %196 = arith.mulf %193, %185 : vector<128x128xf32>
    %c3 = arith.constant 3 : index
    %c0_91 = arith.constant 0 : index
    %c0_92 = arith.constant 0 : index
    %197 = vector.load %arg5[%c3, %c0_91, %c0_92] : memref<9x128x128xf32, #tpu.memory_space<vmem>>, vector<1x128x128xf32>
    %198 = vector.shape_cast %197 : vector<1x128x128xf32> to vector<128x128xf32>
    %cst_93 = arith.constant dense<0.000000e+00> : vector<128x128xf32>
    %199 = tpu.matmul %196, %198, %cst_93 {dimension_numbers = #tpu.dot_dimension_numbers<[1], [0], [0], [1], [0, 0, 1, 1], [], []>} : vector<128x128xf32>, vector<128x128xf32>, vector<128x128xf32> -> vector<128x128xf32>
    %200 = arith.addf %195, %199 : vector<128x128xf32>
    %c0_94 = arith.constant 0 : index
    %c0_95 = arith.constant 0 : index
    %c0_96 = arith.constant 0 : index
    %201 = vector.load %arg7[%c0_94, %c0_95, %c0_96] : memref<1x128x128xf32, #tpu.memory_space<vmem>>, vector<1x128x128xf32>
    %202 = vector.shape_cast %201 : vector<1x128x128xf32> to vector<128x128xf32>
    %203 = vector.shape_cast %200 : vector<128x128xf32> to vector<1x128x128xf32>
    tpu.vector_store %arg7[%c0_94, %c0_95, %c0_96], %203 {strides = array<i32>} : memref<1x128x128xf32, #tpu.memory_space<vmem>>, vector<1x128x128xf32>,
    %cst_97 = arith.constant 0.000000e+00 : f32
    %204 = vector.broadcast %cst_97 : f32 to vector<128x1xf32>
    %205 = arith.addf %5, %204 : vector<128x1xf32>
    %206 = vector.extract_strided_slice %8 {offsets = [0, 4], sizes = [128, 1], strides = [1, 1]} : vector<128x27xf32> to vector<128x1xf32>
    %207 = arith.addf %205, %206 : vector<128x1xf32>
    %cst_98 = arith.constant 0.000000e+00 : f32
    %cst_99 = arith.constant 1.700000e+01 : f32
    %208 = vector.broadcast %cst_98 : f32 to vector<128x1xf32>
    %209 = arith.maximumf %208, %207 : vector<128x1xf32>
    %210 = vector.broadcast %cst_99 : f32 to vector<128x1xf32>
    %211 = arith.minimumf %210, %209 : vector<128x1xf32>
    %cst_100 = arith.constant 0.000000e+00 : f32
    %212 = vector.broadcast %cst_100 : f32 to vector<128x1xf32>
    %213 = arith.addf %6, %212 : vector<128x1xf32>
    %214 = vector.extract_strided_slice %8 {offsets = [0, 13], sizes = [128, 1], strides = [1, 1]} : vector<128x27xf32> to vector<128x1xf32>
    %215 = arith.addf %213, %214 : vector<128x1xf32>
    %cst_101 = arith.constant 0.000000e+00 : f32
    %cst_102 = arith.constant 1.700000e+01 : f32
    %216 = vector.broadcast %cst_101 : f32 to vector<128x1xf32>
    %217 = arith.maximumf %216, %215 : vector<128x1xf32>
    %218 = vector.broadcast %cst_102 : f32 to vector<128x1xf32>
    %219 = arith.minimumf %218, %217 : vector<128x1xf32>
    %220 = vector.broadcast %4 : vector<1x19xf32> to vector<128x19xf32>
    %221 = vector.broadcast %211 : vector<128x1xf32> to vector<128x19xf32>
    %222 = arith.subf %220, %221 : vector<128x19xf32>
    %223 = math.absf %222 : vector<128x19xf32>
    %cst_103 = arith.constant 1.000000e+00 : f32
    %224 = vector.broadcast %cst_103 : f32 to vector<128x19xf32>
    %225 = arith.subf %224, %223 : vector<128x19xf32>
    %cst_104 = arith.constant 0.000000e+00 : f32
    %226 = vector.broadcast %cst_104 : f32 to vector<128x19xf32>
    %227 = arith.maximumf %226, %225 : vector<128x19xf32>
    %228 = vector.extract_strided_slice %15 {offsets = [0, 4], sizes = [128, 1], strides = [1, 1]} : vector<128x9xf32> to vector<128x1xf32>
    %229 = vector.broadcast %228 : vector<128x1xf32> to vector<128x19xf32>
    %230 = arith.mulf %227, %229 : vector<128x19xf32>
    %cst_105 = arith.constant dense<0.000000e+00> : vector<128x128xf32>
    %231 = tpu.matmul %230, %1, %cst_105 {dimension_numbers = #tpu.dot_dimension_numbers<[1], [0], [0], [1], [0, 0, 1, 1], [], []>} : vector<128x19xf32>, vector<19x128xf32>, vector<128x128xf32> -> vector<128x128xf32>
    %232 = vector.broadcast %2 : vector<1x128xf32> to vector<128x128xf32>
    %233 = vector.broadcast %219 : vector<128x1xf32> to vector<128x128xf32>
    %234 = arith.subf %232, %233 : vector<128x128xf32>
    %235 = math.absf %234 : vector<128x128xf32>
    %cst_106 = arith.constant 1.000000e+00 : f32
    %236 = vector.broadcast %cst_106 : f32 to vector<128x128xf32>
    %237 = arith.subf %236, %235 : vector<128x128xf32>
    %cst_107 = arith.constant 0.000000e+00 : f32
    %238 = vector.broadcast %cst_107 : f32 to vector<128x128xf32>
    %239 = arith.maximumf %238, %237 : vector<128x128xf32>
    %c0_108 = arith.constant 0 : index
    %c0_109 = arith.constant 0 : index
    %c0_110 = arith.constant 0 : index
    %240 = vector.load %arg7[%c0_108, %c0_109, %c0_110] : memref<1x128x128xf32, #tpu.memory_space<vmem>>, vector<1x128x128xf32>
    %241 = vector.shape_cast %240 : vector<1x128x128xf32> to vector<128x128xf32>
    %242 = arith.mulf %239, %231 : vector<128x128xf32>
    %c4 = arith.constant 4 : index
    %c0_111 = arith.constant 0 : index
    %c0_112 = arith.constant 0 : index
    %243 = vector.load %arg5[%c4, %c0_111, %c0_112] : memref<9x128x128xf32, #tpu.memory_space<vmem>>, vector<1x128x128xf32>
    %244 = vector.shape_cast %243 : vector<1x128x128xf32> to vector<128x128xf32>
    %cst_113 = arith.constant dense<0.000000e+00> : vector<128x128xf32>
    %245 = tpu.matmul %242, %244, %cst_113 {dimension_numbers = #tpu.dot_dimension_numbers<[1], [0], [0], [1], [0, 0, 1, 1], [], []>} : vector<128x128xf32>, vector<128x128xf32>, vector<128x128xf32> -> vector<128x128xf32>
    %246 = arith.addf %241, %245 : vector<128x128xf32>
    %c0_114 = arith.constant 0 : index
    %c0_115 = arith.constant 0 : index
    %c0_116 = arith.constant 0 : index
    %247 = vector.load %arg7[%c0_114, %c0_115, %c0_116] : memref<1x128x128xf32, #tpu.memory_space<vmem>>, vector<1x128x128xf32>
    %248 = vector.shape_cast %247 : vector<1x128x128xf32> to vector<128x128xf32>
    %249 = vector.shape_cast %246 : vector<128x128xf32> to vector<1x128x128xf32>
    tpu.vector_store %arg7[%c0_114, %c0_115, %c0_116], %249 {strides = array<i32>} : memref<1x128x128xf32, #tpu.memory_space<vmem>>, vector<1x128x128xf32>,
    %cst_117 = arith.constant 0.000000e+00 : f32
    %250 = vector.broadcast %cst_117 : f32 to vector<128x1xf32>
    %251 = arith.addf %5, %250 : vector<128x1xf32>
    %252 = vector.extract_strided_slice %8 {offsets = [0, 5], sizes = [128, 1], strides = [1, 1]} : vector<128x27xf32> to vector<128x1xf32>
    %253 = arith.addf %251, %252 : vector<128x1xf32>
    %cst_118 = arith.constant 0.000000e+00 : f32
    %cst_119 = arith.constant 1.700000e+01 : f32
    %254 = vector.broadcast %cst_118 : f32 to vector<128x1xf32>
    %255 = arith.maximumf %254, %253 : vector<128x1xf32>
    %256 = vector.broadcast %cst_119 : f32 to vector<128x1xf32>
    %257 = arith.minimumf %256, %255 : vector<128x1xf32>
    %cst_120 = arith.constant 1.000000e+00 : f32
    %258 = vector.broadcast %cst_120 : f32 to vector<128x1xf32>
    %259 = arith.addf %6, %258 : vector<128x1xf32>
    %260 = vector.extract_strided_slice %8 {offsets = [0, 14], sizes = [128, 1], strides = [1, 1]} : vector<128x27xf32> to vector<128x1xf32>
    %261 = arith.addf %259, %260 : vector<128x1xf32>
    %cst_121 = arith.constant 0.000000e+00 : f32
    %cst_122 = arith.constant 1.700000e+01 : f32
    %262 = vector.broadcast %cst_121 : f32 to vector<128x1xf32>
    %263 = arith.maximumf %262, %261 : vector<128x1xf32>
    %264 = vector.broadcast %cst_122 : f32 to vector<128x1xf32>
    %265 = arith.minimumf %264, %263 : vector<128x1xf32>
    %266 = vector.broadcast %4 : vector<1x19xf32> to vector<128x19xf32>
    %267 = vector.broadcast %257 : vector<128x1xf32> to vector<128x19xf32>
    %268 = arith.subf %266, %267 : vector<128x19xf32>
    %269 = math.absf %268 : vector<128x19xf32>
    %cst_123 = arith.constant 1.000000e+00 : f32
    %270 = vector.broadcast %cst_123 : f32 to vector<128x19xf32>
    %271 = arith.subf %270, %269 : vector<128x19xf32>
    %cst_124 = arith.constant 0.000000e+00 : f32
    %272 = vector.broadcast %cst_124 : f32 to vector<128x19xf32>
    %273 = arith.maximumf %272, %271 : vector<128x19xf32>
    %274 = vector.extract_strided_slice %15 {offsets = [0, 5], sizes = [128, 1], strides = [1, 1]} : vector<128x9xf32> to vector<128x1xf32>
    %275 = vector.broadcast %274 : vector<128x1xf32> to vector<128x19xf32>
    %276 = arith.mulf %273, %275 : vector<128x19xf32>
    %cst_125 = arith.constant dense<0.000000e+00> : vector<128x128xf32>
    %277 = tpu.matmul %276, %1, %cst_125 {dimension_numbers = #tpu.dot_dimension_numbers<[1], [0], [0], [1], [0, 0, 1, 1], [], []>} : vector<128x19xf32>, vector<19x128xf32>, vector<128x128xf32> -> vector<128x128xf32>
    %278 = vector.broadcast %2 : vector<1x128xf32> to vector<128x128xf32>
    %279 = vector.broadcast %265 : vector<128x1xf32> to vector<128x128xf32>
    %280 = arith.subf %278, %279 : vector<128x128xf32>
    %281 = math.absf %280 : vector<128x128xf32>
    %cst_126 = arith.constant 1.000000e+00 : f32
    %282 = vector.broadcast %cst_126 : f32 to vector<128x128xf32>
    %283 = arith.subf %282, %281 : vector<128x128xf32>
    %cst_127 = arith.constant 0.000000e+00 : f32
    %284 = vector.broadcast %cst_127 : f32 to vector<128x128xf32>
    %285 = arith.maximumf %284, %283 : vector<128x128xf32>
    %c0_128 = arith.constant 0 : index
    %c0_129 = arith.constant 0 : index
    %c0_130 = arith.constant 0 : index
    %286 = vector.load %arg7[%c0_128, %c0_129, %c0_130] : memref<1x128x128xf32, #tpu.memory_space<vmem>>, vector<1x128x128xf32>
    %287 = vector.shape_cast %286 : vector<1x128x128xf32> to vector<128x128xf32>
    %288 = arith.mulf %285, %277 : vector<128x128xf32>
    %c5 = arith.constant 5 : index
    %c0_131 = arith.constant 0 : index
    %c0_132 = arith.constant 0 : index
    %289 = vector.load %arg5[%c5, %c0_131, %c0_132] : memref<9x128x128xf32, #tpu.memory_space<vmem>>, vector<1x128x128xf32>
    %290 = vector.shape_cast %289 : vector<1x128x128xf32> to vector<128x128xf32>
    %cst_133 = arith.constant dense<0.000000e+00> : vector<128x128xf32>
    %291 = tpu.matmul %288, %290, %cst_133 {dimension_numbers = #tpu.dot_dimension_numbers<[1], [0], [0], [1], [0, 0, 1, 1], [], []>} : vector<128x128xf32>, vector<128x128xf32>, vector<128x128xf32> -> vector<128x128xf32>
    %292 = arith.addf %287, %291 : vector<128x128xf32>
    %c0_134 = arith.constant 0 : index
    %c0_135 = arith.constant 0 : index
    %c0_136 = arith.constant 0 : index
    %293 = vector.load %arg7[%c0_134, %c0_135, %c0_136] : memref<1x128x128xf32, #tpu.memory_space<vmem>>, vector<1x128x128xf32>
    %294 = vector.shape_cast %293 : vector<1x128x128xf32> to vector<128x128xf32>
    %295 = vector.shape_cast %292 : vector<128x128xf32> to vector<1x128x128xf32>
    tpu.vector_store %arg7[%c0_134, %c0_135, %c0_136], %295 {strides = array<i32>} : memref<1x128x128xf32, #tpu.memory_space<vmem>>, vector<1x128x128xf32>,
    %cst_137 = arith.constant 1.000000e+00 : f32
    %296 = vector.broadcast %cst_137 : f32 to vector<128x1xf32>
    %297 = arith.addf %5, %296 : vector<128x1xf32>
    %298 = vector.extract_strided_slice %8 {offsets = [0, 6], sizes = [128, 1], strides = [1, 1]} : vector<128x27xf32> to vector<128x1xf32>
    %299 = arith.addf %297, %298 : vector<128x1xf32>
    %cst_138 = arith.constant 0.000000e+00 : f32
    %cst_139 = arith.constant 1.700000e+01 : f32
    %300 = vector.broadcast %cst_138 : f32 to vector<128x1xf32>
    %301 = arith.maximumf %300, %299 : vector<128x1xf32>
    %302 = vector.broadcast %cst_139 : f32 to vector<128x1xf32>
    %303 = arith.minimumf %302, %301 : vector<128x1xf32>
    %cst_140 = arith.constant -1.000000e+00 : f32
    %304 = vector.broadcast %cst_140 : f32 to vector<128x1xf32>
    %305 = arith.addf %6, %304 : vector<128x1xf32>
    %306 = vector.extract_strided_slice %8 {offsets = [0, 15], sizes = [128, 1], strides = [1, 1]} : vector<128x27xf32> to vector<128x1xf32>
    %307 = arith.addf %305, %306 : vector<128x1xf32>
    %cst_141 = arith.constant 0.000000e+00 : f32
    %cst_142 = arith.constant 1.700000e+01 : f32
    %308 = vector.broadcast %cst_141 : f32 to vector<128x1xf32>
    %309 = arith.maximumf %308, %307 : vector<128x1xf32>
    %310 = vector.broadcast %cst_142 : f32 to vector<128x1xf32>
    %311 = arith.minimumf %310, %309 : vector<128x1xf32>
    %312 = vector.broadcast %4 : vector<1x19xf32> to vector<128x19xf32>
    %313 = vector.broadcast %303 : vector<128x1xf32> to vector<128x19xf32>
    %314 = arith.subf %312, %313 : vector<128x19xf32>
    %315 = math.absf %314 : vector<128x19xf32>
    %cst_143 = arith.constant 1.000000e+00 : f32
    %316 = vector.broadcast %cst_143 : f32 to vector<128x19xf32>
    %317 = arith.subf %316, %315 : vector<128x19xf32>
    %cst_144 = arith.constant 0.000000e+00 : f32
    %318 = vector.broadcast %cst_144 : f32 to vector<128x19xf32>
    %319 = arith.maximumf %318, %317 : vector<128x19xf32>
    %320 = vector.extract_strided_slice %15 {offsets = [0, 6], sizes = [128, 1], strides = [1, 1]} : vector<128x9xf32> to vector<128x1xf32>
    %321 = vector.broadcast %320 : vector<128x1xf32> to vector<128x19xf32>
    %322 = arith.mulf %319, %321 : vector<128x19xf32>
    %cst_145 = arith.constant dense<0.000000e+00> : vector<128x128xf32>
    %323 = tpu.matmul %322, %1, %cst_145 {dimension_numbers = #tpu.dot_dimension_numbers<[1], [0], [0], [1], [0, 0, 1, 1], [], []>} : vector<128x19xf32>, vector<19x128xf32>, vector<128x128xf32> -> vector<128x128xf32>
    %324 = vector.broadcast %2 : vector<1x128xf32> to vector<128x128xf32>
    %325 = vector.broadcast %311 : vector<128x1xf32> to vector<128x128xf32>
    %326 = arith.subf %324, %325 : vector<128x128xf32>
    %327 = math.absf %326 : vector<128x128xf32>
    %cst_146 = arith.constant 1.000000e+00 : f32
    %328 = vector.broadcast %cst_146 : f32 to vector<128x128xf32>
    %329 = arith.subf %328, %327 : vector<128x128xf32>
    %cst_147 = arith.constant 0.000000e+00 : f32
    %330 = vector.broadcast %cst_147 : f32 to vector<128x128xf32>
    %331 = arith.maximumf %330, %329 : vector<128x128xf32>
    %c0_148 = arith.constant 0 : index
    %c0_149 = arith.constant 0 : index
    %c0_150 = arith.constant 0 : index
    %332 = vector.load %arg7[%c0_148, %c0_149, %c0_150] : memref<1x128x128xf32, #tpu.memory_space<vmem>>, vector<1x128x128xf32>
    %333 = vector.shape_cast %332 : vector<1x128x128xf32> to vector<128x128xf32>
    %334 = arith.mulf %331, %323 : vector<128x128xf32>
    %c6 = arith.constant 6 : index
    %c0_151 = arith.constant 0 : index
    %c0_152 = arith.constant 0 : index
    %335 = vector.load %arg5[%c6, %c0_151, %c0_152] : memref<9x128x128xf32, #tpu.memory_space<vmem>>, vector<1x128x128xf32>
    %336 = vector.shape_cast %335 : vector<1x128x128xf32> to vector<128x128xf32>
    %cst_153 = arith.constant dense<0.000000e+00> : vector<128x128xf32>
    %337 = tpu.matmul %334, %336, %cst_153 {dimension_numbers = #tpu.dot_dimension_numbers<[1], [0], [0], [1], [0, 0, 1, 1], [], []>} : vector<128x128xf32>, vector<128x128xf32>, vector<128x128xf32> -> vector<128x128xf32>
    %338 = arith.addf %333, %337 : vector<128x128xf32>
    %c0_154 = arith.constant 0 : index
    %c0_155 = arith.constant 0 : index
    %c0_156 = arith.constant 0 : index
    %339 = vector.load %arg7[%c0_154, %c0_155, %c0_156] : memref<1x128x128xf32, #tpu.memory_space<vmem>>, vector<1x128x128xf32>
    %340 = vector.shape_cast %339 : vector<1x128x128xf32> to vector<128x128xf32>
    %341 = vector.shape_cast %338 : vector<128x128xf32> to vector<1x128x128xf32>
    tpu.vector_store %arg7[%c0_154, %c0_155, %c0_156], %341 {strides = array<i32>} : memref<1x128x128xf32, #tpu.memory_space<vmem>>, vector<1x128x128xf32>,
    %cst_157 = arith.constant 1.000000e+00 : f32
    %342 = vector.broadcast %cst_157 : f32 to vector<128x1xf32>
    %343 = arith.addf %5, %342 : vector<128x1xf32>
    %344 = vector.extract_strided_slice %8 {offsets = [0, 7], sizes = [128, 1], strides = [1, 1]} : vector<128x27xf32> to vector<128x1xf32>
    %345 = arith.addf %343, %344 : vector<128x1xf32>
    %cst_158 = arith.constant 0.000000e+00 : f32
    %cst_159 = arith.constant 1.700000e+01 : f32
    %346 = vector.broadcast %cst_158 : f32 to vector<128x1xf32>
    %347 = arith.maximumf %346, %345 : vector<128x1xf32>
    %348 = vector.broadcast %cst_159 : f32 to vector<128x1xf32>
    %349 = arith.minimumf %348, %347 : vector<128x1xf32>
    %cst_160 = arith.constant 0.000000e+00 : f32
    %350 = vector.broadcast %cst_160 : f32 to vector<128x1xf32>
    %351 = arith.addf %6, %350 : vector<128x1xf32>
    %352 = vector.extract_strided_slice %8 {offsets = [0, 16], sizes = [128, 1], strides = [1, 1]} : vector<128x27xf32> to vector<128x1xf32>
    %353 = arith.addf %351, %352 : vector<128x1xf32>
    %cst_161 = arith.constant 0.000000e+00 : f32
    %cst_162 = arith.constant 1.700000e+01 : f32
    %354 = vector.broadcast %cst_161 : f32 to vector<128x1xf32>
    %355 = arith.maximumf %354, %353 : vector<128x1xf32>
    %356 = vector.broadcast %cst_162 : f32 to vector<128x1xf32>
    %357 = arith.minimumf %356, %355 : vector<128x1xf32>
    %358 = vector.broadcast %4 : vector<1x19xf32> to vector<128x19xf32>
    %359 = vector.broadcast %349 : vector<128x1xf32> to vector<128x19xf32>
    %360 = arith.subf %358, %359 : vector<128x19xf32>
    %361 = math.absf %360 : vector<128x19xf32>
    %cst_163 = arith.constant 1.000000e+00 : f32
    %362 = vector.broadcast %cst_163 : f32 to vector<128x19xf32>
    %363 = arith.subf %362, %361 : vector<128x19xf32>
    %cst_164 = arith.constant 0.000000e+00 : f32
    %364 = vector.broadcast %cst_164 : f32 to vector<128x19xf32>
    %365 = arith.maximumf %364, %363 : vector<128x19xf32>
    %366 = vector.extract_strided_slice %15 {offsets = [0, 7], sizes = [128, 1], strides = [1, 1]} : vector<128x9xf32> to vector<128x1xf32>
    %367 = vector.broadcast %366 : vector<128x1xf32> to vector<128x19xf32>
    %368 = arith.mulf %365, %367 : vector<128x19xf32>
    %cst_165 = arith.constant dense<0.000000e+00> : vector<128x128xf32>
    %369 = tpu.matmul %368, %1, %cst_165 {dimension_numbers = #tpu.dot_dimension_numbers<[1], [0], [0], [1], [0, 0, 1, 1], [], []>} : vector<128x19xf32>, vector<19x128xf32>, vector<128x128xf32> -> vector<128x128xf32>
    %370 = vector.broadcast %2 : vector<1x128xf32> to vector<128x128xf32>
    %371 = vector.broadcast %357 : vector<128x1xf32> to vector<128x128xf32>
    %372 = arith.subf %370, %371 : vector<128x128xf32>
    %373 = math.absf %372 : vector<128x128xf32>
    %cst_166 = arith.constant 1.000000e+00 : f32
    %374 = vector.broadcast %cst_166 : f32 to vector<128x128xf32>
    %375 = arith.subf %374, %373 : vector<128x128xf32>
    %cst_167 = arith.constant 0.000000e+00 : f32
    %376 = vector.broadcast %cst_167 : f32 to vector<128x128xf32>
    %377 = arith.maximumf %376, %375 : vector<128x128xf32>
    %c0_168 = arith.constant 0 : index
    %c0_169 = arith.constant 0 : index
    %c0_170 = arith.constant 0 : index
    %378 = vector.load %arg7[%c0_168, %c0_169, %c0_170] : memref<1x128x128xf32, #tpu.memory_space<vmem>>, vector<1x128x128xf32>
    %379 = vector.shape_cast %378 : vector<1x128x128xf32> to vector<128x128xf32>
    %380 = arith.mulf %377, %369 : vector<128x128xf32>
    %c7 = arith.constant 7 : index
    %c0_171 = arith.constant 0 : index
    %c0_172 = arith.constant 0 : index
    %381 = vector.load %arg5[%c7, %c0_171, %c0_172] : memref<9x128x128xf32, #tpu.memory_space<vmem>>, vector<1x128x128xf32>
    %382 = vector.shape_cast %381 : vector<1x128x128xf32> to vector<128x128xf32>
    %cst_173 = arith.constant dense<0.000000e+00> : vector<128x128xf32>
    %383 = tpu.matmul %380, %382, %cst_173 {dimension_numbers = #tpu.dot_dimension_numbers<[1], [0], [0], [1], [0, 0, 1, 1], [], []>} : vector<128x128xf32>, vector<128x128xf32>, vector<128x128xf32> -> vector<128x128xf32>
    %384 = arith.addf %379, %383 : vector<128x128xf32>
    %c0_174 = arith.constant 0 : index
    %c0_175 = arith.constant 0 : index
    %c0_176 = arith.constant 0 : index
    %385 = vector.load %arg7[%c0_174, %c0_175, %c0_176] : memref<1x128x128xf32, #tpu.memory_space<vmem>>, vector<1x128x128xf32>
    %386 = vector.shape_cast %385 : vector<1x128x128xf32> to vector<128x128xf32>
    %387 = vector.shape_cast %384 : vector<128x128xf32> to vector<1x128x128xf32>
    tpu.vector_store %arg7[%c0_174, %c0_175, %c0_176], %387 {strides = array<i32>} : memref<1x128x128xf32, #tpu.memory_space<vmem>>, vector<1x128x128xf32>,
    %cst_177 = arith.constant 1.000000e+00 : f32
    %388 = vector.broadcast %cst_177 : f32 to vector<128x1xf32>
    %389 = arith.addf %5, %388 : vector<128x1xf32>
    %390 = vector.extract_strided_slice %8 {offsets = [0, 8], sizes = [128, 1], strides = [1, 1]} : vector<128x27xf32> to vector<128x1xf32>
    %391 = arith.addf %389, %390 : vector<128x1xf32>
    %cst_178 = arith.constant 0.000000e+00 : f32
    %cst_179 = arith.constant 1.700000e+01 : f32
    %392 = vector.broadcast %cst_178 : f32 to vector<128x1xf32>
    %393 = arith.maximumf %392, %391 : vector<128x1xf32>
    %394 = vector.broadcast %cst_179 : f32 to vector<128x1xf32>
    %395 = arith.minimumf %394, %393 : vector<128x1xf32>
    %cst_180 = arith.constant 1.000000e+00 : f32
    %396 = vector.broadcast %cst_180 : f32 to vector<128x1xf32>
    %397 = arith.addf %6, %396 : vector<128x1xf32>
    %398 = vector.extract_strided_slice %8 {offsets = [0, 17], sizes = [128, 1], strides = [1, 1]} : vector<128x27xf32> to vector<128x1xf32>
    %399 = arith.addf %397, %398 : vector<128x1xf32>
    %cst_181 = arith.constant 0.000000e+00 : f32
    %cst_182 = arith.constant 1.700000e+01 : f32
    %400 = vector.broadcast %cst_181 : f32 to vector<128x1xf32>
    %401 = arith.maximumf %400, %399 : vector<128x1xf32>
    %402 = vector.broadcast %cst_182 : f32 to vector<128x1xf32>
    %403 = arith.minimumf %402, %401 : vector<128x1xf32>
    %404 = vector.broadcast %4 : vector<1x19xf32> to vector<128x19xf32>
    %405 = vector.broadcast %395 : vector<128x1xf32> to vector<128x19xf32>
    %406 = arith.subf %404, %405 : vector<128x19xf32>
    %407 = math.absf %406 : vector<128x19xf32>
    %cst_183 = arith.constant 1.000000e+00 : f32
    %408 = vector.broadcast %cst_183 : f32 to vector<128x19xf32>
    %409 = arith.subf %408, %407 : vector<128x19xf32>
    %cst_184 = arith.constant 0.000000e+00 : f32
    %410 = vector.broadcast %cst_184 : f32 to vector<128x19xf32>
    %411 = arith.maximumf %410, %409 : vector<128x19xf32>
    %412 = vector.extract_strided_slice %15 {offsets = [0, 8], sizes = [128, 1], strides = [1, 1]} : vector<128x9xf32> to vector<128x1xf32>
    %413 = vector.broadcast %412 : vector<128x1xf32> to vector<128x19xf32>
    %414 = arith.mulf %411, %413 : vector<128x19xf32>
    %cst_185 = arith.constant dense<0.000000e+00> : vector<128x128xf32>
    %415 = tpu.matmul %414, %1, %cst_185 {dimension_numbers = #tpu.dot_dimension_numbers<[1], [0], [0], [1], [0, 0, 1, 1], [], []>} : vector<128x19xf32>, vector<19x128xf32>, vector<128x128xf32> -> vector<128x128xf32>
    %416 = vector.broadcast %2 : vector<1x128xf32> to vector<128x128xf32>
    %417 = vector.broadcast %403 : vector<128x1xf32> to vector<128x128xf32>
    %418 = arith.subf %416, %417 : vector<128x128xf32>
    %419 = math.absf %418 : vector<128x128xf32>
    %cst_186 = arith.constant 1.000000e+00 : f32
    %420 = vector.broadcast %cst_186 : f32 to vector<128x128xf32>
    %421 = arith.subf %420, %419 : vector<128x128xf32>
    %cst_187 = arith.constant 0.000000e+00 : f32
    %422 = vector.broadcast %cst_187 : f32 to vector<128x128xf32>
    %423 = arith.maximumf %422, %421 : vector<128x128xf32>
    %c0_188 = arith.constant 0 : index
    %c0_189 = arith.constant 0 : index
    %c0_190 = arith.constant 0 : index
    %424 = vector.load %arg7[%c0_188, %c0_189, %c0_190] : memref<1x128x128xf32, #tpu.memory_space<vmem>>, vector<1x128x128xf32>
    %425 = vector.shape_cast %424 : vector<1x128x128xf32> to vector<128x128xf32>
    %426 = arith.mulf %423, %415 : vector<128x128xf32>
    %c8 = arith.constant 8 : index
    %c0_191 = arith.constant 0 : index
    %c0_192 = arith.constant 0 : index
    %427 = vector.load %arg5[%c8, %c0_191, %c0_192] : memref<9x128x128xf32, #tpu.memory_space<vmem>>, vector<1x128x128xf32>
    %428 = vector.shape_cast %427 : vector<1x128x128xf32> to vector<128x128xf32>
    %cst_193 = arith.constant dense<0.000000e+00> : vector<128x128xf32>
    %429 = tpu.matmul %426, %428, %cst_193 {dimension_numbers = #tpu.dot_dimension_numbers<[1], [0], [0], [1], [0, 0, 1, 1], [], []>} : vector<128x128xf32>, vector<128x128xf32>, vector<128x128xf32> -> vector<128x128xf32>
    %430 = arith.addf %425, %429 : vector<128x128xf32>
    %c0_194 = arith.constant 0 : index
    %c0_195 = arith.constant 0 : index
    %c0_196 = arith.constant 0 : index
    %431 = vector.load %arg7[%c0_194, %c0_195, %c0_196] : memref<1x128x128xf32, #tpu.memory_space<vmem>>, vector<1x128x128xf32>
    %432 = vector.shape_cast %431 : vector<1x128x128xf32> to vector<128x128xf32>
    %433 = vector.shape_cast %430 : vector<128x128xf32> to vector<1x128x128xf32>
    tpu.vector_store %arg7[%c0_194, %c0_195, %c0_196], %433 {strides = array<i32>} : memref<1x128x128xf32, #tpu.memory_space<vmem>>, vector<1x128x128xf32>,
    return
  }
  func.func @transform_0(%arg0: i32, %arg1: i32) -> (i32, i32) {
    %c0_i32 = arith.constant 0 : i32
    %c0_i32_0 = arith.constant 0 : i32
    return %arg1, %c0_i32 : i32, i32
  }
  func.func @transform_1(%arg0: i32, %arg1: i32) -> (i32, i32, i32) {
    %c0_i32 = arith.constant 0 : i32
    %c0_i32_0 = arith.constant 0 : i32
    return %arg0, %arg1, %c0_i32 : i32, i32, i32
  }
  func.func @transform_2(%arg0: i32, %arg1: i32) -> (i32, i32, i32) {
    %c0_i32 = arith.constant 0 : i32
    %c0_i32_0 = arith.constant 0 : i32
    %c0_i32_1 = arith.constant 0 : i32
    return %arg0, %c0_i32, %c0_i32_0 : i32, i32, i32
  }
  func.func @transform_3(%arg0: i32, %arg1: i32) -> (i32, i32, i32) {
    %c0_i32 = arith.constant 0 : i32
    %c0_i32_0 = arith.constant 0 : i32
    %c0_i32_1 = arith.constant 0 : i32
    %c0_i32_2 = arith.constant 0 : i32
    return %c0_i32, %c0_i32_0, %c0_i32_1 : i32, i32, i32
  }
  func.func @transform_4(%arg0: i32, %arg1: i32) -> (i32, i32) {
    %c0_i32 = arith.constant 0 : i32
    %c0_i32_0 = arith.constant 0 : i32
    %c0_i32_1 = arith.constant 0 : i32
    return %c0_i32, %c0_i32_0 : i32, i32
  }
  func.func @transform_5(%arg0: i32, %arg1: i32) -> (i32, i32, i32) {
    %c0_i32 = arith.constant 0 : i32
    %c0_i32_0 = arith.constant 0 : i32
    return %arg0, %arg1, %c0_i32 : i32, i32, i32
  }
}

</mosaic_0001>

<llo_original>
// kernel: dcnv2_forward.1
$region0: #{dcnv2_forward.1}
  #allocation0 [shape = 'u32[]', space=smem, size = 0x4, offset = 0x4, fixed_abs, tag = 'smem constant byte address 0x4 - core index']
  #allocation1 [shape = 'u32[72,128]{1,0:T(1,128)}', space=vmem, size = 0x9000, scoped, tag = 'internal scratch']
  %s0 = inlined_call_operand.vmem [shape: f32[256,2], index: 0, kind: input, shape index: {}]
  %s1 = inlined_call_operand.vmem [shape: f32[2,256,27], index: 1, kind: input, shape index: {}]
  %s2 = inlined_call_operand.vmem [shape: f32[2,19,128], index: 2, kind: input, shape index: {}]
  %s3 = inlined_call_operand.vmem [shape: f32[9,128,128], index: 3, kind: input, shape index: {}]
  %s4 = inlined_call_operand.vmem [shape: f32[1,128], index: 4, kind: input, shape index: {}]
  %s5 = inlined_call_operand.vmem [shape: f32[2,256,128], index: 5, kind: output, shape index: {}]
  %s6 = sld [smem:[#allocation0]]
  $region53: #{dcnv2_forward.1} parent=0
    _
  %s8 = ssub.s32 1, %s6
  %s9 = scalar_select 0, %s8, %s6
  loop: start=0, step=1, limit=6
  $region2: #{dcnv2_forward.1} parent=0 // loop_pre_header
    _
  $region3: #{dcnv2_forward.1} parent=0 // loop_header
    %s11 = sphi 0, %s15
    %p12 = scmp.ge.s32.totalorder %s11, 6
    %s18 = sphi 0, %s30
    %s19 = sphi 0, %s26
    %s20 = sphi 0, %s18
    %s21 = sphi 0, %s19
    %s22 = sphi 0, %s20
    %s23 = sphi 0, %s21
    %s33 = sphi 0, %s35
    %s36 = sphi 0, %s33
    %s37 = sphi 0, %s36
    %s53 = sphi 0, %s37
    %s61 = sphi 0, %s63
    %s64 = sphi 0, %s61
    %s65 = sphi 0, %s64
    %s81 = sphi 0, %s65
    %s87 = sphi 0, %s89
    %s90 = sphi 0, %s87
    %s91 = sphi 0, %s90
    %s107 = sphi 0, %s91
    %s111 = sphi 0, %s111
    %s113 = sphi 0, %s111
    %s114 = sphi 0, %s113
    %s128 = sphi 0, %s114
    %s132 = sphi 0, %s132
    %s134 = sphi 0, %s132
    %s135 = sphi 0, %s134
    %s149 = sphi 0, %s135
    %s157 = sphi 0, %s159
    %s160 = sphi 0, %s157
    %s161 = sphi 0, %s160
    %s177 = sphi 0, %s161
  $region4: #{dcnv2_forward.1} parent=0 // loop_header_branch
    %14 = sbr.rel (%p12) target = $region8
  $region5: #{dcnv2_forward.1} parent=0 // loop_body
    %s16 = ssub.s32 %s11, 1
    %s17 = ssub.s32 %s11, 2
    %s24 = sadd.s32 1, %s19
    %p25 = scmp.ge.s32.totalorder %s24, 2
    %s26 = scalar_select %p25, 0, %s24
    %s27 = sadd.s32 1, %s18
    %s28 = scalar_select %p25, %s27, %s18
    %p29 = scmp.ge.s32.totalorder %s28, 2
    %s30 = scalar_select %p29, 0, %s28
    %s31 = ssub.s32 %s19, %s26
    %p32 = scmp.eq.s32.totalorder %s31, 0
    %s34 = sadd.s32 %s33, 1
    %s35 = scalar_select %p32, %s33, %s34
    %p38 = pneg %p32
    %p39 = scmp.eq.s32.totalorder %s11, 3
    %p40 = por %p38, %p39
    %p41 = scmp.ne.s32.totalorder %s33, %s36
    %p42 = scmp.eq.s32.totalorder %s11, 0
    %p43 = por %p41, %p42
    %p44 = scmp.ne.s32.totalorder %s33, %s36
    %p45 = scmp.eq.s32.totalorder %s16, 3
    %p46 = por %p44, %p45
    %p47 = scmp.ne.s32.totalorder %s36, %s37
    %p48 = scmp.eq.s32.totalorder %s16, 0
    %p49 = por %p47, %p48
    %p50 = scmp.ne.s32.totalorder %s36, %s37
    %p51 = scmp.eq.s32.totalorder %s17, 3
    %p52 = por %p50, %p51
    %p54 = scmp.ne.s32.totalorder %s37, %s53
    %p55 = scmp.eq.s32.totalorder %s17, 0
    %p56 = por %p54, %p55
    %s57 = ssub.s32 %s18, %s30
    %s58 = ssub.s32 %s19, %s26
    %s59 = sor.u32 %s57, %s58
    %p60 = scmp.eq.s32.totalorder %s59, 0
    %s62 = sadd.s32 %s61, 1
    %s63 = scalar_select %p60, %s61, %s62
    %p66 = pneg %p60
    %p67 = scmp.eq.s32.totalorder %s11, 3
    %p68 = por %p66, %p67
    %p69 = scmp.ne.s32.totalorder %s61, %s64
    %p70 = scmp.eq.s32.totalorder %s11, 0
    %p71 = por %p69, %p70
    %p72 = scmp.ne.s32.totalorder %s61, %s64
    %p73 = scmp.eq.s32.totalorder %s16, 3
    %p74 = por %p72, %p73
    %p75 = scmp.ne.s32.totalorder %s64, %s65
    %p76 = scmp.eq.s32.totalorder %s16, 0
    %p77 = por %p75, %p76
    %p78 = scmp.ne.s32.totalorder %s64, %s65
    %p79 = scmp.eq.s32.totalorder %s17, 3
    %p80 = por %p78, %p79
    %p82 = scmp.ne.s32.totalorder %s65, %s81
    %p83 = scmp.eq.s32.totalorder %s17, 0
    %p84 = por %p82, %p83
    %s85 = ssub.s32 %s18, %s30
    %p86 = scmp.eq.s32.totalorder %s85, 0
    %s88 = sadd.s32 %s87, 1
    %s89 = scalar_select %p86, %s87, %s88
    %p92 = pneg %p86
    %p93 = scmp.eq.s32.totalorder %s11, 3
    %p94 = por %p92, %p93
    %p95 = scmp.ne.s32.totalorder %s87, %s90
    %p96 = scmp.eq.s32.totalorder %s11, 0
    %p97 = por %p95, %p96
    %p98 = scmp.ne.s32.totalorder %s87, %s90
    %p99 = scmp.eq.s32.totalorder %s16, 3
    %p100 = por %p98, %p99
    %p101 = scmp.ne.s32.totalorder %s90, %s91
    %p102 = scmp.eq.s32.totalorder %s16, 0
    %p103 = por %p101, %p102
    %p104 = scmp.ne.s32.totalorder %s90, %s91
    %p105 = scmp.eq.s32.totalorder %s17, 3
    %p106 = por %p104, %p105
    %p108 = scmp.ne.s32.totalorder %s91, %s107
    %p109 = scmp.eq.s32.totalorder %s17, 0
    %p110 = por %p108, %p109
    %s112 = sadd.s32 %s111, 1
    %p115 = scmp.eq.s32.totalorder %s11, 3
    %p116 = scmp.ne.s32.totalorder %s111, %s113
    %p117 = scmp.eq.s32.totalorder %s11, 0
    %p118 = por %p116, %p117
    %p119 = scmp.ne.s32.totalorder %s111, %s113
    %p120 = scmp.eq.s32.totalorder %s16, 3
    %p121 = por %p119, %p120
    %p122 = scmp.ne.s32.totalorder %s113, %s114
    %p123 = scmp.eq.s32.totalorder %s16, 0
    %p124 = por %p122, %p123
    %p125 = scmp.ne.s32.totalorder %s113, %s114
    %p126 = scmp.eq.s32.totalorder %s17, 3
    %p127 = por %p125, %p126
    %p129 = scmp.ne.s32.totalorder %s114, %s128
    %p130 = scmp.eq.s32.totalorder %s17, 0
    %p131 = por %p129, %p130
    %s133 = sadd.s32 %s132, 1
    %p136 = scmp.eq.s32.totalorder %s11, 3
    %p137 = scmp.ne.s32.totalorder %s132, %s134
    %p138 = scmp.eq.s32.totalorder %s11, 0
    %p139 = por %p137, %p138
    %p140 = scmp.ne.s32.totalorder %s132, %s134
    %p141 = scmp.eq.s32.totalorder %s16, 3
    %p142 = por %p140, %p141
    %p143 = scmp.ne.s32.totalorder %s134, %s135
    %p144 = scmp.eq.s32.totalorder %s16, 0
    %p145 = por %p143, %p144
    %p146 = scmp.ne.s32.totalorder %s134, %s135
    %p147 = scmp.eq.s32.totalorder %s17, 3
    %p148 = por %p146, %p147
    %p150 = scmp.ne.s32.totalorder %s135, %s149
    %p151 = scmp.eq.s32.totalorder %s17, 0
    %p152 = por %p150, %p151
    %s153 = ssub.s32 %s18, %s30
    %s154 = ssub.s32 %s19, %s26
    %s155 = sor.u32 %s153, %s154
    %p156 = scmp.eq.s32.totalorder %s155, 0
    %s158 = sadd.s32 %s157, 1
    %s159 = scalar_select %p156, %s157, %s158
    %p162 = pneg %p156
    %p163 = scmp.eq.s32.totalorder %s11, 3
    %p164 = por %p162, %p163
    %p165 = scmp.ne.s32.totalorder %s157, %s160
    %p166 = scmp.eq.s32.totalorder %s11, 0
    %p167 = por %p165, %p166
    %p168 = scmp.ne.s32.totalorder %s157, %s160
    %p169 = scmp.eq.s32.totalorder %s16, 3
    %p170 = por %p168, %p169
    %p171 = scmp.ne.s32.totalorder %s160, %s161
    %p172 = scmp.eq.s32.totalorder %s16, 0
    %p173 = por %p171, %p172
    %p174 = scmp.ne.s32.totalorder %s160, %s161
    %p175 = scmp.eq.s32.totalorder %s17, 3
    %p176 = por %p174, %p175
    %p178 = scmp.ne.s32.totalorder %s161, %s177
    %p179 = scmp.eq.s32.totalorder %s17, 0
    %p180 = por %p178, %p179
    %p181 = scmp.le.s32.totalorder 1, %s11
    %p182 = scmp.lt.s32.totalorder %s11, 5
    %p183 = pnand %p181, %p182
    %p184 = pneg %p183
    // Predicated region
    $region9: #{dcnv2_forward.1} parent=5 // pred_check
      _
    $region10: #{dcnv2_forward.1} parent=5 // pred_check_branch
      %186 = sbr.rel (%p183) target = $region12
    $region11: #{dcnv2_forward.1} parent=5 // pred_region
      %s187 = ssub.s32 %s11, 1
      // Predicated region
      $region13: #{dcnv2_forward.1} parent=11 // pred_check
        %p188 = pneg %p124
      $region14: #{dcnv2_forward.1} parent=11 // pred_check_branch
        %190 = sbr.rel (%p188) target = $region16
      $region15: #{dcnv2_forward.1} parent=11 // pred_region
        _
      $region16: #{dcnv2_forward.1} parent=11 // pred_fallthru
        _
      // Predicated region
      $region17: #{dcnv2_forward.1} parent=11 // pred_check
        %p191 = pneg %p145
      $region18: #{dcnv2_forward.1} parent=11 // pred_check_branch
        %193 = sbr.rel (%p191) target = $region20
      $region19: #{dcnv2_forward.1} parent=11 // pred_region
        _
      $region20: #{dcnv2_forward.1} parent=11 // pred_fallthru
        _
    $region12: #{dcnv2_forward.1} parent=5 // pred_fallthru
      _
    %p194 = scmp.lt.s32.totalorder %s11, 4
    // Predicated region
    $region21: #{dcnv2_forward.1} parent=5 // pred_check
      %p195 = pneg %p194
    $region22: #{dcnv2_forward.1} parent=5 // pred_check_branch
      %197 = sbr.rel (%p195) target = $region24
    $region23: #{dcnv2_forward.1} parent=5 // pred_region
      // Predicated region
      $region25: #{dcnv2_forward.1} parent=23 // pred_check
        %p198 = pneg %p43
      $region26: #{dcnv2_forward.1} parent=23 // pred_check_branch
        %200 = sbr.rel (%p198) target = $region28
      $region27: #{dcnv2_forward.1} parent=23 // pred_region
        %s201 = smul.u32 16, %s19
        %p202 = scmp.lt.s32.totalorder %s201, 31
        %s203 = scalar_select %p202, %s201, 31
        %s204 = smul.addr %s203, 8
        %s205 = scalar_lea.vmem %s0, %s204
        %s206 = smul.u32 16, %s19
      $region28: #{dcnv2_forward.1} parent=23 // pred_fallthru
        _
      // Predicated region
      $region29: #{dcnv2_forward.1} parent=23 // pred_check
        %p207 = pneg %p71
      $region30: #{dcnv2_forward.1} parent=23 // pred_check_branch
        %209 = sbr.rel (%p207) target = $region32
      $region31: #{dcnv2_forward.1} parent=23 // pred_region
        %s210 = smul.u32 16, %s19
        %p211 = scmp.lt.s32.totalorder %s18, 1
        %s212 = scalar_select %p211, %s18, 1
        %p213 = scmp.lt.s32.totalorder %s210, 31
        %s214 = scalar_select %p213, %s210, 31
        %s215 = smul.addr %s212, 32
        %s216 = sadd.s32 %s214, %s215
        %s217 = smul.addr %s216, 8
        %s218 = scalar_lea.vmem %s1, %s217
        %s219 = smul.u32 16, %s19
      $region32: #{dcnv2_forward.1} parent=23 // pred_fallthru
        _
      // Predicated region
      $region33: #{dcnv2_forward.1} parent=23 // pred_check
        %p220 = pneg %p97
      $region34: #{dcnv2_forward.1} parent=23 // pred_check_branch
        %222 = sbr.rel (%p220) target = $region36
      $region35: #{dcnv2_forward.1} parent=23 // pred_region
        %p223 = scmp.lt.s32.totalorder %s18, 1
        %s224 = scalar_select %p223, %s18, 1
        %s225 = smul.addr %s224, 3
        %s226 = smul.addr %s225, 8
        %s227 = scalar_lea.vmem %s2, %s226
      $region36: #{dcnv2_forward.1} parent=23 // pred_fallthru
        _
    $region24: #{dcnv2_forward.1} parent=5 // pred_fallthru
      _
    %p228 = scmp.le.s32.totalorder 1, %s11
    %p229 = scmp.lt.s32.totalorder %s11, 5
    %p230 = pnand %p228, %p229
    %p231 = pneg %p230
    // Predicated region
    $region37: #{dcnv2_forward.1} parent=5 // pred_check
      _
    $region38: #{dcnv2_forward.1} parent=5 // pred_check_branch
      %233 = sbr.rel (%p230) target = $region40
    $region39: #{dcnv2_forward.1} parent=5 // pred_region
      %s234 = ssub.s32 %s11, 1
      %s235 = smul.u32 16, %s21
      %p236 = scmp.lt.s32.totalorder %s235, 31
      %s237 = scalar_select %p236, %s235, 31
      %s238 = smul.addr %s237, 8
      %s239 = scalar_lea.vmem %s0, %s238
      %p240 = pneg %p49
      %p241 = pneg %p46
      %s242 = smul.u32 16, %s21
      %p243 = scmp.lt.s32.totalorder %s20, 1
      %s244 = scalar_select %p243, %s20, 1
      %p245 = scmp.lt.s32.totalorder %s242, 31
      %s246 = scalar_select %p245, %s242, 31
      %s247 = smul.addr %s244, 32
      %s248 = sadd.s32 %s246, %s247
      %s249 = smul.addr %s248, 8
      %s250 = scalar_lea.vmem %s1, %s249
      %p251 = pneg %p77
      %p252 = pneg %p74
      %p253 = scmp.lt.s32.totalorder %s20, 1
      %s254 = scalar_select %p253, %s20, 1
      %s255 = smul.addr %s254, 3
      %s256 = smul.addr %s255, 8
      %s257 = scalar_lea.vmem %s2, %s256
      %p258 = pneg %p103
      %p259 = pneg %p100
      %p260 = pneg %p124
      %p261 = pneg %p121
      %p262 = pneg %p145
      %p263 = pneg %p142
      %p264 = pneg %p173
      %p265 = pneg %p170
      %s266 = smul.u32 16, %s21
      %p267 = scmp.lt.s32.totalorder %s20, 1
      %s268 = scalar_select %p267, %s20, 1
      %p269 = scmp.lt.s32.totalorder %s266, 31
      %s270 = scalar_select %p269, %s266, 31
      %s271 = smul.addr %s268, 32
      %s272 = sadd.s32 %s270, %s271
      %s273 = smul.addr %s272, 8
      %s274 = scalar_lea.vmem %s5, %s273
      %s275 = smul.u32 16, %s21
      %p276 = scmp.lt.s32.totalorder %s275, 31
      %s277 = scalar_select %p276, %s275, 31
      %s278 = smul.addr %s277, 8
      %s279 = scalar_lea.vmem %s0, %s278
      %s280 = smul.u32 16, %s21
      %s281 = smul.u32 16, %s21
      %p282 = scmp.lt.s32.totalorder %s20, 1
      %s283 = scalar_select %p282, %s20, 1
      %p284 = scmp.lt.s32.totalorder %s281, 31
      %s285 = scalar_select %p284, %s281, 31
      %s286 = smul.addr %s283, 32
      %s287 = sadd.s32 %s285, %s286
      %s288 = smul.addr %s287, 8
      %s289 = scalar_lea.vmem %s1, %s288
      %s290 = smul.u32 16, %s21
      %p291 = scmp.lt.s32.totalorder %s20, 1
      %s292 = scalar_select %p291, %s20, 1
      %s293 = smul.addr %s292, 3
      %s294 = smul.addr %s293, 8
      %s295 = scalar_lea.vmem %s2, %s294
      %s296 = smul.u32 16, %s21
      %p297 = scmp.lt.s32.totalorder %s20, 1
      %s298 = scalar_select %p297, %s20, 1
      %p299 = scmp.lt.s32.totalorder %s296, 31
      %s300 = scalar_select %p299, %s296, 31
      %s301 = smul.addr %s298, 32
      %s302 = sadd.s32 %s300, %s301
      %s303 = smul.addr %s302, 8
      %s304 = scalar_lea.vmem %s5, %s303
      %s305 = smul.u32 16, %s21
      %v306 = vld [vmem:[%s295] sm:$0xff]
      %v307 = vld [vmem:[%s295 + $0x8] sm:$0xff]
      %v308 = vld [vmem:[%s295 + $0x10] sm:$0x7]
      %v309 = vld [vmem:[%s4] sm:$0x1]
      %v310 = vlaneseq
      %v311 = vand.u32 %v310, 127
      %v312 = vcvt.s32.f32 %v311
      %v313 = vld [vmem:[%s279] sm:$0xff]
      %v314 = vld [vmem:[%s279 + $0x8] sm:$0xff]
      %v315 = vld [vmem:[%s279 + $0x10] sm:$0xff]
      %v316 = vld [vmem:[%s279 + $0x18] sm:$0xff]
      %v317 = vld [vmem:[%s279 + $0x20] sm:$0xff]
      %v318 = vld [vmem:[%s279 + $0x28] sm:$0xff]
      %v319 = vld [vmem:[%s279 + $0x30] sm:$0xff]
      %v320 = vld [vmem:[%s279 + $0x38] sm:$0xff]
      %v321 = vld [vmem:[%s279 + $0x40] sm:$0xff]
      %v322 = vld [vmem:[%s279 + $0x48] sm:$0xff]
      %v323 = vld [vmem:[%s279 + $0x50] sm:$0xff]
      %v324 = vld [vmem:[%s279 + $0x58] sm:$0xff]
      %v325 = vld [vmem:[%s279 + $0x60] sm:$0xff]
      %v326 = vld [vmem:[%s279 + $0x68] sm:$0xff]
      %v327 = vld [vmem:[%s279 + $0x70] sm:$0xff]
      %v328 = vld [vmem:[%s279 + $0x78] sm:$0xff]
      %v329 = vld [vmem:[%s289] sm:$0xff]
      %v330 = vld [vmem:[%s289 + $0x8] sm:$0xff]
      %v331 = vld [vmem:[%s289 + $0x10] sm:$0xff]
      %v332 = vld [vmem:[%s289 + $0x18] sm:$0xff]
      %v333 = vld [vmem:[%s289 + $0x20] sm:$0xff]
      %v334 = vld [vmem:[%s289 + $0x28] sm:$0xff]
      %v335 = vld [vmem:[%s289 + $0x30] sm:$0xff]
      %v336 = vld [vmem:[%s289 + $0x38] sm:$0xff]
      %v337 = vld [vmem:[%s289 + $0x40] sm:$0xff]
      %v338 = vld [vmem:[%s289 + $0x48] sm:$0xff]
      %v339 = vld [vmem:[%s289 + $0x50] sm:$0xff]
      %v340 = vld [vmem:[%s289 + $0x58] sm:$0xff]
      %v341 = vld [vmem:[%s289 + $0x60] sm:$0xff]
      %v342 = vld [vmem:[%s289 + $0x68] sm:$0xff]
      %v343 = vld [vmem:[%s289 + $0x70] sm:$0xff]
      %v344 = vld [vmem:[%s289 + $0x78] sm:$0xff]
      %v345 = vsub.f32 0.0, %v329
      %v346 = vsub.f32 0.0, %v330
      %v347 = vsub.f32 0.0, %v331
      %v348 = vsub.f32 0.0, %v332
      %v349 = vsub.f32 0.0, %v333
      %v350 = vsub.f32 0.0, %v334
      %v351 = vsub.f32 0.0, %v335
      %v352 = vsub.f32 0.0, %v336
      %v353 = vsub.f32 0.0, %v337
      %v354 = vsub.f32 0.0, %v338
      %v355 = vsub.f32 0.0, %v339
      %v356 = vsub.f32 0.0, %v340
      %v357 = vsub.f32 0.0, %v341
      %v358 = vsub.f32 0.0, %v342
      %v359 = vsub.f32 0.0, %v343
      %v360 = vsub.f32 0.0, %v344
      %v361 = vmul.f32 %v345, 1.442695
      %v362 = vpow.pop %v361
      %v363 = vmul.f32 %v346, 1.442695
      %v364 = vpow.pop %v363
      %v365 = vmul.f32 %v347, 1.442695
      %v366 = vpow.pop %v365
      %v367 = vmul.f32 %v348, 1.442695
      %v368 = vpow.pop %v367
      %v369 = vmul.f32 %v349, 1.442695
      %v370 = vpow.pop %v369
      %v371 = vmul.f32 %v350, 1.442695
      %v372 = vpow.pop %v371
      %v373 = vmul.f32 %v351, 1.442695
      %v374 = vpow.pop %v373
      %v375 = vmul.f32 %v352, 1.442695
      %v376 = vpow.pop %v375
      %v377 = vmul.f32 %v353, 1.442695
      %v378 = vpow.pop %v377
      %v379 = vmul.f32 %v354, 1.442695
      %v380 = vpow.pop %v379
      %v381 = vmul.f32 %v355, 1.442695
      %v382 = vpow.pop %v381
      %v383 = vmul.f32 %v356, 1.442695
      %v384 = vpow.pop %v383
      %v385 = vmul.f32 %v357, 1.442695
      %v386 = vpow.pop %v385
      %v387 = vmul.f32 %v358, 1.442695
      %v388 = vpow.pop %v387
      %v389 = vmul.f32 %v359, 1.442695
      %v390 = vpow.pop %v389
      %v391 = vmul.f32 %v360, 1.442695
      %v392 = vpow.pop %v391
      %v393 = vadd.f32 %v362, 1.0
      %v394 = vadd.f32 %v364, 1.0
      %v395 = vadd.f32 %v366, 1.0
      %v396 = vadd.f32 %v368, 1.0
      %v397 = vadd.f32 %v370, 1.0
      %v398 = vadd.f32 %v372, 1.0
      %v399 = vadd.f32 %v374, 1.0
      %v400 = vadd.f32 %v376, 1.0
      %v401 = vadd.f32 %v378, 1.0
      %v402 = vadd.f32 %v380, 1.0
      %v403 = vadd.f32 %v382, 1.0
      %v404 = vadd.f32 %v384, 1.0
      %v405 = vadd.f32 %v386, 1.0
      %v406 = vadd.f32 %v388, 1.0
      %v407 = vadd.f32 %v390, 1.0
      %v408 = vadd.f32 %v392, 1.0
      %v409 = vrcp.pop %v393
      %v410 = vrcp.pop %v394
      %v411 = vrcp.pop %v395
      %v412 = vrcp.pop %v396
      %v413 = vrcp.pop %v397
      %v414 = vrcp.pop %v398
      %v415 = vrcp.pop %v399
      %v416 = vrcp.pop %v400
      %v417 = vrcp.pop %v401
      %v418 = vrcp.pop %v402
      %v419 = vrcp.pop %v403
      %v420 = vrcp.pop %v404
      %v421 = vrcp.pop %v405
      %v422 = vrcp.pop %v406
      %v423 = vrcp.pop %v407
      %v424 = vrcp.pop %v408
      %425 = vst [vmem:[%s304] sm:$0xff] 0.0
      %426 = vst [vmem:[%s304 + $0x8] sm:$0xff] 0.0
      %427 = vst [vmem:[%s304 + $0x10] sm:$0xff] 0.0
      %428 = vst [vmem:[%s304 + $0x18] sm:$0xff] 0.0
      %429 = vst [vmem:[%s304 + $0x20] sm:$0xff] 0.0
      %430 = vst [vmem:[%s304 + $0x28] sm:$0xff] 0.0
      %431 = vst [vmem:[%s304 + $0x30] sm:$0xff] 0.0
      %432 = vst [vmem:[%s304 + $0x38] sm:$0xff] 0.0
      %433 = vst [vmem:[%s304 + $0x40] sm:$0xff] 0.0
      %434 = vst [vmem:[%s304 + $0x48] sm:$0xff] 0.0
      %435 = vst [vmem:[%s304 + $0x50] sm:$0xff] 0.0
      %436 = vst [vmem:[%s304 + $0x58] sm:$0xff] 0.0
      %437 = vst [vmem:[%s304 + $0x60] sm:$0xff] 0.0
      %438 = vst [vmem:[%s304 + $0x68] sm:$0xff] 0.0
      %439 = vst [vmem:[%s304 + $0x70] sm:$0xff] 0.0
      %440 = vst [vmem:[%s304 + $0x78] sm:$0xff] 0.0
      %v441 = vadd.f32 %v313, -1.0
      %v442 = vadd.f32 %v314, -1.0
      %v443 = vadd.f32 %v315, -1.0
      %v444 = vadd.f32 %v316, -1.0
      %v445 = vadd.f32 %v317, -1.0
      %v446 = vadd.f32 %v318, -1.0
      %v447 = vadd.f32 %v319, -1.0
      %v448 = vadd.f32 %v320, -1.0
      %v449 = vadd.f32 %v321, -1.0
      %v450 = vadd.f32 %v322, -1.0
      %v451 = vadd.f32 %v323, -1.0
      %v452 = vadd.f32 %v324, -1.0
      %v453 = vadd.f32 %v325, -1.0
      %v454 = vadd.f32 %v326, -1.0
      %v455 = vadd.f32 %v327, -1.0
      %v456 = vadd.f32 %v328, -1.0
      %v457 = vadd.f32 %v441, %v329
      %v458 = vadd.f32 %v442, %v330
      %v459 = vadd.f32 %v443, %v331
      %v460 = vadd.f32 %v444, %v332
      %v461 = vadd.f32 %v445, %v333
      %v462 = vadd.f32 %v446, %v334
      %v463 = vadd.f32 %v447, %v335
      %v464 = vadd.f32 %v448, %v336
      %v465 = vadd.f32 %v449, %v337
      %v466 = vadd.f32 %v450, %v338
      %v467 = vadd.f32 %v451, %v339
      %v468 = vadd.f32 %v452, %v340
      %v469 = vadd.f32 %v453, %v341
      %v470 = vadd.f32 %v454, %v342
      %v471 = vadd.f32 %v455, %v343
      %v472 = vadd.f32 %v456, %v344
      %v473 = vmax.f32 %v457, 0.0
      %v474 = vmax.f32 %v458, 0.0
      %v475 = vmax.f32 %v459, 0.0
      %v476 = vmax.f32 %v460, 0.0
      %v477 = vmax.f32 %v461, 0.0
      %v478 = vmax.f32 %v462, 0.0
      %v479 = vmax.f32 %v463, 0.0
      %v480 = vmax.f32 %v464, 0.0
      %v481 = vmax.f32 %v465, 0.0
      %v482 = vmax.f32 %v466, 0.0
      %v483 = vmax.f32 %v467, 0.0
      %v484 = vmax.f32 %v468, 0.0
      %v485 = vmax.f32 %v469, 0.0
      %v486 = vmax.f32 %v470, 0.0
      %v487 = vmax.f32 %v471, 0.0
      %v488 = vmax.f32 %v472, 0.0
      %v489 = vmin.f32 %v473, 17.0
      %v490 = vmin.f32 %v474, 17.0
      %v491 = vmin.f32 %v475, 17.0
      %v492 = vmin.f32 %v476, 17.0
      %v493 = vmin.f32 %v477, 17.0
      %v494 = vmin.f32 %v478, 17.0
      %v495 = vmin.f32 %v479, 17.0
      %v496 = vmin.f32 %v480, 17.0
      %v497 = vmin.f32 %v481, 17.0
      %v498 = vmin.f32 %v482, 17.0
      %v499 = vmin.f32 %v483, 17.0
      %v500 = vmin.f32 %v484, 17.0
      %v501 = vmin.f32 %v485, 17.0
      %v502 = vmin.f32 %v486, 17.0
      %v503 = vmin.f32 %v487, 17.0
      %v504 = vmin.f32 %v488, 17.0
      %521 = vrot.lane.b32.xlu0 %v329, 120
      %v522 = vpop.permute.xlu0 %521
      %523 = vrot.lane.b32.xlu0 %v330, 120
      %v524 = vpop.permute.xlu0 %523
      %525 = vrot.lane.b32.xlu0 %v331, 120
      %v526 = vpop.permute.xlu0 %525
      %527 = vrot.lane.b32.xlu0 %v332, 120
      %v528 = vpop.permute.xlu0 %527
      %529 = vrot.lane.b32.xlu0 %v333, 120
      %v530 = vpop.permute.xlu0 %529
      %531 = vrot.lane.b32.xlu0 %v334, 120
      %v532 = vpop.permute.xlu0 %531
      %533 = vrot.lane.b32.xlu0 %v335, 120
      %v534 = vpop.permute.xlu0 %533
      %535 = vrot.lane.b32.xlu0 %v336, 120
      %v536 = vpop.permute.xlu0 %535
      %537 = vrot.lane.b32.xlu0 %v337, 120
      %v538 = vpop.permute.xlu0 %537
      %539 = vrot.lane.b32.xlu0 %v338, 120
      %v540 = vpop.permute.xlu0 %539
      %541 = vrot.lane.b32.xlu0 %v339, 120
      %v542 = vpop.permute.xlu0 %541
      %543 = vrot.lane.b32.xlu0 %v340, 120
      %v544 = vpop.permute.xlu0 %543
      %545 = vrot.lane.b32.xlu0 %v341, 120
      %v546 = vpop.permute.xlu0 %545
      %547 = vrot.lane.b32.xlu0 %v342, 120
      %v548 = vpop.permute.xlu0 %547
      %549 = vrot.lane.b32.xlu0 %v343, 120
      %v550 = vpop.permute.xlu0 %549
      %551 = vrot.lane.b32.xlu0 %v344, 120
      %v552 = vpop.permute.xlu0 %551
      %v569 = vadd.f32 %v441, %v522
      %v570 = vadd.f32 %v442, %v524
      %v571 = vadd.f32 %v443, %v526
      %v572 = vadd.f32 %v444, %v528
      %v573 = vadd.f32 %v445, %v530
      %v574 = vadd.f32 %v446, %v532
      %v575 = vadd.f32 %v447, %v534
      %v576 = vadd.f32 %v448, %v536
      %v577 = vadd.f32 %v449, %v538
      %v578 = vadd.f32 %v450, %v540
      %v579 = vadd.f32 %v451, %v542
      %v580 = vadd.f32 %v452, %v544
      %v581 = vadd.f32 %v453, %v546
      %v582 = vadd.f32 %v454, %v548
      %v583 = vadd.f32 %v455, %v550
      %v584 = vadd.f32 %v456, %v552
      %v585 = vmax.f32 %v569, 0.0
      %v586 = vmax.f32 %v570, 0.0
      %v587 = vmax.f32 %v571, 0.0
      %v588 = vmax.f32 %v572, 0.0
      %v589 = vmax.f32 %v573, 0.0
      %v590 = vmax.f32 %v574, 0.0
      %v591 = vmax.f32 %v575, 0.0
      %v592 = vmax.f32 %v576, 0.0
      %v593 = vmax.f32 %v577, 0.0
      %v594 = vmax.f32 %v578, 0.0
      %v595 = vmax.f32 %v579, 0.0
      %v596 = vmax.f32 %v580, 0.0
      %v597 = vmax.f32 %v581, 0.0
      %v598 = vmax.f32 %v582, 0.0
      %v599 = vmax.f32 %v583, 0.0
      %v600 = vmax.f32 %v584, 0.0
      %v601 = vmin.f32 %v585, 17.0
      %v602 = vmin.f32 %v586, 17.0
      %v603 = vmin.f32 %v587, 17.0
      %v604 = vmin.f32 %v588, 17.0
      %v605 = vmin.f32 %v589, 17.0
      %v606 = vmin.f32 %v590, 17.0
      %v607 = vmin.f32 %v591, 17.0
      %v608 = vmin.f32 %v592, 17.0
      %v609 = vmin.f32 %v593, 17.0
      %v610 = vmin.f32 %v594, 17.0
      %v611 = vmin.f32 %v595, 17.0
      %v612 = vmin.f32 %v596, 17.0
      %v613 = vmin.f32 %v597, 17.0
      %v614 = vmin.f32 %v598, 17.0
      %v615 = vmin.f32 %v599, 17.0
      %v616 = vmin.f32 %v600, 17.0
      %618 = vset.pattern.permute.xlu0 0
      %619 = vperm.xlu0 %618, %v489
      %v620 = vpop.permute.xlu0 %619
      %623 = vset.pattern.permute.xlu0 0
      %624 = vperm.xlu0 %623, %v490
      %v625 = vpop.permute.xlu0 %624
      %628 = vset.pattern.permute.xlu0 0
      %629 = vperm.xlu0 %628, %v491
      %v630 = vpop.permute.xlu0 %629
      %633 = vset.pattern.permute.xlu0 0
      %634 = vperm.xlu0 %633, %v492
      %v635 = vpop.permute.xlu0 %634
      %638 = vset.pattern.permute.xlu0 0
      %639 = vperm.xlu0 %638, %v493
      %v640 = vpop.permute.xlu0 %639
      %643 = vset.pattern.permute.xlu0 0
      %644 = vperm.xlu0 %643, %v494
      %v645 = vpop.permute.xlu0 %644
      %648 = vset.pattern.permute.xlu0 0
      %649 = vperm.xlu0 %648, %v495
      %v650 = vpop.permute.xlu0 %649
      %653 = vset.pattern.permute.xlu0 0
      %654 = vperm.xlu0 %653, %v496
      %v655 = vpop.permute.xlu0 %654
      %658 = vset.pattern.permute.xlu0 0
      %659 = vperm.xlu0 %658, %v497
      %v660 = vpop.permute.xlu0 %659
      %663 = vset.pattern.permute.xlu0 0
      %664 = vperm.xlu0 %663, %v498
      %v665 = vpop.permute.xlu0 %664
      %668 = vset.pattern.permute.xlu0 0
      %669 = vperm.xlu0 %668, %v499
      %v670 = vpop.permute.xlu0 %669
      %673 = vset.pattern.permute.xlu0 0
      %674 = vperm.xlu0 %673, %v500
      %v675 = vpop.permute.xlu0 %674
      %678 = vset.pattern.permute.xlu0 0
      %679 = vperm.xlu0 %678, %v501
      %v680 = vpop.permute.xlu0 %679
      %683 = vset.pattern.permute.xlu0 0
      %684 = vperm.xlu0 %683, %v502
      %v685 = vpop.permute.xlu0 %684
      %688 = vset.pattern.permute.xlu0 0
      %689 = vperm.xlu0 %688, %v503
      %v690 = vpop.permute.xlu0 %689
      %693 = vset.pattern.permute.xlu0 0
      %694 = vperm.xlu0 %693, %v504
      %v695 = vpop.permute.xlu0 %694
      %v697 = vsub.f32 %v312, %v620
      %v698 = vsub.f32 %v312, %v625
      %v699 = vsub.f32 %v312, %v630
      %v700 = vsub.f32 %v312, %v635
      %v701 = vsub.f32 %v312, %v640
      %v702 = vsub.f32 %v312, %v645
      %v703 = vsub.f32 %v312, %v650
      %v704 = vsub.f32 %v312, %v655
      %v705 = vsub.f32 %v312, %v660
      %v706 = vsub.f32 %v312, %v665
      %v707 = vsub.f32 %v312, %v670
      %v708 = vsub.f32 %v312, %v675
      %v709 = vsub.f32 %v312, %v680
      %v710 = vsub.f32 %v312, %v685
      %v711 = vsub.f32 %v312, %v690
      %v712 = vsub.f32 %v312, %v695
      %v713 = vand.u32 2147483647, %v697
      %v714 = vand.u32 2147483647, %v698
      %v715 = vand.u32 2147483647, %v699
      %v716 = vand.u32 2147483647, %v700
      %v717 = vand.u32 2147483647, %v701
      %v718 = vand.u32 2147483647, %v702
      %v719 = vand.u32 2147483647, %v703
      %v720 = vand.u32 2147483647, %v704
      %v721 = vand.u32 2147483647, %v705
      %v722 = vand.u32 2147483647, %v706
      %v723 = vand.u32 2147483647, %v707
      %v724 = vand.u32 2147483647, %v708
      %v725 = vand.u32 2147483647, %v709
      %v726 = vand.u32 2147483647, %v710
      %v727 = vand.u32 2147483647, %v711
      %v728 = vand.u32 2147483647, %v712
      %v729 = vsub.f32 1.0, %v713
      %v730 = vsub.f32 1.0, %v714
      %v731 = vsub.f32 1.0, %v715
      %v732 = vsub.f32 1.0, %v716
      %v733 = vsub.f32 1.0, %v717
      %v734 = vsub.f32 1.0, %v718
      %v735 = vsub.f32 1.0, %v719
      %v736 = vsub.f32 1.0, %v720
      %v737 = vsub.f32 1.0, %v721
      %v738 = vsub.f32 1.0, %v722
      %v739 = vsub.f32 1.0, %v723
      %v740 = vsub.f32 1.0, %v724
      %v741 = vsub.f32 1.0, %v725
      %v742 = vsub.f32 1.0, %v726
      %v743 = vsub.f32 1.0, %v727
      %v744 = vsub.f32 1.0, %v728
      %v745 = vmax.f32 %v729, 0.0
      %v746 = vmax.f32 %v730, 0.0
      %v747 = vmax.f32 %v731, 0.0
      %v748 = vmax.f32 %v732, 0.0
      %v749 = vmax.f32 %v733, 0.0
      %v750 = vmax.f32 %v734, 0.0
      %v751 = vmax.f32 %v735, 0.0
      %v752 = vmax.f32 %v736, 0.0
      %v753 = vmax.f32 %v737, 0.0
      %v754 = vmax.f32 %v738, 0.0
      %v755 = vmax.f32 %v739, 0.0
      %v756 = vmax.f32 %v740, 0.0
      %v757 = vmax.f32 %v741, 0.0
      %v758 = vmax.f32 %v742, 0.0
      %v759 = vmax.f32 %v743, 0.0
      %v760 = vmax.f32 %v744, 0.0
      %762 = vset.pattern.permute.xlu0 18
      %763 = vperm.xlu0 %762, %v409
      %v764 = vpop.permute.xlu0 %763
      %767 = vset.pattern.permute.xlu0 18
      %768 = vperm.xlu0 %767, %v410
      %v769 = vpop.permute.xlu0 %768
      %772 = vset.pattern.permute.xlu0 18
      %773 = vperm.xlu0 %772, %v411
      %v774 = vpop.permute.xlu0 %773
      %777 = vset.pattern.permute.xlu0 18
      %778 = vperm.xlu0 %777, %v412
      %v779 = vpop.permute.xlu0 %778
      %782 = vset.pattern.permute.xlu0 18
      %783 = vperm.xlu0 %782, %v413
      %v784 = vpop.permute.xlu0 %783
      %787 = vset.pattern.permute.xlu0 18
      %788 = vperm.xlu0 %787, %v414
      %v789 = vpop.permute.xlu0 %788
      %792 = vset.pattern.permute.xlu0 18
      %793 = vperm.xlu0 %792, %v415
      %v794 = vpop.permute.xlu0 %793
      %797 = vset.pattern.permute.xlu0 18
      %798 = vperm.xlu0 %797, %v416
      %v799 = vpop.permute.xlu0 %798
      %802 = vset.pattern.permute.xlu0 18
      %803 = vperm.xlu0 %802, %v417
      %v804 = vpop.permute.xlu0 %803
      %807 = vset.pattern.permute.xlu0 18
      %808 = vperm.xlu0 %807, %v418
      %v809 = vpop.permute.xlu0 %808
      %812 = vset.pattern.permute.xlu0 18
      %813 = vperm.xlu0 %812, %v419
      %v814 = vpop.permute.xlu0 %813
      %817 = vset.pattern.permute.xlu0 18
      %818 = vperm.xlu0 %817, %v420
      %v819 = vpop.permute.xlu0 %818
      %822 = vset.pattern.permute.xlu0 18
      %823 = vperm.xlu0 %822, %v421
      %v824 = vpop.permute.xlu0 %823
      %827 = vset.pattern.permute.xlu0 18
      %828 = vperm.xlu0 %827, %v422
      %v829 = vpop.permute.xlu0 %828
      %832 = vset.pattern.permute.xlu0 18
      %833 = vperm.xlu0 %832, %v423
      %v834 = vpop.permute.xlu0 %833
      %837 = vset.pattern.permute.xlu0 18
      %838 = vperm.xlu0 %837, %v424
      %v839 = vpop.permute.xlu0 %838
      %v841 = vmul.f32 %v745, %v764
      %v842 = vmul.f32 %v746, %v769
      %v843 = vmul.f32 %v747, %v774
      %v844 = vmul.f32 %v748, %v779
      %v845 = vmul.f32 %v749, %v784
      %v846 = vmul.f32 %v750, %v789
      %v847 = vmul.f32 %v751, %v794
      %v848 = vmul.f32 %v752, %v799
      %v849 = vmul.f32 %v753, %v804
      %v850 = vmul.f32 %v754, %v809
      %v851 = vmul.f32 %v755, %v814
      %v852 = vmul.f32 %v756, %v819
      %v853 = vmul.f32 %v757, %v824
      %v854 = vmul.f32 %v758, %v829
      %v855 = vmul.f32 %v759, %v834
      %v856 = vmul.f32 %v760, %v839
      %vm857 = vcmask 154624
      %v859 = vsel %vm857, %v841, 0
      %v862 = vsel %vm857, %v842, 0
      %v865 = vsel %vm857, %v843, 0
      %v868 = vsel %vm857, %v844, 0
      %v871 = vsel %vm857, %v845, 0
      %v874 = vsel %vm857, %v846, 0
      %v877 = vsel %vm857, %v847, 0
      %v880 = vsel %vm857, %v848, 0
      %v883 = vsel %vm857, %v849, 0
      %v886 = vsel %vm857, %v850, 0
      %v889 = vsel %vm857, %v851, 0
      %v892 = vsel %vm857, %v852, 0
      %v895 = vsel %vm857, %v853, 0
      %v898 = vsel %vm857, %v854, 0
      %v901 = vsel %vm857, %v855, 0
      %v904 = vsel %vm857, %v856, 0
      %vm906 = vcmask 1042432
      %v908 = vsel %vm906, %v308, 0
      %910 = vmatpush.msra.mxu0 0.0
      %911 = vmatpush.msra.mxu0 0.0
      %912 = vmatpush.msra.mxu0 0.0
      %913 = vmatpush.msra.mxu0 0.0
      %914 = vmatpush.msra.mxu0 0.0
      %915 = vmatpush.msra.mxu0 0.0
      %916 = vmatpush.msra.mxu0 0.0
      %917 = vmatpush.msra.mxu0 0.0
      %918 = vmatpush.msra.mxu0 0.0
      %919 = vmatpush.msra.mxu0 0.0
      %920 = vmatpush.msra.mxu0 0.0
      %921 = vmatpush.msra.mxu0 0.0
      %922 = vmatpush.msra.mxu0 0.0
      %923 = vmatpush.msra.mxu0 %v908
      %924 = vmatpush.msra.mxu0 %v307
      %925 = vmatpush.msra.mxu0 %v306
      %926 = vmatmul.f32.gmra.mxu0 %v859
      %v927 = vpop.f32.mrf.mxu0
      %v928 = vadd.f32 0.0, %v927
      %929 = vmatmul.f32.gmra.mxu0 %v862
      %v930 = vpop.f32.mrf.mxu0
      %v931 = vadd.f32 0.0, %v930
      %932 = vmatmul.f32.gmra.mxu0 %v865
      %v933 = vpop.f32.mrf.mxu0
      %v934 = vadd.f32 0.0, %v933
      %935 = vmatmul.f32.gmra.mxu0 %v868
      %v936 = vpop.f32.mrf.mxu0
      %v937 = vadd.f32 0.0, %v936
      %938 = vmatmul.f32.gmra.mxu0 %v871
      %v939 = vpop.f32.mrf.mxu0
      %v940 = vadd.f32 0.0, %v939
      %941 = vmatmul.f32.gmra.mxu0 %v874
      %v942 = vpop.f32.mrf.mxu0
      %v943 = vadd.f32 0.0, %v942
      %944 = vmatmul.f32.gmra.mxu0 %v877
      %v945 = vpop.f32.mrf.mxu0
      %v946 = vadd.f32 0.0, %v945
      %947 = vmatmul.f32.gmra.mxu0 %v880
      %v948 = vpop.f32.mrf.mxu0
      %v949 = vadd.f32 0.0, %v948
      %950 = vmatmul.f32.gmra.mxu0 %v883
      %v951 = vpop.f32.mrf.mxu0
      %v952 = vadd.f32 0.0, %v951
      %953 = vmatmul.f32.gmra.mxu0 %v886
      %v954 = vpop.f32.mrf.mxu0
      %v955 = vadd.f32 0.0, %v954
      %956 = vmatmul.f32.gmra.mxu0 %v889
      %v957 = vpop.f32.mrf.mxu0
      %v958 = vadd.f32 0.0, %v957
      %959 = vmatmul.f32.gmra.mxu0 %v892
      %v960 = vpop.f32.mrf.mxu0
      %v961 = vadd.f32 0.0, %v960
      %962 = vmatmul.f32.gmra.mxu0 %v895
      %v963 = vpop.f32.mrf.mxu0
      %v964 = vadd.f32 0.0, %v963
      %965 = vmatmul.f32.gmra.mxu0 %v898
      %v966 = vpop.f32.mrf.mxu0
      %v967 = vadd.f32 0.0, %v966
      %968 = vmatmul.f32.gmra.mxu0 %v901
      %v969 = vpop.f32.mrf.mxu0
      %v970 = vadd.f32 0.0, %v969
      %971 = vmatmul.f32.gmra.mxu0 %v904
      %v972 = vpop.f32.mrf.mxu0
      %v973 = vadd.f32 0.0, %v972
      %974 = vdwg.mxu0
      %v976 = vperm.slane %v309, 0
      %979 = vset.pattern.permute.xlu0 1
      %980 = vperm.xlu0 %979, %v601
      %v981 = vpop.permute.xlu0 %980
      %984 = vset.pattern.permute.xlu0 1
      %985 = vperm.xlu0 %984, %v602
      %v986 = vpop.permute.xlu0 %985
      %989 = vset.pattern.permute.xlu0 1
      %990 = vperm.xlu0 %989, %v603
      %v991 = vpop.permute.xlu0 %990
      %994 = vset.pattern.permute.xlu0 1
      %995 = vperm.xlu0 %994, %v604
      %v996 = vpop.permute.xlu0 %995
      %999 = vset.pattern.permute.xlu0 1
      %1000 = vperm.xlu0 %999, %v605
      %v1001 = vpop.permute.xlu0 %1000
      %1004 = vset.pattern.permute.xlu0 1
      %1005 = vperm.xlu0 %1004, %v606
      %v1006 = vpop.permute.xlu0 %1005
      %1009 = vset.pattern.permute.xlu0 1
      %1010 = vperm.xlu0 %1009, %v607
      %v1011 = vpop.permute.xlu0 %1010
      %1014 = vset.pattern.permute.xlu0 1
      %1015 = vperm.xlu0 %1014, %v608
      %v1016 = vpop.permute.xlu0 %1015
      %1019 = vset.pattern.permute.xlu0 1
      %1020 = vperm.xlu0 %1019, %v609
      %v1021 = vpop.permute.xlu0 %1020
      %1024 = vset.pattern.permute.xlu0 1
      %1025 = vperm.xlu0 %1024, %v610
      %v1026 = vpop.permute.xlu0 %1025
      %1029 = vset.pattern.permute.xlu0 1
      %1030 = vperm.xlu0 %1029, %v611
      %v1031 = vpop.permute.xlu0 %1030
      %1034 = vset.pattern.permute.xlu0 1
      %1035 = vperm.xlu0 %1034, %v612
      %v1036 = vpop.permute.xlu0 %1035
      %1039 = vset.pattern.permute.xlu0 1
      %1040 = vperm.xlu0 %1039, %v613
      %v1041 = vpop.permute.xlu0 %1040
      %1044 = vset.pattern.permute.xlu0 1
      %1045 = vperm.xlu0 %1044, %v614
      %v1046 = vpop.permute.xlu0 %1045
      %1049 = vset.pattern.permute.xlu0 1
      %1050 = vperm.xlu0 %1049, %v615
      %v1051 = vpop.permute.xlu0 %1050
      %1054 = vset.pattern.permute.xlu0 1
      %1055 = vperm.xlu0 %1054, %v616
      %v1056 = vpop.permute.xlu0 %1055
      %v1058 = vsub.f32 %v976, %v981
      %v1059 = vsub.f32 %v976, %v986
      %v1060 = vsub.f32 %v976, %v991
      %v1061 = vsub.f32 %v976, %v996
      %v1062 = vsub.f32 %v976, %v1001
      %v1063 = vsub.f32 %v976, %v1006
      %v1064 = vsub.f32 %v976, %v1011
      %v1065 = vsub.f32 %v976, %v1016
      %v1066 = vsub.f32 %v976, %v1021
      %v1067 = vsub.f32 %v976, %v1026
      %v1068 = vsub.f32 %v976, %v1031
      %v1069 = vsub.f32 %v976, %v1036
      %v1070 = vsub.f32 %v976, %v1041
      %v1071 = vsub.f32 %v976, %v1046
      %v1072 = vsub.f32 %v976, %v1051
      %v1073 = vsub.f32 %v976, %v1056
      %v1074 = vand.u32 2147483647, %v1058
      %v1075 = vand.u32 2147483647, %v1059
      %v1076 = vand.u32 2147483647, %v1060
      %v1077 = vand.u32 2147483647, %v1061
      %v1078 = vand.u32 2147483647, %v1062
      %v1079 = vand.u32 2147483647, %v1063
      %v1080 = vand.u32 2147483647, %v1064
      %v1081 = vand.u32 2147483647, %v1065
      %v1082 = vand.u32 2147483647, %v1066
      %v1083 = vand.u32 2147483647, %v1067
      %v1084 = vand.u32 2147483647, %v1068
      %v1085 = vand.u32 2147483647, %v1069
      %v1086 = vand.u32 2147483647, %v1070
      %v1087 = vand.u32 2147483647, %v1071
      %v1088 = vand.u32 2147483647, %v1072
      %v1089 = vand.u32 2147483647, %v1073
      %v1090 = vsub.f32 1.0, %v1074
      %v1091 = vsub.f32 1.0, %v1075
      %v1092 = vsub.f32 1.0, %v1076
      %v1093 = vsub.f32 1.0, %v1077
      %v1094 = vsub.f32 1.0, %v1078
      %v1095 = vsub.f32 1.0, %v1079
      %v1096 = vsub.f32 1.0, %v1080
      %v1097 = vsub.f32 1.0, %v1081
      %v1098 = vsub.f32 1.0, %v1082
      %v1099 = vsub.f32 1.0, %v1083
      %v1100 = vsub.f32 1.0, %v1084
      %v1101 = vsub.f32 1.0, %v1085
      %v1102 = vsub.f32 1.0, %v1086
      %v1103 = vsub.f32 1.0, %v1087
      %v1104 = vsub.f32 1.0, %v1088
      %v1105 = vsub.f32 1.0, %v1089
      %v1106 = vmax.f32 %v1090, 0.0
      %v1107 = vmax.f32 %v1091, 0.0
      %v1108 = vmax.f32 %v1092, 0.0
      %v1109 = vmax.f32 %v1093, 0.0
      %v1110 = vmax.f32 %v1094, 0.0
      %v1111 = vmax.f32 %v1095, 0.0
      %v1112 = vmax.f32 %v1096, 0.0
      %v1113 = vmax.f32 %v1097, 0.0
      %v1114 = vmax.f32 %v1098, 0.0
      %v1115 = vmax.f32 %v1099, 0.0
      %v1116 = vmax.f32 %v1100, 0.0
      %v1117 = vmax.f32 %v1101, 0.0
      %v1118 = vmax.f32 %v1102, 0.0
      %v1119 = vmax.f32 %v1103, 0.0
      %v1120 = vmax.f32 %v1104, 0.0
      %v1121 = vmax.f32 %v1105, 0.0
      %v1122 = vld [vmem:[%s304] sm:$0xff]
      %v1123 = vld [vmem:[%s304 + $0x8] sm:$0xff]
      %v1124 = vld [vmem:[%s304 + $0x10] sm:$0xff]
      %v1125 = vld [vmem:[%s304 + $0x18] sm:$0xff]
      %v1126 = vld [vmem:[%s304 + $0x20] sm:$0xff]
      %v1127 = vld [vmem:[%s304 + $0x28] sm:$0xff]
      %v1128 = vld [vmem:[%s304 + $0x30] sm:$0xff]
      %v1129 = vld [vmem:[%s304 + $0x38] sm:$0xff]
      %v1130 = vld [vmem:[%s304 + $0x40] sm:$0xff]
      %v1131 = vld [vmem:[%s304 + $0x48] sm:$0xff]
      %v1132 = vld [vmem:[%s304 + $0x50] sm:$0xff]
      %v1133 = vld [vmem:[%s304 + $0x58] sm:$0xff]
      %v1134 = vld [vmem:[%s304 + $0x60] sm:$0xff]
      %v1135 = vld [vmem:[%s304 + $0x68] sm:$0xff]
      %v1136 = vld [vmem:[%s304 + $0x70] sm:$0xff]
      %v1137 = vld [vmem:[%s304 + $0x78] sm:$0xff]
      %v1138 = vmul.f32 %v1106, %v928
      %v1139 = vmul.f32 %v1107, %v931
      %v1140 = vmul.f32 %v1108, %v934
      %v1141 = vmul.f32 %v1109, %v937
      %v1142 = vmul.f32 %v1110, %v940
      %v1143 = vmul.f32 %v1111, %v943
      %v1144 = vmul.f32 %v1112, %v946
      %v1145 = vmul.f32 %v1113, %v949
      %v1146 = vmul.f32 %v1114, %v952
      %v1147 = vmul.f32 %v1115, %v955
      %v1148 = vmul.f32 %v1116, %v958
      %v1149 = vmul.f32 %v1117, %v961
      %v1150 = vmul.f32 %v1118, %v964
      %v1151 = vmul.f32 %v1119, %v967
      %v1152 = vmul.f32 %v1120, %v970
      %v1153 = vmul.f32 %v1121, %v973
      %v1154 = vld [vmem:[%s3] sm:$0xff]
      %v1155 = vld [vmem:[%s3 + $0x8] sm:$0xff]
      %v1156 = vld [vmem:[%s3 + $0x10] sm:$0xff]
      %v1157 = vld [vmem:[%s3 + $0x18] sm:$0xff]
      %v1158 = vld [vmem:[%s3 + $0x20] sm:$0xff]
      %v1159 = vld [vmem:[%s3 + $0x28] sm:$0xff]
      %v1160 = vld [vmem:[%s3 + $0x30] sm:$0xff]
      %v1161 = vld [vmem:[%s3 + $0x38] sm:$0xff]
      %v1162 = vld [vmem:[%s3 + $0x40] sm:$0xff]
      %v1163 = vld [vmem:[%s3 + $0x48] sm:$0xff]
      %v1164 = vld [vmem:[%s3 + $0x50] sm:$0xff]
      %v1165 = vld [vmem:[%s3 + $0x58] sm:$0xff]
      %v1166 = vld [vmem:[%s3 + $0x60] sm:$0xff]
      %v1167 = vld [vmem:[%s3 + $0x68] sm:$0xff]
      %v1168 = vld [vmem:[%s3 + $0x70] sm:$0xff]
      %v1169 = vld [vmem:[%s3 + $0x78] sm:$0xff]
      %1170 = vmatpush.msra.mxu0 %v1169
      %1171 = vmatpush.msra.mxu0 %v1168
      %1172 = vmatpush.msra.mxu0 %v1167
      %1173 = vmatpush.msra.mxu0 %v1166
      %1174 = vmatpush.msra.mxu0 %v1165
      %1175 = vmatpush.msra.mxu0 %v1164
      %1176 = vmatpush.msra.mxu0 %v1163
      %1177 = vmatpush.msra.mxu0 %v1162
      %1178 = vmatpush.msra.mxu0 %v1161
      %1179 = vmatpush.msra.mxu0 %v1160
      %1180 = vmatpush.msra.mxu0 %v1159
      %1181 = vmatpush.msra.mxu0 %v1158
      %1182 = vmatpush.msra.mxu0 %v1157
      %1183 = vmatpush.msra.mxu0 %v1156
      %1184 = vmatpush.msra.mxu0 %v1155
      %1185 = vmatpush.msra.mxu0 %v1154
      %1186 = vmatmul.f32.gmra.mxu0 %v1138
      %v1187 = vpop.f32.mrf.mxu0
      %v1188 = vadd.f32 0.0, %v1187
      %1189 = vmatmul.f32.gmra.mxu0 %v1139
      %v1190 = vpop.f32.mrf.mxu0
      %v1191 = vadd.f32 0.0, %v1190
      %1192 = vmatmul.f32.gmra.mxu0 %v1140
      %v1193 = vpop.f32.mrf.mxu0
      %v1194 = vadd.f32 0.0, %v1193
      %1195 = vmatmul.f32.gmra.mxu0 %v1141
      %v1196 = vpop.f32.mrf.mxu0
      %v1197 = vadd.f32 0.0, %v1196
      %1198 = vmatmul.f32.gmra.mxu0 %v1142
      %v1199 = vpop.f32.mrf.mxu0
      %v1200 = vadd.f32 0.0, %v1199
      %1201 = vmatmul.f32.gmra.mxu0 %v1143
      %v1202 = vpop.f32.mrf.mxu0
      %v1203 = vadd.f32 0.0, %v1202
      %1204 = vmatmul.f32.gmra.mxu0 %v1144
      %v1205 = vpop.f32.mrf.mxu0
      %v1206 = vadd.f32 0.0, %v1205
      %1207 = vmatmul.f32.gmra.mxu0 %v1145
      %v1208 = vpop.f32.mrf.mxu0
      %v1209 = vadd.f32 0.0, %v1208
      %1210 = vmatmul.f32.gmra.mxu0 %v1146
      %v1211 = vpop.f32.mrf.mxu0
      %v1212 = vadd.f32 0.0, %v1211
      %1213 = vmatmul.f32.gmra.mxu0 %v1147
      %v1214 = vpop.f32.mrf.mxu0
      %v1215 = vadd.f32 0.0, %v1214
      %1216 = vmatmul.f32.gmra.mxu0 %v1148
      %v1217 = vpop.f32.mrf.mxu0
      %v1218 = vadd.f32 0.0, %v1217
      %1219 = vmatmul.f32.gmra.mxu0 %v1149
      %v1220 = vpop.f32.mrf.mxu0
      %v1221 = vadd.f32 0.0, %v1220
      %1222 = vmatmul.f32.gmra.mxu0 %v1150
      %v1223 = vpop.f32.mrf.mxu0
      %v1224 = vadd.f32 0.0, %v1223
      %1225 = vmatmul.f32.gmra.mxu0 %v1151
      %v1226 = vpop.f32.mrf.mxu0
      %v1227 = vadd.f32 0.0, %v1226
      %1228 = vmatmul.f32.gmra.mxu0 %v1152
      %v1229 = vpop.f32.mrf.mxu0
      %v1230 = vadd.f32 0.0, %v1229
      %1231 = vmatmul.f32.gmra.mxu0 %v1153
      %v1232 = vpop.f32.mrf.mxu0
      %v1233 = vadd.f32 0.0, %v1232
      %1234 = vdwg.mxu0
      %v1235 = vadd.f32 %v1122, %v1188
      %v1236 = vadd.f32 %v1123, %v1191
      %v1237 = vadd.f32 %v1124, %v1194
      %v1238 = vadd.f32 %v1125, %v1197
      %v1239 = vadd.f32 %v1126, %v1200
      %v1240 = vadd.f32 %v1127, %v1203
      %v1241 = vadd.f32 %v1128, %v1206
      %v1242 = vadd.f32 %v1129, %v1209
      %v1243 = vadd.f32 %v1130, %v1212
      %v1244 = vadd.f32 %v1131, %v1215
      %v1245 = vadd.f32 %v1132, %v1218
      %v1246 = vadd.f32 %v1133, %v1221
      %v1247 = vadd.f32 %v1134, %v1224
      %v1248 = vadd.f32 %v1135, %v1227
      %v1249 = vadd.f32 %v1136, %v1230
      %v1250 = vadd.f32 %v1137, %v1233
      %1251 = vst [vmem:[%s304] sm:$0xff] %v1235
      %1252 = vst [vmem:[%s304 + $0x8] sm:$0xff] %v1236
      %1253 = vst [vmem:[%s304 + $0x10] sm:$0xff] %v1237
      %1254 = vst [vmem:[%s304 + $0x18] sm:$0xff] %v1238
      %1255 = vst [vmem:[%s304 + $0x20] sm:$0xff] %v1239
      %1256 = vst [vmem:[%s304 + $0x28] sm:$0xff] %v1240
      %1257 = vst [vmem:[%s304 + $0x30] sm:$0xff] %v1241
      %1258 = vst [vmem:[%s304 + $0x38] sm:$0xff] %v1242
      %1259 = vst [vmem:[%s304 + $0x40] sm:$0xff] %v1243
      %1260 = vst [vmem:[%s304 + $0x48] sm:$0xff] %v1244
      %1261 = vst [vmem:[%s304 + $0x50] sm:$0xff] %v1245
      %1262 = vst [vmem:[%s304 + $0x58] sm:$0xff] %v1246
      %1263 = vst [vmem:[%s304 + $0x60] sm:$0xff] %v1247
      %1264 = vst [vmem:[%s304 + $0x68] sm:$0xff] %v1248
      %1265 = vst [vmem:[%s304 + $0x70] sm:$0xff] %v1249
      %1266 = vst [vmem:[%s304 + $0x78] sm:$0xff] %v1250
      %1267 = vrot.lane.b32.xlu0 %v329, 127
      %v1268 = vpop.permute.xlu0 %1267
      %1269 = vrot.lane.b32.xlu0 %v330, 127
      %v1270 = vpop.permute.xlu0 %1269
      %1271 = vrot.lane.b32.xlu0 %v331, 127
      %v1272 = vpop.permute.xlu0 %1271
      %1273 = vrot.lane.b32.xlu0 %v332, 127
      %v1274 = vpop.permute.xlu0 %1273
      %1275 = vrot.lane.b32.xlu0 %v333, 127
      %v1276 = vpop.permute.xlu0 %1275
      %1277 = vrot.lane.b32.xlu0 %v334, 127
      %v1278 = vpop.permute.xlu0 %1277
      %1279 = vrot.lane.b32.xlu0 %v335, 127
      %v1280 = vpop.permute.xlu0 %1279
      %1281 = vrot.lane.b32.xlu0 %v336, 127
      %v1282 = vpop.permute.xlu0 %1281
      %1283 = vrot.lane.b32.xlu0 %v337, 127
      %v1284 = vpop.permute.xlu0 %1283
      %1285 = vrot.lane.b32.xlu0 %v338, 127
      %v1286 = vpop.permute.xlu0 %1285
      %1287 = vrot.lane.b32.xlu0 %v339, 127
      %v1288 = vpop.permute.xlu0 %1287
      %1289 = vrot.lane.b32.xlu0 %v340, 127
      %v1290 = vpop.permute.xlu0 %1289
      %1291 = vrot.lane.b32.xlu0 %v341, 127
      %v1292 = vpop.permute.xlu0 %1291
      %1293 = vrot.lane.b32.xlu0 %v342, 127
      %v1294 = vpop.permute.xlu0 %1293
      %1295 = vrot.lane.b32.xlu0 %v343, 127
      %v1296 = vpop.permute.xlu0 %1295
      %1297 = vrot.lane.b32.xlu0 %v344, 127
      %v1298 = vpop.permute.xlu0 %1297
      %v1315 = vadd.f32 %v441, %v1268
      %v1316 = vadd.f32 %v442, %v1270
      %v1317 = vadd.f32 %v443, %v1272
      %v1318 = vadd.f32 %v444, %v1274
      %v1319 = vadd.f32 %v445, %v1276
      %v1320 = vadd.f32 %v446, %v1278
      %v1321 = vadd.f32 %v447, %v1280
      %v1322 = vadd.f32 %v448, %v1282
      %v1323 = vadd.f32 %v449, %v1284
      %v1324 = vadd.f32 %v450, %v1286
      %v1325 = vadd.f32 %v451, %v1288
      %v1326 = vadd.f32 %v452, %v1290
      %v1327 = vadd.f32 %v453, %v1292
      %v1328 = vadd.f32 %v454, %v1294
      %v1329 = vadd.f32 %v455, %v1296
      %v1330 = vadd.f32 %v456, %v1298
      %v1331 = vmax.f32 %v1315, 0.0
      %v1332 = vmax.f32 %v1316, 0.0
      %v1333 = vmax.f32 %v1317, 0.0
      %v1334 = vmax.f32 %v1318, 0.0
      %v1335 = vmax.f32 %v1319, 0.0
      %v1336 = vmax.f32 %v1320, 0.0
      %v1337 = vmax.f32 %v1321, 0.0
      %v1338 = vmax.f32 %v1322, 0.0
      %v1339 = vmax.f32 %v1323, 0.0
      %v1340 = vmax.f32 %v1324, 0.0
      %v1341 = vmax.f32 %v1325, 0.0
      %v1342 = vmax.f32 %v1326, 0.0
      %v1343 = vmax.f32 %v1327, 0.0
      %v1344 = vmax.f32 %v1328, 0.0
      %v1345 = vmax.f32 %v1329, 0.0
      %v1346 = vmax.f32 %v1330, 0.0
      %v1347 = vmin.f32 %v1331, 17.0
      %v1348 = vmin.f32 %v1332, 17.0
      %v1349 = vmin.f32 %v1333, 17.0
      %v1350 = vmin.f32 %v1334, 17.0
      %v1351 = vmin.f32 %v1335, 17.0
      %v1352 = vmin.f32 %v1336, 17.0
      %v1353 = vmin.f32 %v1337, 17.0
      %v1354 = vmin.f32 %v1338, 17.0
      %v1355 = vmin.f32 %v1339, 17.0
      %v1356 = vmin.f32 %v1340, 17.0
      %v1357 = vmin.f32 %v1341, 17.0
      %v1358 = vmin.f32 %v1342, 17.0
      %v1359 = vmin.f32 %v1343, 17.0
      %v1360 = vmin.f32 %v1344, 17.0
      %v1361 = vmin.f32 %v1345, 17.0
      %v1362 = vmin.f32 %v1346, 17.0
      %v1363 = vadd.f32 %v313, 0.0
      %v1364 = vadd.f32 %v314, 0.0
      %v1365 = vadd.f32 %v315, 0.0
      %v1366 = vadd.f32 %v316, 0.0
      %v1367 = vadd.f32 %v317, 0.0
      %v1368 = vadd.f32 %v318, 0.0
      %v1369 = vadd.f32 %v319, 0.0
      %v1370 = vadd.f32 %v320, 0.0
      %v1371 = vadd.f32 %v321, 0.0
      %v1372 = vadd.f32 %v322, 0.0
      %v1373 = vadd.f32 %v323, 0.0
      %v1374 = vadd.f32 %v324, 0.0
      %v1375 = vadd.f32 %v325, 0.0
      %v1376 = vadd.f32 %v326, 0.0
      %v1377 = vadd.f32 %v327, 0.0
      %v1378 = vadd.f32 %v328, 0.0
      %1379 = vrot.lane.b32.xlu0 %v329, 119
      %v1380 = vpop.permute.xlu0 %1379
      %1381 = vrot.lane.b32.xlu0 %v330, 119
      %v1382 = vpop.permute.xlu0 %1381
      %1383 = vrot.lane.b32.xlu0 %v331, 119
      %v1384 = vpop.permute.xlu0 %1383
      %1385 = vrot.lane.b32.xlu0 %v332, 119
      %v1386 = vpop.permute.xlu0 %1385
      %1387 = vrot.lane.b32.xlu0 %v333, 119
      %v1388 = vpop.permute.xlu0 %1387
      %1389 = vrot.lane.b32.xlu0 %v334, 119
      %v1390 = vpop.permute.xlu0 %1389
      %1391 = vrot.lane.b32.xlu0 %v335, 119
      %v1392 = vpop.permute.xlu0 %1391
      %1393 = vrot.lane.b32.xlu0 %v336, 119
      %v1394 = vpop.permute.xlu0 %1393
      %1395 = vrot.lane.b32.xlu0 %v337, 119
      %v1396 = vpop.permute.xlu0 %1395
      %1397 = vrot.lane.b32.xlu0 %v338, 119
      %v1398 = vpop.permute.xlu0 %1397
      %1399 = vrot.lane.b32.xlu0 %v339, 119
      %v1400 = vpop.permute.xlu0 %1399
      %1401 = vrot.lane.b32.xlu0 %v340, 119
      %v1402 = vpop.permute.xlu0 %1401
      %1403 = vrot.lane.b32.xlu0 %v341, 119
      %v1404 = vpop.permute.xlu0 %1403
      %1405 = vrot.lane.b32.xlu0 %v342, 119
      %v1406 = vpop.permute.xlu0 %1405
      %1407 = vrot.lane.b32.xlu0 %v343, 119
      %v1408 = vpop.permute.xlu0 %1407
      %1409 = vrot.lane.b32.xlu0 %v344, 119
      %v1410 = vpop.permute.xlu0 %1409
      %v1427 = vadd.f32 %v1363, %v1380
      %v1428 = vadd.f32 %v1364, %v1382
      %v1429 = vadd.f32 %v1365, %v1384
      %v1430 = vadd.f32 %v1366, %v1386
      %v1431 = vadd.f32 %v1367, %v1388
      %v1432 = vadd.f32 %v1368, %v1390
      %v1433 = vadd.f32 %v1369, %v1392
      %v1434 = vadd.f32 %v1370, %v1394
      %v1435 = vadd.f32 %v1371, %v1396
      %v1436 = vadd.f32 %v1372, %v1398
      %v1437 = vadd.f32 %v1373, %v1400
      %v1438 = vadd.f32 %v1374, %v1402
      %v1439 = vadd.f32 %v1375, %v1404
      %v1440 = vadd.f32 %v1376, %v1406
      %v1441 = vadd.f32 %v1377, %v1408
      %v1442 = vadd.f32 %v1378, %v1410
      %v1443 = vmax.f32 %v1427, 0.0
      %v1444 = vmax.f32 %v1428, 0.0
      %v1445 = vmax.f32 %v1429, 0.0
      %v1446 = vmax.f32 %v1430, 0.0
      %v1447 = vmax.f32 %v1431, 0.0
      %v1448 = vmax.f32 %v1432, 0.0
      %v1449 = vmax.f32 %v1433, 0.0
      %v1450 = vmax.f32 %v1434, 0.0
      %v1451 = vmax.f32 %v1435, 0.0
      %v1452 = vmax.f32 %v1436, 0.0
      %v1453 = vmax.f32 %v1437, 0.0
      %v1454 = vmax.f32 %v1438, 0.0
      %v1455 = vmax.f32 %v1439, 0.0
      %v1456 = vmax.f32 %v1440, 0.0
      %v1457 = vmax.f32 %v1441, 0.0
      %v1458 = vmax.f32 %v1442, 0.0
      %v1459 = vmin.f32 %v1443, 17.0
      %v1460 = vmin.f32 %v1444, 17.0
      %v1461 = vmin.f32 %v1445, 17.0
      %v1462 = vmin.f32 %v1446, 17.0
      %v1463 = vmin.f32 %v1447, 17.0
      %v1464 = vmin.f32 %v1448, 17.0
      %v1465 = vmin.f32 %v1449, 17.0
      %v1466 = vmin.f32 %v1450, 17.0
      %v1467 = vmin.f32 %v1451, 17.0
      %v1468 = vmin.f32 %v1452, 17.0
      %v1469 = vmin.f32 %v1453, 17.0
      %v1470 = vmin.f32 %v1454, 17.0
      %v1471 = vmin.f32 %v1455, 17.0
      %v1472 = vmin.f32 %v1456, 17.0
      %v1473 = vmin.f32 %v1457, 17.0
      %v1474 = vmin.f32 %v1458, 17.0
      %1476 = vset.pattern.permute.xlu0 0
      %1477 = vperm.xlu0 %1476, %v1347
      %v1478 = vpop.permute.xlu0 %1477
      %1481 = vset.pattern.permute.xlu0 0
      %1482 = vperm.xlu0 %1481, %v1348
      %v1483 = vpop.permute.xlu0 %1482
      %1486 = vset.pattern.permute.xlu0 0
      %1487 = vperm.xlu0 %1486, %v1349
      %v1488 = vpop.permute.xlu0 %1487
      %1491 = vset.pattern.permute.xlu0 0
      %1492 = vperm.xlu0 %1491, %v1350
      %v1493 = vpop.permute.xlu0 %1492
      %1496 = vset.pattern.permute.xlu0 0
      %1497 = vperm.xlu0 %1496, %v1351
      %v1498 = vpop.permute.xlu0 %1497
      %1501 = vset.pattern.permute.xlu0 0
      %1502 = vperm.xlu0 %1501, %v1352
      %v1503 = vpop.permute.xlu0 %1502
      %1506 = vset.pattern.permute.xlu0 0
      %1507 = vperm.xlu0 %1506, %v1353
      %v1508 = vpop.permute.xlu0 %1507
      %1511 = vset.pattern.permute.xlu0 0
      %1512 = vperm.xlu0 %1511, %v1354
      %v1513 = vpop.permute.xlu0 %1512
      %1516 = vset.pattern.permute.xlu0 0
      %1517 = vperm.xlu0 %1516, %v1355
      %v1518 = vpop.permute.xlu0 %1517
      %1521 = vset.pattern.permute.xlu0 0
      %1522 = vperm.xlu0 %1521, %v1356
      %v1523 = vpop.permute.xlu0 %1522
      %1526 = vset.pattern.permute.xlu0 0
      %1527 = vperm.xlu0 %1526, %v1357
      %v1528 = vpop.permute.xlu0 %1527
      %1531 = vset.pattern.permute.xlu0 0
      %1532 = vperm.xlu0 %1531, %v1358
      %v1533 = vpop.permute.xlu0 %1532
      %1536 = vset.pattern.permute.xlu0 0
      %1537 = vperm.xlu0 %1536, %v1359
      %v1538 = vpop.permute.xlu0 %1537
      %1541 = vset.pattern.permute.xlu0 0
      %1542 = vperm.xlu0 %1541, %v1360
      %v1543 = vpop.permute.xlu0 %1542
      %1546 = vset.pattern.permute.xlu0 0
      %1547 = vperm.xlu0 %1546, %v1361
      %v1548 = vpop.permute.xlu0 %1547
      %1551 = vset.pattern.permute.xlu0 0
      %1552 = vperm.xlu0 %1551, %v1362
      %v1553 = vpop.permute.xlu0 %1552
      %v1555 = vsub.f32 %v312, %v1478
      %v1556 = vsub.f32 %v312, %v1483
      %v1557 = vsub.f32 %v312, %v1488
      %v1558 = vsub.f32 %v312, %v1493
      %v1559 = vsub.f32 %v312, %v1498
      %v1560 = vsub.f32 %v312, %v1503
      %v1561 = vsub.f32 %v312, %v1508
      %v1562 = vsub.f32 %v312, %v1513
      %v1563 = vsub.f32 %v312, %v1518
      %v1564 = vsub.f32 %v312, %v1523
      %v1565 = vsub.f32 %v312, %v1528
      %v1566 = vsub.f32 %v312, %v1533
      %v1567 = vsub.f32 %v312, %v1538
      %v1568 = vsub.f32 %v312, %v1543
      %v1569 = vsub.f32 %v312, %v1548
      %v1570 = vsub.f32 %v312, %v1553
      %v1571 = vand.u32 2147483647, %v1555
      %v1572 = vand.u32 2147483647, %v1556
      %v1573 = vand.u32 2147483647, %v1557
      %v1574 = vand.u32 2147483647, %v1558
      %v1575 = vand.u32 2147483647, %v1559
      %v1576 = vand.u32 2147483647, %v1560
      %v1577 = vand.u32 2147483647, %v1561
      %v1578 = vand.u32 2147483647, %v1562
      %v1579 = vand.u32 2147483647, %v1563
      %v1580 = vand.u32 2147483647, %v1564
      %v1581 = vand.u32 2147483647, %v1565
      %v1582 = vand.u32 2147483647, %v1566
      %v1583 = vand.u32 2147483647, %v1567
      %v1584 = vand.u32 2147483647, %v1568
      %v1585 = vand.u32 2147483647, %v1569
      %v1586 = vand.u32 2147483647, %v1570
      %v1587 = vsub.f32 1.0, %v1571
      %v1588 = vsub.f32 1.0, %v1572
      %v1589 = vsub.f32 1.0, %v1573
      %v1590 = vsub.f32 1.0, %v1574
      %v1591 = vsub.f32 1.0, %v1575
      %v1592 = vsub.f32 1.0, %v1576
      %v1593 = vsub.f32 1.0, %v1577
      %v1594 = vsub.f32 1.0, %v1578
      %v1595 = vsub.f32 1.0, %v1579
      %v1596 = vsub.f32 1.0, %v1580
      %v1597 = vsub.f32 1.0, %v1581
      %v1598 = vsub.f32 1.0, %v1582
      %v1599 = vsub.f32 1.0, %v1583
      %v1600 = vsub.f32 1.0, %v1584
      %v1601 = vsub.f32 1.0, %v1585
      %v1602 = vsub.f32 1.0, %v1586
      %v1603 = vmax.f32 %v1587, 0.0
      %v1604 = vmax.f32 %v1588, 0.0
      %v1605 = vmax.f32 %v1589, 0.0
      %v1606 = vmax.f32 %v1590, 0.0
      %v1607 = vmax.f32 %v1591, 0.0
      %v1608 = vmax.f32 %v1592, 0.0
      %v1609 = vmax.f32 %v1593, 0.0
      %v1610 = vmax.f32 %v1594, 0.0
      %v1611 = vmax.f32 %v1595, 0.0
      %v1612 = vmax.f32 %v1596, 0.0
      %v1613 = vmax.f32 %v1597, 0.0
      %v1614 = vmax.f32 %v1598, 0.0
      %v1615 = vmax.f32 %v1599, 0.0
      %v1616 = vmax.f32 %v1600, 0.0
      %v1617 = vmax.f32 %v1601, 0.0
      %v1618 = vmax.f32 %v1602, 0.0
      %1619 = vset.pattern.permute.xlu0 19
      %1620 = vperm.xlu0 %1619, %v409
      %v1621 = vpop.permute.xlu0 %1620
      %1623 = vset.pattern.permute.xlu0 19
      %1624 = vperm.xlu0 %1623, %v410
      %v1625 = vpop.permute.xlu0 %1624
      %1627 = vset.pattern.permute.xlu0 19
      %1628 = vperm.xlu0 %1627, %v411
      %v1629 = vpop.permute.xlu0 %1628
      %1631 = vset.pattern.permute.xlu0 19
      %1632 = vperm.xlu0 %1631, %v412
      %v1633 = vpop.permute.xlu0 %1632
      %1635 = vset.pattern.permute.xlu0 19
      %1636 = vperm.xlu0 %1635, %v413
      %v1637 = vpop.permute.xlu0 %1636
      %1639 = vset.pattern.permute.xlu0 19
      %1640 = vperm.xlu0 %1639, %v414
      %v1641 = vpop.permute.xlu0 %1640
      %1643 = vset.pattern.permute.xlu0 19
      %1644 = vperm.xlu0 %1643, %v415
      %v1645 = vpop.permute.xlu0 %1644
      %1647 = vset.pattern.permute.xlu0 19
      %1648 = vperm.xlu0 %1647, %v416
      %v1649 = vpop.permute.xlu0 %1648
      %1651 = vset.pattern.permute.xlu0 19
      %1652 = vperm.xlu0 %1651, %v417
      %v1653 = vpop.permute.xlu0 %1652
      %1655 = vset.pattern.permute.xlu0 19
      %1656 = vperm.xlu0 %1655, %v418
      %v1657 = vpop.permute.xlu0 %1656
      %1659 = vset.pattern.permute.xlu0 19
      %1660 = vperm.xlu0 %1659, %v419
      %v1661 = vpop.permute.xlu0 %1660
      %1663 = vset.pattern.permute.xlu0 19
      %1664 = vperm.xlu0 %1663, %v420
      %v1665 = vpop.permute.xlu0 %1664
      %1667 = vset.pattern.permute.xlu0 19
      %1668 = vperm.xlu0 %1667, %v421
      %v1669 = vpop.permute.xlu0 %1668
      %1671 = vset.pattern.permute.xlu0 19
      %1672 = vperm.xlu0 %1671, %v422
      %v1673 = vpop.permute.xlu0 %1672
      %1675 = vset.pattern.permute.xlu0 19
      %1676 = vperm.xlu0 %1675, %v423
      %v1677 = vpop.permute.xlu0 %1676
      %1679 = vset.pattern.permute.xlu0 19
      %1680 = vperm.xlu0 %1679, %v424
      %v1681 = vpop.permute.xlu0 %1680
      %v1683 = vmul.f32 %v1603, %v1621
      %v1684 = vmul.f32 %v1604, %v1625
      %v1685 = vmul.f32 %v1605, %v1629
      %v1686 = vmul.f32 %v1606, %v1633
      %v1687 = vmul.f32 %v1607, %v1637
      %v1688 = vmul.f32 %v1608, %v1641
      %v1689 = vmul.f32 %v1609, %v1645
      %v1690 = vmul.f32 %v1610, %v1649
      %v1691 = vmul.f32 %v1611, %v1653
      %v1692 = vmul.f32 %v1612, %v1657
      %v1693 = vmul.f32 %v1613, %v1661
      %v1694 = vmul.f32 %v1614, %v1665
      %v1695 = vmul.f32 %v1615, %v1669
      %v1696 = vmul.f32 %v1616, %v1673
      %v1697 = vmul.f32 %v1617, %v1677
      %v1698 = vmul.f32 %v1618, %v1681
      %v1700 = vsel %vm857, %v1683, 0
      %v1703 = vsel %vm857, %v1684, 0
      %v1706 = vsel %vm857, %v1685, 0
      %v1709 = vsel %vm857, %v1686, 0
      %v1712 = vsel %vm857, %v1687, 0
      %v1715 = vsel %vm857, %v1688, 0
      %v1718 = vsel %vm857, %v1689, 0
      %v1721 = vsel %vm857, %v1690, 0
      %v1724 = vsel %vm857, %v1691, 0
      %v1727 = vsel %vm857, %v1692, 0
      %v1730 = vsel %vm857, %v1693, 0
      %v1733 = vsel %vm857, %v1694, 0
      %v1736 = vsel %vm857, %v1695, 0
      %v1739 = vsel %vm857, %v1696, 0
      %v1742 = vsel %vm857, %v1697, 0
      %v1745 = vsel %vm857, %v1698, 0
      %1747 = vmatpush.msra.mxu0 0.0
      %1748 = vmatpush.msra.mxu0 0.0
      %1749 = vmatpush.msra.mxu0 0.0
      %1750 = vmatpush.msra.mxu0 0.0
      %1751 = vmatpush.msra.mxu0 0.0
      %1752 = vmatpush.msra.mxu0 0.0
      %1753 = vmatpush.msra.mxu0 0.0
      %1754 = vmatpush.msra.mxu0 0.0
      %1755 = vmatpush.msra.mxu0 0.0
      %1756 = vmatpush.msra.mxu0 0.0
      %1757 = vmatpush.msra.mxu0 0.0
      %1758 = vmatpush.msra.mxu0 0.0
      %1759 = vmatpush.msra.mxu0 0.0
      %1760 = vmatpush.msra.mxu0 %v908
      %1761 = vmatpush.msra.mxu0 %v307
      %1762 = vmatpush.msra.mxu0 %v306
      %1763 = vmatmul.f32.gmra.mxu0 %v1700
      %v1764 = vpop.f32.mrf.mxu0
      %v1765 = vadd.f32 0.0, %v1764
      %1766 = vmatmul.f32.gmra.mxu0 %v1703
      %v1767 = vpop.f32.mrf.mxu0
      %v1768 = vadd.f32 0.0, %v1767
      %1769 = vmatmul.f32.gmra.mxu0 %v1706
      %v1770 = vpop.f32.mrf.mxu0
      %v1771 = vadd.f32 0.0, %v1770
      %1772 = vmatmul.f32.gmra.mxu0 %v1709
      %v1773 = vpop.f32.mrf.mxu0
      %v1774 = vadd.f32 0.0, %v1773
      %1775 = vmatmul.f32.gmra.mxu0 %v1712
      %v1776 = vpop.f32.mrf.mxu0
      %v1777 = vadd.f32 0.0, %v1776
      %1778 = vmatmul.f32.gmra.mxu0 %v1715
      %v1779 = vpop.f32.mrf.mxu0
      %v1780 = vadd.f32 0.0, %v1779
      %1781 = vmatmul.f32.gmra.mxu0 %v1718
      %v1782 = vpop.f32.mrf.mxu0
      %v1783 = vadd.f32 0.0, %v1782
      %1784 = vmatmul.f32.gmra.mxu0 %v1721
      %v1785 = vpop.f32.mrf.mxu0
      %v1786 = vadd.f32 0.0, %v1785
      %1787 = vmatmul.f32.gmra.mxu0 %v1724
      %v1788 = vpop.f32.mrf.mxu0
      %v1789 = vadd.f32 0.0, %v1788
      %1790 = vmatmul.f32.gmra.mxu0 %v1727
      %v1791 = vpop.f32.mrf.mxu0
      %v1792 = vadd.f32 0.0, %v1791
      %1793 = vmatmul.f32.gmra.mxu0 %v1730
      %v1794 = vpop.f32.mrf.mxu0
      %v1795 = vadd.f32 0.0, %v1794
      %1796 = vmatmul.f32.gmra.mxu0 %v1733
      %v1797 = vpop.f32.mrf.mxu0
      %v1798 = vadd.f32 0.0, %v1797
      %1799 = vmatmul.f32.gmra.mxu0 %v1736
      %v1800 = vpop.f32.mrf.mxu0
      %v1801 = vadd.f32 0.0, %v1800
      %1802 = vmatmul.f32.gmra.mxu0 %v1739
      %v1803 = vpop.f32.mrf.mxu0
      %v1804 = vadd.f32 0.0, %v1803
      %1805 = vmatmul.f32.gmra.mxu0 %v1742
      %v1806 = vpop.f32.mrf.mxu0
      %v1807 = vadd.f32 0.0, %v1806
      %1808 = vmatmul.f32.gmra.mxu0 %v1745
      %v1809 = vpop.f32.mrf.mxu0
      %v1810 = vadd.f32 0.0, %v1809
      %1811 = vdwg.mxu0
      %1813 = vset.pattern.permute.xlu0 1
      %1814 = vperm.xlu0 %1813, %v1459
      %v1815 = vpop.permute.xlu0 %1814
      %1818 = vset.pattern.permute.xlu0 1
      %1819 = vperm.xlu0 %1818, %v1460
      %v1820 = vpop.permute.xlu0 %1819
      %1823 = vset.pattern.permute.xlu0 1
      %1824 = vperm.xlu0 %1823, %v1461
      %v1825 = vpop.permute.xlu0 %1824
      %1828 = vset.pattern.permute.xlu0 1
      %1829 = vperm.xlu0 %1828, %v1462
      %v1830 = vpop.permute.xlu0 %1829
      %1833 = vset.pattern.permute.xlu0 1
      %1834 = vperm.xlu0 %1833, %v1463
      %v1835 = vpop.permute.xlu0 %1834
      %1838 = vset.pattern.permute.xlu0 1
      %1839 = vperm.xlu0 %1838, %v1464
      %v1840 = vpop.permute.xlu0 %1839
      %1843 = vset.pattern.permute.xlu0 1
      %1844 = vperm.xlu0 %1843, %v1465
      %v1845 = vpop.permute.xlu0 %1844
      %1848 = vset.pattern.permute.xlu0 1
      %1849 = vperm.xlu0 %1848, %v1466
      %v1850 = vpop.permute.xlu0 %1849
      %1853 = vset.pattern.permute.xlu0 1
      %1854 = vperm.xlu0 %1853, %v1467
      %v1855 = vpop.permute.xlu0 %1854
      %1858 = vset.pattern.permute.xlu0 1
      %1859 = vperm.xlu0 %1858, %v1468
      %v1860 = vpop.permute.xlu0 %1859
      %1863 = vset.pattern.permute.xlu0 1
      %1864 = vperm.xlu0 %1863, %v1469
      %v1865 = vpop.permute.xlu0 %1864
      %1868 = vset.pattern.permute.xlu0 1
      %1869 = vperm.xlu0 %1868, %v1470
      %v1870 = vpop.permute.xlu0 %1869
      %1873 = vset.pattern.permute.xlu0 1
      %1874 = vperm.xlu0 %1873, %v1471
      %v1875 = vpop.permute.xlu0 %1874
      %1878 = vset.pattern.permute.xlu0 1
      %1879 = vperm.xlu0 %1878, %v1472
      %v1880 = vpop.permute.xlu0 %1879
      %1883 = vset.pattern.permute.xlu0 1
      %1884 = vperm.xlu0 %1883, %v1473
      %v1885 = vpop.permute.xlu0 %1884
      %1888 = vset.pattern.permute.xlu0 1
      %1889 = vperm.xlu0 %1888, %v1474
      %v1890 = vpop.permute.xlu0 %1889
      %v1892 = vsub.f32 %v976, %v1815
      %v1893 = vsub.f32 %v976, %v1820
      %v1894 = vsub.f32 %v976, %v1825
      %v1895 = vsub.f32 %v976, %v1830
      %v1896 = vsub.f32 %v976, %v1835
      %v1897 = vsub.f32 %v976, %v1840
      %v1898 = vsub.f32 %v976, %v1845
      %v1899 = vsub.f32 %v976, %v1850
      %v1900 = vsub.f32 %v976, %v1855
      %v1901 = vsub.f32 %v976, %v1860
      %v1902 = vsub.f32 %v976, %v1865
      %v1903 = vsub.f32 %v976, %v1870
      %v1904 = vsub.f32 %v976, %v1875
      %v1905 = vsub.f32 %v976, %v1880
      %v1906 = vsub.f32 %v976, %v1885
      %v1907 = vsub.f32 %v976, %v1890
      %v1908 = vand.u32 2147483647, %v1892
      %v1909 = vand.u32 2147483647, %v1893
      %v1910 = vand.u32 2147483647, %v1894
      %v1911 = vand.u32 2147483647, %v1895
      %v1912 = vand.u32 2147483647, %v1896
      %v1913 = vand.u32 2147483647, %v1897
      %v1914 = vand.u32 2147483647, %v1898
      %v1915 = vand.u32 2147483647, %v1899
      %v1916 = vand.u32 2147483647, %v1900
      %v1917 = vand.u32 2147483647, %v1901
      %v1918 = vand.u32 2147483647, %v1902
      %v1919 = vand.u32 2147483647, %v1903
      %v1920 = vand.u32 2147483647, %v1904
      %v1921 = vand.u32 2147483647, %v1905
      %v1922 = vand.u32 2147483647, %v1906
      %v1923 = vand.u32 2147483647, %v1907
      %v1924 = vsub.f32 1.0, %v1908
      %v1925 = vsub.f32 1.0, %v1909
      %v1926 = vsub.f32 1.0, %v1910
      %v1927 = vsub.f32 1.0, %v1911
      %v1928 = vsub.f32 1.0, %v1912
      %v1929 = vsub.f32 1.0, %v1913
      %v1930 = vsub.f32 1.0, %v1914
      %v1931 = vsub.f32 1.0, %v1915
      %v1932 = vsub.f32 1.0, %v1916
      %v1933 = vsub.f32 1.0, %v1917
      %v1934 = vsub.f32 1.0, %v1918
      %v1935 = vsub.f32 1.0, %v1919
      %v1936 = vsub.f32 1.0, %v1920
      %v1937 = vsub.f32 1.0, %v1921
      %v1938 = vsub.f32 1.0, %v1922
      %v1939 = vsub.f32 1.0, %v1923
      %v1940 = vmax.f32 %v1924, 0.0
      %v1941 = vmax.f32 %v1925, 0.0
      %v1942 = vmax.f32 %v1926, 0.0
      %v1943 = vmax.f32 %v1927, 0.0
      %v1944 = vmax.f32 %v1928, 0.0
      %v1945 = vmax.f32 %v1929, 0.0
      %v1946 = vmax.f32 %v1930, 0.0
      %v1947 = vmax.f32 %v1931, 0.0
      %v1948 = vmax.f32 %v1932, 0.0
      %v1949 = vmax.f32 %v1933, 0.0
      %v1950 = vmax.f32 %v1934, 0.0
      %v1951 = vmax.f32 %v1935, 0.0
      %v1952 = vmax.f32 %v1936, 0.0
      %v1953 = vmax.f32 %v1937, 0.0
      %v1954 = vmax.f32 %v1938, 0.0
      %v1955 = vmax.f32 %v1939, 0.0
      %v1956 = vld [vmem:[%s304] sm:$0xff]
      %v1957 = vld [vmem:[%s304 + $0x8] sm:$0xff]
      %v1958 = vld [vmem:[%s304 + $0x10] sm:$0xff]
      %v1959 = vld [vmem:[%s304 + $0x18] sm:$0xff]
      %v1960 = vld [vmem:[%s304 + $0x20] sm:$0xff]
      %v1961 = vld [vmem:[%s304 + $0x28] sm:$0xff]
      %v1962 = vld [vmem:[%s304 + $0x30] sm:$0xff]
      %v1963 = vld [vmem:[%s304 + $0x38] sm:$0xff]
      %v1964 = vld [vmem:[%s304 + $0x40] sm:$0xff]
      %v1965 = vld [vmem:[%s304 + $0x48] sm:$0xff]
      %v1966 = vld [vmem:[%s304 + $0x50] sm:$0xff]
      %v1967 = vld [vmem:[%s304 + $0x58] sm:$0xff]
      %v1968 = vld [vmem:[%s304 + $0x60] sm:$0xff]
      %v1969 = vld [vmem:[%s304 + $0x68] sm:$0xff]
      %v1970 = vld [vmem:[%s304 + $0x70] sm:$0xff]
      %v1971 = vld [vmem:[%s304 + $0x78] sm:$0xff]
      %v1972 = vmul.f32 %v1940, %v1765
      %v1973 = vmul.f32 %v1941, %v1768
      %v1974 = vmul.f32 %v1942, %v1771
      %v1975 = vmul.f32 %v1943, %v1774
      %v1976 = vmul.f32 %v1944, %v1777
      %v1977 = vmul.f32 %v1945, %v1780
      %v1978 = vmul.f32 %v1946, %v1783
      %v1979 = vmul.f32 %v1947, %v1786
      %v1980 = vmul.f32 %v1948, %v1789
      %v1981 = vmul.f32 %v1949, %v1792
      %v1982 = vmul.f32 %v1950, %v1795
      %v1983 = vmul.f32 %v1951, %v1798
      %v1984 = vmul.f32 %v1952, %v1801
      %v1985 = vmul.f32 %v1953, %v1804
      %v1986 = vmul.f32 %v1954, %v1807
      %v1987 = vmul.f32 %v1955, %v1810
      %s1988 = scalar_lea.vmem %s3, 128
      %v1989 = vld [vmem:[%s1988] sm:$0xff]
      %v1990 = vld [vmem:[%s1988 + $0x8] sm:$0xff]
      %v1991 = vld [vmem:[%s1988 + $0x10] sm:$0xff]
      %v1992 = vld [vmem:[%s1988 + $0x18] sm:$0xff]
      %v1993 = vld [vmem:[%s1988 + $0x20] sm:$0xff]
      %v1994 = vld [vmem:[%s1988 + $0x28] sm:$0xff]
      %v1995 = vld [vmem:[%s1988 + $0x30] sm:$0xff]
      %v1996 = vld [vmem:[%s1988 + $0x38] sm:$0xff]
      %v1997 = vld [vmem:[%s1988 + $0x40] sm:$0xff]
      %v1998 = vld [vmem:[%s1988 + $0x48] sm:$0xff]
      %v1999 = vld [vmem:[%s1988 + $0x50] sm:$0xff]
      %v2000 = vld [vmem:[%s1988 + $0x58] sm:$0xff]
      %v2001 = vld [vmem:[%s1988 + $0x60] sm:$0xff]
      %v2002 = vld [vmem:[%s1988 + $0x68] sm:$0xff]
      %v2003 = vld [vmem:[%s1988 + $0x70] sm:$0xff]
      %v2004 = vld [vmem:[%s1988 + $0x78] sm:$0xff]
      %2005 = vmatpush.msra.mxu0 %v2004
      %2006 = vmatpush.msra.mxu0 %v2003
      %2007 = vmatpush.msra.mxu0 %v2002
      %2008 = vmatpush.msra.mxu0 %v2001
      %2009 = vmatpush.msra.mxu0 %v2000
      %2010 = vmatpush.msra.mxu0 %v1999
      %2011 = vmatpush.msra.mxu0 %v1998
      %2012 = vmatpush.msra.mxu0 %v1997
      %2013 = vmatpush.msra.mxu0 %v1996
      %2014 = vmatpush.msra.mxu0 %v1995
      %2015 = vmatpush.msra.mxu0 %v1994
      %2016 = vmatpush.msra.mxu0 %v1993
      %2017 = vmatpush.msra.mxu0 %v1992
      %2018 = vmatpush.msra.mxu0 %v1991
      %2019 = vmatpush.msra.mxu0 %v1990
      %2020 = vmatpush.msra.mxu0 %v1989
      %2021 = vmatmul.f32.gmra.mxu0 %v1972
      %v2022 = vpop.f32.mrf.mxu0
      %v2023 = vadd.f32 0.0, %v2022
      %2024 = vmatmul.f32.gmra.mxu0 %v1973
      %v2025 = vpop.f32.mrf.mxu0
      %v2026 = vadd.f32 0.0, %v2025
      %2027 = vmatmul.f32.gmra.mxu0 %v1974
      %v2028 = vpop.f32.mrf.mxu0
      %v2029 = vadd.f32 0.0, %v2028
      %2030 = vmatmul.f32.gmra.mxu0 %v1975
      %v2031 = vpop.f32.mrf.mxu0
      %v2032 = vadd.f32 0.0, %v2031
      %2033 = vmatmul.f32.gmra.mxu0 %v1976
      %v2034 = vpop.f32.mrf.mxu0
      %v2035 = vadd.f32 0.0, %v2034
      %2036 = vmatmul.f32.gmra.mxu0 %v1977
      %v2037 = vpop.f32.mrf.mxu0
      %v2038 = vadd.f32 0.0, %v2037
      %2039 = vmatmul.f32.gmra.mxu0 %v1978
      %v2040 = vpop.f32.mrf.mxu0
      %v2041 = vadd.f32 0.0, %v2040
      %2042 = vmatmul.f32.gmra.mxu0 %v1979
      %v2043 = vpop.f32.mrf.mxu0
      %v2044 = vadd.f32 0.0, %v2043
      %2045 = vmatmul.f32.gmra.mxu0 %v1980
      %v2046 = vpop.f32.mrf.mxu0
      %v2047 = vadd.f32 0.0, %v2046
      %2048 = vmatmul.f32.gmra.mxu0 %v1981
      %v2049 = vpop.f32.mrf.mxu0
      %v2050 = vadd.f32 0.0, %v2049
      %2051 = vmatmul.f32.gmra.mxu0 %v1982
      %v2052 = vpop.f32.mrf.mxu0
      %v2053 = vadd.f32 0.0, %v2052
      %2054 = vmatmul.f32.gmra.mxu0 %v1983
      %v2055 = vpop.f32.mrf.mxu0
      %v2056 = vadd.f32 0.0, %v2055
      %2057 = vmatmul.f32.gmra.mxu0 %v1984
      %v2058 = vpop.f32.mrf.mxu0
      %v2059 = vadd.f32 0.0, %v2058
      %2060 = vmatmul.f32.gmra.mxu0 %v1985
      %v2061 = vpop.f32.mrf.mxu0
      %v2062 = vadd.f32 0.0, %v2061
      %2063 = vmatmul.f32.gmra.mxu0 %v1986
      %v2064 = vpop.f32.mrf.mxu0
      %v2065 = vadd.f32 0.0, %v2064
      %2066 = vmatmul.f32.gmra.mxu0 %v1987
      %v2067 = vpop.f32.mrf.mxu0
      %v2068 = vadd.f32 0.0, %v2067
      %2069 = vdwg.mxu0
      %v2070 = vadd.f32 %v1956, %v2023
      %v2071 = vadd.f32 %v1957, %v2026
      %v2072 = vadd.f32 %v1958, %v2029
      %v2073 = vadd.f32 %v1959, %v2032
      %v2074 = vadd.f32 %v1960, %v2035
      %v2075 = vadd.f32 %v1961, %v2038
      %v2076 = vadd.f32 %v1962, %v2041
      %v2077 = vadd.f32 %v1963, %v2044
      %v2078 = vadd.f32 %v1964, %v2047
      %v2079 = vadd.f32 %v1965, %v2050
      %v2080 = vadd.f32 %v1966, %v2053
      %v2081 = vadd.f32 %v1967, %v2056
      %v2082 = vadd.f32 %v1968, %v2059
      %v2083 = vadd.f32 %v1969, %v2062
      %v2084 = vadd.f32 %v1970, %v2065
      %v2085 = vadd.f32 %v1971, %v2068
      %2086 = vst [vmem:[%s304] sm:$0xff] %v2070
      %2087 = vst [vmem:[%s304 + $0x8] sm:$0xff] %v2071
      %2088 = vst [vmem:[%s304 + $0x10] sm:$0xff] %v2072
      %2089 = vst [vmem:[%s304 + $0x18] sm:$0xff] %v2073
      %2090 = vst [vmem:[%s304 + $0x20] sm:$0xff] %v2074
      %2091 = vst [vmem:[%s304 + $0x28] sm:$0xff] %v2075
      %2092 = vst [vmem:[%s304 + $0x30] sm:$0xff] %v2076
      %2093 = vst [vmem:[%s304 + $0x38] sm:$0xff] %v2077
      %2094 = vst [vmem:[%s304 + $0x40] sm:$0xff] %v2078
      %2095 = vst [vmem:[%s304 + $0x48] sm:$0xff] %v2079
      %2096 = vst [vmem:[%s304 + $0x50] sm:$0xff] %v2080
      %2097 = vst [vmem:[%s304 + $0x58] sm:$0xff] %v2081
      %2098 = vst [vmem:[%s304 + $0x60] sm:$0xff] %v2082
      %2099 = vst [vmem:[%s304 + $0x68] sm:$0xff] %v2083
      %2100 = vst [vmem:[%s304 + $0x70] sm:$0xff] %v2084
      %2101 = vst [vmem:[%s304 + $0x78] sm:$0xff] %v2085
      %2102 = vrot.lane.b32.xlu0 %v329, 126
      %v2103 = vpop.permute.xlu0 %2102
      %2104 = vrot.lane.b32.xlu0 %v330, 126
      %v2105 = vpop.permute.xlu0 %2104
      %2106 = vrot.lane.b32.xlu0 %v331, 126
      %v2107 = vpop.permute.xlu0 %2106
      %2108 = vrot.lane.b32.xlu0 %v332, 126
      %v2109 = vpop.permute.xlu0 %2108
      %2110 = vrot.lane.b32.xlu0 %v333, 126
      %v2111 = vpop.permute.xlu0 %2110
      %2112 = vrot.lane.b32.xlu0 %v334, 126
      %v2113 = vpop.permute.xlu0 %2112
      %2114 = vrot.lane.b32.xlu0 %v335, 126
      %v2115 = vpop.permute.xlu0 %2114
      %2116 = vrot.lane.b32.xlu0 %v336, 126
      %v2117 = vpop.permute.xlu0 %2116
      %2118 = vrot.lane.b32.xlu0 %v337, 126
      %v2119 = vpop.permute.xlu0 %2118
      %2120 = vrot.lane.b32.xlu0 %v338, 126
      %v2121 = vpop.permute.xlu0 %2120
      %2122 = vrot.lane.b32.xlu0 %v339, 126
      %v2123 = vpop.permute.xlu0 %2122
      %2124 = vrot.lane.b32.xlu0 %v340, 126
      %v2125 = vpop.permute.xlu0 %2124
      %2126 = vrot.lane.b32.xlu0 %v341, 126
      %v2127 = vpop.permute.xlu0 %2126
      %2128 = vrot.lane.b32.xlu0 %v342, 126
      %v2129 = vpop.permute.xlu0 %2128
      %2130 = vrot.lane.b32.xlu0 %v343, 126
      %v2131 = vpop.permute.xlu0 %2130
      %2132 = vrot.lane.b32.xlu0 %v344, 126
      %v2133 = vpop.permute.xlu0 %2132
      %v2150 = vadd.f32 %v441, %v2103
      %v2151 = vadd.f32 %v442, %v2105
      %v2152 = vadd.f32 %v443, %v2107
      %v2153 = vadd.f32 %v444, %v2109
      %v2154 = vadd.f32 %v445, %v2111
      %v2155 = vadd.f32 %v446, %v2113
      %v2156 = vadd.f32 %v447, %v2115
      %v2157 = vadd.f32 %v448, %v2117
      %v2158 = vadd.f32 %v449, %v2119
      %v2159 = vadd.f32 %v450, %v2121
      %v2160 = vadd.f32 %v451, %v2123
      %v2161 = vadd.f32 %v452, %v2125
      %v2162 = vadd.f32 %v453, %v2127
      %v2163 = vadd.f32 %v454, %v2129
      %v2164 = vadd.f32 %v455, %v2131
      %v2165 = vadd.f32 %v456, %v2133
      %v2166 = vmax.f32 %v2150, 0.0
      %v2167 = vmax.f32 %v2151, 0.0
      %v2168 = vmax.f32 %v2152, 0.0
      %v2169 = vmax.f32 %v2153, 0.0
      %v2170 = vmax.f32 %v2154, 0.0
      %v2171 = vmax.f32 %v2155, 0.0
      %v2172 = vmax.f32 %v2156, 0.0
      %v2173 = vmax.f32 %v2157, 0.0
      %v2174 = vmax.f32 %v2158, 0.0
      %v2175 = vmax.f32 %v2159, 0.0
      %v2176 = vmax.f32 %v2160, 0.0
      %v2177 = vmax.f32 %v2161, 0.0
      %v2178 = vmax.f32 %v2162, 0.0
      %v2179 = vmax.f32 %v2163, 0.0
      %v2180 = vmax.f32 %v2164, 0.0
      %v2181 = vmax.f32 %v2165, 0.0
      %v2182 = vmin.f32 %v2166, 17.0
      %v2183 = vmin.f32 %v2167, 17.0
      %v2184 = vmin.f32 %v2168, 17.0
      %v2185 = vmin.f32 %v2169, 17.0
      %v2186 = vmin.f32 %v2170, 17.0
      %v2187 = vmin.f32 %v2171, 17.0
      %v2188 = vmin.f32 %v2172, 17.0
      %v2189 = vmin.f32 %v2173, 17.0
      %v2190 = vmin.f32 %v2174, 17.0
      %v2191 = vmin.f32 %v2175, 17.0
      %v2192 = vmin.f32 %v2176, 17.0
      %v2193 = vmin.f32 %v2177, 17.0
      %v2194 = vmin.f32 %v2178, 17.0
      %v2195 = vmin.f32 %v2179, 17.0
      %v2196 = vmin.f32 %v2180, 17.0
      %v2197 = vmin.f32 %v2181, 17.0
      %v2198 = vadd.f32 %v313, 1.0
      %v2199 = vadd.f32 %v314, 1.0
      %v2200 = vadd.f32 %v315, 1.0
      %v2201 = vadd.f32 %v316, 1.0
      %v2202 = vadd.f32 %v317, 1.0
      %v2203 = vadd.f32 %v318, 1.0
      %v2204 = vadd.f32 %v319, 1.0
      %v2205 = vadd.f32 %v320, 1.0
      %v2206 = vadd.f32 %v321, 1.0
      %v2207 = vadd.f32 %v322, 1.0
      %v2208 = vadd.f32 %v323, 1.0
      %v2209 = vadd.f32 %v324, 1.0
      %v2210 = vadd.f32 %v325, 1.0
      %v2211 = vadd.f32 %v326, 1.0
      %v2212 = vadd.f32 %v327, 1.0
      %v2213 = vadd.f32 %v328, 1.0
      %2214 = vrot.lane.b32.xlu0 %v329, 118
      %v2215 = vpop.permute.xlu0 %2214
      %2216 = vrot.lane.b32.xlu0 %v330, 118
      %v2217 = vpop.permute.xlu0 %2216
      %2218 = vrot.lane.b32.xlu0 %v331, 118
      %v2219 = vpop.permute.xlu0 %2218
      %2220 = vrot.lane.b32.xlu0 %v332, 118
      %v2221 = vpop.permute.xlu0 %2220
      %2222 = vrot.lane.b32.xlu0 %v333, 118
      %v2223 = vpop.permute.xlu0 %2222
      %2224 = vrot.lane.b32.xlu0 %v334, 118
      %v2225 = vpop.permute.xlu0 %2224
      %2226 = vrot.lane.b32.xlu0 %v335, 118
      %v2227 = vpop.permute.xlu0 %2226
      %2228 = vrot.lane.b32.xlu0 %v336, 118
      %v2229 = vpop.permute.xlu0 %2228
      %2230 = vrot.lane.b32.xlu0 %v337, 118
      %v2231 = vpop.permute.xlu0 %2230
      %2232 = vrot.lane.b32.xlu0 %v338, 118
      %v2233 = vpop.permute.xlu0 %2232
      %2234 = vrot.lane.b32.xlu0 %v339, 118
      %v2235 = vpop.permute.xlu0 %2234
      %2236 = vrot.lane.b32.xlu0 %v340, 118
      %v2237 = vpop.permute.xlu0 %2236
      %2238 = vrot.lane.b32.xlu0 %v341, 118
      %v2239 = vpop.permute.xlu0 %2238
      %2240 = vrot.lane.b32.xlu0 %v342, 118
      %v2241 = vpop.permute.xlu0 %2240
      %2242 = vrot.lane.b32.xlu0 %v343, 118
      %v2243 = vpop.permute.xlu0 %2242
      %2244 = vrot.lane.b32.xlu0 %v344, 118
      %v2245 = vpop.permute.xlu0 %2244
      %v2262 = vadd.f32 %v2198, %v2215
      %v2263 = vadd.f32 %v2199, %v2217
      %v2264 = vadd.f32 %v2200, %v2219
      %v2265 = vadd.f32 %v2201, %v2221
      %v2266 = vadd.f32 %v2202, %v2223
      %v2267 = vadd.f32 %v2203, %v2225
      %v2268 = vadd.f32 %v2204, %v2227
      %v2269 = vadd.f32 %v2205, %v2229
      %v2270 = vadd.f32 %v2206, %v2231
      %v2271 = vadd.f32 %v2207, %v2233
      %v2272 = vadd.f32 %v2208, %v2235
      %v2273 = vadd.f32 %v2209, %v2237
      %v2274 = vadd.f32 %v2210, %v2239
      %v2275 = vadd.f32 %v2211, %v2241
      %v2276 = vadd.f32 %v2212, %v2243
      %v2277 = vadd.f32 %v2213, %v2245
      %v2278 = vmax.f32 %v2262, 0.0
      %v2279 = vmax.f32 %v2263, 0.0
      %v2280 = vmax.f32 %v2264, 0.0
      %v2281 = vmax.f32 %v2265, 0.0
      %v2282 = vmax.f32 %v2266, 0.0
      %v2283 = vmax.f32 %v2267, 0.0
      %v2284 = vmax.f32 %v2268, 0.0
      %v2285 = vmax.f32 %v2269, 0.0
      %v2286 = vmax.f32 %v2270, 0.0
      %v2287 = vmax.f32 %v2271, 0.0
      %v2288 = vmax.f32 %v2272, 0.0
      %v2289 = vmax.f32 %v2273, 0.0
      %v2290 = vmax.f32 %v2274, 0.0
      %v2291 = vmax.f32 %v2275, 0.0
      %v2292 = vmax.f32 %v2276, 0.0
      %v2293 = vmax.f32 %v2277, 0.0
      %v2294 = vmin.f32 %v2278, 17.0
      %v2295 = vmin.f32 %v2279, 17.0
      %v2296 = vmin.f32 %v2280, 17.0
      %v2297 = vmin.f32 %v2281, 17.0
      %v2298 = vmin.f32 %v2282, 17.0
      %v2299 = vmin.f32 %v2283, 17.0
      %v2300 = vmin.f32 %v2284, 17.0
      %v2301 = vmin.f32 %v2285, 17.0
      %v2302 = vmin.f32 %v2286, 17.0
      %v2303 = vmin.f32 %v2287, 17.0
      %v2304 = vmin.f32 %v2288, 17.0
      %v2305 = vmin.f32 %v2289, 17.0
      %v2306 = vmin.f32 %v2290, 17.0
      %v2307 = vmin.f32 %v2291, 17.0
      %v2308 = vmin.f32 %v2292, 17.0
      %v2309 = vmin.f32 %v2293, 17.0
      %2311 = vset.pattern.permute.xlu0 0
      %2312 = vperm.xlu0 %2311, %v2182
      %v2313 = vpop.permute.xlu0 %2312
      %2316 = vset.pattern.permute.xlu0 0
      %2317 = vperm.xlu0 %2316, %v2183
      %v2318 = vpop.permute.xlu0 %2317
      %2321 = vset.pattern.permute.xlu0 0
      %2322 = vperm.xlu0 %2321, %v2184
      %v2323 = vpop.permute.xlu0 %2322
      %2326 = vset.pattern.permute.xlu0 0
      %2327 = vperm.xlu0 %2326, %v2185
      %v2328 = vpop.permute.xlu0 %2327
      %2331 = vset.pattern.permute.xlu0 0
      %2332 = vperm.xlu0 %2331, %v2186
      %v2333 = vpop.permute.xlu0 %2332
      %2336 = vset.pattern.permute.xlu0 0
      %2337 = vperm.xlu0 %2336, %v2187
      %v2338 = vpop.permute.xlu0 %2337
      %2341 = vset.pattern.permute.xlu0 0
      %2342 = vperm.xlu0 %2341, %v2188
      %v2343 = vpop.permute.xlu0 %2342
      %2346 = vset.pattern.permute.xlu0 0
      %2347 = vperm.xlu0 %2346, %v2189
      %v2348 = vpop.permute.xlu0 %2347
      %2351 = vset.pattern.permute.xlu0 0
      %2352 = vperm.xlu0 %2351, %v2190
      %v2353 = vpop.permute.xlu0 %2352
      %2356 = vset.pattern.permute.xlu0 0
      %2357 = vperm.xlu0 %2356, %v2191
      %v2358 = vpop.permute.xlu0 %2357
      %2361 = vset.pattern.permute.xlu0 0
      %2362 = vperm.xlu0 %2361, %v2192
      %v2363 = vpop.permute.xlu0 %2362
      %2366 = vset.pattern.permute.xlu0 0
      %2367 = vperm.xlu0 %2366, %v2193
      %v2368 = vpop.permute.xlu0 %2367
      %2371 = vset.pattern.permute.xlu0 0
      %2372 = vperm.xlu0 %2371, %v2194
      %v2373 = vpop.permute.xlu0 %2372
      %2376 = vset.pattern.permute.xlu0 0
      %2377 = vperm.xlu0 %2376, %v2195
      %v2378 = vpop.permute.xlu0 %2377
      %2381 = vset.pattern.permute.xlu0 0
      %2382 = vperm.xlu0 %2381, %v2196
      %v2383 = vpop.permute.xlu0 %2382
      %2386 = vset.pattern.permute.xlu0 0
      %2387 = vperm.xlu0 %2386, %v2197
      %v2388 = vpop.permute.xlu0 %2387
      %v2390 = vsub.f32 %v312, %v2313
      %v2391 = vsub.f32 %v312, %v2318
      %v2392 = vsub.f32 %v312, %v2323
      %v2393 = vsub.f32 %v312, %v2328
      %v2394 = vsub.f32 %v312, %v2333
      %v2395 = vsub.f32 %v312, %v2338
      %v2396 = vsub.f32 %v312, %v2343
      %v2397 = vsub.f32 %v312, %v2348
      %v2398 = vsub.f32 %v312, %v2353
      %v2399 = vsub.f32 %v312, %v2358
      %v2400 = vsub.f32 %v312, %v2363
      %v2401 = vsub.f32 %v312, %v2368
      %v2402 = vsub.f32 %v312, %v2373
      %v2403 = vsub.f32 %v312, %v2378
      %v2404 = vsub.f32 %v312, %v2383
      %v2405 = vsub.f32 %v312, %v2388
      %v2406 = vand.u32 2147483647, %v2390
      %v2407 = vand.u32 2147483647, %v2391
      %v2408 = vand.u32 2147483647, %v2392
      %v2409 = vand.u32 2147483647, %v2393
      %v2410 = vand.u32 2147483647, %v2394
      %v2411 = vand.u32 2147483647, %v2395
      %v2412 = vand.u32 2147483647, %v2396
      %v2413 = vand.u32 2147483647, %v2397
      %v2414 = vand.u32 2147483647, %v2398
      %v2415 = vand.u32 2147483647, %v2399
      %v2416 = vand.u32 2147483647, %v2400
      %v2417 = vand.u32 2147483647, %v2401
      %v2418 = vand.u32 2147483647, %v2402
      %v2419 = vand.u32 2147483647, %v2403
      %v2420 = vand.u32 2147483647, %v2404
      %v2421 = vand.u32 2147483647, %v2405
      %v2422 = vsub.f32 1.0, %v2406
      %v2423 = vsub.f32 1.0, %v2407
      %v2424 = vsub.f32 1.0, %v2408
      %v2425 = vsub.f32 1.0, %v2409
      %v2426 = vsub.f32 1.0, %v2410
      %v2427 = vsub.f32 1.0, %v2411
      %v2428 = vsub.f32 1.0, %v2412
      %v2429 = vsub.f32 1.0, %v2413
      %v2430 = vsub.f32 1.0, %v2414
      %v2431 = vsub.f32 1.0, %v2415
      %v2432 = vsub.f32 1.0, %v2416
      %v2433 = vsub.f32 1.0, %v2417
      %v2434 = vsub.f32 1.0, %v2418
      %v2435 = vsub.f32 1.0, %v2419
      %v2436 = vsub.f32 1.0, %v2420
      %v2437 = vsub.f32 1.0, %v2421
      %v2438 = vmax.f32 %v2422, 0.0
      %v2439 = vmax.f32 %v2423, 0.0
      %v2440 = vmax.f32 %v2424, 0.0
      %v2441 = vmax.f32 %v2425, 0.0
      %v2442 = vmax.f32 %v2426, 0.0
      %v2443 = vmax.f32 %v2427, 0.0
      %v2444 = vmax.f32 %v2428, 0.0
      %v2445 = vmax.f32 %v2429, 0.0
      %v2446 = vmax.f32 %v2430, 0.0
      %v2447 = vmax.f32 %v2431, 0.0
      %v2448 = vmax.f32 %v2432, 0.0
      %v2449 = vmax.f32 %v2433, 0.0
      %v2450 = vmax.f32 %v2434, 0.0
      %v2451 = vmax.f32 %v2435, 0.0
      %v2452 = vmax.f32 %v2436, 0.0
      %v2453 = vmax.f32 %v2437, 0.0
      %2454 = vset.pattern.permute.xlu0 20
      %2455 = vperm.xlu0 %2454, %v409
      %v2456 = vpop.permute.xlu0 %2455
      %2458 = vset.pattern.permute.xlu0 20
      %2459 = vperm.xlu0 %2458, %v410
      %v2460 = vpop.permute.xlu0 %2459
      %2462 = vset.pattern.permute.xlu0 20
      %2463 = vperm.xlu0 %2462, %v411
      %v2464 = vpop.permute.xlu0 %2463
      %2466 = vset.pattern.permute.xlu0 20
      %2467 = vperm.xlu0 %2466, %v412
      %v2468 = vpop.permute.xlu0 %2467
      %2470 = vset.pattern.permute.xlu0 20
      %2471 = vperm.xlu0 %2470, %v413
      %v2472 = vpop.permute.xlu0 %2471
      %2474 = vset.pattern.permute.xlu0 20
      %2475 = vperm.xlu0 %2474, %v414
      %v2476 = vpop.permute.xlu0 %2475
      %2478 = vset.pattern.permute.xlu0 20
      %2479 = vperm.xlu0 %2478, %v415
      %v2480 = vpop.permute.xlu0 %2479
      %2482 = vset.pattern.permute.xlu0 20
      %2483 = vperm.xlu0 %2482, %v416
      %v2484 = vpop.permute.xlu0 %2483
      %2486 = vset.pattern.permute.xlu0 20
      %2487 = vperm.xlu0 %2486, %v417
      %v2488 = vpop.permute.xlu0 %2487
      %2490 = vset.pattern.permute.xlu0 20
      %2491 = vperm.xlu0 %2490, %v418
      %v2492 = vpop.permute.xlu0 %2491
      %2494 = vset.pattern.permute.xlu0 20
      %2495 = vperm.xlu0 %2494, %v419
      %v2496 = vpop.permute.xlu0 %2495
      %2498 = vset.pattern.permute.xlu0 20
      %2499 = vperm.xlu0 %2498, %v420
      %v2500 = vpop.permute.xlu0 %2499
      %2502 = vset.pattern.permute.xlu0 20
      %2503 = vperm.xlu0 %2502, %v421
      %v2504 = vpop.permute.xlu0 %2503
      %2506 = vset.pattern.permute.xlu0 20
      %2507 = vperm.xlu0 %2506, %v422
      %v2508 = vpop.permute.xlu0 %2507
      %2510 = vset.pattern.permute.xlu0 20
      %2511 = vperm.xlu0 %2510, %v423
      %v2512 = vpop.permute.xlu0 %2511
      %2514 = vset.pattern.permute.xlu0 20
      %2515 = vperm.xlu0 %2514, %v424
      %v2516 = vpop.permute.xlu0 %2515
      %v2518 = vmul.f32 %v2438, %v2456
      %v2519 = vmul.f32 %v2439, %v2460
      %v2520 = vmul.f32 %v2440, %v2464
      %v2521 = vmul.f32 %v2441, %v2468
      %v2522 = vmul.f32 %v2442, %v2472
      %v2523 = vmul.f32 %v2443, %v2476
      %v2524 = vmul.f32 %v2444, %v2480
      %v2525 = vmul.f32 %v2445, %v2484
      %v2526 = vmul.f32 %v2446, %v2488
      %v2527 = vmul.f32 %v2447, %v2492
      %v2528 = vmul.f32 %v2448, %v2496
      %v2529 = vmul.f32 %v2449, %v2500
      %v2530 = vmul.f32 %v2450, %v2504
      %v2531 = vmul.f32 %v2451, %v2508
      %v2532 = vmul.f32 %v2452, %v2512
      %v2533 = vmul.f32 %v2453, %v2516
      %v2535 = vsel %vm857, %v2518, 0
      %v2538 = vsel %vm857, %v2519, 0
      %v2541 = vsel %vm857, %v2520, 0
      %v2544 = vsel %vm857, %v2521, 0
      %v2547 = vsel %vm857, %v2522, 0
      %v2550 = vsel %vm857, %v2523, 0
      %v2553 = vsel %vm857, %v2524, 0
      %v2556 = vsel %vm857, %v2525, 0
      %v2559 = vsel %vm857, %v2526, 0
      %v2562 = vsel %vm857, %v2527, 0
      %v2565 = vsel %vm857, %v2528, 0
      %v2568 = vsel %vm857, %v2529, 0
      %v2571 = vsel %vm857, %v2530, 0
      %v2574 = vsel %vm857, %v2531, 0
      %v2577 = vsel %vm857, %v2532, 0
      %v2580 = vsel %vm857, %v2533, 0
      %2582 = vmatpush.msra.mxu0 0.0
      %2583 = vmatpush.msra.mxu0 0.0
      %2584 = vmatpush.msra.mxu0 0.0
      %2585 = vmatpush.msra.mxu0 0.0
      %2586 = vmatpush.msra.mxu0 0.0
      %2587 = vmatpush.msra.mxu0 0.0
      %2588 = vmatpush.msra.mxu0 0.0
      %2589 = vmatpush.msra.mxu0 0.0
      %2590 = vmatpush.msra.mxu0 0.0
      %2591 = vmatpush.msra.mxu0 0.0
      %2592 = vmatpush.msra.mxu0 0.0
      %2593 = vmatpush.msra.mxu0 0.0
      %2594 = vmatpush.msra.mxu0 0.0
      %2595 = vmatpush.msra.mxu0 %v908
      %2596 = vmatpush.msra.mxu0 %v307
      %2597 = vmatpush.msra.mxu0 %v306
      %2598 = vmatmul.f32.gmra.mxu0 %v2535
      %v2599 = vpop.f32.mrf.mxu0
      %v2600 = vadd.f32 0.0, %v2599
      %2601 = vmatmul.f32.gmra.mxu0 %v2538
      %v2602 = vpop.f32.mrf.mxu0
      %v2603 = vadd.f32 0.0, %v2602
      %2604 = vmatmul.f32.gmra.mxu0 %v2541
      %v2605 = vpop.f32.mrf.mxu0
      %v2606 = vadd.f32 0.0, %v2605
      %2607 = vmatmul.f32.gmra.mxu0 %v2544
      %v2608 = vpop.f32.mrf.mxu0
      %v2609 = vadd.f32 0.0, %v2608
      %2610 = vmatmul.f32.gmra.mxu0 %v2547
      %v2611 = vpop.f32.mrf.mxu0
      %v2612 = vadd.f32 0.0, %v2611
      %2613 = vmatmul.f32.gmra.mxu0 %v2550
      %v2614 = vpop.f32.mrf.mxu0
      %v2615 = vadd.f32 0.0, %v2614
      %2616 = vmatmul.f32.gmra.mxu0 %v2553
      %v2617 = vpop.f32.mrf.mxu0
      %v2618 = vadd.f32 0.0, %v2617
      %2619 = vmatmul.f32.gmra.mxu0 %v2556
      %v2620 = vpop.f32.mrf.mxu0
      %v2621 = vadd.f32 0.0, %v2620
      %2622 = vmatmul.f32.gmra.mxu0 %v2559
      %v2623 = vpop.f32.mrf.mxu0
      %v2624 = vadd.f32 0.0, %v2623
      %2625 = vmatmul.f32.gmra.mxu0 %v2562
      %v2626 = vpop.f32.mrf.mxu0
      %v2627 = vadd.f32 0.0, %v2626
      %2628 = vmatmul.f32.gmra.mxu0 %v2565
      %v2629 = vpop.f32.mrf.mxu0
      %v2630 = vadd.f32 0.0, %v2629
      %2631 = vmatmul.f32.gmra.mxu0 %v2568
      %v2632 = vpop.f32.mrf.mxu0
      %v2633 = vadd.f32 0.0, %v2632
      %2634 = vmatmul.f32.gmra.mxu0 %v2571
      %v2635 = vpop.f32.mrf.mxu0
      %v2636 = vadd.f32 0.0, %v2635
      %2637 = vmatmul.f32.gmra.mxu0 %v2574
      %v2638 = vpop.f32.mrf.mxu0
      %v2639 = vadd.f32 0.0, %v2638
      %2640 = vmatmul.f32.gmra.mxu0 %v2577
      %v2641 = vpop.f32.mrf.mxu0
      %v2642 = vadd.f32 0.0, %v2641
      %2643 = vmatmul.f32.gmra.mxu0 %v2580
      %v2644 = vpop.f32.mrf.mxu0
      %v2645 = vadd.f32 0.0, %v2644
      %2646 = vdwg.mxu0
      %2648 = vset.pattern.permute.xlu0 1
      %2649 = vperm.xlu0 %2648, %v2294
      %v2650 = vpop.permute.xlu0 %2649
      %2653 = vset.pattern.permute.xlu0 1
      %2654 = vperm.xlu0 %2653, %v2295
      %v2655 = vpop.permute.xlu0 %2654
      %2658 = vset.pattern.permute.xlu0 1
      %2659 = vperm.xlu0 %2658, %v2296
      %v2660 = vpop.permute.xlu0 %2659
      %2663 = vset.pattern.permute.xlu0 1
      %2664 = vperm.xlu0 %2663, %v2297
      %v2665 = vpop.permute.xlu0 %2664
      %2668 = vset.pattern.permute.xlu0 1
      %2669 = vperm.xlu0 %2668, %v2298
      %v2670 = vpop.permute.xlu0 %2669
      %2673 = vset.pattern.permute.xlu0 1
      %2674 = vperm.xlu0 %2673, %v2299
      %v2675 = vpop.permute.xlu0 %2674
      %2678 = vset.pattern.permute.xlu0 1
      %2679 = vperm.xlu0 %2678, %v2300
      %v2680 = vpop.permute.xlu0 %2679
      %2683 = vset.pattern.permute.xlu0 1
      %2684 = vperm.xlu0 %2683, %v2301
      %v2685 = vpop.permute.xlu0 %2684
      %2688 = vset.pattern.permute.xlu0 1
      %2689 = vperm.xlu0 %2688, %v2302
      %v2690 = vpop.permute.xlu0 %2689
      %2693 = vset.pattern.permute.xlu0 1
      %2694 = vperm.xlu0 %2693, %v2303
      %v2695 = vpop.permute.xlu0 %2694
      %2698 = vset.pattern.permute.xlu0 1
      %2699 = vperm.xlu0 %2698, %v2304
      %v2700 = vpop.permute.xlu0 %2699
      %2703 = vset.pattern.permute.xlu0 1
      %2704 = vperm.xlu0 %2703, %v2305
      %v2705 = vpop.permute.xlu0 %2704
      %2708 = vset.pattern.permute.xlu0 1
      %2709 = vperm.xlu0 %2708, %v2306
      %v2710 = vpop.permute.xlu0 %2709
      %2713 = vset.pattern.permute.xlu0 1
      %2714 = vperm.xlu0 %2713, %v2307
      %v2715 = vpop.permute.xlu0 %2714
      %2718 = vset.pattern.permute.xlu0 1
      %2719 = vperm.xlu0 %2718, %v2308
      %v2720 = vpop.permute.xlu0 %2719
      %2723 = vset.pattern.permute.xlu0 1
      %2724 = vperm.xlu0 %2723, %v2309
      %v2725 = vpop.permute.xlu0 %2724
      %v2727 = vsub.f32 %v976, %v2650
      %v2728 = vsub.f32 %v976, %v2655
      %v2729 = vsub.f32 %v976, %v2660
      %v2730 = vsub.f32 %v976, %v2665
      %v2731 = vsub.f32 %v976, %v2670
      %v2732 = vsub.f32 %v976, %v2675
      %v2733 = vsub.f32 %v976, %v2680
      %v2734 = vsub.f32 %v976, %v2685
      %v2735 = vsub.f32 %v976, %v2690
      %v2736 = vsub.f32 %v976, %v2695
      %v2737 = vsub.f32 %v976, %v2700
      %v2738 = vsub.f32 %v976, %v2705
      %v2739 = vsub.f32 %v976, %v2710
      %v2740 = vsub.f32 %v976, %v2715
      %v2741 = vsub.f32 %v976, %v2720
      %v2742 = vsub.f32 %v976, %v2725
      %v2743 = vand.u32 2147483647, %v2727
      %v2744 = vand.u32 2147483647, %v2728
      %v2745 = vand.u32 2147483647, %v2729
      %v2746 = vand.u32 2147483647, %v2730
      %v2747 = vand.u32 2147483647, %v2731
      %v2748 = vand.u32 2147483647, %v2732
      %v2749 = vand.u32 2147483647, %v2733
      %v2750 = vand.u32 2147483647, %v2734
      %v2751 = vand.u32 2147483647, %v2735
      %v2752 = vand.u32 2147483647, %v2736
      %v2753 = vand.u32 2147483647, %v2737
      %v2754 = vand.u32 2147483647, %v2738
      %v2755 = vand.u32 2147483647, %v2739
      %v2756 = vand.u32 2147483647, %v2740
      %v2757 = vand.u32 2147483647, %v2741
      %v2758 = vand.u32 2147483647, %v2742
      %v2759 = vsub.f32 1.0, %v2743
      %v2760 = vsub.f32 1.0, %v2744
      %v2761 = vsub.f32 1.0, %v2745
      %v2762 = vsub.f32 1.0, %v2746
      %v2763 = vsub.f32 1.0, %v2747
      %v2764 = vsub.f32 1.0, %v2748
      %v2765 = vsub.f32 1.0, %v2749
      %v2766 = vsub.f32 1.0, %v2750
      %v2767 = vsub.f32 1.0, %v2751
      %v2768 = vsub.f32 1.0, %v2752
      %v2769 = vsub.f32 1.0, %v2753
      %v2770 = vsub.f32 1.0, %v2754
      %v2771 = vsub.f32 1.0, %v2755
      %v2772 = vsub.f32 1.0, %v2756
      %v2773 = vsub.f32 1.0, %v2757
      %v2774 = vsub.f32 1.0, %v2758
      %v2775 = vmax.f32 %v2759, 0.0
      %v2776 = vmax.f32 %v2760, 0.0
      %v2777 = vmax.f32 %v2761, 0.0
      %v2778 = vmax.f32 %v2762, 0.0
      %v2779 = vmax.f32 %v2763, 0.0
      %v2780 = vmax.f32 %v2764, 0.0
      %v2781 = vmax.f32 %v2765, 0.0
      %v2782 = vmax.f32 %v2766, 0.0
      %v2783 = vmax.f32 %v2767, 0.0
      %v2784 = vmax.f32 %v2768, 0.0
      %v2785 = vmax.f32 %v2769, 0.0
      %v2786 = vmax.f32 %v2770, 0.0
      %v2787 = vmax.f32 %v2771, 0.0
      %v2788 = vmax.f32 %v2772, 0.0
      %v2789 = vmax.f32 %v2773, 0.0
      %v2790 = vmax.f32 %v2774, 0.0
      %v2791 = vld [vmem:[%s304] sm:$0xff]
      %v2792 = vld [vmem:[%s304 + $0x8] sm:$0xff]
      %v2793 = vld [vmem:[%s304 + $0x10] sm:$0xff]
      %v2794 = vld [vmem:[%s304 + $0x18] sm:$0xff]
      %v2795 = vld [vmem:[%s304 + $0x20] sm:$0xff]
      %v2796 = vld [vmem:[%s304 + $0x28] sm:$0xff]
      %v2797 = vld [vmem:[%s304 + $0x30] sm:$0xff]
      %v2798 = vld [vmem:[%s304 + $0x38] sm:$0xff]
      %v2799 = vld [vmem:[%s304 + $0x40] sm:$0xff]
      %v2800 = vld [vmem:[%s304 + $0x48] sm:$0xff]
      %v2801 = vld [vmem:[%s304 + $0x50] sm:$0xff]
      %v2802 = vld [vmem:[%s304 + $0x58] sm:$0xff]
      %v2803 = vld [vmem:[%s304 + $0x60] sm:$0xff]
      %v2804 = vld [vmem:[%s304 + $0x68] sm:$0xff]
      %v2805 = vld [vmem:[%s304 + $0x70] sm:$0xff]
      %v2806 = vld [vmem:[%s304 + $0x78] sm:$0xff]
      %v2807 = vmul.f32 %v2775, %v2600
      %v2808 = vmul.f32 %v2776, %v2603
      %v2809 = vmul.f32 %v2777, %v2606
      %v2810 = vmul.f32 %v2778, %v2609
      %v2811 = vmul.f32 %v2779, %v2612
      %v2812 = vmul.f32 %v2780, %v2615
      %v2813 = vmul.f32 %v2781, %v2618
      %v2814 = vmul.f32 %v2782, %v2621
      %v2815 = vmul.f32 %v2783, %v2624
      %v2816 = vmul.f32 %v2784, %v2627
      %v2817 = vmul.f32 %v2785, %v2630
      %v2818 = vmul.f32 %v2786, %v2633
      %v2819 = vmul.f32 %v2787, %v2636
      %v2820 = vmul.f32 %v2788, %v2639
      %v2821 = vmul.f32 %v2789, %v2642
      %v2822 = vmul.f32 %v2790, %v2645
      %s2823 = scalar_lea.vmem %s3, 256
      %v2824 = vld [vmem:[%s2823] sm:$0xff]
      %v2825 = vld [vmem:[%s2823 + $0x8] sm:$0xff]
      %v2826 = vld [vmem:[%s2823 + $0x10] sm:$0xff]
      %v2827 = vld [vmem:[%s2823 + $0x18] sm:$0xff]
      %v2828 = vld [vmem:[%s2823 + $0x20] sm:$0xff]
      %v2829 = vld [vmem:[%s2823 + $0x28] sm:$0xff]
      %v2830 = vld [vmem:[%s2823 + $0x30] sm:$0xff]
      %v2831 = vld [vmem:[%s2823 + $0x38] sm:$0xff]
      %v2832 = vld [vmem:[%s2823 + $0x40] sm:$0xff]
      %v2833 = vld [vmem:[%s2823 + $0x48] sm:$0xff]
      %v2834 = vld [vmem:[%s2823 + $0x50] sm:$0xff]
      %v2835 = vld [vmem:[%s2823 + $0x58] sm:$0xff]
      %v2836 = vld [vmem:[%s2823 + $0x60] sm:$0xff]
      %v2837 = vld [vmem:[%s2823 + $0x68] sm:$0xff]
      %v2838 = vld [vmem:[%s2823 + $0x70] sm:$0xff]
      %v2839 = vld [vmem:[%s2823 + $0x78] sm:$0xff]
      %2840 = vmatpush.msra.mxu0 %v2839
      %2841 = vmatpush.msra.mxu0 %v2838
      %2842 = vmatpush.msra.mxu0 %v2837
      %2843 = vmatpush.msra.mxu0 %v2836
      %2844 = vmatpush.msra.mxu0 %v2835
      %2845 = vmatpush.msra.mxu0 %v2834
      %2846 = vmatpush.msra.mxu0 %v2833
      %2847 = vmatpush.msra.mxu0 %v2832
      %2848 = vmatpush.msra.mxu0 %v2831
      %2849 = vmatpush.msra.mxu0 %v2830
      %2850 = vmatpush.msra.mxu0 %v2829
      %2851 = vmatpush.msra.mxu0 %v2828
      %2852 = vmatpush.msra.mxu0 %v2827
      %2853 = vmatpush.msra.mxu0 %v2826
      %2854 = vmatpush.msra.mxu0 %v2825
      %2855 = vmatpush.msra.mxu0 %v2824
      %2856 = vmatmul.f32.gmra.mxu0 %v2807
      %v2857 = vpop.f32.mrf.mxu0
      %v2858 = vadd.f32 0.0, %v2857
      %2859 = vmatmul.f32.gmra.mxu0 %v2808
      %v2860 = vpop.f32.mrf.mxu0
      %v2861 = vadd.f32 0.0, %v2860
      %2862 = vmatmul.f32.gmra.mxu0 %v2809
      %v2863 = vpop.f32.mrf.mxu0
      %v2864 = vadd.f32 0.0, %v2863
      %2865 = vmatmul.f32.gmra.mxu0 %v2810
      %v2866 = vpop.f32.mrf.mxu0
      %v2867 = vadd.f32 0.0, %v2866
      %2868 = vmatmul.f32.gmra.mxu0 %v2811
      %v2869 = vpop.f32.mrf.mxu0
      %v2870 = vadd.f32 0.0, %v2869
      %2871 = vmatmul.f32.gmra.mxu0 %v2812
      %v2872 = vpop.f32.mrf.mxu0
      %v2873 = vadd.f32 0.0, %v2872
      %2874 = vmatmul.f32.gmra.mxu0 %v2813
      %v2875 = vpop.f32.mrf.mxu0
      %v2876 = vadd.f32 0.0, %v2875
      %2877 = vmatmul.f32.gmra.mxu0 %v2814
      %v2878 = vpop.f32.mrf.mxu0
      %v2879 = vadd.f32 0.0, %v2878
      %2880 = vmatmul.f32.gmra.mxu0 %v2815
      %v2881 = vpop.f32.mrf.mxu0
      %v2882 = vadd.f32 0.0, %v2881
      %2883 = vmatmul.f32.gmra.mxu0 %v2816
      %v2884 = vpop.f32.mrf.mxu0
      %v2885 = vadd.f32 0.0, %v2884
      %2886 = vmatmul.f32.gmra.mxu0 %v2817
      %v2887 = vpop.f32.mrf.mxu0
      %v2888 = vadd.f32 0.0, %v2887
      %2889 = vmatmul.f32.gmra.mxu0 %v2818
      %v2890 = vpop.f32.mrf.mxu0
      %v2891 = vadd.f32 0.0, %v2890
      %2892 = vmatmul.f32.gmra.mxu0 %v2819
      %v2893 = vpop.f32.mrf.mxu0
      %v2894 = vadd.f32 0.0, %v2893
      %2895 = vmatmul.f32.gmra.mxu0 %v2820
      %v2896 = vpop.f32.mrf.mxu0
      %v2897 = vadd.f32 0.0, %v2896
      %2898 = vmatmul.f32.gmra.mxu0 %v2821
      %v2899 = vpop.f32.mrf.mxu0
      %v2900 = vadd.f32 0.0, %v2899
      %2901 = vmatmul.f32.gmra.mxu0 %v2822
      %v2902 = vpop.f32.mrf.mxu0
      %v2903 = vadd.f32 0.0, %v2902
      %2904 = vdwg.mxu0
      %v2905 = vadd.f32 %v2791, %v2858
      %v2906 = vadd.f32 %v2792, %v2861
      %v2907 = vadd.f32 %v2793, %v2864
      %v2908 = vadd.f32 %v2794, %v2867
      %v2909 = vadd.f32 %v2795, %v2870
      %v2910 = vadd.f32 %v2796, %v2873
      %v2911 = vadd.f32 %v2797, %v2876
      %v2912 = vadd.f32 %v2798, %v2879
      %v2913 = vadd.f32 %v2799, %v2882
      %v2914 = vadd.f32 %v2800, %v2885
      %v2915 = vadd.f32 %v2801, %v2888
      %v2916 = vadd.f32 %v2802, %v2891
      %v2917 = vadd.f32 %v2803, %v2894
      %v2918 = vadd.f32 %v2804, %v2897
      %v2919 = vadd.f32 %v2805, %v2900
      %v2920 = vadd.f32 %v2806, %v2903
      %2921 = vst [vmem:[%s304] sm:$0xff] %v2905
      %2922 = vst [vmem:[%s304 + $0x8] sm:$0xff] %v2906
      %2923 = vst [vmem:[%s304 + $0x10] sm:$0xff] %v2907
      %2924 = vst [vmem:[%s304 + $0x18] sm:$0xff] %v2908
      %2925 = vst [vmem:[%s304 + $0x20] sm:$0xff] %v2909
      %2926 = vst [vmem:[%s304 + $0x28] sm:$0xff] %v2910
      %2927 = vst [vmem:[%s304 + $0x30] sm:$0xff] %v2911
      %2928 = vst [vmem:[%s304 + $0x38] sm:$0xff] %v2912
      %2929 = vst [vmem:[%s304 + $0x40] sm:$0xff] %v2913
      %2930 = vst [vmem:[%s304 + $0x48] sm:$0xff] %v2914
      %2931 = vst [vmem:[%s304 + $0x50] sm:$0xff] %v2915
      %2932 = vst [vmem:[%s304 + $0x58] sm:$0xff] %v2916
      %2933 = vst [vmem:[%s304 + $0x60] sm:$0xff] %v2917
      %2934 = vst [vmem:[%s304 + $0x68] sm:$0xff] %v2918
      %2935 = vst [vmem:[%s304 + $0x70] sm:$0xff] %v2919
      %2936 = vst [vmem:[%s304 + $0x78] sm:$0xff] %v2920
      %2937 = vrot.lane.b32.xlu0 %v329, 125
      %v2938 = vpop.permute.xlu0 %2937
      %2939 = vrot.lane.b32.xlu0 %v330, 125
      %v2940 = vpop.permute.xlu0 %2939
      %2941 = vrot.lane.b32.xlu0 %v331, 125
      %v2942 = vpop.permute.xlu0 %2941
      %2943 = vrot.lane.b32.xlu0 %v332, 125
      %v2944 = vpop.permute.xlu0 %2943
      %2945 = vrot.lane.b32.xlu0 %v333, 125
      %v2946 = vpop.permute.xlu0 %2945
      %2947 = vrot.lane.b32.xlu0 %v334, 125
      %v2948 = vpop.permute.xlu0 %2947
      %2949 = vrot.lane.b32.xlu0 %v335, 125
      %v2950 = vpop.permute.xlu0 %2949
      %2951 = vrot.lane.b32.xlu0 %v336, 125
      %v2952 = vpop.permute.xlu0 %2951
      %2953 = vrot.lane.b32.xlu0 %v337, 125
      %v2954 = vpop.permute.xlu0 %2953
      %2955 = vrot.lane.b32.xlu0 %v338, 125
      %v2956 = vpop.permute.xlu0 %2955
      %2957 = vrot.lane.b32.xlu0 %v339, 125
      %v2958 = vpop.permute.xlu0 %2957
      %2959 = vrot.lane.b32.xlu0 %v340, 125
      %v2960 = vpop.permute.xlu0 %2959
      %2961 = vrot.lane.b32.xlu0 %v341, 125
      %v2962 = vpop.permute.xlu0 %2961
      %2963 = vrot.lane.b32.xlu0 %v342, 125
      %v2964 = vpop.permute.xlu0 %2963
      %2965 = vrot.lane.b32.xlu0 %v343, 125
      %v2966 = vpop.permute.xlu0 %2965
      %2967 = vrot.lane.b32.xlu0 %v344, 125
      %v2968 = vpop.permute.xlu0 %2967
      %v2985 = vadd.f32 %v1363, %v2938
      %v2986 = vadd.f32 %v1364, %v2940
      %v2987 = vadd.f32 %v1365, %v2942
      %v2988 = vadd.f32 %v1366, %v2944
      %v2989 = vadd.f32 %v1367, %v2946
      %v2990 = vadd.f32 %v1368, %v2948
      %v2991 = vadd.f32 %v1369, %v2950
      %v2992 = vadd.f32 %v1370, %v2952
      %v2993 = vadd.f32 %v1371, %v2954
      %v2994 = vadd.f32 %v1372, %v2956
      %v2995 = vadd.f32 %v1373, %v2958
      %v2996 = vadd.f32 %v1374, %v2960
      %v2997 = vadd.f32 %v1375, %v2962
      %v2998 = vadd.f32 %v1376, %v2964
      %v2999 = vadd.f32 %v1377, %v2966
      %v3000 = vadd.f32 %v1378, %v2968
      %v3001 = vmax.f32 %v2985, 0.0
      %v3002 = vmax.f32 %v2986, 0.0
      %v3003 = vmax.f32 %v2987, 0.0
      %v3004 = vmax.f32 %v2988, 0.0
      %v3005 = vmax.f32 %v2989, 0.0
      %v3006 = vmax.f32 %v2990, 0.0
      %v3007 = vmax.f32 %v2991, 0.0
      %v3008 = vmax.f32 %v2992, 0.0
      %v3009 = vmax.f32 %v2993, 0.0
      %v3010 = vmax.f32 %v2994, 0.0
      %v3011 = vmax.f32 %v2995, 0.0
      %v3012 = vmax.f32 %v2996, 0.0
      %v3013 = vmax.f32 %v2997, 0.0
      %v3014 = vmax.f32 %v2998, 0.0
      %v3015 = vmax.f32 %v2999, 0.0
      %v3016 = vmax.f32 %v3000, 0.0
      %v3017 = vmin.f32 %v3001, 17.0
      %v3018 = vmin.f32 %v3002, 17.0
      %v3019 = vmin.f32 %v3003, 17.0
      %v3020 = vmin.f32 %v3004, 17.0
      %v3021 = vmin.f32 %v3005, 17.0
      %v3022 = vmin.f32 %v3006, 17.0
      %v3023 = vmin.f32 %v3007, 17.0
      %v3024 = vmin.f32 %v3008, 17.0
      %v3025 = vmin.f32 %v3009, 17.0
      %v3026 = vmin.f32 %v3010, 17.0
      %v3027 = vmin.f32 %v3011, 17.0
      %v3028 = vmin.f32 %v3012, 17.0
      %v3029 = vmin.f32 %v3013, 17.0
      %v3030 = vmin.f32 %v3014, 17.0
      %v3031 = vmin.f32 %v3015, 17.0
      %v3032 = vmin.f32 %v3016, 17.0
      %3033 = vrot.lane.b32.xlu0 %v329, 117
      %v3034 = vpop.permute.xlu0 %3033
      %3035 = vrot.lane.b32.xlu0 %v330, 117
      %v3036 = vpop.permute.xlu0 %3035
      %3037 = vrot.lane.b32.xlu0 %v331, 117
      %v3038 = vpop.permute.xlu0 %3037
      %3039 = vrot.lane.b32.xlu0 %v332, 117
      %v3040 = vpop.permute.xlu0 %3039
      %3041 = vrot.lane.b32.xlu0 %v333, 117
      %v3042 = vpop.permute.xlu0 %3041
      %3043 = vrot.lane.b32.xlu0 %v334, 117
      %v3044 = vpop.permute.xlu0 %3043
      %3045 = vrot.lane.b32.xlu0 %v335, 117
      %v3046 = vpop.permute.xlu0 %3045
      %3047 = vrot.lane.b32.xlu0 %v336, 117
      %v3048 = vpop.permute.xlu0 %3047
      %3049 = vrot.lane.b32.xlu0 %v337, 117
      %v3050 = vpop.permute.xlu0 %3049
      %3051 = vrot.lane.b32.xlu0 %v338, 117
      %v3052 = vpop.permute.xlu0 %3051
      %3053 = vrot.lane.b32.xlu0 %v339, 117
      %v3054 = vpop.permute.xlu0 %3053
      %3055 = vrot.lane.b32.xlu0 %v340, 117
      %v3056 = vpop.permute.xlu0 %3055
      %3057 = vrot.lane.b32.xlu0 %v341, 117
      %v3058 = vpop.permute.xlu0 %3057
      %3059 = vrot.lane.b32.xlu0 %v342, 117
      %v3060 = vpop.permute.xlu0 %3059
      %3061 = vrot.lane.b32.xlu0 %v343, 117
      %v3062 = vpop.permute.xlu0 %3061
      %3063 = vrot.lane.b32.xlu0 %v344, 117
      %v3064 = vpop.permute.xlu0 %3063
      %v3081 = vadd.f32 %v441, %v3034
      %v3082 = vadd.f32 %v442, %v3036
      %v3083 = vadd.f32 %v443, %v3038
      %v3084 = vadd.f32 %v444, %v3040
      %v3085 = vadd.f32 %v445, %v3042
      %v3086 = vadd.f32 %v446, %v3044
      %v3087 = vadd.f32 %v447, %v3046
      %v3088 = vadd.f32 %v448, %v3048
      %v3089 = vadd.f32 %v449, %v3050
      %v3090 = vadd.f32 %v450, %v3052
      %v3091 = vadd.f32 %v451, %v3054
      %v3092 = vadd.f32 %v452, %v3056
      %v3093 = vadd.f32 %v453, %v3058
      %v3094 = vadd.f32 %v454, %v3060
      %v3095 = vadd.f32 %v455, %v3062
      %v3096 = vadd.f32 %v456, %v3064
      %v3097 = vmax.f32 %v3081, 0.0
      %v3098 = vmax.f32 %v3082, 0.0
      %v3099 = vmax.f32 %v3083, 0.0
      %v3100 = vmax.f32 %v3084, 0.0
      %v3101 = vmax.f32 %v3085, 0.0
      %v3102 = vmax.f32 %v3086, 0.0
      %v3103 = vmax.f32 %v3087, 0.0
      %v3104 = vmax.f32 %v3088, 0.0
      %v3105 = vmax.f32 %v3089, 0.0
      %v3106 = vmax.f32 %v3090, 0.0
      %v3107 = vmax.f32 %v3091, 0.0
      %v3108 = vmax.f32 %v3092, 0.0
      %v3109 = vmax.f32 %v3093, 0.0
      %v3110 = vmax.f32 %v3094, 0.0
      %v3111 = vmax.f32 %v3095, 0.0
      %v3112 = vmax.f32 %v3096, 0.0
      %v3113 = vmin.f32 %v3097, 17.0
      %v3114 = vmin.f32 %v3098, 17.0
      %v3115 = vmin.f32 %v3099, 17.0
      %v3116 = vmin.f32 %v3100, 17.0
      %v3117 = vmin.f32 %v3101, 17.0
      %v3118 = vmin.f32 %v3102, 17.0
      %v3119 = vmin.f32 %v3103, 17.0
      %v3120 = vmin.f32 %v3104, 17.0
      %v3121 = vmin.f32 %v3105, 17.0
      %v3122 = vmin.f32 %v3106, 17.0
      %v3123 = vmin.f32 %v3107, 17.0
      %v3124 = vmin.f32 %v3108, 17.0
      %v3125 = vmin.f32 %v3109, 17.0
      %v3126 = vmin.f32 %v3110, 17.0
      %v3127 = vmin.f32 %v3111, 17.0
      %v3128 = vmin.f32 %v3112, 17.0
      %3130 = vset.pattern.permute.xlu0 0
      %3131 = vperm.xlu0 %3130, %v3017
      %v3132 = vpop.permute.xlu0 %3131
      %3135 = vset.pattern.permute.xlu0 0
      %3136 = vperm.xlu0 %3135, %v3018
      %v3137 = vpop.permute.xlu0 %3136
      %3140 = vset.pattern.permute.xlu0 0
      %3141 = vperm.xlu0 %3140, %v3019
      %v3142 = vpop.permute.xlu0 %3141
      %3145 = vset.pattern.permute.xlu0 0
      %3146 = vperm.xlu0 %3145, %v3020
      %v3147 = vpop.permute.xlu0 %3146
      %3150 = vset.pattern.permute.xlu0 0
      %3151 = vperm.xlu0 %3150, %v3021
      %v3152 = vpop.permute.xlu0 %3151
      %3155 = vset.pattern.permute.xlu0 0
      %3156 = vperm.xlu0 %3155, %v3022
      %v3157 = vpop.permute.xlu0 %3156
      %3160 = vset.pattern.permute.xlu0 0
      %3161 = vperm.xlu0 %3160, %v3023
      %v3162 = vpop.permute.xlu0 %3161
      %3165 = vset.pattern.permute.xlu0 0
      %3166 = vperm.xlu0 %3165, %v3024
      %v3167 = vpop.permute.xlu0 %3166
      %3170 = vset.pattern.permute.xlu0 0
      %3171 = vperm.xlu0 %3170, %v3025
      %v3172 = vpop.permute.xlu0 %3171
      %3175 = vset.pattern.permute.xlu0 0
      %3176 = vperm.xlu0 %3175, %v3026
      %v3177 = vpop.permute.xlu0 %3176
      %3180 = vset.pattern.permute.xlu0 0
      %3181 = vperm.xlu0 %3180, %v3027
      %v3182 = vpop.permute.xlu0 %3181
      %3185 = vset.pattern.permute.xlu0 0
      %3186 = vperm.xlu0 %3185, %v3028
      %v3187 = vpop.permute.xlu0 %3186
      %3190 = vset.pattern.permute.xlu0 0
      %3191 = vperm.xlu0 %3190, %v3029
      %v3192 = vpop.permute.xlu0 %3191
      %3195 = vset.pattern.permute.xlu0 0
      %3196 = vperm.xlu0 %3195, %v3030
      %v3197 = vpop.permute.xlu0 %3196
      %3200 = vset.pattern.permute.xlu0 0
      %3201 = vperm.xlu0 %3200, %v3031
      %v3202 = vpop.permute.xlu0 %3201
      %3205 = vset.pattern.permute.xlu0 0
      %3206 = vperm.xlu0 %3205, %v3032
      %v3207 = vpop.permute.xlu0 %3206
      %v3209 = vsub.f32 %v312, %v3132
      %v3210 = vsub.f32 %v312, %v3137
      %v3211 = vsub.f32 %v312, %v3142
      %v3212 = vsub.f32 %v312, %v3147
      %v3213 = vsub.f32 %v312, %v3152
      %v3214 = vsub.f32 %v312, %v3157
      %v3215 = vsub.f32 %v312, %v3162
      %v3216 = vsub.f32 %v312, %v3167
      %v3217 = vsub.f32 %v312, %v3172
      %v3218 = vsub.f32 %v312, %v3177
      %v3219 = vsub.f32 %v312, %v3182
      %v3220 = vsub.f32 %v312, %v3187
      %v3221 = vsub.f32 %v312, %v3192
      %v3222 = vsub.f32 %v312, %v3197
      %v3223 = vsub.f32 %v312, %v3202
      %v3224 = vsub.f32 %v312, %v3207
      %v3225 = vand.u32 2147483647, %v3209
      %v3226 = vand.u32 2147483647, %v3210
      %v3227 = vand.u32 2147483647, %v3211
      %v3228 = vand.u32 2147483647, %v3212
      %v3229 = vand.u32 2147483647, %v3213
      %v3230 = vand.u32 2147483647, %v3214
      %v3231 = vand.u32 2147483647, %v3215
      %v3232 = vand.u32 2147483647, %v3216
      %v3233 = vand.u32 2147483647, %v3217
      %v3234 = vand.u32 2147483647, %v3218
      %v3235 = vand.u32 2147483647, %v3219
      %v3236 = vand.u32 2147483647, %v3220
      %v3237 = vand.u32 2147483647, %v3221
      %v3238 = vand.u32 2147483647, %v3222
      %v3239 = vand.u32 2147483647, %v3223
      %v3240 = vand.u32 2147483647, %v3224
      %v3241 = vsub.f32 1.0, %v3225
      %v3242 = vsub.f32 1.0, %v3226
      %v3243 = vsub.f32 1.0, %v3227
      %v3244 = vsub.f32 1.0, %v3228
      %v3245 = vsub.f32 1.0, %v3229
      %v3246 = vsub.f32 1.0, %v3230
      %v3247 = vsub.f32 1.0, %v3231
      %v3248 = vsub.f32 1.0, %v3232
      %v3249 = vsub.f32 1.0, %v3233
      %v3250 = vsub.f32 1.0, %v3234
      %v3251 = vsub.f32 1.0, %v3235
      %v3252 = vsub.f32 1.0, %v3236
      %v3253 = vsub.f32 1.0, %v3237
      %v3254 = vsub.f32 1.0, %v3238
      %v3255 = vsub.f32 1.0, %v3239
      %v3256 = vsub.f32 1.0, %v3240
      %v3257 = vmax.f32 %v3241, 0.0
      %v3258 = vmax.f32 %v3242, 0.0
      %v3259 = vmax.f32 %v3243, 0.0
      %v3260 = vmax.f32 %v3244, 0.0
      %v3261 = vmax.f32 %v3245, 0.0
      %v3262 = vmax.f32 %v3246, 0.0
      %v3263 = vmax.f32 %v3247, 0.0
      %v3264 = vmax.f32 %v3248, 0.0
      %v3265 = vmax.f32 %v3249, 0.0
      %v3266 = vmax.f32 %v3250, 0.0
      %v3267 = vmax.f32 %v3251, 0.0
      %v3268 = vmax.f32 %v3252, 0.0
      %v3269 = vmax.f32 %v3253, 0.0
      %v3270 = vmax.f32 %v3254, 0.0
      %v3271 = vmax.f32 %v3255, 0.0
      %v3272 = vmax.f32 %v3256, 0.0
      %3273 = vset.pattern.permute.xlu0 21
      %3274 = vperm.xlu0 %3273, %v409
      %v3275 = vpop.permute.xlu0 %3274
      %3277 = vset.pattern.permute.xlu0 21
      %3278 = vperm.xlu0 %3277, %v410
      %v3279 = vpop.permute.xlu0 %3278
      %3281 = vset.pattern.permute.xlu0 21
      %3282 = vperm.xlu0 %3281, %v411
      %v3283 = vpop.permute.xlu0 %3282
      %3285 = vset.pattern.permute.xlu0 21
      %3286 = vperm.xlu0 %3285, %v412
      %v3287 = vpop.permute.xlu0 %3286
      %3289 = vset.pattern.permute.xlu0 21
      %3290 = vperm.xlu0 %3289, %v413
      %v3291 = vpop.permute.xlu0 %3290
      %3293 = vset.pattern.permute.xlu0 21
      %3294 = vperm.xlu0 %3293, %v414
      %v3295 = vpop.permute.xlu0 %3294
      %3297 = vset.pattern.permute.xlu0 21
      %3298 = vperm.xlu0 %3297, %v415
      %v3299 = vpop.permute.xlu0 %3298
      %3301 = vset.pattern.permute.xlu0 21
      %3302 = vperm.xlu0 %3301, %v416
      %v3303 = vpop.permute.xlu0 %3302
      %3305 = vset.pattern.permute.xlu0 21
      %3306 = vperm.xlu0 %3305, %v417
      %v3307 = vpop.permute.xlu0 %3306
      %3309 = vset.pattern.permute.xlu0 21
      %3310 = vperm.xlu0 %3309, %v418
      %v3311 = vpop.permute.xlu0 %3310
      %3313 = vset.pattern.permute.xlu0 21
      %3314 = vperm.xlu0 %3313, %v419
      %v3315 = vpop.permute.xlu0 %3314
      %3317 = vset.pattern.permute.xlu0 21
      %3318 = vperm.xlu0 %3317, %v420
      %v3319 = vpop.permute.xlu0 %3318
      %3321 = vset.pattern.permute.xlu0 21
      %3322 = vperm.xlu0 %3321, %v421
      %v3323 = vpop.permute.xlu0 %3322
      %3325 = vset.pattern.permute.xlu0 21
      %3326 = vperm.xlu0 %3325, %v422
      %v3327 = vpop.permute.xlu0 %3326
      %3329 = vset.pattern.permute.xlu0 21
      %3330 = vperm.xlu0 %3329, %v423
      %v3331 = vpop.permute.xlu0 %3330
      %3333 = vset.pattern.permute.xlu0 21
      %3334 = vperm.xlu0 %3333, %v424
      %v3335 = vpop.permute.xlu0 %3334
      %v3337 = vmul.f32 %v3257, %v3275
      %v3338 = vmul.f32 %v3258, %v3279
      %v3339 = vmul.f32 %v3259, %v3283
      %v3340 = vmul.f32 %v3260, %v3287
      %v3341 = vmul.f32 %v3261, %v3291
      %v3342 = vmul.f32 %v3262, %v3295
      %v3343 = vmul.f32 %v3263, %v3299
      %v3344 = vmul.f32 %v3264, %v3303
      %v3345 = vmul.f32 %v3265, %v3307
      %v3346 = vmul.f32 %v3266, %v3311
      %v3347 = vmul.f32 %v3267, %v3315
      %v3348 = vmul.f32 %v3268, %v3319
      %v3349 = vmul.f32 %v3269, %v3323
      %v3350 = vmul.f32 %v3270, %v3327
      %v3351 = vmul.f32 %v3271, %v3331
      %v3352 = vmul.f32 %v3272, %v3335
      %v3354 = vsel %vm857, %v3337, 0
      %v3357 = vsel %vm857, %v3338, 0
      %v3360 = vsel %vm857, %v3339, 0
      %v3363 = vsel %vm857, %v3340, 0
      %v3366 = vsel %vm857, %v3341, 0
      %v3369 = vsel %vm857, %v3342, 0
      %v3372 = vsel %vm857, %v3343, 0
      %v3375 = vsel %vm857, %v3344, 0
      %v3378 = vsel %vm857, %v3345, 0
      %v3381 = vsel %vm857, %v3346, 0
      %v3384 = vsel %vm857, %v3347, 0
      %v3387 = vsel %vm857, %v3348, 0
      %v3390 = vsel %vm857, %v3349, 0
      %v3393 = vsel %vm857, %v3350, 0
      %v3396 = vsel %vm857, %v3351, 0
      %v3399 = vsel %vm857, %v3352, 0
      %3401 = vmatpush.msra.mxu0 0.0
      %3402 = vmatpush.msra.mxu0 0.0
      %3403 = vmatpush.msra.mxu0 0.0
      %3404 = vmatpush.msra.mxu0 0.0
      %3405 = vmatpush.msra.mxu0 0.0
      %3406 = vmatpush.msra.mxu0 0.0
      %3407 = vmatpush.msra.mxu0 0.0
      %3408 = vmatpush.msra.mxu0 0.0
      %3409 = vmatpush.msra.mxu0 0.0
      %3410 = vmatpush.msra.mxu0 0.0
      %3411 = vmatpush.msra.mxu0 0.0
      %3412 = vmatpush.msra.mxu0 0.0
      %3413 = vmatpush.msra.mxu0 0.0
      %3414 = vmatpush.msra.mxu0 %v908
      %3415 = vmatpush.msra.mxu0 %v307
      %3416 = vmatpush.msra.mxu0 %v306
      %3417 = vmatmul.f32.gmra.mxu0 %v3354
      %v3418 = vpop.f32.mrf.mxu0
      %v3419 = vadd.f32 0.0, %v3418
      %3420 = vmatmul.f32.gmra.mxu0 %v3357
      %v3421 = vpop.f32.mrf.mxu0
      %v3422 = vadd.f32 0.0, %v3421
      %3423 = vmatmul.f32.gmra.mxu0 %v3360
      %v3424 = vpop.f32.mrf.mxu0
      %v3425 = vadd.f32 0.0, %v3424
      %3426 = vmatmul.f32.gmra.mxu0 %v3363
      %v3427 = vpop.f32.mrf.mxu0
      %v3428 = vadd.f32 0.0, %v3427
      %3429 = vmatmul.f32.gmra.mxu0 %v3366
      %v3430 = vpop.f32.mrf.mxu0
      %v3431 = vadd.f32 0.0, %v3430
      %3432 = vmatmul.f32.gmra.mxu0 %v3369
      %v3433 = vpop.f32.mrf.mxu0
      %v3434 = vadd.f32 0.0, %v3433
      %3435 = vmatmul.f32.gmra.mxu0 %v3372
      %v3436 = vpop.f32.mrf.mxu0
      %v3437 = vadd.f32 0.0, %v3436
      %3438 = vmatmul.f32.gmra.mxu0 %v3375
      %v3439 = vpop.f32.mrf.mxu0
      %v3440 = vadd.f32 0.0, %v3439
      %3441 = vmatmul.f32.gmra.mxu0 %v3378
      %v3442 = vpop.f32.mrf.mxu0
      %v3443 = vadd.f32 0.0, %v3442
      %3444 = vmatmul.f32.gmra.mxu0 %v3381
      %v3445 = vpop.f32.mrf.mxu0
      %v3446 = vadd.f32 0.0, %v3445
      %3447 = vmatmul.f32.gmra.mxu0 %v3384
      %v3448 = vpop.f32.mrf.mxu0
      %v3449 = vadd.f32 0.0, %v3448
      %3450 = vmatmul.f32.gmra.mxu0 %v3387
      %v3451 = vpop.f32.mrf.mxu0
      %v3452 = vadd.f32 0.0, %v3451
      %3453 = vmatmul.f32.gmra.mxu0 %v3390
      %v3454 = vpop.f32.mrf.mxu0
      %v3455 = vadd.f32 0.0, %v3454
      %3456 = vmatmul.f32.gmra.mxu0 %v3393
      %v3457 = vpop.f32.mrf.mxu0
      %v3458 = vadd.f32 0.0, %v3457
      %3459 = vmatmul.f32.gmra.mxu0 %v3396
      %v3460 = vpop.f32.mrf.mxu0
      %v3461 = vadd.f32 0.0, %v3460
      %3462 = vmatmul.f32.gmra.mxu0 %v3399
      %v3463 = vpop.f32.mrf.mxu0
      %v3464 = vadd.f32 0.0, %v3463
      %3465 = vdwg.mxu0
      %3467 = vset.pattern.permute.xlu0 1
      %3468 = vperm.xlu0 %3467, %v3113
      %v3469 = vpop.permute.xlu0 %3468
      %3472 = vset.pattern.permute.xlu0 1
      %3473 = vperm.xlu0 %3472, %v3114
      %v3474 = vpop.permute.xlu0 %3473
      %3477 = vset.pattern.permute.xlu0 1
      %3478 = vperm.xlu0 %3477, %v3115
      %v3479 = vpop.permute.xlu0 %3478
      %3482 = vset.pattern.permute.xlu0 1
      %3483 = vperm.xlu0 %3482, %v3116
      %v3484 = vpop.permute.xlu0 %3483
      %3487 = vset.pattern.permute.xlu0 1
      %3488 = vperm.xlu0 %3487, %v3117
      %v3489 = vpop.permute.xlu0 %3488
      %3492 = vset.pattern.permute.xlu0 1
      %3493 = vperm.xlu0 %3492, %v3118
      %v3494 = vpop.permute.xlu0 %3493
      %3497 = vset.pattern.permute.xlu0 1
      %3498 = vperm.xlu0 %3497, %v3119
      %v3499 = vpop.permute.xlu0 %3498
      %3502 = vset.pattern.permute.xlu0 1
      %3503 = vperm.xlu0 %3502, %v3120
      %v3504 = vpop.permute.xlu0 %3503
      %3507 = vset.pattern.permute.xlu0 1
      %3508 = vperm.xlu0 %3507, %v3121
      %v3509 = vpop.permute.xlu0 %3508
      %3512 = vset.pattern.permute.xlu0 1
      %3513 = vperm.xlu0 %3512, %v3122
      %v3514 = vpop.permute.xlu0 %3513
      %3517 = vset.pattern.permute.xlu0 1
      %3518 = vperm.xlu0 %3517, %v3123
      %v3519 = vpop.permute.xlu0 %3518
      %3522 = vset.pattern.permute.xlu0 1
      %3523 = vperm.xlu0 %3522, %v3124
      %v3524 = vpop.permute.xlu0 %3523
      %3527 = vset.pattern.permute.xlu0 1
      %3528 = vperm.xlu0 %3527, %v3125
      %v3529 = vpop.permute.xlu0 %3528
      %3532 = vset.pattern.permute.xlu0 1
      %3533 = vperm.xlu0 %3532, %v3126
      %v3534 = vpop.permute.xlu0 %3533
      %3537 = vset.pattern.permute.xlu0 1
      %3538 = vperm.xlu0 %3537, %v3127
      %v3539 = vpop.permute.xlu0 %3538
      %3542 = vset.pattern.permute.xlu0 1
      %3543 = vperm.xlu0 %3542, %v3128
      %v3544 = vpop.permute.xlu0 %3543
      %v3546 = vsub.f32 %v976, %v3469
      %v3547 = vsub.f32 %v976, %v3474
      %v3548 = vsub.f32 %v976, %v3479
      %v3549 = vsub.f32 %v976, %v3484
      %v3550 = vsub.f32 %v976, %v3489
      %v3551 = vsub.f32 %v976, %v3494
      %v3552 = vsub.f32 %v976, %v3499
      %v3553 = vsub.f32 %v976, %v3504
      %v3554 = vsub.f32 %v976, %v3509
      %v3555 = vsub.f32 %v976, %v3514
      %v3556 = vsub.f32 %v976, %v3519
      %v3557 = vsub.f32 %v976, %v3524
      %v3558 = vsub.f32 %v976, %v3529
      %v3559 = vsub.f32 %v976, %v3534
      %v3560 = vsub.f32 %v976, %v3539
      %v3561 = vsub.f32 %v976, %v3544
      %v3562 = vand.u32 2147483647, %v3546
      %v3563 = vand.u32 2147483647, %v3547
      %v3564 = vand.u32 2147483647, %v3548
      %v3565 = vand.u32 2147483647, %v3549
      %v3566 = vand.u32 2147483647, %v3550
      %v3567 = vand.u32 2147483647, %v3551
      %v3568 = vand.u32 2147483647, %v3552
      %v3569 = vand.u32 2147483647, %v3553
      %v3570 = vand.u32 2147483647, %v3554
      %v3571 = vand.u32 2147483647, %v3555
      %v3572 = vand.u32 2147483647, %v3556
      %v3573 = vand.u32 2147483647, %v3557
      %v3574 = vand.u32 2147483647, %v3558
      %v3575 = vand.u32 2147483647, %v3559
      %v3576 = vand.u32 2147483647, %v3560
      %v3577 = vand.u32 2147483647, %v3561
      %v3578 = vsub.f32 1.0, %v3562
      %v3579 = vsub.f32 1.0, %v3563
      %v3580 = vsub.f32 1.0, %v3564
      %v3581 = vsub.f32 1.0, %v3565
      %v3582 = vsub.f32 1.0, %v3566
      %v3583 = vsub.f32 1.0, %v3567
      %v3584 = vsub.f32 1.0, %v3568
      %v3585 = vsub.f32 1.0, %v3569
      %v3586 = vsub.f32 1.0, %v3570
      %v3587 = vsub.f32 1.0, %v3571
      %v3588 = vsub.f32 1.0, %v3572
      %v3589 = vsub.f32 1.0, %v3573
      %v3590 = vsub.f32 1.0, %v3574
      %v3591 = vsub.f32 1.0, %v3575
      %v3592 = vsub.f32 1.0, %v3576
      %v3593 = vsub.f32 1.0, %v3577
      %v3594 = vmax.f32 %v3578, 0.0
      %v3595 = vmax.f32 %v3579, 0.0
      %v3596 = vmax.f32 %v3580, 0.0
      %v3597 = vmax.f32 %v3581, 0.0
      %v3598 = vmax.f32 %v3582, 0.0
      %v3599 = vmax.f32 %v3583, 0.0
      %v3600 = vmax.f32 %v3584, 0.0
      %v3601 = vmax.f32 %v3585, 0.0
      %v3602 = vmax.f32 %v3586, 0.0
      %v3603 = vmax.f32 %v3587, 0.0
      %v3604 = vmax.f32 %v3588, 0.0
      %v3605 = vmax.f32 %v3589, 0.0
      %v3606 = vmax.f32 %v3590, 0.0
      %v3607 = vmax.f32 %v3591, 0.0
      %v3608 = vmax.f32 %v3592, 0.0
      %v3609 = vmax.f32 %v3593, 0.0
      %v3610 = vld [vmem:[%s304] sm:$0xff]
      %v3611 = vld [vmem:[%s304 + $0x8] sm:$0xff]
      %v3612 = vld [vmem:[%s304 + $0x10] sm:$0xff]
      %v3613 = vld [vmem:[%s304 + $0x18] sm:$0xff]
      %v3614 = vld [vmem:[%s304 + $0x20] sm:$0xff]
      %v3615 = vld [vmem:[%s304 + $0x28] sm:$0xff]
      %v3616 = vld [vmem:[%s304 + $0x30] sm:$0xff]
      %v3617 = vld [vmem:[%s304 + $0x38] sm:$0xff]
      %v3618 = vld [vmem:[%s304 + $0x40] sm:$0xff]
      %v3619 = vld [vmem:[%s304 + $0x48] sm:$0xff]
      %v3620 = vld [vmem:[%s304 + $0x50] sm:$0xff]
      %v3621 = vld [vmem:[%s304 + $0x58] sm:$0xff]
      %v3622 = vld [vmem:[%s304 + $0x60] sm:$0xff]
      %v3623 = vld [vmem:[%s304 + $0x68] sm:$0xff]
      %v3624 = vld [vmem:[%s304 + $0x70] sm:$0xff]
      %v3625 = vld [vmem:[%s304 + $0x78] sm:$0xff]
      %v3626 = vmul.f32 %v3594, %v3419
      %v3627 = vmul.f32 %v3595, %v3422
      %v3628 = vmul.f32 %v3596, %v3425
      %v3629 = vmul.f32 %v3597, %v3428
      %v3630 = vmul.f32 %v3598, %v3431
      %v3631 = vmul.f32 %v3599, %v3434
      %v3632 = vmul.f32 %v3600, %v3437
      %v3633 = vmul.f32 %v3601, %v3440
      %v3634 = vmul.f32 %v3602, %v3443
      %v3635 = vmul.f32 %v3603, %v3446
      %v3636 = vmul.f32 %v3604, %v3449
      %v3637 = vmul.f32 %v3605, %v3452
      %v3638 = vmul.f32 %v3606, %v3455
      %v3639 = vmul.f32 %v3607, %v3458
      %v3640 = vmul.f32 %v3608, %v3461
      %v3641 = vmul.f32 %v3609, %v3464
      %s3642 = scalar_lea.vmem %s3, 384
      %v3643 = vld [vmem:[%s3642] sm:$0xff]
      %v3644 = vld [vmem:[%s3642 + $0x8] sm:$0xff]
      %v3645 = vld [vmem:[%s3642 + $0x10] sm:$0xff]
      %v3646 = vld [vmem:[%s3642 + $0x18] sm:$0xff]
      %v3647 = vld [vmem:[%s3642 + $0x20] sm:$0xff]
      %v3648 = vld [vmem:[%s3642 + $0x28] sm:$0xff]
      %v3649 = vld [vmem:[%s3642 + $0x30] sm:$0xff]
      %v3650 = vld [vmem:[%s3642 + $0x38] sm:$0xff]
      %v3651 = vld [vmem:[%s3642 + $0x40] sm:$0xff]
      %v3652 = vld [vmem:[%s3642 + $0x48] sm:$0xff]
      %v3653 = vld [vmem:[%s3642 + $0x50] sm:$0xff]
      %v3654 = vld [vmem:[%s3642 + $0x58] sm:$0xff]
      %v3655 = vld [vmem:[%s3642 + $0x60] sm:$0xff]
      %v3656 = vld [vmem:[%s3642 + $0x68] sm:$0xff]
      %v3657 = vld [vmem:[%s3642 + $0x70] sm:$0xff]
      %v3658 = vld [vmem:[%s3642 + $0x78] sm:$0xff]
      %3659 = vmatpush.msra.mxu0 %v3658
      %3660 = vmatpush.msra.mxu0 %v3657
      %3661 = vmatpush.msra.mxu0 %v3656
      %3662 = vmatpush.msra.mxu0 %v3655
      %3663 = vmatpush.msra.mxu0 %v3654
      %3664 = vmatpush.msra.mxu0 %v3653
      %3665 = vmatpush.msra.mxu0 %v3652
      %3666 = vmatpush.msra.mxu0 %v3651
      %3667 = vmatpush.msra.mxu0 %v3650
      %3668 = vmatpush.msra.mxu0 %v3649
      %3669 = vmatpush.msra.mxu0 %v3648
      %3670 = vmatpush.msra.mxu0 %v3647
      %3671 = vmatpush.msra.mxu0 %v3646
      %3672 = vmatpush.msra.mxu0 %v3645
      %3673 = vmatpush.msra.mxu0 %v3644
      %3674 = vmatpush.msra.mxu0 %v3643
      %3675 = vmatmul.f32.gmra.mxu0 %v3626
      %v3676 = vpop.f32.mrf.mxu0
      %v3677 = vadd.f32 0.0, %v3676
      %3678 = vmatmul.f32.gmra.mxu0 %v3627
      %v3679 = vpop.f32.mrf.mxu0
      %v3680 = vadd.f32 0.0, %v3679
      %3681 = vmatmul.f32.gmra.mxu0 %v3628
      %v3682 = vpop.f32.mrf.mxu0
      %v3683 = vadd.f32 0.0, %v3682
      %3684 = vmatmul.f32.gmra.mxu0 %v3629
      %v3685 = vpop.f32.mrf.mxu0
      %v3686 = vadd.f32 0.0, %v3685
      %3687 = vmatmul.f32.gmra.mxu0 %v3630
      %v3688 = vpop.f32.mrf.mxu0
      %v3689 = vadd.f32 0.0, %v3688
      %3690 = vmatmul.f32.gmra.mxu0 %v3631
      %v3691 = vpop.f32.mrf.mxu0
      %v3692 = vadd.f32 0.0, %v3691
      %3693 = vmatmul.f32.gmra.mxu0 %v3632
      %v3694 = vpop.f32.mrf.mxu0
      %v3695 = vadd.f32 0.0, %v3694
      %3696 = vmatmul.f32.gmra.mxu0 %v3633
      %v3697 = vpop.f32.mrf.mxu0
      %v3698 = vadd.f32 0.0, %v3697
      %3699 = vmatmul.f32.gmra.mxu0 %v3634
      %v3700 = vpop.f32.mrf.mxu0
      %v3701 = vadd.f32 0.0, %v3700
      %3702 = vmatmul.f32.gmra.mxu0 %v3635
      %v3703 = vpop.f32.mrf.mxu0
      %v3704 = vadd.f32 0.0, %v3703
      %3705 = vmatmul.f32.gmra.mxu0 %v3636
      %v3706 = vpop.f32.mrf.mxu0
      %v3707 = vadd.f32 0.0, %v3706
      %3708 = vmatmul.f32.gmra.mxu0 %v3637
      %v3709 = vpop.f32.mrf.mxu0
      %v3710 = vadd.f32 0.0, %v3709
      %3711 = vmatmul.f32.gmra.mxu0 %v3638
      %v3712 = vpop.f32.mrf.mxu0
      %v3713 = vadd.f32 0.0, %v3712
      %3714 = vmatmul.f32.gmra.mxu0 %v3639
      %v3715 = vpop.f32.mrf.mxu0
      %v3716 = vadd.f32 0.0, %v3715
      %3717 = vmatmul.f32.gmra.mxu0 %v3640
      %v3718 = vpop.f32.mrf.mxu0
      %v3719 = vadd.f32 0.0, %v3718
      %3720 = vmatmul.f32.gmra.mxu0 %v3641
      %v3721 = vpop.f32.mrf.mxu0
      %v3722 = vadd.f32 0.0, %v3721
      %3723 = vdwg.mxu0
      %v3724 = vadd.f32 %v3610, %v3677
      %v3725 = vadd.f32 %v3611, %v3680
      %v3726 = vadd.f32 %v3612, %v3683
      %v3727 = vadd.f32 %v3613, %v3686
      %v3728 = vadd.f32 %v3614, %v3689
      %v3729 = vadd.f32 %v3615, %v3692
      %v3730 = vadd.f32 %v3616, %v3695
      %v3731 = vadd.f32 %v3617, %v3698
      %v3732 = vadd.f32 %v3618, %v3701
      %v3733 = vadd.f32 %v3619, %v3704
      %v3734 = vadd.f32 %v3620, %v3707
      %v3735 = vadd.f32 %v3621, %v3710
      %v3736 = vadd.f32 %v3622, %v3713
      %v3737 = vadd.f32 %v3623, %v3716
      %v3738 = vadd.f32 %v3624, %v3719
      %v3739 = vadd.f32 %v3625, %v3722
      %3740 = vst [vmem:[%s304] sm:$0xff] %v3724
      %3741 = vst [vmem:[%s304 + $0x8] sm:$0xff] %v3725
      %3742 = vst [vmem:[%s304 + $0x10] sm:$0xff] %v3726
      %3743 = vst [vmem:[%s304 + $0x18] sm:$0xff] %v3727
      %3744 = vst [vmem:[%s304 + $0x20] sm:$0xff] %v3728
      %3745 = vst [vmem:[%s304 + $0x28] sm:$0xff] %v3729
      %3746 = vst [vmem:[%s304 + $0x30] sm:$0xff] %v3730
      %3747 = vst [vmem:[%s304 + $0x38] sm:$0xff] %v3731
      %3748 = vst [vmem:[%s304 + $0x40] sm:$0xff] %v3732
      %3749 = vst [vmem:[%s304 + $0x48] sm:$0xff] %v3733
      %3750 = vst [vmem:[%s304 + $0x50] sm:$0xff] %v3734
      %3751 = vst [vmem:[%s304 + $0x58] sm:$0xff] %v3735
      %3752 = vst [vmem:[%s304 + $0x60] sm:$0xff] %v3736
      %3753 = vst [vmem:[%s304 + $0x68] sm:$0xff] %v3737
      %3754 = vst [vmem:[%s304 + $0x70] sm:$0xff] %v3738
      %3755 = vst [vmem:[%s304 + $0x78] sm:$0xff] %v3739
      %3756 = vrot.lane.b32.xlu0 %v329, 124
      %v3757 = vpop.permute.xlu0 %3756
      %3758 = vrot.lane.b32.xlu0 %v330, 124
      %v3759 = vpop.permute.xlu0 %3758
      %3760 = vrot.lane.b32.xlu0 %v331, 124
      %v3761 = vpop.permute.xlu0 %3760
      %3762 = vrot.lane.b32.xlu0 %v332, 124
      %v3763 = vpop.permute.xlu0 %3762
      %3764 = vrot.lane.b32.xlu0 %v333, 124
      %v3765 = vpop.permute.xlu0 %3764
      %3766 = vrot.lane.b32.xlu0 %v334, 124
      %v3767 = vpop.permute.xlu0 %3766
      %3768 = vrot.lane.b32.xlu0 %v335, 124
      %v3769 = vpop.permute.xlu0 %3768
      %3770 = vrot.lane.b32.xlu0 %v336, 124
      %v3771 = vpop.permute.xlu0 %3770
      %3772 = vrot.lane.b32.xlu0 %v337, 124
      %v3773 = vpop.permute.xlu0 %3772
      %3774 = vrot.lane.b32.xlu0 %v338, 124
      %v3775 = vpop.permute.xlu0 %3774
      %3776 = vrot.lane.b32.xlu0 %v339, 124
      %v3777 = vpop.permute.xlu0 %3776
      %3778 = vrot.lane.b32.xlu0 %v340, 124
      %v3779 = vpop.permute.xlu0 %3778
      %3780 = vrot.lane.b32.xlu0 %v341, 124
      %v3781 = vpop.permute.xlu0 %3780
      %3782 = vrot.lane.b32.xlu0 %v342, 124
      %v3783 = vpop.permute.xlu0 %3782
      %3784 = vrot.lane.b32.xlu0 %v343, 124
      %v3785 = vpop.permute.xlu0 %3784
      %3786 = vrot.lane.b32.xlu0 %v344, 124
      %v3787 = vpop.permute.xlu0 %3786
      %v3804 = vadd.f32 %v1363, %v3757
      %v3805 = vadd.f32 %v1364, %v3759
      %v3806 = vadd.f32 %v1365, %v3761
      %v3807 = vadd.f32 %v1366, %v3763
      %v3808 = vadd.f32 %v1367, %v3765
      %v3809 = vadd.f32 %v1368, %v3767
      %v3810 = vadd.f32 %v1369, %v3769
      %v3811 = vadd.f32 %v1370, %v3771
      %v3812 = vadd.f32 %v1371, %v3773
      %v3813 = vadd.f32 %v1372, %v3775
      %v3814 = vadd.f32 %v1373, %v3777
      %v3815 = vadd.f32 %v1374, %v3779
      %v3816 = vadd.f32 %v1375, %v3781
      %v3817 = vadd.f32 %v1376, %v3783
      %v3818 = vadd.f32 %v1377, %v3785
      %v3819 = vadd.f32 %v1378, %v3787
      %v3820 = vmax.f32 %v3804, 0.0
      %v3821 = vmax.f32 %v3805, 0.0
      %v3822 = vmax.f32 %v3806, 0.0
      %v3823 = vmax.f32 %v3807, 0.0
      %v3824 = vmax.f32 %v3808, 0.0
      %v3825 = vmax.f32 %v3809, 0.0
      %v3826 = vmax.f32 %v3810, 0.0
      %v3827 = vmax.f32 %v3811, 0.0
      %v3828 = vmax.f32 %v3812, 0.0
      %v3829 = vmax.f32 %v3813, 0.0
      %v3830 = vmax.f32 %v3814, 0.0
      %v3831 = vmax.f32 %v3815, 0.0
      %v3832 = vmax.f32 %v3816, 0.0
      %v3833 = vmax.f32 %v3817, 0.0
      %v3834 = vmax.f32 %v3818, 0.0
      %v3835 = vmax.f32 %v3819, 0.0
      %v3836 = vmin.f32 %v3820, 17.0
      %v3837 = vmin.f32 %v3821, 17.0
      %v3838 = vmin.f32 %v3822, 17.0
      %v3839 = vmin.f32 %v3823, 17.0
      %v3840 = vmin.f32 %v3824, 17.0
      %v3841 = vmin.f32 %v3825, 17.0
      %v3842 = vmin.f32 %v3826, 17.0
      %v3843 = vmin.f32 %v3827, 17.0
      %v3844 = vmin.f32 %v3828, 17.0
      %v3845 = vmin.f32 %v3829, 17.0
      %v3846 = vmin.f32 %v3830, 17.0
      %v3847 = vmin.f32 %v3831, 17.0
      %v3848 = vmin.f32 %v3832, 17.0
      %v3849 = vmin.f32 %v3833, 17.0
      %v3850 = vmin.f32 %v3834, 17.0
      %v3851 = vmin.f32 %v3835, 17.0
      %3852 = vrot.lane.b32.xlu0 %v329, 116
      %v3853 = vpop.permute.xlu0 %3852
      %3854 = vrot.lane.b32.xlu0 %v330, 116
      %v3855 = vpop.permute.xlu0 %3854
      %3856 = vrot.lane.b32.xlu0 %v331, 116
      %v3857 = vpop.permute.xlu0 %3856
      %3858 = vrot.lane.b32.xlu0 %v332, 116
      %v3859 = vpop.permute.xlu0 %3858
      %3860 = vrot.lane.b32.xlu0 %v333, 116
      %v3861 = vpop.permute.xlu0 %3860
      %3862 = vrot.lane.b32.xlu0 %v334, 116
      %v3863 = vpop.permute.xlu0 %3862
      %3864 = vrot.lane.b32.xlu0 %v335, 116
      %v3865 = vpop.permute.xlu0 %3864
      %3866 = vrot.lane.b32.xlu0 %v336, 116
      %v3867 = vpop.permute.xlu0 %3866
      %3868 = vrot.lane.b32.xlu0 %v337, 116
      %v3869 = vpop.permute.xlu0 %3868
      %3870 = vrot.lane.b32.xlu0 %v338, 116
      %v3871 = vpop.permute.xlu0 %3870
      %3872 = vrot.lane.b32.xlu0 %v339, 116
      %v3873 = vpop.permute.xlu0 %3872
      %3874 = vrot.lane.b32.xlu0 %v340, 116
      %v3875 = vpop.permute.xlu0 %3874
      %3876 = vrot.lane.b32.xlu0 %v341, 116
      %v3877 = vpop.permute.xlu0 %3876
      %3878 = vrot.lane.b32.xlu0 %v342, 116
      %v3879 = vpop.permute.xlu0 %3878
      %3880 = vrot.lane.b32.xlu0 %v343, 116
      %v3881 = vpop.permute.xlu0 %3880
      %3882 = vrot.lane.b32.xlu0 %v344, 116
      %v3883 = vpop.permute.xlu0 %3882
      %v3900 = vadd.f32 %v1363, %v3853
      %v3901 = vadd.f32 %v1364, %v3855
      %v3902 = vadd.f32 %v1365, %v3857
      %v3903 = vadd.f32 %v1366, %v3859
      %v3904 = vadd.f32 %v1367, %v3861
      %v3905 = vadd.f32 %v1368, %v3863
      %v3906 = vadd.f32 %v1369, %v3865
      %v3907 = vadd.f32 %v1370, %v3867
      %v3908 = vadd.f32 %v1371, %v3869
      %v3909 = vadd.f32 %v1372, %v3871
      %v3910 = vadd.f32 %v1373, %v3873
      %v3911 = vadd.f32 %v1374, %v3875
      %v3912 = vadd.f32 %v1375, %v3877
      %v3913 = vadd.f32 %v1376, %v3879
      %v3914 = vadd.f32 %v1377, %v3881
      %v3915 = vadd.f32 %v1378, %v3883
      %v3916 = vmax.f32 %v3900, 0.0
      %v3917 = vmax.f32 %v3901, 0.0
      %v3918 = vmax.f32 %v3902, 0.0
      %v3919 = vmax.f32 %v3903, 0.0
      %v3920 = vmax.f32 %v3904, 0.0
      %v3921 = vmax.f32 %v3905, 0.0
      %v3922 = vmax.f32 %v3906, 0.0
      %v3923 = vmax.f32 %v3907, 0.0
      %v3924 = vmax.f32 %v3908, 0.0
      %v3925 = vmax.f32 %v3909, 0.0
      %v3926 = vmax.f32 %v3910, 0.0
      %v3927 = vmax.f32 %v3911, 0.0
      %v3928 = vmax.f32 %v3912, 0.0
      %v3929 = vmax.f32 %v3913, 0.0
      %v3930 = vmax.f32 %v3914, 0.0
      %v3931 = vmax.f32 %v3915, 0.0
      %v3932 = vmin.f32 %v3916, 17.0
      %v3933 = vmin.f32 %v3917, 17.0
      %v3934 = vmin.f32 %v3918, 17.0
      %v3935 = vmin.f32 %v3919, 17.0
      %v3936 = vmin.f32 %v3920, 17.0
      %v3937 = vmin.f32 %v3921, 17.0
      %v3938 = vmin.f32 %v3922, 17.0
      %v3939 = vmin.f32 %v3923, 17.0
      %v3940 = vmin.f32 %v3924, 17.0
      %v3941 = vmin.f32 %v3925, 17.0
      %v3942 = vmin.f32 %v3926, 17.0
      %v3943 = vmin.f32 %v3927, 17.0
      %v3944 = vmin.f32 %v3928, 17.0
      %v3945 = vmin.f32 %v3929, 17.0
      %v3946 = vmin.f32 %v3930, 17.0
      %v3947 = vmin.f32 %v3931, 17.0
      %3949 = vset.pattern.permute.xlu0 0
      %3950 = vperm.xlu0 %3949, %v3836
      %v3951 = vpop.permute.xlu0 %3950
      %3954 = vset.pattern.permute.xlu0 0
      %3955 = vperm.xlu0 %3954, %v3837
      %v3956 = vpop.permute.xlu0 %3955
      %3959 = vset.pattern.permute.xlu0 0
      %3960 = vperm.xlu0 %3959, %v3838
      %v3961 = vpop.permute.xlu0 %3960
      %3964 = vset.pattern.permute.xlu0 0
      %3965 = vperm.xlu0 %3964, %v3839
      %v3966 = vpop.permute.xlu0 %3965
      %3969 = vset.pattern.permute.xlu0 0
      %3970 = vperm.xlu0 %3969, %v3840
      %v3971 = vpop.permute.xlu0 %3970
      %3974 = vset.pattern.permute.xlu0 0
      %3975 = vperm.xlu0 %3974, %v3841
      %v3976 = vpop.permute.xlu0 %3975
      %3979 = vset.pattern.permute.xlu0 0
      %3980 = vperm.xlu0 %3979, %v3842
      %v3981 = vpop.permute.xlu0 %3980
      %3984 = vset.pattern.permute.xlu0 0
      %3985 = vperm.xlu0 %3984, %v3843
      %v3986 = vpop.permute.xlu0 %3985
      %3989 = vset.pattern.permute.xlu0 0
      %3990 = vperm.xlu0 %3989, %v3844
      %v3991 = vpop.permute.xlu0 %3990
      %3994 = vset.pattern.permute.xlu0 0
      %3995 = vperm.xlu0 %3994, %v3845
      %v3996 = vpop.permute.xlu0 %3995
      %3999 = vset.pattern.permute.xlu0 0
      %4000 = vperm.xlu0 %3999, %v3846
      %v4001 = vpop.permute.xlu0 %4000
      %4004 = vset.pattern.permute.xlu0 0
      %4005 = vperm.xlu0 %4004, %v3847
      %v4006 = vpop.permute.xlu0 %4005
      %4009 = vset.pattern.permute.xlu0 0
      %4010 = vperm.xlu0 %4009, %v3848
      %v4011 = vpop.permute.xlu0 %4010
      %4014 = vset.pattern.permute.xlu0 0
      %4015 = vperm.xlu0 %4014, %v3849
      %v4016 = vpop.permute.xlu0 %4015
      %4019 = vset.pattern.permute.xlu0 0
      %4020 = vperm.xlu0 %4019, %v3850
      %v4021 = vpop.permute.xlu0 %4020
      %4024 = vset.pattern.permute.xlu0 0
      %4025 = vperm.xlu0 %4024, %v3851
      %v4026 = vpop.permute.xlu0 %4025
      %v4028 = vsub.f32 %v312, %v3951
      %v4029 = vsub.f32 %v312, %v3956
      %v4030 = vsub.f32 %v312, %v3961
      %v4031 = vsub.f32 %v312, %v3966
      %v4032 = vsub.f32 %v312, %v3971
      %v4033 = vsub.f32 %v312, %v3976
      %v4034 = vsub.f32 %v312, %v3981
      %v4035 = vsub.f32 %v312, %v3986
      %v4036 = vsub.f32 %v312, %v3991
      %v4037 = vsub.f32 %v312, %v3996
      %v4038 = vsub.f32 %v312, %v4001
      %v4039 = vsub.f32 %v312, %v4006
      %v4040 = vsub.f32 %v312, %v4011
      %v4041 = vsub.f32 %v312, %v4016
      %v4042 = vsub.f32 %v312, %v4021
      %v4043 = vsub.f32 %v312, %v4026
      %v4044 = vand.u32 2147483647, %v4028
      %v4045 = vand.u32 2147483647, %v4029
      %v4046 = vand.u32 2147483647, %v4030
      %v4047 = vand.u32 2147483647, %v4031
      %v4048 = vand.u32 2147483647, %v4032
      %v4049 = vand.u32 2147483647, %v4033
      %v4050 = vand.u32 2147483647, %v4034
      %v4051 = vand.u32 2147483647, %v4035
      %v4052 = vand.u32 2147483647, %v4036
      %v4053 = vand.u32 2147483647, %v4037
      %v4054 = vand.u32 2147483647, %v4038
      %v4055 = vand.u32 2147483647, %v4039
      %v4056 = vand.u32 2147483647, %v4040
      %v4057 = vand.u32 2147483647, %v4041
      %v4058 = vand.u32 2147483647, %v4042
      %v4059 = vand.u32 2147483647, %v4043
      %v4060 = vsub.f32 1.0, %v4044
      %v4061 = vsub.f32 1.0, %v4045
      %v4062 = vsub.f32 1.0, %v4046
      %v4063 = vsub.f32 1.0, %v4047
      %v4064 = vsub.f32 1.0, %v4048
      %v4065 = vsub.f32 1.0, %v4049
      %v4066 = vsub.f32 1.0, %v4050
      %v4067 = vsub.f32 1.0, %v4051
      %v4068 = vsub.f32 1.0, %v4052
      %v4069 = vsub.f32 1.0, %v4053
      %v4070 = vsub.f32 1.0, %v4054
      %v4071 = vsub.f32 1.0, %v4055
      %v4072 = vsub.f32 1.0, %v4056
      %v4073 = vsub.f32 1.0, %v4057
      %v4074 = vsub.f32 1.0, %v4058
      %v4075 = vsub.f32 1.0, %v4059
      %v4076 = vmax.f32 %v4060, 0.0
      %v4077 = vmax.f32 %v4061, 0.0
      %v4078 = vmax.f32 %v4062, 0.0
      %v4079 = vmax.f32 %v4063, 0.0
      %v4080 = vmax.f32 %v4064, 0.0
      %v4081 = vmax.f32 %v4065, 0.0
      %v4082 = vmax.f32 %v4066, 0.0
      %v4083 = vmax.f32 %v4067, 0.0
      %v4084 = vmax.f32 %v4068, 0.0
      %v4085 = vmax.f32 %v4069, 0.0
      %v4086 = vmax.f32 %v4070, 0.0
      %v4087 = vmax.f32 %v4071, 0.0
      %v4088 = vmax.f32 %v4072, 0.0
      %v4089 = vmax.f32 %v4073, 0.0
      %v4090 = vmax.f32 %v4074, 0.0
      %v4091 = vmax.f32 %v4075, 0.0
      %4092 = vset.pattern.permute.xlu0 22
      %4093 = vperm.xlu0 %4092, %v409
      %v4094 = vpop.permute.xlu0 %4093
      %4096 = vset.pattern.permute.xlu0 22
      %4097 = vperm.xlu0 %4096, %v410
      %v4098 = vpop.permute.xlu0 %4097
      %4100 = vset.pattern.permute.xlu0 22
      %4101 = vperm.xlu0 %4100, %v411
      %v4102 = vpop.permute.xlu0 %4101
      %4104 = vset.pattern.permute.xlu0 22
      %4105 = vperm.xlu0 %4104, %v412
      %v4106 = vpop.permute.xlu0 %4105
      %4108 = vset.pattern.permute.xlu0 22
      %4109 = vperm.xlu0 %4108, %v413
      %v4110 = vpop.permute.xlu0 %4109
      %4112 = vset.pattern.permute.xlu0 22
      %4113 = vperm.xlu0 %4112, %v414
      %v4114 = vpop.permute.xlu0 %4113
      %4116 = vset.pattern.permute.xlu0 22
      %4117 = vperm.xlu0 %4116, %v415
      %v4118 = vpop.permute.xlu0 %4117
      %4120 = vset.pattern.permute.xlu0 22
      %4121 = vperm.xlu0 %4120, %v416
      %v4122 = vpop.permute.xlu0 %4121
      %4124 = vset.pattern.permute.xlu0 22
      %4125 = vperm.xlu0 %4124, %v417
      %v4126 = vpop.permute.xlu0 %4125
      %4128 = vset.pattern.permute.xlu0 22
      %4129 = vperm.xlu0 %4128, %v418
      %v4130 = vpop.permute.xlu0 %4129
      %4132 = vset.pattern.permute.xlu0 22
      %4133 = vperm.xlu0 %4132, %v419
      %v4134 = vpop.permute.xlu0 %4133
      %4136 = vset.pattern.permute.xlu0 22
      %4137 = vperm.xlu0 %4136, %v420
      %v4138 = vpop.permute.xlu0 %4137
      %4140 = vset.pattern.permute.xlu0 22
      %4141 = vperm.xlu0 %4140, %v421
      %v4142 = vpop.permute.xlu0 %4141
      %4144 = vset.pattern.permute.xlu0 22
      %4145 = vperm.xlu0 %4144, %v422
      %v4146 = vpop.permute.xlu0 %4145
      %4148 = vset.pattern.permute.xlu0 22
      %4149 = vperm.xlu0 %4148, %v423
      %v4150 = vpop.permute.xlu0 %4149
      %4152 = vset.pattern.permute.xlu0 22
      %4153 = vperm.xlu0 %4152, %v424
      %v4154 = vpop.permute.xlu0 %4153
      %v4156 = vmul.f32 %v4076, %v4094
      %v4157 = vmul.f32 %v4077, %v4098
      %v4158 = vmul.f32 %v4078, %v4102
      %v4159 = vmul.f32 %v4079, %v4106
      %v4160 = vmul.f32 %v4080, %v4110
      %v4161 = vmul.f32 %v4081, %v4114
      %v4162 = vmul.f32 %v4082, %v4118
      %v4163 = vmul.f32 %v4083, %v4122
      %v4164 = vmul.f32 %v4084, %v4126
      %v4165 = vmul.f32 %v4085, %v4130
      %v4166 = vmul.f32 %v4086, %v4134
      %v4167 = vmul.f32 %v4087, %v4138
      %v4168 = vmul.f32 %v4088, %v4142
      %v4169 = vmul.f32 %v4089, %v4146
      %v4170 = vmul.f32 %v4090, %v4150
      %v4171 = vmul.f32 %v4091, %v4154
      %v4173 = vsel %vm857, %v4156, 0
      %v4176 = vsel %vm857, %v4157, 0
      %v4179 = vsel %vm857, %v4158, 0
      %v4182 = vsel %vm857, %v4159, 0
      %v4185 = vsel %vm857, %v4160, 0
      %v4188 = vsel %vm857, %v4161, 0
      %v4191 = vsel %vm857, %v4162, 0
      %v4194 = vsel %vm857, %v4163, 0
      %v4197 = vsel %vm857, %v4164, 0
      %v4200 = vsel %vm857, %v4165, 0
      %v4203 = vsel %vm857, %v4166, 0
      %v4206 = vsel %vm857, %v4167, 0
      %v4209 = vsel %vm857, %v4168, 0
      %v4212 = vsel %vm857, %v4169, 0
      %v4215 = vsel %vm857, %v4170, 0
      %v4218 = vsel %vm857, %v4171, 0
      %4220 = vmatpush.msra.mxu0 0.0
      %4221 = vmatpush.msra.mxu0 0.0
      %4222 = vmatpush.msra.mxu0 0.0
      %4223 = vmatpush.msra.mxu0 0.0
      %4224 = vmatpush.msra.mxu0 0.0
      %4225 = vmatpush.msra.mxu0 0.0
      %4226 = vmatpush.msra.mxu0 0.0
      %4227 = vmatpush.msra.mxu0 0.0
      %4228 = vmatpush.msra.mxu0 0.0
      %4229 = vmatpush.msra.mxu0 0.0
      %4230 = vmatpush.msra.mxu0 0.0
      %4231 = vmatpush.msra.mxu0 0.0
      %4232 = vmatpush.msra.mxu0 0.0
      %4233 = vmatpush.msra.mxu0 %v908
      %4234 = vmatpush.msra.mxu0 %v307
      %4235 = vmatpush.msra.mxu0 %v306
      %4236 = vmatmul.f32.gmra.mxu0 %v4173
      %v4237 = vpop.f32.mrf.mxu0
      %v4238 = vadd.f32 0.0, %v4237
      %4239 = vmatmul.f32.gmra.mxu0 %v4176
      %v4240 = vpop.f32.mrf.mxu0
      %v4241 = vadd.f32 0.0, %v4240
      %4242 = vmatmul.f32.gmra.mxu0 %v4179
      %v4243 = vpop.f32.mrf.mxu0
      %v4244 = vadd.f32 0.0, %v4243
      %4245 = vmatmul.f32.gmra.mxu0 %v4182
      %v4246 = vpop.f32.mrf.mxu0
      %v4247 = vadd.f32 0.0, %v4246
      %4248 = vmatmul.f32.gmra.mxu0 %v4185
      %v4249 = vpop.f32.mrf.mxu0
      %v4250 = vadd.f32 0.0, %v4249
      %4251 = vmatmul.f32.gmra.mxu0 %v4188
      %v4252 = vpop.f32.mrf.mxu0
      %v4253 = vadd.f32 0.0, %v4252
      %4254 = vmatmul.f32.gmra.mxu0 %v4191
      %v4255 = vpop.f32.mrf.mxu0
      %v4256 = vadd.f32 0.0, %v4255
      %4257 = vmatmul.f32.gmra.mxu0 %v4194
      %v4258 = vpop.f32.mrf.mxu0
      %v4259 = vadd.f32 0.0, %v4258
      %4260 = vmatmul.f32.gmra.mxu0 %v4197
      %v4261 = vpop.f32.mrf.mxu0
      %v4262 = vadd.f32 0.0, %v4261
      %4263 = vmatmul.f32.gmra.mxu0 %v4200
      %v4264 = vpop.f32.mrf.mxu0
      %v4265 = vadd.f32 0.0, %v4264
      %4266 = vmatmul.f32.gmra.mxu0 %v4203
      %v4267 = vpop.f32.mrf.mxu0
      %v4268 = vadd.f32 0.0, %v4267
      %4269 = vmatmul.f32.gmra.mxu0 %v4206
      %v4270 = vpop.f32.mrf.mxu0
      %v4271 = vadd.f32 0.0, %v4270
      %4272 = vmatmul.f32.gmra.mxu0 %v4209
      %v4273 = vpop.f32.mrf.mxu0
      %v4274 = vadd.f32 0.0, %v4273
      %4275 = vmatmul.f32.gmra.mxu0 %v4212
      %v4276 = vpop.f32.mrf.mxu0
      %v4277 = vadd.f32 0.0, %v4276
      %4278 = vmatmul.f32.gmra.mxu0 %v4215
      %v4279 = vpop.f32.mrf.mxu0
      %v4280 = vadd.f32 0.0, %v4279
      %4281 = vmatmul.f32.gmra.mxu0 %v4218
      %v4282 = vpop.f32.mrf.mxu0
      %v4283 = vadd.f32 0.0, %v4282
      %4284 = vdwg.mxu0
      %4286 = vset.pattern.permute.xlu0 1
      %4287 = vperm.xlu0 %4286, %v3932
      %v4288 = vpop.permute.xlu0 %4287
      %4291 = vset.pattern.permute.xlu0 1
      %4292 = vperm.xlu0 %4291, %v3933
      %v4293 = vpop.permute.xlu0 %4292
      %4296 = vset.pattern.permute.xlu0 1
      %4297 = vperm.xlu0 %4296, %v3934
      %v4298 = vpop.permute.xlu0 %4297
      %4301 = vset.pattern.permute.xlu0 1
      %4302 = vperm.xlu0 %4301, %v3935
      %v4303 = vpop.permute.xlu0 %4302
      %4306 = vset.pattern.permute.xlu0 1
      %4307 = vperm.xlu0 %4306, %v3936
      %v4308 = vpop.permute.xlu0 %4307
      %4311 = vset.pattern.permute.xlu0 1
      %4312 = vperm.xlu0 %4311, %v3937
      %v4313 = vpop.permute.xlu0 %4312
      %4316 = vset.pattern.permute.xlu0 1
      %4317 = vperm.xlu0 %4316, %v3938
      %v4318 = vpop.permute.xlu0 %4317
      %4321 = vset.pattern.permute.xlu0 1
      %4322 = vperm.xlu0 %4321, %v3939
      %v4323 = vpop.permute.xlu0 %4322
      %4326 = vset.pattern.permute.xlu0 1
      %4327 = vperm.xlu0 %4326, %v3940
      %v4328 = vpop.permute.xlu0 %4327
      %4331 = vset.pattern.permute.xlu0 1
      %4332 = vperm.xlu0 %4331, %v3941
      %v4333 = vpop.permute.xlu0 %4332
      %4336 = vset.pattern.permute.xlu0 1
      %4337 = vperm.xlu0 %4336, %v3942
      %v4338 = vpop.permute.xlu0 %4337
      %4341 = vset.pattern.permute.xlu0 1
      %4342 = vperm.xlu0 %4341, %v3943
      %v4343 = vpop.permute.xlu0 %4342
      %4346 = vset.pattern.permute.xlu0 1
      %4347 = vperm.xlu0 %4346, %v3944
      %v4348 = vpop.permute.xlu0 %4347
      %4351 = vset.pattern.permute.xlu0 1
      %4352 = vperm.xlu0 %4351, %v3945
      %v4353 = vpop.permute.xlu0 %4352
      %4356 = vset.pattern.permute.xlu0 1
      %4357 = vperm.xlu0 %4356, %v3946
      %v4358 = vpop.permute.xlu0 %4357
      %4361 = vset.pattern.permute.xlu0 1
      %4362 = vperm.xlu0 %4361, %v3947
      %v4363 = vpop.permute.xlu0 %4362
      %v4365 = vsub.f32 %v976, %v4288
      %v4366 = vsub.f32 %v976, %v4293
      %v4367 = vsub.f32 %v976, %v4298
      %v4368 = vsub.f32 %v976, %v4303
      %v4369 = vsub.f32 %v976, %v4308
      %v4370 = vsub.f32 %v976, %v4313
      %v4371 = vsub.f32 %v976, %v4318
      %v4372 = vsub.f32 %v976, %v4323
      %v4373 = vsub.f32 %v976, %v4328
      %v4374 = vsub.f32 %v976, %v4333
      %v4375 = vsub.f32 %v976, %v4338
      %v4376 = vsub.f32 %v976, %v4343
      %v4377 = vsub.f32 %v976, %v4348
      %v4378 = vsub.f32 %v976, %v4353
      %v4379 = vsub.f32 %v976, %v4358
      %v4380 = vsub.f32 %v976, %v4363
      %v4381 = vand.u32 2147483647, %v4365
      %v4382 = vand.u32 2147483647, %v4366
      %v4383 = vand.u32 2147483647, %v4367
      %v4384 = vand.u32 2147483647, %v4368
      %v4385 = vand.u32 2147483647, %v4369
      %v4386 = vand.u32 2147483647, %v4370
      %v4387 = vand.u32 2147483647, %v4371
      %v4388 = vand.u32 2147483647, %v4372
      %v4389 = vand.u32 2147483647, %v4373
      %v4390 = vand.u32 2147483647, %v4374
      %v4391 = vand.u32 2147483647, %v4375
      %v4392 = vand.u32 2147483647, %v4376
      %v4393 = vand.u32 2147483647, %v4377
      %v4394 = vand.u32 2147483647, %v4378
      %v4395 = vand.u32 2147483647, %v4379
      %v4396 = vand.u32 2147483647, %v4380
      %v4397 = vsub.f32 1.0, %v4381
      %v4398 = vsub.f32 1.0, %v4382
      %v4399 = vsub.f32 1.0, %v4383
      %v4400 = vsub.f32 1.0, %v4384
      %v4401 = vsub.f32 1.0, %v4385
      %v4402 = vsub.f32 1.0, %v4386
      %v4403 = vsub.f32 1.0, %v4387
      %v4404 = vsub.f32 1.0, %v4388
      %v4405 = vsub.f32 1.0, %v4389
      %v4406 = vsub.f32 1.0, %v4390
      %v4407 = vsub.f32 1.0, %v4391
      %v4408 = vsub.f32 1.0, %v4392
      %v4409 = vsub.f32 1.0, %v4393
      %v4410 = vsub.f32 1.0, %v4394
      %v4411 = vsub.f32 1.0, %v4395
      %v4412 = vsub.f32 1.0, %v4396
      %v4413 = vmax.f32 %v4397, 0.0
      %v4414 = vmax.f32 %v4398, 0.0
      %v4415 = vmax.f32 %v4399, 0.0
      %v4416 = vmax.f32 %v4400, 0.0
      %v4417 = vmax.f32 %v4401, 0.0
      %v4418 = vmax.f32 %v4402, 0.0
      %v4419 = vmax.f32 %v4403, 0.0
      %v4420 = vmax.f32 %v4404, 0.0
      %v4421 = vmax.f32 %v4405, 0.0
      %v4422 = vmax.f32 %v4406, 0.0
      %v4423 = vmax.f32 %v4407, 0.0
      %v4424 = vmax.f32 %v4408, 0.0
      %v4425 = vmax.f32 %v4409, 0.0
      %v4426 = vmax.f32 %v4410, 0.0
      %v4427 = vmax.f32 %v4411, 0.0
      %v4428 = vmax.f32 %v4412, 0.0
      %v4429 = vld [vmem:[%s304] sm:$0xff]
      %v4430 = vld [vmem:[%s304 + $0x8] sm:$0xff]
      %v4431 = vld [vmem:[%s304 + $0x10] sm:$0xff]
      %v4432 = vld [vmem:[%s304 + $0x18] sm:$0xff]
      %v4433 = vld [vmem:[%s304 + $0x20] sm:$0xff]
      %v4434 = vld [vmem:[%s304 + $0x28] sm:$0xff]
      %v4435 = vld [vmem:[%s304 + $0x30] sm:$0xff]
      %v4436 = vld [vmem:[%s304 + $0x38] sm:$0xff]
      %v4437 = vld [vmem:[%s304 + $0x40] sm:$0xff]
      %v4438 = vld [vmem:[%s304 + $0x48] sm:$0xff]
      %v4439 = vld [vmem:[%s304 + $0x50] sm:$0xff]
      %v4440 = vld [vmem:[%s304 + $0x58] sm:$0xff]
      %v4441 = vld [vmem:[%s304 + $0x60] sm:$0xff]
      %v4442 = vld [vmem:[%s304 + $0x68] sm:$0xff]
      %v4443 = vld [vmem:[%s304 + $0x70] sm:$0xff]
      %v4444 = vld [vmem:[%s304 + $0x78] sm:$0xff]
      %v4445 = vmul.f32 %v4413, %v4238
      %v4446 = vmul.f32 %v4414, %v4241
      %v4447 = vmul.f32 %v4415, %v4244
      %v4448 = vmul.f32 %v4416, %v4247
      %v4449 = vmul.f32 %v4417, %v4250
      %v4450 = vmul.f32 %v4418, %v4253
      %v4451 = vmul.f32 %v4419, %v4256
      %v4452 = vmul.f32 %v4420, %v4259
      %v4453 = vmul.f32 %v4421, %v4262
      %v4454 = vmul.f32 %v4422, %v4265
      %v4455 = vmul.f32 %v4423, %v4268
      %v4456 = vmul.f32 %v4424, %v4271
      %v4457 = vmul.f32 %v4425, %v4274
      %v4458 = vmul.f32 %v4426, %v4277
      %v4459 = vmul.f32 %v4427, %v4280
      %v4460 = vmul.f32 %v4428, %v4283
      %s4461 = scalar_lea.vmem %s3, 512
      %v4462 = vld [vmem:[%s4461] sm:$0xff]
      %v4463 = vld [vmem:[%s4461 + $0x8] sm:$0xff]
      %v4464 = vld [vmem:[%s4461 + $0x10] sm:$0xff]
      %v4465 = vld [vmem:[%s4461 + $0x18] sm:$0xff]
      %v4466 = vld [vmem:[%s4461 + $0x20] sm:$0xff]
      %v4467 = vld [vmem:[%s4461 + $0x28] sm:$0xff]
      %v4468 = vld [vmem:[%s4461 + $0x30] sm:$0xff]
      %v4469 = vld [vmem:[%s4461 + $0x38] sm:$0xff]
      %v4470 = vld [vmem:[%s4461 + $0x40] sm:$0xff]
      %v4471 = vld [vmem:[%s4461 + $0x48] sm:$0xff]
      %v4472 = vld [vmem:[%s4461 + $0x50] sm:$0xff]
      %v4473 = vld [vmem:[%s4461 + $0x58] sm:$0xff]
      %v4474 = vld [vmem:[%s4461 + $0x60] sm:$0xff]
      %v4475 = vld [vmem:[%s4461 + $0x68] sm:$0xff]
      %v4476 = vld [vmem:[%s4461 + $0x70] sm:$0xff]
      %v4477 = vld [vmem:[%s4461 + $0x78] sm:$0xff]
      %4478 = vmatpush.msra.mxu0 %v4477
      %4479 = vmatpush.msra.mxu0 %v4476
      %4480 = vmatpush.msra.mxu0 %v4475
      %4481 = vmatpush.msra.mxu0 %v4474
      %4482 = vmatpush.msra.mxu0 %v4473
      %4483 = vmatpush.msra.mxu0 %v4472
      %4484 = vmatpush.msra.mxu0 %v4471
      %4485 = vmatpush.msra.mxu0 %v4470
      %4486 = vmatpush.msra.mxu0 %v4469
      %4487 = vmatpush.msra.mxu0 %v4468
      %4488 = vmatpush.msra.mxu0 %v4467
      %4489 = vmatpush.msra.mxu0 %v4466
      %4490 = vmatpush.msra.mxu0 %v4465
      %4491 = vmatpush.msra.mxu0 %v4464
      %4492 = vmatpush.msra.mxu0 %v4463
      %4493 = vmatpush.msra.mxu0 %v4462
      %4494 = vmatmul.f32.gmra.mxu0 %v4445
      %v4495 = vpop.f32.mrf.mxu0
      %v4496 = vadd.f32 0.0, %v4495
      %4497 = vmatmul.f32.gmra.mxu0 %v4446
      %v4498 = vpop.f32.mrf.mxu0
      %v4499 = vadd.f32 0.0, %v4498
      %4500 = vmatmul.f32.gmra.mxu0 %v4447
      %v4501 = vpop.f32.mrf.mxu0
      %v4502 = vadd.f32 0.0, %v4501
      %4503 = vmatmul.f32.gmra.mxu0 %v4448
      %v4504 = vpop.f32.mrf.mxu0
      %v4505 = vadd.f32 0.0, %v4504
      %4506 = vmatmul.f32.gmra.mxu0 %v4449
      %v4507 = vpop.f32.mrf.mxu0
      %v4508 = vadd.f32 0.0, %v4507
      %4509 = vmatmul.f32.gmra.mxu0 %v4450
      %v4510 = vpop.f32.mrf.mxu0
      %v4511 = vadd.f32 0.0, %v4510
      %4512 = vmatmul.f32.gmra.mxu0 %v4451
      %v4513 = vpop.f32.mrf.mxu0
      %v4514 = vadd.f32 0.0, %v4513
      %4515 = vmatmul.f32.gmra.mxu0 %v4452
      %v4516 = vpop.f32.mrf.mxu0
      %v4517 = vadd.f32 0.0, %v4516
      %4518 = vmatmul.f32.gmra.mxu0 %v4453
      %v4519 = vpop.f32.mrf.mxu0
      %v4520 = vadd.f32 0.0, %v4519
      %4521 = vmatmul.f32.gmra.mxu0 %v4454
      %v4522 = vpop.f32.mrf.mxu0
      %v4523 = vadd.f32 0.0, %v4522
      %4524 = vmatmul.f32.gmra.mxu0 %v4455
      %v4525 = vpop.f32.mrf.mxu0
      %v4526 = vadd.f32 0.0, %v4525
      %4527 = vmatmul.f32.gmra.mxu0 %v4456
      %v4528 = vpop.f32.mrf.mxu0
      %v4529 = vadd.f32 0.0, %v4528
      %4530 = vmatmul.f32.gmra.mxu0 %v4457
      %v4531 = vpop.f32.mrf.mxu0
      %v4532 = vadd.f32 0.0, %v4531
      %4533 = vmatmul.f32.gmra.mxu0 %v4458
      %v4534 = vpop.f32.mrf.mxu0
      %v4535 = vadd.f32 0.0, %v4534
      %4536 = vmatmul.f32.gmra.mxu0 %v4459
      %v4537 = vpop.f32.mrf.mxu0
      %v4538 = vadd.f32 0.0, %v4537
      %4539 = vmatmul.f32.gmra.mxu0 %v4460
      %v4540 = vpop.f32.mrf.mxu0
      %v4541 = vadd.f32 0.0, %v4540
      %4542 = vdwg.mxu0
      %v4543 = vadd.f32 %v4429, %v4496
      %v4544 = vadd.f32 %v4430, %v4499
      %v4545 = vadd.f32 %v4431, %v4502
      %v4546 = vadd.f32 %v4432, %v4505
      %v4547 = vadd.f32 %v4433, %v4508
      %v4548 = vadd.f32 %v4434, %v4511
      %v4549 = vadd.f32 %v4435, %v4514
      %v4550 = vadd.f32 %v4436, %v4517
      %v4551 = vadd.f32 %v4437, %v4520
      %v4552 = vadd.f32 %v4438, %v4523
      %v4553 = vadd.f32 %v4439, %v4526
      %v4554 = vadd.f32 %v4440, %v4529
      %v4555 = vadd.f32 %v4441, %v4532
      %v4556 = vadd.f32 %v4442, %v4535
      %v4557 = vadd.f32 %v4443, %v4538
      %v4558 = vadd.f32 %v4444, %v4541
      %4559 = vst [vmem:[%s304] sm:$0xff] %v4543
      %4560 = vst [vmem:[%s304 + $0x8] sm:$0xff] %v4544
      %4561 = vst [vmem:[%s304 + $0x10] sm:$0xff] %v4545
      %4562 = vst [vmem:[%s304 + $0x18] sm:$0xff] %v4546
      %4563 = vst [vmem:[%s304 + $0x20] sm:$0xff] %v4547
      %4564 = vst [vmem:[%s304 + $0x28] sm:$0xff] %v4548
      %4565 = vst [vmem:[%s304 + $0x30] sm:$0xff] %v4549
      %4566 = vst [vmem:[%s304 + $0x38] sm:$0xff] %v4550
      %4567 = vst [vmem:[%s304 + $0x40] sm:$0xff] %v4551
      %4568 = vst [vmem:[%s304 + $0x48] sm:$0xff] %v4552
      %4569 = vst [vmem:[%s304 + $0x50] sm:$0xff] %v4553
      %4570 = vst [vmem:[%s304 + $0x58] sm:$0xff] %v4554
      %4571 = vst [vmem:[%s304 + $0x60] sm:$0xff] %v4555
      %4572 = vst [vmem:[%s304 + $0x68] sm:$0xff] %v4556
      %4573 = vst [vmem:[%s304 + $0x70] sm:$0xff] %v4557
      %4574 = vst [vmem:[%s304 + $0x78] sm:$0xff] %v4558
      %4575 = vrot.lane.b32.xlu0 %v329, 123
      %v4576 = vpop.permute.xlu0 %4575
      %4577 = vrot.lane.b32.xlu0 %v330, 123
      %v4578 = vpop.permute.xlu0 %4577
      %4579 = vrot.lane.b32.xlu0 %v331, 123
      %v4580 = vpop.permute.xlu0 %4579
      %4581 = vrot.lane.b32.xlu0 %v332, 123
      %v4582 = vpop.permute.xlu0 %4581
      %4583 = vrot.lane.b32.xlu0 %v333, 123
      %v4584 = vpop.permute.xlu0 %4583
      %4585 = vrot.lane.b32.xlu0 %v334, 123
      %v4586 = vpop.permute.xlu0 %4585
      %4587 = vrot.lane.b32.xlu0 %v335, 123
      %v4588 = vpop.permute.xlu0 %4587
      %4589 = vrot.lane.b32.xlu0 %v336, 123
      %v4590 = vpop.permute.xlu0 %4589
      %4591 = vrot.lane.b32.xlu0 %v337, 123
      %v4592 = vpop.permute.xlu0 %4591
      %4593 = vrot.lane.b32.xlu0 %v338, 123
      %v4594 = vpop.permute.xlu0 %4593
      %4595 = vrot.lane.b32.xlu0 %v339, 123
      %v4596 = vpop.permute.xlu0 %4595
      %4597 = vrot.lane.b32.xlu0 %v340, 123
      %v4598 = vpop.permute.xlu0 %4597
      %4599 = vrot.lane.b32.xlu0 %v341, 123
      %v4600 = vpop.permute.xlu0 %4599
      %4601 = vrot.lane.b32.xlu0 %v342, 123
      %v4602 = vpop.permute.xlu0 %4601
      %4603 = vrot.lane.b32.xlu0 %v343, 123
      %v4604 = vpop.permute.xlu0 %4603
      %4605 = vrot.lane.b32.xlu0 %v344, 123
      %v4606 = vpop.permute.xlu0 %4605
      %v4623 = vadd.f32 %v1363, %v4576
      %v4624 = vadd.f32 %v1364, %v4578
      %v4625 = vadd.f32 %v1365, %v4580
      %v4626 = vadd.f32 %v1366, %v4582
      %v4627 = vadd.f32 %v1367, %v4584
      %v4628 = vadd.f32 %v1368, %v4586
      %v4629 = vadd.f32 %v1369, %v4588
      %v4630 = vadd.f32 %v1370, %v4590
      %v4631 = vadd.f32 %v1371, %v4592
      %v4632 = vadd.f32 %v1372, %v4594
      %v4633 = vadd.f32 %v1373, %v4596
      %v4634 = vadd.f32 %v1374, %v4598
      %v4635 = vadd.f32 %v1375, %v4600
      %v4636 = vadd.f32 %v1376, %v4602
      %v4637 = vadd.f32 %v1377, %v4604
      %v4638 = vadd.f32 %v1378, %v4606
      %v4639 = vmax.f32 %v4623, 0.0
      %v4640 = vmax.f32 %v4624, 0.0
      %v4641 = vmax.f32 %v4625, 0.0
      %v4642 = vmax.f32 %v4626, 0.0
      %v4643 = vmax.f32 %v4627, 0.0
      %v4644 = vmax.f32 %v4628, 0.0
      %v4645 = vmax.f32 %v4629, 0.0
      %v4646 = vmax.f32 %v4630, 0.0
      %v4647 = vmax.f32 %v4631, 0.0
      %v4648 = vmax.f32 %v4632, 0.0
      %v4649 = vmax.f32 %v4633, 0.0
      %v4650 = vmax.f32 %v4634, 0.0
      %v4651 = vmax.f32 %v4635, 0.0
      %v4652 = vmax.f32 %v4636, 0.0
      %v4653 = vmax.f32 %v4637, 0.0
      %v4654 = vmax.f32 %v4638, 0.0
      %v4655 = vmin.f32 %v4639, 17.0
      %v4656 = vmin.f32 %v4640, 17.0
      %v4657 = vmin.f32 %v4641, 17.0
      %v4658 = vmin.f32 %v4642, 17.0
      %v4659 = vmin.f32 %v4643, 17.0
      %v4660 = vmin.f32 %v4644, 17.0
      %v4661 = vmin.f32 %v4645, 17.0
      %v4662 = vmin.f32 %v4646, 17.0
      %v4663 = vmin.f32 %v4647, 17.0
      %v4664 = vmin.f32 %v4648, 17.0
      %v4665 = vmin.f32 %v4649, 17.0
      %v4666 = vmin.f32 %v4650, 17.0
      %v4667 = vmin.f32 %v4651, 17.0
      %v4668 = vmin.f32 %v4652, 17.0
      %v4669 = vmin.f32 %v4653, 17.0
      %v4670 = vmin.f32 %v4654, 17.0
      %4671 = vrot.lane.b32.xlu0 %v329, 115
      %v4672 = vpop.permute.xlu0 %4671
      %4673 = vrot.lane.b32.xlu0 %v330, 115
      %v4674 = vpop.permute.xlu0 %4673
      %4675 = vrot.lane.b32.xlu0 %v331, 115
      %v4676 = vpop.permute.xlu0 %4675
      %4677 = vrot.lane.b32.xlu0 %v332, 115
      %v4678 = vpop.permute.xlu0 %4677
      %4679 = vrot.lane.b32.xlu0 %v333, 115
      %v4680 = vpop.permute.xlu0 %4679
      %4681 = vrot.lane.b32.xlu0 %v334, 115
      %v4682 = vpop.permute.xlu0 %4681
      %4683 = vrot.lane.b32.xlu0 %v335, 115
      %v4684 = vpop.permute.xlu0 %4683
      %4685 = vrot.lane.b32.xlu0 %v336, 115
      %v4686 = vpop.permute.xlu0 %4685
      %4687 = vrot.lane.b32.xlu0 %v337, 115
      %v4688 = vpop.permute.xlu0 %4687
      %4689 = vrot.lane.b32.xlu0 %v338, 115
      %v4690 = vpop.permute.xlu0 %4689
      %4691 = vrot.lane.b32.xlu0 %v339, 115
      %v4692 = vpop.permute.xlu0 %4691
      %4693 = vrot.lane.b32.xlu0 %v340, 115
      %v4694 = vpop.permute.xlu0 %4693
      %4695 = vrot.lane.b32.xlu0 %v341, 115
      %v4696 = vpop.permute.xlu0 %4695
      %4697 = vrot.lane.b32.xlu0 %v342, 115
      %v4698 = vpop.permute.xlu0 %4697
      %4699 = vrot.lane.b32.xlu0 %v343, 115
      %v4700 = vpop.permute.xlu0 %4699
      %4701 = vrot.lane.b32.xlu0 %v344, 115
      %v4702 = vpop.permute.xlu0 %4701
      %v4719 = vadd.f32 %v2198, %v4672
      %v4720 = vadd.f32 %v2199, %v4674
      %v4721 = vadd.f32 %v2200, %v4676
      %v4722 = vadd.f32 %v2201, %v4678
      %v4723 = vadd.f32 %v2202, %v4680
      %v4724 = vadd.f32 %v2203, %v4682
      %v4725 = vadd.f32 %v2204, %v4684
      %v4726 = vadd.f32 %v2205, %v4686
      %v4727 = vadd.f32 %v2206, %v4688
      %v4728 = vadd.f32 %v2207, %v4690
      %v4729 = vadd.f32 %v2208, %v4692
      %v4730 = vadd.f32 %v2209, %v4694
      %v4731 = vadd.f32 %v2210, %v4696
      %v4732 = vadd.f32 %v2211, %v4698
      %v4733 = vadd.f32 %v2212, %v4700
      %v4734 = vadd.f32 %v2213, %v4702
      %v4735 = vmax.f32 %v4719, 0.0
      %v4736 = vmax.f32 %v4720, 0.0
      %v4737 = vmax.f32 %v4721, 0.0
      %v4738 = vmax.f32 %v4722, 0.0
      %v4739 = vmax.f32 %v4723, 0.0
      %v4740 = vmax.f32 %v4724, 0.0
      %v4741 = vmax.f32 %v4725, 0.0
      %v4742 = vmax.f32 %v4726, 0.0
      %v4743 = vmax.f32 %v4727, 0.0
      %v4744 = vmax.f32 %v4728, 0.0
      %v4745 = vmax.f32 %v4729, 0.0
      %v4746 = vmax.f32 %v4730, 0.0
      %v4747 = vmax.f32 %v4731, 0.0
      %v4748 = vmax.f32 %v4732, 0.0
      %v4749 = vmax.f32 %v4733, 0.0
      %v4750 = vmax.f32 %v4734, 0.0
      %v4751 = vmin.f32 %v4735, 17.0
      %v4752 = vmin.f32 %v4736, 17.0
      %v4753 = vmin.f32 %v4737, 17.0
      %v4754 = vmin.f32 %v4738, 17.0
      %v4755 = vmin.f32 %v4739, 17.0
      %v4756 = vmin.f32 %v4740, 17.0
      %v4757 = vmin.f32 %v4741, 17.0
      %v4758 = vmin.f32 %v4742, 17.0
      %v4759 = vmin.f32 %v4743, 17.0
      %v4760 = vmin.f32 %v4744, 17.0
      %v4761 = vmin.f32 %v4745, 17.0
      %v4762 = vmin.f32 %v4746, 17.0
      %v4763 = vmin.f32 %v4747, 17.0
      %v4764 = vmin.f32 %v4748, 17.0
      %v4765 = vmin.f32 %v4749, 17.0
      %v4766 = vmin.f32 %v4750, 17.0
      %4768 = vset.pattern.permute.xlu0 0
      %4769 = vperm.xlu0 %4768, %v4655
      %v4770 = vpop.permute.xlu0 %4769
      %4773 = vset.pattern.permute.xlu0 0
      %4774 = vperm.xlu0 %4773, %v4656
      %v4775 = vpop.permute.xlu0 %4774
      %4778 = vset.pattern.permute.xlu0 0
      %4779 = vperm.xlu0 %4778, %v4657
      %v4780 = vpop.permute.xlu0 %4779
      %4783 = vset.pattern.permute.xlu0 0
      %4784 = vperm.xlu0 %4783, %v4658
      %v4785 = vpop.permute.xlu0 %4784
      %4788 = vset.pattern.permute.xlu0 0
      %4789 = vperm.xlu0 %4788, %v4659
      %v4790 = vpop.permute.xlu0 %4789
      %4793 = vset.pattern.permute.xlu0 0
      %4794 = vperm.xlu0 %4793, %v4660
      %v4795 = vpop.permute.xlu0 %4794
      %4798 = vset.pattern.permute.xlu0 0
      %4799 = vperm.xlu0 %4798, %v4661
      %v4800 = vpop.permute.xlu0 %4799
      %4803 = vset.pattern.permute.xlu0 0
      %4804 = vperm.xlu0 %4803, %v4662
      %v4805 = vpop.permute.xlu0 %4804
      %4808 = vset.pattern.permute.xlu0 0
      %4809 = vperm.xlu0 %4808, %v4663
      %v4810 = vpop.permute.xlu0 %4809
      %4813 = vset.pattern.permute.xlu0 0
      %4814 = vperm.xlu0 %4813, %v4664
      %v4815 = vpop.permute.xlu0 %4814
      %4818 = vset.pattern.permute.xlu0 0
      %4819 = vperm.xlu0 %4818, %v4665
      %v4820 = vpop.permute.xlu0 %4819
      %4823 = vset.pattern.permute.xlu0 0
      %4824 = vperm.xlu0 %4823, %v4666
      %v4825 = vpop.permute.xlu0 %4824
      %4828 = vset.pattern.permute.xlu0 0
      %4829 = vperm.xlu0 %4828, %v4667
      %v4830 = vpop.permute.xlu0 %4829
      %4833 = vset.pattern.permute.xlu0 0
      %4834 = vperm.xlu0 %4833, %v4668
      %v4835 = vpop.permute.xlu0 %4834
      %4838 = vset.pattern.permute.xlu0 0
      %4839 = vperm.xlu0 %4838, %v4669
      %v4840 = vpop.permute.xlu0 %4839
      %4843 = vset.pattern.permute.xlu0 0
      %4844 = vperm.xlu0 %4843, %v4670
      %v4845 = vpop.permute.xlu0 %4844
      %v4847 = vsub.f32 %v312, %v4770
      %v4848 = vsub.f32 %v312, %v4775
      %v4849 = vsub.f32 %v312, %v4780
      %v4850 = vsub.f32 %v312, %v4785
      %v4851 = vsub.f32 %v312, %v4790
      %v4852 = vsub.f32 %v312, %v4795
      %v4853 = vsub.f32 %v312, %v4800
      %v4854 = vsub.f32 %v312, %v4805
      %v4855 = vsub.f32 %v312, %v4810
      %v4856 = vsub.f32 %v312, %v4815
      %v4857 = vsub.f32 %v312, %v4820
      %v4858 = vsub.f32 %v312, %v4825
      %v4859 = vsub.f32 %v312, %v4830
      %v4860 = vsub.f32 %v312, %v4835
      %v4861 = vsub.f32 %v312, %v4840
      %v4862 = vsub.f32 %v312, %v4845
      %v4863 = vand.u32 2147483647, %v4847
      %v4864 = vand.u32 2147483647, %v4848
      %v4865 = vand.u32 2147483647, %v4849
      %v4866 = vand.u32 2147483647, %v4850
      %v4867 = vand.u32 2147483647, %v4851
      %v4868 = vand.u32 2147483647, %v4852
      %v4869 = vand.u32 2147483647, %v4853
      %v4870 = vand.u32 2147483647, %v4854
      %v4871 = vand.u32 2147483647, %v4855
      %v4872 = vand.u32 2147483647, %v4856
      %v4873 = vand.u32 2147483647, %v4857
      %v4874 = vand.u32 2147483647, %v4858
      %v4875 = vand.u32 2147483647, %v4859
      %v4876 = vand.u32 2147483647, %v4860
      %v4877 = vand.u32 2147483647, %v4861
      %v4878 = vand.u32 2147483647, %v4862
      %v4879 = vsub.f32 1.0, %v4863
      %v4880 = vsub.f32 1.0, %v4864
      %v4881 = vsub.f32 1.0, %v4865
      %v4882 = vsub.f32 1.0, %v4866
      %v4883 = vsub.f32 1.0, %v4867
      %v4884 = vsub.f32 1.0, %v4868
      %v4885 = vsub.f32 1.0, %v4869
      %v4886 = vsub.f32 1.0, %v4870
      %v4887 = vsub.f32 1.0, %v4871
      %v4888 = vsub.f32 1.0, %v4872
      %v4889 = vsub.f32 1.0, %v4873
      %v4890 = vsub.f32 1.0, %v4874
      %v4891 = vsub.f32 1.0, %v4875
      %v4892 = vsub.f32 1.0, %v4876
      %v4893 = vsub.f32 1.0, %v4877
      %v4894 = vsub.f32 1.0, %v4878
      %v4895 = vmax.f32 %v4879, 0.0
      %v4896 = vmax.f32 %v4880, 0.0
      %v4897 = vmax.f32 %v4881, 0.0
      %v4898 = vmax.f32 %v4882, 0.0
      %v4899 = vmax.f32 %v4883, 0.0
      %v4900 = vmax.f32 %v4884, 0.0
      %v4901 = vmax.f32 %v4885, 0.0
      %v4902 = vmax.f32 %v4886, 0.0
      %v4903 = vmax.f32 %v4887, 0.0
      %v4904 = vmax.f32 %v4888, 0.0
      %v4905 = vmax.f32 %v4889, 0.0
      %v4906 = vmax.f32 %v4890, 0.0
      %v4907 = vmax.f32 %v4891, 0.0
      %v4908 = vmax.f32 %v4892, 0.0
      %v4909 = vmax.f32 %v4893, 0.0
      %v4910 = vmax.f32 %v4894, 0.0
      %4911 = vset.pattern.permute.xlu0 23
      %4912 = vperm.xlu0 %4911, %v409
      %v4913 = vpop.permute.xlu0 %4912
      %4915 = vset.pattern.permute.xlu0 23
      %4916 = vperm.xlu0 %4915, %v410
      %v4917 = vpop.permute.xlu0 %4916
      %4919 = vset.pattern.permute.xlu0 23
      %4920 = vperm.xlu0 %4919, %v411
      %v4921 = vpop.permute.xlu0 %4920
      %4923 = vset.pattern.permute.xlu0 23
      %4924 = vperm.xlu0 %4923, %v412
      %v4925 = vpop.permute.xlu0 %4924
      %4927 = vset.pattern.permute.xlu0 23
      %4928 = vperm.xlu0 %4927, %v413
      %v4929 = vpop.permute.xlu0 %4928
      %4931 = vset.pattern.permute.xlu0 23
      %4932 = vperm.xlu0 %4931, %v414
      %v4933 = vpop.permute.xlu0 %4932
      %4935 = vset.pattern.permute.xlu0 23
      %4936 = vperm.xlu0 %4935, %v415
      %v4937 = vpop.permute.xlu0 %4936
      %4939 = vset.pattern.permute.xlu0 23
      %4940 = vperm.xlu0 %4939, %v416
      %v4941 = vpop.permute.xlu0 %4940
      %4943 = vset.pattern.permute.xlu0 23
      %4944 = vperm.xlu0 %4943, %v417
      %v4945 = vpop.permute.xlu0 %4944
      %4947 = vset.pattern.permute.xlu0 23
      %4948 = vperm.xlu0 %4947, %v418
      %v4949 = vpop.permute.xlu0 %4948
      %4951 = vset.pattern.permute.xlu0 23
      %4952 = vperm.xlu0 %4951, %v419
      %v4953 = vpop.permute.xlu0 %4952
      %4955 = vset.pattern.permute.xlu0 23
      %4956 = vperm.xlu0 %4955, %v420
      %v4957 = vpop.permute.xlu0 %4956
      %4959 = vset.pattern.permute.xlu0 23
      %4960 = vperm.xlu0 %4959, %v421
      %v4961 = vpop.permute.xlu0 %4960
      %4963 = vset.pattern.permute.xlu0 23
      %4964 = vperm.xlu0 %4963, %v422
      %v4965 = vpop.permute.xlu0 %4964
      %4967 = vset.pattern.permute.xlu0 23
      %4968 = vperm.xlu0 %4967, %v423
      %v4969 = vpop.permute.xlu0 %4968
      %4971 = vset.pattern.permute.xlu0 23
      %4972 = vperm.xlu0 %4971, %v424
      %v4973 = vpop.permute.xlu0 %4972
      %v4975 = vmul.f32 %v4895, %v4913
      %v4976 = vmul.f32 %v4896, %v4917
      %v4977 = vmul.f32 %v4897, %v4921
      %v4978 = vmul.f32 %v4898, %v4925
      %v4979 = vmul.f32 %v4899, %v4929
      %v4980 = vmul.f32 %v4900, %v4933
      %v4981 = vmul.f32 %v4901, %v4937
      %v4982 = vmul.f32 %v4902, %v4941
      %v4983 = vmul.f32 %v4903, %v4945
      %v4984 = vmul.f32 %v4904, %v4949
      %v4985 = vmul.f32 %v4905, %v4953
      %v4986 = vmul.f32 %v4906, %v4957
      %v4987 = vmul.f32 %v4907, %v4961
      %v4988 = vmul.f32 %v4908, %v4965
      %v4989 = vmul.f32 %v4909, %v4969
      %v4990 = vmul.f32 %v4910, %v4973
      %v4992 = vsel %vm857, %v4975, 0
      %v4995 = vsel %vm857, %v4976, 0
      %v4998 = vsel %vm857, %v4977, 0
      %v5001 = vsel %vm857, %v4978, 0
      %v5004 = vsel %vm857, %v4979, 0
      %v5007 = vsel %vm857, %v4980, 0
      %v5010 = vsel %vm857, %v4981, 0
      %v5013 = vsel %vm857, %v4982, 0
      %v5016 = vsel %vm857, %v4983, 0
      %v5019 = vsel %vm857, %v4984, 0
      %v5022 = vsel %vm857, %v4985, 0
      %v5025 = vsel %vm857, %v4986, 0
      %v5028 = vsel %vm857, %v4987, 0
      %v5031 = vsel %vm857, %v4988, 0
      %v5034 = vsel %vm857, %v4989, 0
      %v5037 = vsel %vm857, %v4990, 0
      %5039 = vmatpush.msra.mxu0 0.0
      %5040 = vmatpush.msra.mxu0 0.0
      %5041 = vmatpush.msra.mxu0 0.0
      %5042 = vmatpush.msra.mxu0 0.0
      %5043 = vmatpush.msra.mxu0 0.0
      %5044 = vmatpush.msra.mxu0 0.0
      %5045 = vmatpush.msra.mxu0 0.0
      %5046 = vmatpush.msra.mxu0 0.0
      %5047 = vmatpush.msra.mxu0 0.0
      %5048 = vmatpush.msra.mxu0 0.0
      %5049 = vmatpush.msra.mxu0 0.0
      %5050 = vmatpush.msra.mxu0 0.0
      %5051 = vmatpush.msra.mxu0 0.0
      %5052 = vmatpush.msra.mxu0 %v908
      %5053 = vmatpush.msra.mxu0 %v307
      %5054 = vmatpush.msra.mxu0 %v306
      %5055 = vmatmul.f32.gmra.mxu0 %v4992
      %v5056 = vpop.f32.mrf.mxu0
      %v5057 = vadd.f32 0.0, %v5056
      %5058 = vmatmul.f32.gmra.mxu0 %v4995
      %v5059 = vpop.f32.mrf.mxu0
      %v5060 = vadd.f32 0.0, %v5059
      %5061 = vmatmul.f32.gmra.mxu0 %v4998
      %v5062 = vpop.f32.mrf.mxu0
      %v5063 = vadd.f32 0.0, %v5062
      %5064 = vmatmul.f32.gmra.mxu0 %v5001
      %v5065 = vpop.f32.mrf.mxu0
      %v5066 = vadd.f32 0.0, %v5065
      %5067 = vmatmul.f32.gmra.mxu0 %v5004
      %v5068 = vpop.f32.mrf.mxu0
      %v5069 = vadd.f32 0.0, %v5068
      %5070 = vmatmul.f32.gmra.mxu0 %v5007
      %v5071 = vpop.f32.mrf.mxu0
      %v5072 = vadd.f32 0.0, %v5071
      %5073 = vmatmul.f32.gmra.mxu0 %v5010
      %v5074 = vpop.f32.mrf.mxu0
      %v5075 = vadd.f32 0.0, %v5074
      %5076 = vmatmul.f32.gmra.mxu0 %v5013
      %v5077 = vpop.f32.mrf.mxu0
      %v5078 = vadd.f32 0.0, %v5077
      %5079 = vmatmul.f32.gmra.mxu0 %v5016
      %v5080 = vpop.f32.mrf.mxu0
      %v5081 = vadd.f32 0.0, %v5080
      %5082 = vmatmul.f32.gmra.mxu0 %v5019
      %v5083 = vpop.f32.mrf.mxu0
      %v5084 = vadd.f32 0.0, %v5083
      %5085 = vmatmul.f32.gmra.mxu0 %v5022
      %v5086 = vpop.f32.mrf.mxu0
      %v5087 = vadd.f32 0.0, %v5086
      %5088 = vmatmul.f32.gmra.mxu0 %v5025
      %v5089 = vpop.f32.mrf.mxu0
      %v5090 = vadd.f32 0.0, %v5089
      %5091 = vmatmul.f32.gmra.mxu0 %v5028
      %v5092 = vpop.f32.mrf.mxu0
      %v5093 = vadd.f32 0.0, %v5092
      %5094 = vmatmul.f32.gmra.mxu0 %v5031
      %v5095 = vpop.f32.mrf.mxu0
      %v5096 = vadd.f32 0.0, %v5095
      %5097 = vmatmul.f32.gmra.mxu0 %v5034
      %v5098 = vpop.f32.mrf.mxu0
      %v5099 = vadd.f32 0.0, %v5098
      %5100 = vmatmul.f32.gmra.mxu0 %v5037
      %v5101 = vpop.f32.mrf.mxu0
      %v5102 = vadd.f32 0.0, %v5101
      %5103 = vdwg.mxu0
      %5105 = vset.pattern.permute.xlu0 1
      %5106 = vperm.xlu0 %5105, %v4751
      %v5107 = vpop.permute.xlu0 %5106
      %5110 = vset.pattern.permute.xlu0 1
      %5111 = vperm.xlu0 %5110, %v4752
      %v5112 = vpop.permute.xlu0 %5111
      %5115 = vset.pattern.permute.xlu0 1
      %5116 = vperm.xlu0 %5115, %v4753
      %v5117 = vpop.permute.xlu0 %5116
      %5120 = vset.pattern.permute.xlu0 1
      %5121 = vperm.xlu0 %5120, %v4754
      %v5122 = vpop.permute.xlu0 %5121
      %5125 = vset.pattern.permute.xlu0 1
      %5126 = vperm.xlu0 %5125, %v4755
      %v5127 = vpop.permute.xlu0 %5126
      %5130 = vset.pattern.permute.xlu0 1
      %5131 = vperm.xlu0 %5130, %v4756
      %v5132 = vpop.permute.xlu0 %5131
      %5135 = vset.pattern.permute.xlu0 1
      %5136 = vperm.xlu0 %5135, %v4757
      %v5137 = vpop.permute.xlu0 %5136
      %5140 = vset.pattern.permute.xlu0 1
      %5141 = vperm.xlu0 %5140, %v4758
      %v5142 = vpop.permute.xlu0 %5141
      %5145 = vset.pattern.permute.xlu0 1
      %5146 = vperm.xlu0 %5145, %v4759
      %v5147 = vpop.permute.xlu0 %5146
      %5150 = vset.pattern.permute.xlu0 1
      %5151 = vperm.xlu0 %5150, %v4760
      %v5152 = vpop.permute.xlu0 %5151
      %5155 = vset.pattern.permute.xlu0 1
      %5156 = vperm.xlu0 %5155, %v4761
      %v5157 = vpop.permute.xlu0 %5156
      %5160 = vset.pattern.permute.xlu0 1
      %5161 = vperm.xlu0 %5160, %v4762
      %v5162 = vpop.permute.xlu0 %5161
      %5165 = vset.pattern.permute.xlu0 1
      %5166 = vperm.xlu0 %5165, %v4763
      %v5167 = vpop.permute.xlu0 %5166
      %5170 = vset.pattern.permute.xlu0 1
      %5171 = vperm.xlu0 %5170, %v4764
      %v5172 = vpop.permute.xlu0 %5171
      %5175 = vset.pattern.permute.xlu0 1
      %5176 = vperm.xlu0 %5175, %v4765
      %v5177 = vpop.permute.xlu0 %5176
      %5180 = vset.pattern.permute.xlu0 1
      %5181 = vperm.xlu0 %5180, %v4766
      %v5182 = vpop.permute.xlu0 %5181
      %v5184 = vsub.f32 %v976, %v5107
      %v5185 = vsub.f32 %v976, %v5112
      %v5186 = vsub.f32 %v976, %v5117
      %v5187 = vsub.f32 %v976, %v5122
      %v5188 = vsub.f32 %v976, %v5127
      %v5189 = vsub.f32 %v976, %v5132
      %v5190 = vsub.f32 %v976, %v5137
      %v5191 = vsub.f32 %v976, %v5142
      %v5192 = vsub.f32 %v976, %v5147
      %v5193 = vsub.f32 %v976, %v5152
      %v5194 = vsub.f32 %v976, %v5157
      %v5195 = vsub.f32 %v976, %v5162
      %v5196 = vsub.f32 %v976, %v5167
      %v5197 = vsub.f32 %v976, %v5172
      %v5198 = vsub.f32 %v976, %v5177
      %v5199 = vsub.f32 %v976, %v5182
      %v5200 = vand.u32 2147483647, %v5184
      %v5201 = vand.u32 2147483647, %v5185
      %v5202 = vand.u32 2147483647, %v5186
      %v5203 = vand.u32 2147483647, %v5187
      %v5204 = vand.u32 2147483647, %v5188
      %v5205 = vand.u32 2147483647, %v5189
      %v5206 = vand.u32 2147483647, %v5190
      %v5207 = vand.u32 2147483647, %v5191
      %v5208 = vand.u32 2147483647, %v5192
      %v5209 = vand.u32 2147483647, %v5193
      %v5210 = vand.u32 2147483647, %v5194
      %v5211 = vand.u32 2147483647, %v5195
      %v5212 = vand.u32 2147483647, %v5196
      %v5213 = vand.u32 2147483647, %v5197
      %v5214 = vand.u32 2147483647, %v5198
      %v5215 = vand.u32 2147483647, %v5199
      %v5216 = vsub.f32 1.0, %v5200
      %v5217 = vsub.f32 1.0, %v5201
      %v5218 = vsub.f32 1.0, %v5202
      %v5219 = vsub.f32 1.0, %v5203
      %v5220 = vsub.f32 1.0, %v5204
      %v5221 = vsub.f32 1.0, %v5205
      %v5222 = vsub.f32 1.0, %v5206
      %v5223 = vsub.f32 1.0, %v5207
      %v5224 = vsub.f32 1.0, %v5208
      %v5225 = vsub.f32 1.0, %v5209
      %v5226 = vsub.f32 1.0, %v5210
      %v5227 = vsub.f32 1.0, %v5211
      %v5228 = vsub.f32 1.0, %v5212
      %v5229 = vsub.f32 1.0, %v5213
      %v5230 = vsub.f32 1.0, %v5214
      %v5231 = vsub.f32 1.0, %v5215
      %v5232 = vmax.f32 %v5216, 0.0
      %v5233 = vmax.f32 %v5217, 0.0
      %v5234 = vmax.f32 %v5218, 0.0
      %v5235 = vmax.f32 %v5219, 0.0
      %v5236 = vmax.f32 %v5220, 0.0
      %v5237 = vmax.f32 %v5221, 0.0
      %v5238 = vmax.f32 %v5222, 0.0
      %v5239 = vmax.f32 %v5223, 0.0
      %v5240 = vmax.f32 %v5224, 0.0
      %v5241 = vmax.f32 %v5225, 0.0
      %v5242 = vmax.f32 %v5226, 0.0
      %v5243 = vmax.f32 %v5227, 0.0
      %v5244 = vmax.f32 %v5228, 0.0
      %v5245 = vmax.f32 %v5229, 0.0
      %v5246 = vmax.f32 %v5230, 0.0
      %v5247 = vmax.f32 %v5231, 0.0
      %v5248 = vld [vmem:[%s304] sm:$0xff]
      %v5249 = vld [vmem:[%s304 + $0x8] sm:$0xff]
      %v5250 = vld [vmem:[%s304 + $0x10] sm:$0xff]
      %v5251 = vld [vmem:[%s304 + $0x18] sm:$0xff]
      %v5252 = vld [vmem:[%s304 + $0x20] sm:$0xff]
      %v5253 = vld [vmem:[%s304 + $0x28] sm:$0xff]
      %v5254 = vld [vmem:[%s304 + $0x30] sm:$0xff]
      %v5255 = vld [vmem:[%s304 + $0x38] sm:$0xff]
      %v5256 = vld [vmem:[%s304 + $0x40] sm:$0xff]
      %v5257 = vld [vmem:[%s304 + $0x48] sm:$0xff]
      %v5258 = vld [vmem:[%s304 + $0x50] sm:$0xff]
      %v5259 = vld [vmem:[%s304 + $0x58] sm:$0xff]
      %v5260 = vld [vmem:[%s304 + $0x60] sm:$0xff]
      %v5261 = vld [vmem:[%s304 + $0x68] sm:$0xff]
      %v5262 = vld [vmem:[%s304 + $0x70] sm:$0xff]
      %v5263 = vld [vmem:[%s304 + $0x78] sm:$0xff]
      %v5264 = vmul.f32 %v5232, %v5057
      %v5265 = vmul.f32 %v5233, %v5060
      %v5266 = vmul.f32 %v5234, %v5063
      %v5267 = vmul.f32 %v5235, %v5066
      %v5268 = vmul.f32 %v5236, %v5069
      %v5269 = vmul.f32 %v5237, %v5072
      %v5270 = vmul.f32 %v5238, %v5075
      %v5271 = vmul.f32 %v5239, %v5078
      %v5272 = vmul.f32 %v5240, %v5081
      %v5273 = vmul.f32 %v5241, %v5084
      %v5274 = vmul.f32 %v5242, %v5087
      %v5275 = vmul.f32 %v5243, %v5090
      %v5276 = vmul.f32 %v5244, %v5093
      %v5277 = vmul.f32 %v5245, %v5096
      %v5278 = vmul.f32 %v5246, %v5099
      %v5279 = vmul.f32 %v5247, %v5102
      %s5280 = scalar_lea.vmem %s3, 640
      %v5281 = vld [vmem:[%s5280] sm:$0xff]
      %v5282 = vld [vmem:[%s5280 + $0x8] sm:$0xff]
      %v5283 = vld [vmem:[%s5280 + $0x10] sm:$0xff]
      %v5284 = vld [vmem:[%s5280 + $0x18] sm:$0xff]
      %v5285 = vld [vmem:[%s5280 + $0x20] sm:$0xff]
      %v5286 = vld [vmem:[%s5280 + $0x28] sm:$0xff]
      %v5287 = vld [vmem:[%s5280 + $0x30] sm:$0xff]
      %v5288 = vld [vmem:[%s5280 + $0x38] sm:$0xff]
      %v5289 = vld [vmem:[%s5280 + $0x40] sm:$0xff]
      %v5290 = vld [vmem:[%s5280 + $0x48] sm:$0xff]
      %v5291 = vld [vmem:[%s5280 + $0x50] sm:$0xff]
      %v5292 = vld [vmem:[%s5280 + $0x58] sm:$0xff]
      %v5293 = vld [vmem:[%s5280 + $0x60] sm:$0xff]
      %v5294 = vld [vmem:[%s5280 + $0x68] sm:$0xff]
      %v5295 = vld [vmem:[%s5280 + $0x70] sm:$0xff]
      %v5296 = vld [vmem:[%s5280 + $0x78] sm:$0xff]
      %5297 = vmatpush.msra.mxu0 %v5296
      %5298 = vmatpush.msra.mxu0 %v5295
      %5299 = vmatpush.msra.mxu0 %v5294
      %5300 = vmatpush.msra.mxu0 %v5293
      %5301 = vmatpush.msra.mxu0 %v5292
      %5302 = vmatpush.msra.mxu0 %v5291
      %5303 = vmatpush.msra.mxu0 %v5290
      %5304 = vmatpush.msra.mxu0 %v5289
      %5305 = vmatpush.msra.mxu0 %v5288
      %5306 = vmatpush.msra.mxu0 %v5287
      %5307 = vmatpush.msra.mxu0 %v5286
      %5308 = vmatpush.msra.mxu0 %v5285
      %5309 = vmatpush.msra.mxu0 %v5284
      %5310 = vmatpush.msra.mxu0 %v5283
      %5311 = vmatpush.msra.mxu0 %v5282
      %5312 = vmatpush.msra.mxu0 %v5281
      %5313 = vmatmul.f32.gmra.mxu0 %v5264
      %v5314 = vpop.f32.mrf.mxu0
      %v5315 = vadd.f32 0.0, %v5314
      %5316 = vmatmul.f32.gmra.mxu0 %v5265
      %v5317 = vpop.f32.mrf.mxu0
      %v5318 = vadd.f32 0.0, %v5317
      %5319 = vmatmul.f32.gmra.mxu0 %v5266
      %v5320 = vpop.f32.mrf.mxu0
      %v5321 = vadd.f32 0.0, %v5320
      %5322 = vmatmul.f32.gmra.mxu0 %v5267
      %v5323 = vpop.f32.mrf.mxu0
      %v5324 = vadd.f32 0.0, %v5323
      %5325 = vmatmul.f32.gmra.mxu0 %v5268
      %v5326 = vpop.f32.mrf.mxu0
      %v5327 = vadd.f32 0.0, %v5326
      %5328 = vmatmul.f32.gmra.mxu0 %v5269
      %v5329 = vpop.f32.mrf.mxu0
      %v5330 = vadd.f32 0.0, %v5329
      %5331 = vmatmul.f32.gmra.mxu0 %v5270
      %v5332 = vpop.f32.mrf.mxu0
      %v5333 = vadd.f32 0.0, %v5332
      %5334 = vmatmul.f32.gmra.mxu0 %v5271
      %v5335 = vpop.f32.mrf.mxu0
      %v5336 = vadd.f32 0.0, %v5335
      %5337 = vmatmul.f32.gmra.mxu0 %v5272
      %v5338 = vpop.f32.mrf.mxu0
      %v5339 = vadd.f32 0.0, %v5338
      %5340 = vmatmul.f32.gmra.mxu0 %v5273
      %v5341 = vpop.f32.mrf.mxu0
      %v5342 = vadd.f32 0.0, %v5341
      %5343 = vmatmul.f32.gmra.mxu0 %v5274
      %v5344 = vpop.f32.mrf.mxu0
      %v5345 = vadd.f32 0.0, %v5344
      %5346 = vmatmul.f32.gmra.mxu0 %v5275
      %v5347 = vpop.f32.mrf.mxu0
      %v5348 = vadd.f32 0.0, %v5347
      %5349 = vmatmul.f32.gmra.mxu0 %v5276
      %v5350 = vpop.f32.mrf.mxu0
      %v5351 = vadd.f32 0.0, %v5350
      %5352 = vmatmul.f32.gmra.mxu0 %v5277
      %v5353 = vpop.f32.mrf.mxu0
      %v5354 = vadd.f32 0.0, %v5353
      %5355 = vmatmul.f32.gmra.mxu0 %v5278
      %v5356 = vpop.f32.mrf.mxu0
      %v5357 = vadd.f32 0.0, %v5356
      %5358 = vmatmul.f32.gmra.mxu0 %v5279
      %v5359 = vpop.f32.mrf.mxu0
      %v5360 = vadd.f32 0.0, %v5359
      %5361 = vdwg.mxu0
      %v5362 = vadd.f32 %v5248, %v5315
      %v5363 = vadd.f32 %v5249, %v5318
      %v5364 = vadd.f32 %v5250, %v5321
      %v5365 = vadd.f32 %v5251, %v5324
      %v5366 = vadd.f32 %v5252, %v5327
      %v5367 = vadd.f32 %v5253, %v5330
      %v5368 = vadd.f32 %v5254, %v5333
      %v5369 = vadd.f32 %v5255, %v5336
      %v5370 = vadd.f32 %v5256, %v5339
      %v5371 = vadd.f32 %v5257, %v5342
      %v5372 = vadd.f32 %v5258, %v5345
      %v5373 = vadd.f32 %v5259, %v5348
      %v5374 = vadd.f32 %v5260, %v5351
      %v5375 = vadd.f32 %v5261, %v5354
      %v5376 = vadd.f32 %v5262, %v5357
      %v5377 = vadd.f32 %v5263, %v5360
      %5378 = vst [vmem:[%s304] sm:$0xff] %v5362
      %5379 = vst [vmem:[%s304 + $0x8] sm:$0xff] %v5363
      %5380 = vst [vmem:[%s304 + $0x10] sm:$0xff] %v5364
      %5381 = vst [vmem:[%s304 + $0x18] sm:$0xff] %v5365
      %5382 = vst [vmem:[%s304 + $0x20] sm:$0xff] %v5366
      %5383 = vst [vmem:[%s304 + $0x28] sm:$0xff] %v5367
      %5384 = vst [vmem:[%s304 + $0x30] sm:$0xff] %v5368
      %5385 = vst [vmem:[%s304 + $0x38] sm:$0xff] %v5369
      %5386 = vst [vmem:[%s304 + $0x40] sm:$0xff] %v5370
      %5387 = vst [vmem:[%s304 + $0x48] sm:$0xff] %v5371
      %5388 = vst [vmem:[%s304 + $0x50] sm:$0xff] %v5372
      %5389 = vst [vmem:[%s304 + $0x58] sm:$0xff] %v5373
      %5390 = vst [vmem:[%s304 + $0x60] sm:$0xff] %v5374
      %5391 = vst [vmem:[%s304 + $0x68] sm:$0xff] %v5375
      %5392 = vst [vmem:[%s304 + $0x70] sm:$0xff] %v5376
      %5393 = vst [vmem:[%s304 + $0x78] sm:$0xff] %v5377
      %5394 = vrot.lane.b32.xlu0 %v329, 122
      %v5395 = vpop.permute.xlu0 %5394
      %5396 = vrot.lane.b32.xlu0 %v330, 122
      %v5397 = vpop.permute.xlu0 %5396
      %5398 = vrot.lane.b32.xlu0 %v331, 122
      %v5399 = vpop.permute.xlu0 %5398
      %5400 = vrot.lane.b32.xlu0 %v332, 122
      %v5401 = vpop.permute.xlu0 %5400
      %5402 = vrot.lane.b32.xlu0 %v333, 122
      %v5403 = vpop.permute.xlu0 %5402
      %5404 = vrot.lane.b32.xlu0 %v334, 122
      %v5405 = vpop.permute.xlu0 %5404
      %5406 = vrot.lane.b32.xlu0 %v335, 122
      %v5407 = vpop.permute.xlu0 %5406
      %5408 = vrot.lane.b32.xlu0 %v336, 122
      %v5409 = vpop.permute.xlu0 %5408
      %5410 = vrot.lane.b32.xlu0 %v337, 122
      %v5411 = vpop.permute.xlu0 %5410
      %5412 = vrot.lane.b32.xlu0 %v338, 122
      %v5413 = vpop.permute.xlu0 %5412
      %5414 = vrot.lane.b32.xlu0 %v339, 122
      %v5415 = vpop.permute.xlu0 %5414
      %5416 = vrot.lane.b32.xlu0 %v340, 122
      %v5417 = vpop.permute.xlu0 %5416
      %5418 = vrot.lane.b32.xlu0 %v341, 122
      %v5419 = vpop.permute.xlu0 %5418
      %5420 = vrot.lane.b32.xlu0 %v342, 122
      %v5421 = vpop.permute.xlu0 %5420
      %5422 = vrot.lane.b32.xlu0 %v343, 122
      %v5423 = vpop.permute.xlu0 %5422
      %5424 = vrot.lane.b32.xlu0 %v344, 122
      %v5425 = vpop.permute.xlu0 %5424
      %v5442 = vadd.f32 %v2198, %v5395
      %v5443 = vadd.f32 %v2199, %v5397
      %v5444 = vadd.f32 %v2200, %v5399
      %v5445 = vadd.f32 %v2201, %v5401
      %v5446 = vadd.f32 %v2202, %v5403
      %v5447 = vadd.f32 %v2203, %v5405
      %v5448 = vadd.f32 %v2204, %v5407
      %v5449 = vadd.f32 %v2205, %v5409
      %v5450 = vadd.f32 %v2206, %v5411
      %v5451 = vadd.f32 %v2207, %v5413
      %v5452 = vadd.f32 %v2208, %v5415
      %v5453 = vadd.f32 %v2209, %v5417
      %v5454 = vadd.f32 %v2210, %v5419
      %v5455 = vadd.f32 %v2211, %v5421
      %v5456 = vadd.f32 %v2212, %v5423
      %v5457 = vadd.f32 %v2213, %v5425
      %v5458 = vmax.f32 %v5442, 0.0
      %v5459 = vmax.f32 %v5443, 0.0
      %v5460 = vmax.f32 %v5444, 0.0
      %v5461 = vmax.f32 %v5445, 0.0
      %v5462 = vmax.f32 %v5446, 0.0
      %v5463 = vmax.f32 %v5447, 0.0
      %v5464 = vmax.f32 %v5448, 0.0
      %v5465 = vmax.f32 %v5449, 0.0
      %v5466 = vmax.f32 %v5450, 0.0
      %v5467 = vmax.f32 %v5451, 0.0
      %v5468 = vmax.f32 %v5452, 0.0
      %v5469 = vmax.f32 %v5453, 0.0
      %v5470 = vmax.f32 %v5454, 0.0
      %v5471 = vmax.f32 %v5455, 0.0
      %v5472 = vmax.f32 %v5456, 0.0
      %v5473 = vmax.f32 %v5457, 0.0
      %v5474 = vmin.f32 %v5458, 17.0
      %v5475 = vmin.f32 %v5459, 17.0
      %v5476 = vmin.f32 %v5460, 17.0
      %v5477 = vmin.f32 %v5461, 17.0
      %v5478 = vmin.f32 %v5462, 17.0
      %v5479 = vmin.f32 %v5463, 17.0
      %v5480 = vmin.f32 %v5464, 17.0
      %v5481 = vmin.f32 %v5465, 17.0
      %v5482 = vmin.f32 %v5466, 17.0
      %v5483 = vmin.f32 %v5467, 17.0
      %v5484 = vmin.f32 %v5468, 17.0
      %v5485 = vmin.f32 %v5469, 17.0
      %v5486 = vmin.f32 %v5470, 17.0
      %v5487 = vmin.f32 %v5471, 17.0
      %v5488 = vmin.f32 %v5472, 17.0
      %v5489 = vmin.f32 %v5473, 17.0
      %5490 = vrot.lane.b32.xlu0 %v329, 114
      %v5491 = vpop.permute.xlu0 %5490
      %5492 = vrot.lane.b32.xlu0 %v330, 114
      %v5493 = vpop.permute.xlu0 %5492
      %5494 = vrot.lane.b32.xlu0 %v331, 114
      %v5495 = vpop.permute.xlu0 %5494
      %5496 = vrot.lane.b32.xlu0 %v332, 114
      %v5497 = vpop.permute.xlu0 %5496
      %5498 = vrot.lane.b32.xlu0 %v333, 114
      %v5499 = vpop.permute.xlu0 %5498
      %5500 = vrot.lane.b32.xlu0 %v334, 114
      %v5501 = vpop.permute.xlu0 %5500
      %5502 = vrot.lane.b32.xlu0 %v335, 114
      %v5503 = vpop.permute.xlu0 %5502
      %5504 = vrot.lane.b32.xlu0 %v336, 114
      %v5505 = vpop.permute.xlu0 %5504
      %5506 = vrot.lane.b32.xlu0 %v337, 114
      %v5507 = vpop.permute.xlu0 %5506
      %5508 = vrot.lane.b32.xlu0 %v338, 114
      %v5509 = vpop.permute.xlu0 %5508
      %5510 = vrot.lane.b32.xlu0 %v339, 114
      %v5511 = vpop.permute.xlu0 %5510
      %5512 = vrot.lane.b32.xlu0 %v340, 114
      %v5513 = vpop.permute.xlu0 %5512
      %5514 = vrot.lane.b32.xlu0 %v341, 114
      %v5515 = vpop.permute.xlu0 %5514
      %5516 = vrot.lane.b32.xlu0 %v342, 114
      %v5517 = vpop.permute.xlu0 %5516
      %5518 = vrot.lane.b32.xlu0 %v343, 114
      %v5519 = vpop.permute.xlu0 %5518
      %5520 = vrot.lane.b32.xlu0 %v344, 114
      %v5521 = vpop.permute.xlu0 %5520
      %v5538 = vadd.f32 %v441, %v5491
      %v5539 = vadd.f32 %v442, %v5493
      %v5540 = vadd.f32 %v443, %v5495
      %v5541 = vadd.f32 %v444, %v5497
      %v5542 = vadd.f32 %v445, %v5499
      %v5543 = vadd.f32 %v446, %v5501
      %v5544 = vadd.f32 %v447, %v5503
      %v5545 = vadd.f32 %v448, %v5505
      %v5546 = vadd.f32 %v449, %v5507
      %v5547 = vadd.f32 %v450, %v5509
      %v5548 = vadd.f32 %v451, %v5511
      %v5549 = vadd.f32 %v452, %v5513
      %v5550 = vadd.f32 %v453, %v5515
      %v5551 = vadd.f32 %v454, %v5517
      %v5552 = vadd.f32 %v455, %v5519
      %v5553 = vadd.f32 %v456, %v5521
      %v5554 = vmax.f32 %v5538, 0.0
      %v5555 = vmax.f32 %v5539, 0.0
      %v5556 = vmax.f32 %v5540, 0.0
      %v5557 = vmax.f32 %v5541, 0.0
      %v5558 = vmax.f32 %v5542, 0.0
      %v5559 = vmax.f32 %v5543, 0.0
      %v5560 = vmax.f32 %v5544, 0.0
      %v5561 = vmax.f32 %v5545, 0.0
      %v5562 = vmax.f32 %v5546, 0.0
      %v5563 = vmax.f32 %v5547, 0.0
      %v5564 = vmax.f32 %v5548, 0.0
      %v5565 = vmax.f32 %v5549, 0.0
      %v5566 = vmax.f32 %v5550, 0.0
      %v5567 = vmax.f32 %v5551, 0.0
      %v5568 = vmax.f32 %v5552, 0.0
      %v5569 = vmax.f32 %v5553, 0.0
      %v5570 = vmin.f32 %v5554, 17.0
      %v5571 = vmin.f32 %v5555, 17.0
      %v5572 = vmin.f32 %v5556, 17.0
      %v5573 = vmin.f32 %v5557, 17.0
      %v5574 = vmin.f32 %v5558, 17.0
      %v5575 = vmin.f32 %v5559, 17.0
      %v5576 = vmin.f32 %v5560, 17.0
      %v5577 = vmin.f32 %v5561, 17.0
      %v5578 = vmin.f32 %v5562, 17.0
      %v5579 = vmin.f32 %v5563, 17.0
      %v5580 = vmin.f32 %v5564, 17.0
      %v5581 = vmin.f32 %v5565, 17.0
      %v5582 = vmin.f32 %v5566, 17.0
      %v5583 = vmin.f32 %v5567, 17.0
      %v5584 = vmin.f32 %v5568, 17.0
      %v5585 = vmin.f32 %v5569, 17.0
      %5587 = vset.pattern.permute.xlu0 0
      %5588 = vperm.xlu0 %5587, %v5474
      %v5589 = vpop.permute.xlu0 %5588
      %5592 = vset.pattern.permute.xlu0 0
      %5593 = vperm.xlu0 %5592, %v5475
      %v5594 = vpop.permute.xlu0 %5593
      %5597 = vset.pattern.permute.xlu0 0
      %5598 = vperm.xlu0 %5597, %v5476
      %v5599 = vpop.permute.xlu0 %5598
      %5602 = vset.pattern.permute.xlu0 0
      %5603 = vperm.xlu0 %5602, %v5477
      %v5604 = vpop.permute.xlu0 %5603
      %5607 = vset.pattern.permute.xlu0 0
      %5608 = vperm.xlu0 %5607, %v5478
      %v5609 = vpop.permute.xlu0 %5608
      %5612 = vset.pattern.permute.xlu0 0
      %5613 = vperm.xlu0 %5612, %v5479
      %v5614 = vpop.permute.xlu0 %5613
      %5617 = vset.pattern.permute.xlu0 0
      %5618 = vperm.xlu0 %5617, %v5480
      %v5619 = vpop.permute.xlu0 %5618
      %5622 = vset.pattern.permute.xlu0 0
      %5623 = vperm.xlu0 %5622, %v5481
      %v5624 = vpop.permute.xlu0 %5623
      %5627 = vset.pattern.permute.xlu0 0
      %5628 = vperm.xlu0 %5627, %v5482
      %v5629 = vpop.permute.xlu0 %5628
      %5632 = vset.pattern.permute.xlu0 0
      %5633 = vperm.xlu0 %5632, %v5483
      %v5634 = vpop.permute.xlu0 %5633
      %5637 = vset.pattern.permute.xlu0 0
      %5638 = vperm.xlu0 %5637, %v5484
      %v5639 = vpop.permute.xlu0 %5638
      %5642 = vset.pattern.permute.xlu0 0
      %5643 = vperm.xlu0 %5642, %v5485
      %v5644 = vpop.permute.xlu0 %5643
      %5647 = vset.pattern.permute.xlu0 0
      %5648 = vperm.xlu0 %5647, %v5486
      %v5649 = vpop.permute.xlu0 %5648
      %5652 = vset.pattern.permute.xlu0 0
      %5653 = vperm.xlu0 %5652, %v5487
      %v5654 = vpop.permute.xlu0 %5653
      %5657 = vset.pattern.permute.xlu0 0
      %5658 = vperm.xlu0 %5657, %v5488
      %v5659 = vpop.permute.xlu0 %5658
      %5662 = vset.pattern.permute.xlu0 0
      %5663 = vperm.xlu0 %5662, %v5489
      %v5664 = vpop.permute.xlu0 %5663
      %v5666 = vsub.f32 %v312, %v5589
      %v5667 = vsub.f32 %v312, %v5594
      %v5668 = vsub.f32 %v312, %v5599
      %v5669 = vsub.f32 %v312, %v5604
      %v5670 = vsub.f32 %v312, %v5609
      %v5671 = vsub.f32 %v312, %v5614
      %v5672 = vsub.f32 %v312, %v5619
      %v5673 = vsub.f32 %v312, %v5624
      %v5674 = vsub.f32 %v312, %v5629
      %v5675 = vsub.f32 %v312, %v5634
      %v5676 = vsub.f32 %v312, %v5639
      %v5677 = vsub.f32 %v312, %v5644
      %v5678 = vsub.f32 %v312, %v5649
      %v5679 = vsub.f32 %v312, %v5654
      %v5680 = vsub.f32 %v312, %v5659
      %v5681 = vsub.f32 %v312, %v5664
      %v5682 = vand.u32 2147483647, %v5666
      %v5683 = vand.u32 2147483647, %v5667
      %v5684 = vand.u32 2147483647, %v5668
      %v5685 = vand.u32 2147483647, %v5669
      %v5686 = vand.u32 2147483647, %v5670
      %v5687 = vand.u32 2147483647, %v5671
      %v5688 = vand.u32 2147483647, %v5672
      %v5689 = vand.u32 2147483647, %v5673
      %v5690 = vand.u32 2147483647, %v5674
      %v5691 = vand.u32 2147483647, %v5675
      %v5692 = vand.u32 2147483647, %v5676
      %v5693 = vand.u32 2147483647, %v5677
      %v5694 = vand.u32 2147483647, %v5678
      %v5695 = vand.u32 2147483647, %v5679
      %v5696 = vand.u32 2147483647, %v5680
      %v5697 = vand.u32 2147483647, %v5681
      %v5698 = vsub.f32 1.0, %v5682
      %v5699 = vsub.f32 1.0, %v5683
      %v5700 = vsub.f32 1.0, %v5684
      %v5701 = vsub.f32 1.0, %v5685
      %v5702 = vsub.f32 1.0, %v5686
      %v5703 = vsub.f32 1.0, %v5687
      %v5704 = vsub.f32 1.0, %v5688
      %v5705 = vsub.f32 1.0, %v5689
      %v5706 = vsub.f32 1.0, %v5690
      %v5707 = vsub.f32 1.0, %v5691
      %v5708 = vsub.f32 1.0, %v5692
      %v5709 = vsub.f32 1.0, %v5693
      %v5710 = vsub.f32 1.0, %v5694
      %v5711 = vsub.f32 1.0, %v5695
      %v5712 = vsub.f32 1.0, %v5696
      %v5713 = vsub.f32 1.0, %v5697
      %v5714 = vmax.f32 %v5698, 0.0
      %v5715 = vmax.f32 %v5699, 0.0
      %v5716 = vmax.f32 %v5700, 0.0
      %v5717 = vmax.f32 %v5701, 0.0
      %v5718 = vmax.f32 %v5702, 0.0
      %v5719 = vmax.f32 %v5703, 0.0
      %v5720 = vmax.f32 %v5704, 0.0
      %v5721 = vmax.f32 %v5705, 0.0
      %v5722 = vmax.f32 %v5706, 0.0
      %v5723 = vmax.f32 %v5707, 0.0
      %v5724 = vmax.f32 %v5708, 0.0
      %v5725 = vmax.f32 %v5709, 0.0
      %v5726 = vmax.f32 %v5710, 0.0
      %v5727 = vmax.f32 %v5711, 0.0
      %v5728 = vmax.f32 %v5712, 0.0
      %v5729 = vmax.f32 %v5713, 0.0
      %5730 = vset.pattern.permute.xlu0 24
      %5731 = vperm.xlu0 %5730, %v409
      %v5732 = vpop.permute.xlu0 %5731
      %5734 = vset.pattern.permute.xlu0 24
      %5735 = vperm.xlu0 %5734, %v410
      %v5736 = vpop.permute.xlu0 %5735
      %5738 = vset.pattern.permute.xlu0 24
      %5739 = vperm.xlu0 %5738, %v411
      %v5740 = vpop.permute.xlu0 %5739
      %5742 = vset.pattern.permute.xlu0 24
      %5743 = vperm.xlu0 %5742, %v412
      %v5744 = vpop.permute.xlu0 %5743
      %5746 = vset.pattern.permute.xlu0 24
      %5747 = vperm.xlu0 %5746, %v413
      %v5748 = vpop.permute.xlu0 %5747
      %5750 = vset.pattern.permute.xlu0 24
      %5751 = vperm.xlu0 %5750, %v414
      %v5752 = vpop.permute.xlu0 %5751
      %5754 = vset.pattern.permute.xlu0 24
      %5755 = vperm.xlu0 %5754, %v415
      %v5756 = vpop.permute.xlu0 %5755
      %5758 = vset.pattern.permute.xlu0 24
      %5759 = vperm.xlu0 %5758, %v416
      %v5760 = vpop.permute.xlu0 %5759
      %5762 = vset.pattern.permute.xlu0 24
      %5763 = vperm.xlu0 %5762, %v417
      %v5764 = vpop.permute.xlu0 %5763
      %5766 = vset.pattern.permute.xlu0 24
      %5767 = vperm.xlu0 %5766, %v418
      %v5768 = vpop.permute.xlu0 %5767
      %5770 = vset.pattern.permute.xlu0 24
      %5771 = vperm.xlu0 %5770, %v419
      %v5772 = vpop.permute.xlu0 %5771
      %5774 = vset.pattern.permute.xlu0 24
      %5775 = vperm.xlu0 %5774, %v420
      %v5776 = vpop.permute.xlu0 %5775
      %5778 = vset.pattern.permute.xlu0 24
      %5779 = vperm.xlu0 %5778, %v421
      %v5780 = vpop.permute.xlu0 %5779
      %5782 = vset.pattern.permute.xlu0 24
      %5783 = vperm.xlu0 %5782, %v422
      %v5784 = vpop.permute.xlu0 %5783
      %5786 = vset.pattern.permute.xlu0 24
      %5787 = vperm.xlu0 %5786, %v423
      %v5788 = vpop.permute.xlu0 %5787
      %5790 = vset.pattern.permute.xlu0 24
      %5791 = vperm.xlu0 %5790, %v424
      %v5792 = vpop.permute.xlu0 %5791
      %v5794 = vmul.f32 %v5714, %v5732
      %v5795 = vmul.f32 %v5715, %v5736
      %v5796 = vmul.f32 %v5716, %v5740
      %v5797 = vmul.f32 %v5717, %v5744
      %v5798 = vmul.f32 %v5718, %v5748
      %v5799 = vmul.f32 %v5719, %v5752
      %v5800 = vmul.f32 %v5720, %v5756
      %v5801 = vmul.f32 %v5721, %v5760
      %v5802 = vmul.f32 %v5722, %v5764
      %v5803 = vmul.f32 %v5723, %v5768
      %v5804 = vmul.f32 %v5724, %v5772
      %v5805 = vmul.f32 %v5725, %v5776
      %v5806 = vmul.f32 %v5726, %v5780
      %v5807 = vmul.f32 %v5727, %v5784
      %v5808 = vmul.f32 %v5728, %v5788
      %v5809 = vmul.f32 %v5729, %v5792
      %v5811 = vsel %vm857, %v5794, 0
      %v5814 = vsel %vm857, %v5795, 0
      %v5817 = vsel %vm857, %v5796, 0
      %v5820 = vsel %vm857, %v5797, 0
      %v5823 = vsel %vm857, %v5798, 0
      %v5826 = vsel %vm857, %v5799, 0
      %v5829 = vsel %vm857, %v5800, 0
      %v5832 = vsel %vm857, %v5801, 0
      %v5835 = vsel %vm857, %v5802, 0
      %v5838 = vsel %vm857, %v5803, 0
      %v5841 = vsel %vm857, %v5804, 0
      %v5844 = vsel %vm857, %v5805, 0
      %v5847 = vsel %vm857, %v5806, 0
      %v5850 = vsel %vm857, %v5807, 0
      %v5853 = vsel %vm857, %v5808, 0
      %v5856 = vsel %vm857, %v5809, 0
      %5858 = vmatpush.msra.mxu0 0.0
      %5859 = vmatpush.msra.mxu0 0.0
      %5860 = vmatpush.msra.mxu0 0.0
      %5861 = vmatpush.msra.mxu0 0.0
      %5862 = vmatpush.msra.mxu0 0.0
      %5863 = vmatpush.msra.mxu0 0.0
      %5864 = vmatpush.msra.mxu0 0.0
      %5865 = vmatpush.msra.mxu0 0.0
      %5866 = vmatpush.msra.mxu0 0.0
      %5867 = vmatpush.msra.mxu0 0.0
      %5868 = vmatpush.msra.mxu0 0.0
      %5869 = vmatpush.msra.mxu0 0.0
      %5870 = vmatpush.msra.mxu0 0.0
      %5871 = vmatpush.msra.mxu0 %v908
      %5872 = vmatpush.msra.mxu0 %v307
      %5873 = vmatpush.msra.mxu0 %v306
      %5874 = vmatmul.f32.gmra.mxu0 %v5811
      %v5875 = vpop.f32.mrf.mxu0
      %v5876 = vadd.f32 0.0, %v5875
      %5877 = vmatmul.f32.gmra.mxu0 %v5814
      %v5878 = vpop.f32.mrf.mxu0
      %v5879 = vadd.f32 0.0, %v5878
      %5880 = vmatmul.f32.gmra.mxu0 %v5817
      %v5881 = vpop.f32.mrf.mxu0
      %v5882 = vadd.f32 0.0, %v5881
      %5883 = vmatmul.f32.gmra.mxu0 %v5820
      %v5884 = vpop.f32.mrf.mxu0
      %v5885 = vadd.f32 0.0, %v5884
      %5886 = vmatmul.f32.gmra.mxu0 %v5823
      %v5887 = vpop.f32.mrf.mxu0
      %v5888 = vadd.f32 0.0, %v5887
      %5889 = vmatmul.f32.gmra.mxu0 %v5826
      %v5890 = vpop.f32.mrf.mxu0
      %v5891 = vadd.f32 0.0, %v5890
      %5892 = vmatmul.f32.gmra.mxu0 %v5829
      %v5893 = vpop.f32.mrf.mxu0
      %v5894 = vadd.f32 0.0, %v5893
      %5895 = vmatmul.f32.gmra.mxu0 %v5832
      %v5896 = vpop.f32.mrf.mxu0
      %v5897 = vadd.f32 0.0, %v5896
      %5898 = vmatmul.f32.gmra.mxu0 %v5835
      %v5899 = vpop.f32.mrf.mxu0
      %v5900 = vadd.f32 0.0, %v5899
      %5901 = vmatmul.f32.gmra.mxu0 %v5838
      %v5902 = vpop.f32.mrf.mxu0
      %v5903 = vadd.f32 0.0, %v5902
      %5904 = vmatmul.f32.gmra.mxu0 %v5841
      %v5905 = vpop.f32.mrf.mxu0
      %v5906 = vadd.f32 0.0, %v5905
      %5907 = vmatmul.f32.gmra.mxu0 %v5844
      %v5908 = vpop.f32.mrf.mxu0
      %v5909 = vadd.f32 0.0, %v5908
      %5910 = vmatmul.f32.gmra.mxu0 %v5847
      %v5911 = vpop.f32.mrf.mxu0
      %v5912 = vadd.f32 0.0, %v5911
      %5913 = vmatmul.f32.gmra.mxu0 %v5850
      %v5914 = vpop.f32.mrf.mxu0
      %v5915 = vadd.f32 0.0, %v5914
      %5916 = vmatmul.f32.gmra.mxu0 %v5853
      %v5917 = vpop.f32.mrf.mxu0
      %v5918 = vadd.f32 0.0, %v5917
      %5919 = vmatmul.f32.gmra.mxu0 %v5856
      %v5920 = vpop.f32.mrf.mxu0
      %v5921 = vadd.f32 0.0, %v5920
      %5922 = vdwg.mxu0
      %5924 = vset.pattern.permute.xlu0 1
      %5925 = vperm.xlu0 %5924, %v5570
      %v5926 = vpop.permute.xlu0 %5925
      %5929 = vset.pattern.permute.xlu0 1
      %5930 = vperm.xlu0 %5929, %v5571
      %v5931 = vpop.permute.xlu0 %5930
      %5934 = vset.pattern.permute.xlu0 1
      %5935 = vperm.xlu0 %5934, %v5572
      %v5936 = vpop.permute.xlu0 %5935
      %5939 = vset.pattern.permute.xlu0 1
      %5940 = vperm.xlu0 %5939, %v5573
      %v5941 = vpop.permute.xlu0 %5940
      %5944 = vset.pattern.permute.xlu0 1
      %5945 = vperm.xlu0 %5944, %v5574
      %v5946 = vpop.permute.xlu0 %5945
      %5949 = vset.pattern.permute.xlu0 1
      %5950 = vperm.xlu0 %5949, %v5575
      %v5951 = vpop.permute.xlu0 %5950
      %5954 = vset.pattern.permute.xlu0 1
      %5955 = vperm.xlu0 %5954, %v5576
      %v5956 = vpop.permute.xlu0 %5955
      %5959 = vset.pattern.permute.xlu0 1
      %5960 = vperm.xlu0 %5959, %v5577
      %v5961 = vpop.permute.xlu0 %5960
      %5964 = vset.pattern.permute.xlu0 1
      %5965 = vperm.xlu0 %5964, %v5578
      %v5966 = vpop.permute.xlu0 %5965
      %5969 = vset.pattern.permute.xlu0 1
      %5970 = vperm.xlu0 %5969, %v5579
      %v5971 = vpop.permute.xlu0 %5970
      %5974 = vset.pattern.permute.xlu0 1
      %5975 = vperm.xlu0 %5974, %v5580
      %v5976 = vpop.permute.xlu0 %5975
      %5979 = vset.pattern.permute.xlu0 1
      %5980 = vperm.xlu0 %5979, %v5581
      %v5981 = vpop.permute.xlu0 %5980
      %5984 = vset.pattern.permute.xlu0 1
      %5985 = vperm.xlu0 %5984, %v5582
      %v5986 = vpop.permute.xlu0 %5985
      %5989 = vset.pattern.permute.xlu0 1
      %5990 = vperm.xlu0 %5989, %v5583
      %v5991 = vpop.permute.xlu0 %5990
      %5994 = vset.pattern.permute.xlu0 1
      %5995 = vperm.xlu0 %5994, %v5584
      %v5996 = vpop.permute.xlu0 %5995
      %5999 = vset.pattern.permute.xlu0 1
      %6000 = vperm.xlu0 %5999, %v5585
      %v6001 = vpop.permute.xlu0 %6000
      %v6003 = vsub.f32 %v976, %v5926
      %v6004 = vsub.f32 %v976, %v5931
      %v6005 = vsub.f32 %v976, %v5936
      %v6006 = vsub.f32 %v976, %v5941
      %v6007 = vsub.f32 %v976, %v5946
      %v6008 = vsub.f32 %v976, %v5951
      %v6009 = vsub.f32 %v976, %v5956
      %v6010 = vsub.f32 %v976, %v5961
      %v6011 = vsub.f32 %v976, %v5966
      %v6012 = vsub.f32 %v976, %v5971
      %v6013 = vsub.f32 %v976, %v5976
      %v6014 = vsub.f32 %v976, %v5981
      %v6015 = vsub.f32 %v976, %v5986
      %v6016 = vsub.f32 %v976, %v5991
      %v6017 = vsub.f32 %v976, %v5996
      %v6018 = vsub.f32 %v976, %v6001
      %v6019 = vand.u32 2147483647, %v6003
      %v6020 = vand.u32 2147483647, %v6004
      %v6021 = vand.u32 2147483647, %v6005
      %v6022 = vand.u32 2147483647, %v6006
      %v6023 = vand.u32 2147483647, %v6007
      %v6024 = vand.u32 2147483647, %v6008
      %v6025 = vand.u32 2147483647, %v6009
      %v6026 = vand.u32 2147483647, %v6010
      %v6027 = vand.u32 2147483647, %v6011
      %v6028 = vand.u32 2147483647, %v6012
      %v6029 = vand.u32 2147483647, %v6013
      %v6030 = vand.u32 2147483647, %v6014
      %v6031 = vand.u32 2147483647, %v6015
      %v6032 = vand.u32 2147483647, %v6016
      %v6033 = vand.u32 2147483647, %v6017
      %v6034 = vand.u32 2147483647, %v6018
      %v6035 = vsub.f32 1.0, %v6019
      %v6036 = vsub.f32 1.0, %v6020
      %v6037 = vsub.f32 1.0, %v6021
      %v6038 = vsub.f32 1.0, %v6022
      %v6039 = vsub.f32 1.0, %v6023
      %v6040 = vsub.f32 1.0, %v6024
      %v6041 = vsub.f32 1.0, %v6025
      %v6042 = vsub.f32 1.0, %v6026
      %v6043 = vsub.f32 1.0, %v6027
      %v6044 = vsub.f32 1.0, %v6028
      %v6045 = vsub.f32 1.0, %v6029
      %v6046 = vsub.f32 1.0, %v6030
      %v6047 = vsub.f32 1.0, %v6031
      %v6048 = vsub.f32 1.0, %v6032
      %v6049 = vsub.f32 1.0, %v6033
      %v6050 = vsub.f32 1.0, %v6034
      %v6051 = vmax.f32 %v6035, 0.0
      %v6052 = vmax.f32 %v6036, 0.0
      %v6053 = vmax.f32 %v6037, 0.0
      %v6054 = vmax.f32 %v6038, 0.0
      %v6055 = vmax.f32 %v6039, 0.0
      %v6056 = vmax.f32 %v6040, 0.0
      %v6057 = vmax.f32 %v6041, 0.0
      %v6058 = vmax.f32 %v6042, 0.0
      %v6059 = vmax.f32 %v6043, 0.0
      %v6060 = vmax.f32 %v6044, 0.0
      %v6061 = vmax.f32 %v6045, 0.0
      %v6062 = vmax.f32 %v6046, 0.0
      %v6063 = vmax.f32 %v6047, 0.0
      %v6064 = vmax.f32 %v6048, 0.0
      %v6065 = vmax.f32 %v6049, 0.0
      %v6066 = vmax.f32 %v6050, 0.0
      %v6067 = vld [vmem:[%s304] sm:$0xff]
      %v6068 = vld [vmem:[%s304 + $0x8] sm:$0xff]
      %v6069 = vld [vmem:[%s304 + $0x10] sm:$0xff]
      %v6070 = vld [vmem:[%s304 + $0x18] sm:$0xff]
      %v6071 = vld [vmem:[%s304 + $0x20] sm:$0xff]
      %v6072 = vld [vmem:[%s304 + $0x28] sm:$0xff]
      %v6073 = vld [vmem:[%s304 + $0x30] sm:$0xff]
      %v6074 = vld [vmem:[%s304 + $0x38] sm:$0xff]
      %v6075 = vld [vmem:[%s304 + $0x40] sm:$0xff]
      %v6076 = vld [vmem:[%s304 + $0x48] sm:$0xff]
      %v6077 = vld [vmem:[%s304 + $0x50] sm:$0xff]
      %v6078 = vld [vmem:[%s304 + $0x58] sm:$0xff]
      %v6079 = vld [vmem:[%s304 + $0x60] sm:$0xff]
      %v6080 = vld [vmem:[%s304 + $0x68] sm:$0xff]
      %v6081 = vld [vmem:[%s304 + $0x70] sm:$0xff]
      %v6082 = vld [vmem:[%s304 + $0x78] sm:$0xff]
      %v6083 = vmul.f32 %v6051, %v5876
      %v6084 = vmul.f32 %v6052, %v5879
      %v6085 = vmul.f32 %v6053, %v5882
      %v6086 = vmul.f32 %v6054, %v5885
      %v6087 = vmul.f32 %v6055, %v5888
      %v6088 = vmul.f32 %v6056, %v5891
      %v6089 = vmul.f32 %v6057, %v5894
      %v6090 = vmul.f32 %v6058, %v5897
      %v6091 = vmul.f32 %v6059, %v5900
      %v6092 = vmul.f32 %v6060, %v5903
      %v6093 = vmul.f32 %v6061, %v5906
      %v6094 = vmul.f32 %v6062, %v5909
      %v6095 = vmul.f32 %v6063, %v5912
      %v6096 = vmul.f32 %v6064, %v5915
      %v6097 = vmul.f32 %v6065, %v5918
      %v6098 = vmul.f32 %v6066, %v5921
      %s6099 = scalar_lea.vmem %s3, 768
      %v6100 = vld [vmem:[%s6099] sm:$0xff]
      %v6101 = vld [vmem:[%s6099 + $0x8] sm:$0xff]
      %v6102 = vld [vmem:[%s6099 + $0x10] sm:$0xff]
      %v6103 = vld [vmem:[%s6099 + $0x18] sm:$0xff]
      %v6104 = vld [vmem:[%s6099 + $0x20] sm:$0xff]
      %v6105 = vld [vmem:[%s6099 + $0x28] sm:$0xff]
      %v6106 = vld [vmem:[%s6099 + $0x30] sm:$0xff]
      %v6107 = vld [vmem:[%s6099 + $0x38] sm:$0xff]
      %v6108 = vld [vmem:[%s6099 + $0x40] sm:$0xff]
      %v6109 = vld [vmem:[%s6099 + $0x48] sm:$0xff]
      %v6110 = vld [vmem:[%s6099 + $0x50] sm:$0xff]
      %v6111 = vld [vmem:[%s6099 + $0x58] sm:$0xff]
      %v6112 = vld [vmem:[%s6099 + $0x60] sm:$0xff]
      %v6113 = vld [vmem:[%s6099 + $0x68] sm:$0xff]
      %v6114 = vld [vmem:[%s6099 + $0x70] sm:$0xff]
      %v6115 = vld [vmem:[%s6099 + $0x78] sm:$0xff]
      %6116 = vmatpush.msra.mxu0 %v6115
      %6117 = vmatpush.msra.mxu0 %v6114
      %6118 = vmatpush.msra.mxu0 %v6113
      %6119 = vmatpush.msra.mxu0 %v6112
      %6120 = vmatpush.msra.mxu0 %v6111
      %6121 = vmatpush.msra.mxu0 %v6110
      %6122 = vmatpush.msra.mxu0 %v6109
      %6123 = vmatpush.msra.mxu0 %v6108
      %6124 = vmatpush.msra.mxu0 %v6107
      %6125 = vmatpush.msra.mxu0 %v6106
      %6126 = vmatpush.msra.mxu0 %v6105
      %6127 = vmatpush.msra.mxu0 %v6104
      %6128 = vmatpush.msra.mxu0 %v6103
      %6129 = vmatpush.msra.mxu0 %v6102
      %6130 = vmatpush.msra.mxu0 %v6101
      %6131 = vmatpush.msra.mxu0 %v6100
      %6132 = vmatmul.f32.gmra.mxu0 %v6083
      %v6133 = vpop.f32.mrf.mxu0
      %v6134 = vadd.f32 0.0, %v6133
      %6135 = vmatmul.f32.gmra.mxu0 %v6084
      %v6136 = vpop.f32.mrf.mxu0
      %v6137 = vadd.f32 0.0, %v6136
      %6138 = vmatmul.f32.gmra.mxu0 %v6085
      %v6139 = vpop.f32.mrf.mxu0
      %v6140 = vadd.f32 0.0, %v6139
      %6141 = vmatmul.f32.gmra.mxu0 %v6086
      %v6142 = vpop.f32.mrf.mxu0
      %v6143 = vadd.f32 0.0, %v6142
      %6144 = vmatmul.f32.gmra.mxu0 %v6087
      %v6145 = vpop.f32.mrf.mxu0
      %v6146 = vadd.f32 0.0, %v6145
      %6147 = vmatmul.f32.gmra.mxu0 %v6088
      %v6148 = vpop.f32.mrf.mxu0
      %v6149 = vadd.f32 0.0, %v6148
      %6150 = vmatmul.f32.gmra.mxu0 %v6089
      %v6151 = vpop.f32.mrf.mxu0
      %v6152 = vadd.f32 0.0, %v6151
      %6153 = vmatmul.f32.gmra.mxu0 %v6090
      %v6154 = vpop.f32.mrf.mxu0
      %v6155 = vadd.f32 0.0, %v6154
      %6156 = vmatmul.f32.gmra.mxu0 %v6091
      %v6157 = vpop.f32.mrf.mxu0
      %v6158 = vadd.f32 0.0, %v6157
      %6159 = vmatmul.f32.gmra.mxu0 %v6092
      %v6160 = vpop.f32.mrf.mxu0
      %v6161 = vadd.f32 0.0, %v6160
      %6162 = vmatmul.f32.gmra.mxu0 %v6093
      %v6163 = vpop.f32.mrf.mxu0
      %v6164 = vadd.f32 0.0, %v6163
      %6165 = vmatmul.f32.gmra.mxu0 %v6094
      %v6166 = vpop.f32.mrf.mxu0
      %v6167 = vadd.f32 0.0, %v6166
      %6168 = vmatmul.f32.gmra.mxu0 %v6095
      %v6169 = vpop.f32.mrf.mxu0
      %v6170 = vadd.f32 0.0, %v6169
      %6171 = vmatmul.f32.gmra.mxu0 %v6096
      %v6172 = vpop.f32.mrf.mxu0
      %v6173 = vadd.f32 0.0, %v6172
      %6174 = vmatmul.f32.gmra.mxu0 %v6097
      %v6175 = vpop.f32.mrf.mxu0
      %v6176 = vadd.f32 0.0, %v6175
      %6177 = vmatmul.f32.gmra.mxu0 %v6098
      %v6178 = vpop.f32.mrf.mxu0
      %v6179 = vadd.f32 0.0, %v6178
      %6180 = vdwg.mxu0
      %v6181 = vadd.f32 %v6067, %v6134
      %v6182 = vadd.f32 %v6068, %v6137
      %v6183 = vadd.f32 %v6069, %v6140
      %v6184 = vadd.f32 %v6070, %v6143
      %v6185 = vadd.f32 %v6071, %v6146
      %v6186 = vadd.f32 %v6072, %v6149
      %v6187 = vadd.f32 %v6073, %v6152
      %v6188 = vadd.f32 %v6074, %v6155
      %v6189 = vadd.f32 %v6075, %v6158
      %v6190 = vadd.f32 %v6076, %v6161
      %v6191 = vadd.f32 %v6077, %v6164
      %v6192 = vadd.f32 %v6078, %v6167
      %v6193 = vadd.f32 %v6079, %v6170
      %v6194 = vadd.f32 %v6080, %v6173
      %v6195 = vadd.f32 %v6081, %v6176
      %v6196 = vadd.f32 %v6082, %v6179
      %6197 = vst [vmem:[%s304] sm:$0xff] %v6181
      %6198 = vst [vmem:[%s304 + $0x8] sm:$0xff] %v6182
      %6199 = vst [vmem:[%s304 + $0x10] sm:$0xff] %v6183
      %6200 = vst [vmem:[%s304 + $0x18] sm:$0xff] %v6184
      %6201 = vst [vmem:[%s304 + $0x20] sm:$0xff] %v6185
      %6202 = vst [vmem:[%s304 + $0x28] sm:$0xff] %v6186
      %6203 = vst [vmem:[%s304 + $0x30] sm:$0xff] %v6187
      %6204 = vst [vmem:[%s304 + $0x38] sm:$0xff] %v6188
      %6205 = vst [vmem:[%s304 + $0x40] sm:$0xff] %v6189
      %6206 = vst [vmem:[%s304 + $0x48] sm:$0xff] %v6190
      %6207 = vst [vmem:[%s304 + $0x50] sm:$0xff] %v6191
      %6208 = vst [vmem:[%s304 + $0x58] sm:$0xff] %v6192
      %6209 = vst [vmem:[%s304 + $0x60] sm:$0xff] %v6193
      %6210 = vst [vmem:[%s304 + $0x68] sm:$0xff] %v6194
      %6211 = vst [vmem:[%s304 + $0x70] sm:$0xff] %v6195
      %6212 = vst [vmem:[%s304 + $0x78] sm:$0xff] %v6196
      %6213 = vrot.lane.b32.xlu0 %v329, 121
      %v6214 = vpop.permute.xlu0 %6213
      %6215 = vrot.lane.b32.xlu0 %v330, 121
      %v6216 = vpop.permute.xlu0 %6215
      %6217 = vrot.lane.b32.xlu0 %v331, 121
      %v6218 = vpop.permute.xlu0 %6217
      %6219 = vrot.lane.b32.xlu0 %v332, 121
      %v6220 = vpop.permute.xlu0 %6219
      %6221 = vrot.lane.b32.xlu0 %v333, 121
      %v6222 = vpop.permute.xlu0 %6221
      %6223 = vrot.lane.b32.xlu0 %v334, 121
      %v6224 = vpop.permute.xlu0 %6223
      %6225 = vrot.lane.b32.xlu0 %v335, 121
      %v6226 = vpop.permute.xlu0 %6225
      %6227 = vrot.lane.b32.xlu0 %v336, 121
      %v6228 = vpop.permute.xlu0 %6227
      %6229 = vrot.lane.b32.xlu0 %v337, 121
      %v6230 = vpop.permute.xlu0 %6229
      %6231 = vrot.lane.b32.xlu0 %v338, 121
      %v6232 = vpop.permute.xlu0 %6231
      %6233 = vrot.lane.b32.xlu0 %v339, 121
      %v6234 = vpop.permute.xlu0 %6233
      %6235 = vrot.lane.b32.xlu0 %v340, 121
      %v6236 = vpop.permute.xlu0 %6235
      %6237 = vrot.lane.b32.xlu0 %v341, 121
      %v6238 = vpop.permute.xlu0 %6237
      %6239 = vrot.lane.b32.xlu0 %v342, 121
      %v6240 = vpop.permute.xlu0 %6239
      %6241 = vrot.lane.b32.xlu0 %v343, 121
      %v6242 = vpop.permute.xlu0 %6241
      %6243 = vrot.lane.b32.xlu0 %v344, 121
      %v6244 = vpop.permute.xlu0 %6243
      %v6261 = vadd.f32 %v2198, %v6214
      %v6262 = vadd.f32 %v2199, %v6216
      %v6263 = vadd.f32 %v2200, %v6218
      %v6264 = vadd.f32 %v2201, %v6220
      %v6265 = vadd.f32 %v2202, %v6222
      %v6266 = vadd.f32 %v2203, %v6224
      %v6267 = vadd.f32 %v2204, %v6226
      %v6268 = vadd.f32 %v2205, %v6228
      %v6269 = vadd.f32 %v2206, %v6230
      %v6270 = vadd.f32 %v2207, %v6232
      %v6271 = vadd.f32 %v2208, %v6234
      %v6272 = vadd.f32 %v2209, %v6236
      %v6273 = vadd.f32 %v2210, %v6238
      %v6274 = vadd.f32 %v2211, %v6240
      %v6275 = vadd.f32 %v2212, %v6242
      %v6276 = vadd.f32 %v2213, %v6244
      %v6277 = vmax.f32 %v6261, 0.0
      %v6278 = vmax.f32 %v6262, 0.0
      %v6279 = vmax.f32 %v6263, 0.0
      %v6280 = vmax.f32 %v6264, 0.0
      %v6281 = vmax.f32 %v6265, 0.0
      %v6282 = vmax.f32 %v6266, 0.0
      %v6283 = vmax.f32 %v6267, 0.0
      %v6284 = vmax.f32 %v6268, 0.0
      %v6285 = vmax.f32 %v6269, 0.0
      %v6286 = vmax.f32 %v6270, 0.0
      %v6287 = vmax.f32 %v6271, 0.0
      %v6288 = vmax.f32 %v6272, 0.0
      %v6289 = vmax.f32 %v6273, 0.0
      %v6290 = vmax.f32 %v6274, 0.0
      %v6291 = vmax.f32 %v6275, 0.0
      %v6292 = vmax.f32 %v6276, 0.0
      %v6293 = vmin.f32 %v6277, 17.0
      %v6294 = vmin.f32 %v6278, 17.0
      %v6295 = vmin.f32 %v6279, 17.0
      %v6296 = vmin.f32 %v6280, 17.0
      %v6297 = vmin.f32 %v6281, 17.0
      %v6298 = vmin.f32 %v6282, 17.0
      %v6299 = vmin.f32 %v6283, 17.0
      %v6300 = vmin.f32 %v6284, 17.0
      %v6301 = vmin.f32 %v6285, 17.0
      %v6302 = vmin.f32 %v6286, 17.0
      %v6303 = vmin.f32 %v6287, 17.0
      %v6304 = vmin.f32 %v6288, 17.0
      %v6305 = vmin.f32 %v6289, 17.0
      %v6306 = vmin.f32 %v6290, 17.0
      %v6307 = vmin.f32 %v6291, 17.0
      %v6308 = vmin.f32 %v6292, 17.0
      %6309 = vrot.lane.b32.xlu0 %v329, 113
      %v6310 = vpop.permute.xlu0 %6309
      %6311 = vrot.lane.b32.xlu0 %v330, 113
      %v6312 = vpop.permute.xlu0 %6311
      %6313 = vrot.lane.b32.xlu0 %v331, 113
      %v6314 = vpop.permute.xlu0 %6313
      %6315 = vrot.lane.b32.xlu0 %v332, 113
      %v6316 = vpop.permute.xlu0 %6315
      %6317 = vrot.lane.b32.xlu0 %v333, 113
      %v6318 = vpop.permute.xlu0 %6317
      %6319 = vrot.lane.b32.xlu0 %v334, 113
      %v6320 = vpop.permute.xlu0 %6319
      %6321 = vrot.lane.b32.xlu0 %v335, 113
      %v6322 = vpop.permute.xlu0 %6321
      %6323 = vrot.lane.b32.xlu0 %v336, 113
      %v6324 = vpop.permute.xlu0 %6323
      %6325 = vrot.lane.b32.xlu0 %v337, 113
      %v6326 = vpop.permute.xlu0 %6325
      %6327 = vrot.lane.b32.xlu0 %v338, 113
      %v6328 = vpop.permute.xlu0 %6327
      %6329 = vrot.lane.b32.xlu0 %v339, 113
      %v6330 = vpop.permute.xlu0 %6329
      %6331 = vrot.lane.b32.xlu0 %v340, 113
      %v6332 = vpop.permute.xlu0 %6331
      %6333 = vrot.lane.b32.xlu0 %v341, 113
      %v6334 = vpop.permute.xlu0 %6333
      %6335 = vrot.lane.b32.xlu0 %v342, 113
      %v6336 = vpop.permute.xlu0 %6335
      %6337 = vrot.lane.b32.xlu0 %v343, 113
      %v6338 = vpop.permute.xlu0 %6337
      %6339 = vrot.lane.b32.xlu0 %v344, 113
      %v6340 = vpop.permute.xlu0 %6339
      %v6357 = vadd.f32 %v1363, %v6310
      %v6358 = vadd.f32 %v1364, %v6312
      %v6359 = vadd.f32 %v1365, %v6314
      %v6360 = vadd.f32 %v1366, %v6316
      %v6361 = vadd.f32 %v1367, %v6318
      %v6362 = vadd.f32 %v1368, %v6320
      %v6363 = vadd.f32 %v1369, %v6322
      %v6364 = vadd.f32 %v1370, %v6324
      %v6365 = vadd.f32 %v1371, %v6326
      %v6366 = vadd.f32 %v1372, %v6328
      %v6367 = vadd.f32 %v1373, %v6330
      %v6368 = vadd.f32 %v1374, %v6332
      %v6369 = vadd.f32 %v1375, %v6334
      %v6370 = vadd.f32 %v1376, %v6336
      %v6371 = vadd.f32 %v1377, %v6338
      %v6372 = vadd.f32 %v1378, %v6340
      %v6373 = vmax.f32 %v6357, 0.0
      %v6374 = vmax.f32 %v6358, 0.0
      %v6375 = vmax.f32 %v6359, 0.0
      %v6376 = vmax.f32 %v6360, 0.0
      %v6377 = vmax.f32 %v6361, 0.0
      %v6378 = vmax.f32 %v6362, 0.0
      %v6379 = vmax.f32 %v6363, 0.0
      %v6380 = vmax.f32 %v6364, 0.0
      %v6381 = vmax.f32 %v6365, 0.0
      %v6382 = vmax.f32 %v6366, 0.0
      %v6383 = vmax.f32 %v6367, 0.0
      %v6384 = vmax.f32 %v6368, 0.0
      %v6385 = vmax.f32 %v6369, 0.0
      %v6386 = vmax.f32 %v6370, 0.0
      %v6387 = vmax.f32 %v6371, 0.0
      %v6388 = vmax.f32 %v6372, 0.0
      %v6389 = vmin.f32 %v6373, 17.0
      %v6390 = vmin.f32 %v6374, 17.0
      %v6391 = vmin.f32 %v6375, 17.0
      %v6392 = vmin.f32 %v6376, 17.0
      %v6393 = vmin.f32 %v6377, 17.0
      %v6394 = vmin.f32 %v6378, 17.0
      %v6395 = vmin.f32 %v6379, 17.0
      %v6396 = vmin.f32 %v6380, 17.0
      %v6397 = vmin.f32 %v6381, 17.0
      %v6398 = vmin.f32 %v6382, 17.0
      %v6399 = vmin.f32 %v6383, 17.0
      %v6400 = vmin.f32 %v6384, 17.0
      %v6401 = vmin.f32 %v6385, 17.0
      %v6402 = vmin.f32 %v6386, 17.0
      %v6403 = vmin.f32 %v6387, 17.0
      %v6404 = vmin.f32 %v6388, 17.0
      %6406 = vset.pattern.permute.xlu0 0
      %6407 = vperm.xlu0 %6406, %v6293
      %v6408 = vpop.permute.xlu0 %6407
      %6411 = vset.pattern.permute.xlu0 0
      %6412 = vperm.xlu0 %6411, %v6294
      %v6413 = vpop.permute.xlu0 %6412
      %6416 = vset.pattern.permute.xlu0 0
      %6417 = vperm.xlu0 %6416, %v6295
      %v6418 = vpop.permute.xlu0 %6417
      %6421 = vset.pattern.permute.xlu0 0
      %6422 = vperm.xlu0 %6421, %v6296
      %v6423 = vpop.permute.xlu0 %6422
      %6426 = vset.pattern.permute.xlu0 0
      %6427 = vperm.xlu0 %6426, %v6297
      %v6428 = vpop.permute.xlu0 %6427
      %6431 = vset.pattern.permute.xlu0 0
      %6432 = vperm.xlu0 %6431, %v6298
      %v6433 = vpop.permute.xlu0 %6432
      %6436 = vset.pattern.permute.xlu0 0
      %6437 = vperm.xlu0 %6436, %v6299
      %v6438 = vpop.permute.xlu0 %6437
      %6441 = vset.pattern.permute.xlu0 0
      %6442 = vperm.xlu0 %6441, %v6300
      %v6443 = vpop.permute.xlu0 %6442
      %6446 = vset.pattern.permute.xlu0 0
      %6447 = vperm.xlu0 %6446, %v6301
      %v6448 = vpop.permute.xlu0 %6447
      %6451 = vset.pattern.permute.xlu0 0
      %6452 = vperm.xlu0 %6451, %v6302
      %v6453 = vpop.permute.xlu0 %6452
      %6456 = vset.pattern.permute.xlu0 0
      %6457 = vperm.xlu0 %6456, %v6303
      %v6458 = vpop.permute.xlu0 %6457
      %6461 = vset.pattern.permute.xlu0 0
      %6462 = vperm.xlu0 %6461, %v6304
      %v6463 = vpop.permute.xlu0 %6462
      %6466 = vset.pattern.permute.xlu0 0
      %6467 = vperm.xlu0 %6466, %v6305
      %v6468 = vpop.permute.xlu0 %6467
      %6471 = vset.pattern.permute.xlu0 0
      %6472 = vperm.xlu0 %6471, %v6306
      %v6473 = vpop.permute.xlu0 %6472
      %6476 = vset.pattern.permute.xlu0 0
      %6477 = vperm.xlu0 %6476, %v6307
      %v6478 = vpop.permute.xlu0 %6477
      %6481 = vset.pattern.permute.xlu0 0
      %6482 = vperm.xlu0 %6481, %v6308
      %v6483 = vpop.permute.xlu0 %6482
      %v6485 = vsub.f32 %v312, %v6408
      %v6486 = vsub.f32 %v312, %v6413
      %v6487 = vsub.f32 %v312, %v6418
      %v6488 = vsub.f32 %v312, %v6423
      %v6489 = vsub.f32 %v312, %v6428
      %v6490 = vsub.f32 %v312, %v6433
      %v6491 = vsub.f32 %v312, %v6438
      %v6492 = vsub.f32 %v312, %v6443
      %v6493 = vsub.f32 %v312, %v6448
      %v6494 = vsub.f32 %v312, %v6453
      %v6495 = vsub.f32 %v312, %v6458
      %v6496 = vsub.f32 %v312, %v6463
      %v6497 = vsub.f32 %v312, %v6468
      %v6498 = vsub.f32 %v312, %v6473
      %v6499 = vsub.f32 %v312, %v6478
      %v6500 = vsub.f32 %v312, %v6483
      %v6501 = vand.u32 2147483647, %v6485
      %v6502 = vand.u32 2147483647, %v6486
      %v6503 = vand.u32 2147483647, %v6487
      %v6504 = vand.u32 2147483647, %v6488
      %v6505 = vand.u32 2147483647, %v6489
      %v6506 = vand.u32 2147483647, %v6490
      %v6507 = vand.u32 2147483647, %v6491
      %v6508 = vand.u32 2147483647, %v6492
      %v6509 = vand.u32 2147483647, %v6493
      %v6510 = vand.u32 2147483647, %v6494
      %v6511 = vand.u32 2147483647, %v6495
      %v6512 = vand.u32 2147483647, %v6496
      %v6513 = vand.u32 2147483647, %v6497
      %v6514 = vand.u32 2147483647, %v6498
      %v6515 = vand.u32 2147483647, %v6499
      %v6516 = vand.u32 2147483647, %v6500
      %v6517 = vsub.f32 1.0, %v6501
      %v6518 = vsub.f32 1.0, %v6502
      %v6519 = vsub.f32 1.0, %v6503
      %v6520 = vsub.f32 1.0, %v6504
      %v6521 = vsub.f32 1.0, %v6505
      %v6522 = vsub.f32 1.0, %v6506
      %v6523 = vsub.f32 1.0, %v6507
      %v6524 = vsub.f32 1.0, %v6508
      %v6525 = vsub.f32 1.0, %v6509
      %v6526 = vsub.f32 1.0, %v6510
      %v6527 = vsub.f32 1.0, %v6511
      %v6528 = vsub.f32 1.0, %v6512
      %v6529 = vsub.f32 1.0, %v6513
      %v6530 = vsub.f32 1.0, %v6514
      %v6531 = vsub.f32 1.0, %v6515
      %v6532 = vsub.f32 1.0, %v6516
      %v6533 = vmax.f32 %v6517, 0.0
      %v6534 = vmax.f32 %v6518, 0.0
      %v6535 = vmax.f32 %v6519, 0.0
      %v6536 = vmax.f32 %v6520, 0.0
      %v6537 = vmax.f32 %v6521, 0.0
      %v6538 = vmax.f32 %v6522, 0.0
      %v6539 = vmax.f32 %v6523, 0.0
      %v6540 = vmax.f32 %v6524, 0.0
      %v6541 = vmax.f32 %v6525, 0.0
      %v6542 = vmax.f32 %v6526, 0.0
      %v6543 = vmax.f32 %v6527, 0.0
      %v6544 = vmax.f32 %v6528, 0.0
      %v6545 = vmax.f32 %v6529, 0.0
      %v6546 = vmax.f32 %v6530, 0.0
      %v6547 = vmax.f32 %v6531, 0.0
      %v6548 = vmax.f32 %v6532, 0.0
      %6549 = vset.pattern.permute.xlu0 25
      %6550 = vperm.xlu0 %6549, %v409
      %v6551 = vpop.permute.xlu0 %6550
      %6553 = vset.pattern.permute.xlu0 25
      %6554 = vperm.xlu0 %6553, %v410
      %v6555 = vpop.permute.xlu0 %6554
      %6557 = vset.pattern.permute.xlu0 25
      %6558 = vperm.xlu0 %6557, %v411
      %v6559 = vpop.permute.xlu0 %6558
      %6561 = vset.pattern.permute.xlu0 25
      %6562 = vperm.xlu0 %6561, %v412
      %v6563 = vpop.permute.xlu0 %6562
      %6565 = vset.pattern.permute.xlu0 25
      %6566 = vperm.xlu0 %6565, %v413
      %v6567 = vpop.permute.xlu0 %6566
      %6569 = vset.pattern.permute.xlu0 25
      %6570 = vperm.xlu0 %6569, %v414
      %v6571 = vpop.permute.xlu0 %6570
      %6573 = vset.pattern.permute.xlu0 25
      %6574 = vperm.xlu0 %6573, %v415
      %v6575 = vpop.permute.xlu0 %6574
      %6577 = vset.pattern.permute.xlu0 25
      %6578 = vperm.xlu0 %6577, %v416
      %v6579 = vpop.permute.xlu0 %6578
      %6581 = vset.pattern.permute.xlu0 25
      %6582 = vperm.xlu0 %6581, %v417
      %v6583 = vpop.permute.xlu0 %6582
      %6585 = vset.pattern.permute.xlu0 25
      %6586 = vperm.xlu0 %6585, %v418
      %v6587 = vpop.permute.xlu0 %6586
      %6589 = vset.pattern.permute.xlu0 25
      %6590 = vperm.xlu0 %6589, %v419
      %v6591 = vpop.permute.xlu0 %6590
      %6593 = vset.pattern.permute.xlu0 25
      %6594 = vperm.xlu0 %6593, %v420
      %v6595 = vpop.permute.xlu0 %6594
      %6597 = vset.pattern.permute.xlu0 25
      %6598 = vperm.xlu0 %6597, %v421
      %v6599 = vpop.permute.xlu0 %6598
      %6601 = vset.pattern.permute.xlu0 25
      %6602 = vperm.xlu0 %6601, %v422
      %v6603 = vpop.permute.xlu0 %6602
      %6605 = vset.pattern.permute.xlu0 25
      %6606 = vperm.xlu0 %6605, %v423
      %v6607 = vpop.permute.xlu0 %6606
      %6609 = vset.pattern.permute.xlu0 25
      %6610 = vperm.xlu0 %6609, %v424
      %v6611 = vpop.permute.xlu0 %6610
      %v6613 = vmul.f32 %v6533, %v6551
      %v6614 = vmul.f32 %v6534, %v6555
      %v6615 = vmul.f32 %v6535, %v6559
      %v6616 = vmul.f32 %v6536, %v6563
      %v6617 = vmul.f32 %v6537, %v6567
      %v6618 = vmul.f32 %v6538, %v6571
      %v6619 = vmul.f32 %v6539, %v6575
      %v6620 = vmul.f32 %v6540, %v6579
      %v6621 = vmul.f32 %v6541, %v6583
      %v6622 = vmul.f32 %v6542, %v6587
      %v6623 = vmul.f32 %v6543, %v6591
      %v6624 = vmul.f32 %v6544, %v6595
      %v6625 = vmul.f32 %v6545, %v6599
      %v6626 = vmul.f32 %v6546, %v6603
      %v6627 = vmul.f32 %v6547, %v6607
      %v6628 = vmul.f32 %v6548, %v6611
      %v6630 = vsel %vm857, %v6613, 0
      %v6633 = vsel %vm857, %v6614, 0
      %v6636 = vsel %vm857, %v6615, 0
      %v6639 = vsel %vm857, %v6616, 0
      %v6642 = vsel %vm857, %v6617, 0
      %v6645 = vsel %vm857, %v6618, 0
      %v6648 = vsel %vm857, %v6619, 0
      %v6651 = vsel %vm857, %v6620, 0
      %v6654 = vsel %vm857, %v6621, 0
      %v6657 = vsel %vm857, %v6622, 0
      %v6660 = vsel %vm857, %v6623, 0
      %v6663 = vsel %vm857, %v6624, 0
      %v6666 = vsel %vm857, %v6625, 0
      %v6669 = vsel %vm857, %v6626, 0
      %v6672 = vsel %vm857, %v6627, 0
      %v6675 = vsel %vm857, %v6628, 0
      %6677 = vmatpush.msra.mxu0 0.0
      %6678 = vmatpush.msra.mxu0 0.0
      %6679 = vmatpush.msra.mxu0 0.0
      %6680 = vmatpush.msra.mxu0 0.0
      %6681 = vmatpush.msra.mxu0 0.0
      %6682 = vmatpush.msra.mxu0 0.0
      %6683 = vmatpush.msra.mxu0 0.0
      %6684 = vmatpush.msra.mxu0 0.0
      %6685 = vmatpush.msra.mxu0 0.0
      %6686 = vmatpush.msra.mxu0 0.0
      %6687 = vmatpush.msra.mxu0 0.0
      %6688 = vmatpush.msra.mxu0 0.0
      %6689 = vmatpush.msra.mxu0 0.0
      %6690 = vmatpush.msra.mxu0 %v908
      %6691 = vmatpush.msra.mxu0 %v307
      %6692 = vmatpush.msra.mxu0 %v306
      %6693 = vmatmul.f32.gmra.mxu0 %v6630
      %v6694 = vpop.f32.mrf.mxu0
      %v6695 = vadd.f32 0.0, %v6694
      %6696 = vmatmul.f32.gmra.mxu0 %v6633
      %v6697 = vpop.f32.mrf.mxu0
      %v6698 = vadd.f32 0.0, %v6697
      %6699 = vmatmul.f32.gmra.mxu0 %v6636
      %v6700 = vpop.f32.mrf.mxu0
      %v6701 = vadd.f32 0.0, %v6700
      %6702 = vmatmul.f32.gmra.mxu0 %v6639
      %v6703 = vpop.f32.mrf.mxu0
      %v6704 = vadd.f32 0.0, %v6703
      %6705 = vmatmul.f32.gmra.mxu0 %v6642
      %v6706 = vpop.f32.mrf.mxu0
      %v6707 = vadd.f32 0.0, %v6706
      %6708 = vmatmul.f32.gmra.mxu0 %v6645
      %v6709 = vpop.f32.mrf.mxu0
      %v6710 = vadd.f32 0.0, %v6709
      %6711 = vmatmul.f32.gmra.mxu0 %v6648
      %v6712 = vpop.f32.mrf.mxu0
      %v6713 = vadd.f32 0.0, %v6712
      %6714 = vmatmul.f32.gmra.mxu0 %v6651
      %v6715 = vpop.f32.mrf.mxu0
      %v6716 = vadd.f32 0.0, %v6715
      %6717 = vmatmul.f32.gmra.mxu0 %v6654
      %v6718 = vpop.f32.mrf.mxu0
      %v6719 = vadd.f32 0.0, %v6718
      %6720 = vmatmul.f32.gmra.mxu0 %v6657
      %v6721 = vpop.f32.mrf.mxu0
      %v6722 = vadd.f32 0.0, %v6721
      %6723 = vmatmul.f32.gmra.mxu0 %v6660
      %v6724 = vpop.f32.mrf.mxu0
      %v6725 = vadd.f32 0.0, %v6724
      %6726 = vmatmul.f32.gmra.mxu0 %v6663
      %v6727 = vpop.f32.mrf.mxu0
      %v6728 = vadd.f32 0.0, %v6727
      %6729 = vmatmul.f32.gmra.mxu0 %v6666
      %v6730 = vpop.f32.mrf.mxu0
      %v6731 = vadd.f32 0.0, %v6730
      %6732 = vmatmul.f32.gmra.mxu0 %v6669
      %v6733 = vpop.f32.mrf.mxu0
      %v6734 = vadd.f32 0.0, %v6733
      %6735 = vmatmul.f32.gmra.mxu0 %v6672
      %v6736 = vpop.f32.mrf.mxu0
      %v6737 = vadd.f32 0.0, %v6736
      %6738 = vmatmul.f32.gmra.mxu0 %v6675
      %v6739 = vpop.f32.mrf.mxu0
      %v6740 = vadd.f32 0.0, %v6739
      %6741 = vdwg.mxu0
      %6743 = vset.pattern.permute.xlu0 1
      %6744 = vperm.xlu0 %6743, %v6389
      %v6745 = vpop.permute.xlu0 %6744
      %6748 = vset.pattern.permute.xlu0 1
      %6749 = vperm.xlu0 %6748, %v6390
      %v6750 = vpop.permute.xlu0 %6749
      %6753 = vset.pattern.permute.xlu0 1
      %6754 = vperm.xlu0 %6753, %v6391
      %v6755 = vpop.permute.xlu0 %6754
      %6758 = vset.pattern.permute.xlu0 1
      %6759 = vperm.xlu0 %6758, %v6392
      %v6760 = vpop.permute.xlu0 %6759
      %6763 = vset.pattern.permute.xlu0 1
      %6764 = vperm.xlu0 %6763, %v6393
      %v6765 = vpop.permute.xlu0 %6764
      %6768 = vset.pattern.permute.xlu0 1
      %6769 = vperm.xlu0 %6768, %v6394
      %v6770 = vpop.permute.xlu0 %6769
      %6773 = vset.pattern.permute.xlu0 1
      %6774 = vperm.xlu0 %6773, %v6395
      %v6775 = vpop.permute.xlu0 %6774
      %6778 = vset.pattern.permute.xlu0 1
      %6779 = vperm.xlu0 %6778, %v6396
      %v6780 = vpop.permute.xlu0 %6779
      %6783 = vset.pattern.permute.xlu0 1
      %6784 = vperm.xlu0 %6783, %v6397
      %v6785 = vpop.permute.xlu0 %6784
      %6788 = vset.pattern.permute.xlu0 1
      %6789 = vperm.xlu0 %6788, %v6398
      %v6790 = vpop.permute.xlu0 %6789
      %6793 = vset.pattern.permute.xlu0 1
      %6794 = vperm.xlu0 %6793, %v6399
      %v6795 = vpop.permute.xlu0 %6794
      %6798 = vset.pattern.permute.xlu0 1
      %6799 = vperm.xlu0 %6798, %v6400
      %v6800 = vpop.permute.xlu0 %6799
      %6803 = vset.pattern.permute.xlu0 1
      %6804 = vperm.xlu0 %6803, %v6401
      %v6805 = vpop.permute.xlu0 %6804
      %6808 = vset.pattern.permute.xlu0 1
      %6809 = vperm.xlu0 %6808, %v6402
      %v6810 = vpop.permute.xlu0 %6809
      %6813 = vset.pattern.permute.xlu0 1
      %6814 = vperm.xlu0 %6813, %v6403
      %v6815 = vpop.permute.xlu0 %6814
      %6818 = vset.pattern.permute.xlu0 1
      %6819 = vperm.xlu0 %6818, %v6404
      %v6820 = vpop.permute.xlu0 %6819
      %v6822 = vsub.f32 %v976, %v6745
      %v6823 = vsub.f32 %v976, %v6750
      %v6824 = vsub.f32 %v976, %v6755
      %v6825 = vsub.f32 %v976, %v6760
      %v6826 = vsub.f32 %v976, %v6765
      %v6827 = vsub.f32 %v976, %v6770
      %v6828 = vsub.f32 %v976, %v6775
      %v6829 = vsub.f32 %v976, %v6780
      %v6830 = vsub.f32 %v976, %v6785
      %v6831 = vsub.f32 %v976, %v6790
      %v6832 = vsub.f32 %v976, %v6795
      %v6833 = vsub.f32 %v976, %v6800
      %v6834 = vsub.f32 %v976, %v6805
      %v6835 = vsub.f32 %v976, %v6810
      %v6836 = vsub.f32 %v976, %v6815
      %v6837 = vsub.f32 %v976, %v6820
      %v6838 = vand.u32 2147483647, %v6822
      %v6839 = vand.u32 2147483647, %v6823
      %v6840 = vand.u32 2147483647, %v6824
      %v6841 = vand.u32 2147483647, %v6825
      %v6842 = vand.u32 2147483647, %v6826
      %v6843 = vand.u32 2147483647, %v6827
      %v6844 = vand.u32 2147483647, %v6828
      %v6845 = vand.u32 2147483647, %v6829
      %v6846 = vand.u32 2147483647, %v6830
      %v6847 = vand.u32 2147483647, %v6831
      %v6848 = vand.u32 2147483647, %v6832
      %v6849 = vand.u32 2147483647, %v6833
      %v6850 = vand.u32 2147483647, %v6834
      %v6851 = vand.u32 2147483647, %v6835
      %v6852 = vand.u32 2147483647, %v6836
      %v6853 = vand.u32 2147483647, %v6837
      %v6854 = vsub.f32 1.0, %v6838
      %v6855 = vsub.f32 1.0, %v6839
      %v6856 = vsub.f32 1.0, %v6840
      %v6857 = vsub.f32 1.0, %v6841
      %v6858 = vsub.f32 1.0, %v6842
      %v6859 = vsub.f32 1.0, %v6843
      %v6860 = vsub.f32 1.0, %v6844
      %v6861 = vsub.f32 1.0, %v6845
      %v6862 = vsub.f32 1.0, %v6846
      %v6863 = vsub.f32 1.0, %v6847
      %v6864 = vsub.f32 1.0, %v6848
      %v6865 = vsub.f32 1.0, %v6849
      %v6866 = vsub.f32 1.0, %v6850
      %v6867 = vsub.f32 1.0, %v6851
      %v6868 = vsub.f32 1.0, %v6852
      %v6869 = vsub.f32 1.0, %v6853
      %v6870 = vmax.f32 %v6854, 0.0
      %v6871 = vmax.f32 %v6855, 0.0
      %v6872 = vmax.f32 %v6856, 0.0
      %v6873 = vmax.f32 %v6857, 0.0
      %v6874 = vmax.f32 %v6858, 0.0
      %v6875 = vmax.f32 %v6859, 0.0
      %v6876 = vmax.f32 %v6860, 0.0
      %v6877 = vmax.f32 %v6861, 0.0
      %v6878 = vmax.f32 %v6862, 0.0
      %v6879 = vmax.f32 %v6863, 0.0
      %v6880 = vmax.f32 %v6864, 0.0
      %v6881 = vmax.f32 %v6865, 0.0
      %v6882 = vmax.f32 %v6866, 0.0
      %v6883 = vmax.f32 %v6867, 0.0
      %v6884 = vmax.f32 %v6868, 0.0
      %v6885 = vmax.f32 %v6869, 0.0
      %v6886 = vld [vmem:[%s304] sm:$0xff]
      %v6887 = vld [vmem:[%s304 + $0x8] sm:$0xff]
      %v6888 = vld [vmem:[%s304 + $0x10] sm:$0xff]
      %v6889 = vld [vmem:[%s304 + $0x18] sm:$0xff]
      %v6890 = vld [vmem:[%s304 + $0x20] sm:$0xff]
      %v6891 = vld [vmem:[%s304 + $0x28] sm:$0xff]
      %v6892 = vld [vmem:[%s304 + $0x30] sm:$0xff]
      %v6893 = vld [vmem:[%s304 + $0x38] sm:$0xff]
      %v6894 = vld [vmem:[%s304 + $0x40] sm:$0xff]
      %v6895 = vld [vmem:[%s304 + $0x48] sm:$0xff]
      %v6896 = vld [vmem:[%s304 + $0x50] sm:$0xff]
      %v6897 = vld [vmem:[%s304 + $0x58] sm:$0xff]
      %v6898 = vld [vmem:[%s304 + $0x60] sm:$0xff]
      %v6899 = vld [vmem:[%s304 + $0x68] sm:$0xff]
      %v6900 = vld [vmem:[%s304 + $0x70] sm:$0xff]
      %v6901 = vld [vmem:[%s304 + $0x78] sm:$0xff]
      %v6902 = vmul.f32 %v6870, %v6695
      %v6903 = vmul.f32 %v6871, %v6698
      %v6904 = vmul.f32 %v6872, %v6701
      %v6905 = vmul.f32 %v6873, %v6704
      %v6906 = vmul.f32 %v6874, %v6707
      %v6907 = vmul.f32 %v6875, %v6710
      %v6908 = vmul.f32 %v6876, %v6713
      %v6909 = vmul.f32 %v6877, %v6716
      %v6910 = vmul.f32 %v6878, %v6719
      %v6911 = vmul.f32 %v6879, %v6722
      %v6912 = vmul.f32 %v6880, %v6725
      %v6913 = vmul.f32 %v6881, %v6728
      %v6914 = vmul.f32 %v6882, %v6731
      %v6915 = vmul.f32 %v6883, %v6734
      %v6916 = vmul.f32 %v6884, %v6737
      %v6917 = vmul.f32 %v6885, %v6740
      %s6918 = scalar_lea.vmem %s3, 896
      %v6919 = vld [vmem:[%s6918] sm:$0xff]
      %v6920 = vld [vmem:[%s6918 + $0x8] sm:$0xff]
      %v6921 = vld [vmem:[%s6918 + $0x10] sm:$0xff]
      %v6922 = vld [vmem:[%s6918 + $0x18] sm:$0xff]
      %v6923 = vld [vmem:[%s6918 + $0x20] sm:$0xff]
      %v6924 = vld [vmem:[%s6918 + $0x28] sm:$0xff]
      %v6925 = vld [vmem:[%s6918 + $0x30] sm:$0xff]
      %v6926 = vld [vmem:[%s6918 + $0x38] sm:$0xff]
      %v6927 = vld [vmem:[%s6918 + $0x40] sm:$0xff]
      %v6928 = vld [vmem:[%s6918 + $0x48] sm:$0xff]
      %v6929 = vld [vmem:[%s6918 + $0x50] sm:$0xff]
      %v6930 = vld [vmem:[%s6918 + $0x58] sm:$0xff]
      %v6931 = vld [vmem:[%s6918 + $0x60] sm:$0xff]
      %v6932 = vld [vmem:[%s6918 + $0x68] sm:$0xff]
      %v6933 = vld [vmem:[%s6918 + $0x70] sm:$0xff]
      %v6934 = vld [vmem:[%s6918 + $0x78] sm:$0xff]
      %6935 = vmatpush.msra.mxu0 %v6934
      %6936 = vmatpush.msra.mxu0 %v6933
      %6937 = vmatpush.msra.mxu0 %v6932
      %6938 = vmatpush.msra.mxu0 %v6931
      %6939 = vmatpush.msra.mxu0 %v6930
      %6940 = vmatpush.msra.mxu0 %v6929
      %6941 = vmatpush.msra.mxu0 %v6928
      %6942 = vmatpush.msra.mxu0 %v6927
      %6943 = vmatpush.msra.mxu0 %v6926
      %6944 = vmatpush.msra.mxu0 %v6925
      %6945 = vmatpush.msra.mxu0 %v6924
      %6946 = vmatpush.msra.mxu0 %v6923
      %6947 = vmatpush.msra.mxu0 %v6922
      %6948 = vmatpush.msra.mxu0 %v6921
      %6949 = vmatpush.msra.mxu0 %v6920
      %6950 = vmatpush.msra.mxu0 %v6919
      %6951 = vmatmul.f32.gmra.mxu0 %v6902
      %v6952 = vpop.f32.mrf.mxu0
      %v6953 = vadd.f32 0.0, %v6952
      %6954 = vmatmul.f32.gmra.mxu0 %v6903
      %v6955 = vpop.f32.mrf.mxu0
      %v6956 = vadd.f32 0.0, %v6955
      %6957 = vmatmul.f32.gmra.mxu0 %v6904
      %v6958 = vpop.f32.mrf.mxu0
      %v6959 = vadd.f32 0.0, %v6958
      %6960 = vmatmul.f32.gmra.mxu0 %v6905
      %v6961 = vpop.f32.mrf.mxu0
      %v6962 = vadd.f32 0.0, %v6961
      %6963 = vmatmul.f32.gmra.mxu0 %v6906
      %v6964 = vpop.f32.mrf.mxu0
      %v6965 = vadd.f32 0.0, %v6964
      %6966 = vmatmul.f32.gmra.mxu0 %v6907
      %v6967 = vpop.f32.mrf.mxu0
      %v6968 = vadd.f32 0.0, %v6967
      %6969 = vmatmul.f32.gmra.mxu0 %v6908
      %v6970 = vpop.f32.mrf.mxu0
      %v6971 = vadd.f32 0.0, %v6970
      %6972 = vmatmul.f32.gmra.mxu0 %v6909
      %v6973 = vpop.f32.mrf.mxu0
      %v6974 = vadd.f32 0.0, %v6973
      %6975 = vmatmul.f32.gmra.mxu0 %v6910
      %v6976 = vpop.f32.mrf.mxu0
      %v6977 = vadd.f32 0.0, %v6976
      %6978 = vmatmul.f32.gmra.mxu0 %v6911
      %v6979 = vpop.f32.mrf.mxu0
      %v6980 = vadd.f32 0.0, %v6979
      %6981 = vmatmul.f32.gmra.mxu0 %v6912
      %v6982 = vpop.f32.mrf.mxu0
      %v6983 = vadd.f32 0.0, %v6982
      %6984 = vmatmul.f32.gmra.mxu0 %v6913
      %v6985 = vpop.f32.mrf.mxu0
      %v6986 = vadd.f32 0.0, %v6985
      %6987 = vmatmul.f32.gmra.mxu0 %v6914
      %v6988 = vpop.f32.mrf.mxu0
      %v6989 = vadd.f32 0.0, %v6988
      %6990 = vmatmul.f32.gmra.mxu0 %v6915
      %v6991 = vpop.f32.mrf.mxu0
      %v6992 = vadd.f32 0.0, %v6991
      %6993 = vmatmul.f32.gmra.mxu0 %v6916
      %v6994 = vpop.f32.mrf.mxu0
      %v6995 = vadd.f32 0.0, %v6994
      %6996 = vmatmul.f32.gmra.mxu0 %v6917
      %v6997 = vpop.f32.mrf.mxu0
      %v6998 = vadd.f32 0.0, %v6997
      %6999 = vdwg.mxu0
      %v7000 = vadd.f32 %v6886, %v6953
      %v7001 = vadd.f32 %v6887, %v6956
      %v7002 = vadd.f32 %v6888, %v6959
      %v7003 = vadd.f32 %v6889, %v6962
      %v7004 = vadd.f32 %v6890, %v6965
      %v7005 = vadd.f32 %v6891, %v6968
      %v7006 = vadd.f32 %v6892, %v6971
      %v7007 = vadd.f32 %v6893, %v6974
      %v7008 = vadd.f32 %v6894, %v6977
      %v7009 = vadd.f32 %v6895, %v6980
      %v7010 = vadd.f32 %v6896, %v6983
      %v7011 = vadd.f32 %v6897, %v6986
      %v7012 = vadd.f32 %v6898, %v6989
      %v7013 = vadd.f32 %v6899, %v6992
      %v7014 = vadd.f32 %v6900, %v6995
      %v7015 = vadd.f32 %v6901, %v6998
      %7016 = vst [vmem:[%s304] sm:$0xff] %v7000
      %7017 = vst [vmem:[%s304 + $0x8] sm:$0xff] %v7001
      %7018 = vst [vmem:[%s304 + $0x10] sm:$0xff] %v7002
      %7019 = vst [vmem:[%s304 + $0x18] sm:$0xff] %v7003
      %7020 = vst [vmem:[%s304 + $0x20] sm:$0xff] %v7004
      %7021 = vst [vmem:[%s304 + $0x28] sm:$0xff] %v7005
      %7022 = vst [vmem:[%s304 + $0x30] sm:$0xff] %v7006
      %7023 = vst [vmem:[%s304 + $0x38] sm:$0xff] %v7007
      %7024 = vst [vmem:[%s304 + $0x40] sm:$0xff] %v7008
      %7025 = vst [vmem:[%s304 + $0x48] sm:$0xff] %v7009
      %7026 = vst [vmem:[%s304 + $0x50] sm:$0xff] %v7010
      %7027 = vst [vmem:[%s304 + $0x58] sm:$0xff] %v7011
      %7028 = vst [vmem:[%s304 + $0x60] sm:$0xff] %v7012
      %7029 = vst [vmem:[%s304 + $0x68] sm:$0xff] %v7013
      %7030 = vst [vmem:[%s304 + $0x70] sm:$0xff] %v7014
      %7031 = vst [vmem:[%s304 + $0x78] sm:$0xff] %v7015
      %v7032 = vadd.f32 %v2198, %v522
      %v7033 = vadd.f32 %v2199, %v524
      %v7034 = vadd.f32 %v2200, %v526
      %v7035 = vadd.f32 %v2201, %v528
      %v7036 = vadd.f32 %v2202, %v530
      %v7037 = vadd.f32 %v2203, %v532
      %v7038 = vadd.f32 %v2204, %v534
      %v7039 = vadd.f32 %v2205, %v536
      %v7040 = vadd.f32 %v2206, %v538
      %v7041 = vadd.f32 %v2207, %v540
      %v7042 = vadd.f32 %v2208, %v542
      %v7043 = vadd.f32 %v2209, %v544
      %v7044 = vadd.f32 %v2210, %v546
      %v7045 = vadd.f32 %v2211, %v548
      %v7046 = vadd.f32 %v2212, %v550
      %v7047 = vadd.f32 %v2213, %v552
      %v7048 = vmax.f32 %v7032, 0.0
      %v7049 = vmax.f32 %v7033, 0.0
      %v7050 = vmax.f32 %v7034, 0.0
      %v7051 = vmax.f32 %v7035, 0.0
      %v7052 = vmax.f32 %v7036, 0.0
      %v7053 = vmax.f32 %v7037, 0.0
      %v7054 = vmax.f32 %v7038, 0.0
      %v7055 = vmax.f32 %v7039, 0.0
      %v7056 = vmax.f32 %v7040, 0.0
      %v7057 = vmax.f32 %v7041, 0.0
      %v7058 = vmax.f32 %v7042, 0.0
      %v7059 = vmax.f32 %v7043, 0.0
      %v7060 = vmax.f32 %v7044, 0.0
      %v7061 = vmax.f32 %v7045, 0.0
      %v7062 = vmax.f32 %v7046, 0.0
      %v7063 = vmax.f32 %v7047, 0.0
      %v7064 = vmin.f32 %v7048, 17.0
      %v7065 = vmin.f32 %v7049, 17.0
      %v7066 = vmin.f32 %v7050, 17.0
      %v7067 = vmin.f32 %v7051, 17.0
      %v7068 = vmin.f32 %v7052, 17.0
      %v7069 = vmin.f32 %v7053, 17.0
      %v7070 = vmin.f32 %v7054, 17.0
      %v7071 = vmin.f32 %v7055, 17.0
      %v7072 = vmin.f32 %v7056, 17.0
      %v7073 = vmin.f32 %v7057, 17.0
      %v7074 = vmin.f32 %v7058, 17.0
      %v7075 = vmin.f32 %v7059, 17.0
      %v7076 = vmin.f32 %v7060, 17.0
      %v7077 = vmin.f32 %v7061, 17.0
      %v7078 = vmin.f32 %v7062, 17.0
      %v7079 = vmin.f32 %v7063, 17.0
      %7080 = vrot.lane.b32.xlu0 %v329, 112
      %v7081 = vpop.permute.xlu0 %7080
      %7082 = vrot.lane.b32.xlu0 %v330, 112
      %v7083 = vpop.permute.xlu0 %7082
      %7084 = vrot.lane.b32.xlu0 %v331, 112
      %v7085 = vpop.permute.xlu0 %7084
      %7086 = vrot.lane.b32.xlu0 %v332, 112
      %v7087 = vpop.permute.xlu0 %7086
      %7088 = vrot.lane.b32.xlu0 %v333, 112
      %v7089 = vpop.permute.xlu0 %7088
      %7090 = vrot.lane.b32.xlu0 %v334, 112
      %v7091 = vpop.permute.xlu0 %7090
      %7092 = vrot.lane.b32.xlu0 %v335, 112
      %v7093 = vpop.permute.xlu0 %7092
      %7094 = vrot.lane.b32.xlu0 %v336, 112
      %v7095 = vpop.permute.xlu0 %7094
      %7096 = vrot.lane.b32.xlu0 %v337, 112
      %v7097 = vpop.permute.xlu0 %7096
      %7098 = vrot.lane.b32.xlu0 %v338, 112
      %v7099 = vpop.permute.xlu0 %7098
      %7100 = vrot.lane.b32.xlu0 %v339, 112
      %v7101 = vpop.permute.xlu0 %7100
      %7102 = vrot.lane.b32.xlu0 %v340, 112
      %v7103 = vpop.permute.xlu0 %7102
      %7104 = vrot.lane.b32.xlu0 %v341, 112
      %v7105 = vpop.permute.xlu0 %7104
      %7106 = vrot.lane.b32.xlu0 %v342, 112
      %v7107 = vpop.permute.xlu0 %7106
      %7108 = vrot.lane.b32.xlu0 %v343, 112
      %v7109 = vpop.permute.xlu0 %7108
      %7110 = vrot.lane.b32.xlu0 %v344, 112
      %v7111 = vpop.permute.xlu0 %7110
      %v7128 = vadd.f32 %v2198, %v7081
      %v7129 = vadd.f32 %v2199, %v7083
      %v7130 = vadd.f32 %v2200, %v7085
      %v7131 = vadd.f32 %v2201, %v7087
      %v7132 = vadd.f32 %v2202, %v7089
      %v7133 = vadd.f32 %v2203, %v7091
      %v7134 = vadd.f32 %v2204, %v7093
      %v7135 = vadd.f32 %v2205, %v7095
      %v7136 = vadd.f32 %v2206, %v7097
      %v7137 = vadd.f32 %v2207, %v7099
      %v7138 = vadd.f32 %v2208, %v7101
      %v7139 = vadd.f32 %v2209, %v7103
      %v7140 = vadd.f32 %v2210, %v7105
      %v7141 = vadd.f32 %v2211, %v7107
      %v7142 = vadd.f32 %v2212, %v7109
      %v7143 = vadd.f32 %v2213, %v7111
      %v7144 = vmax.f32 %v7128, 0.0
      %v7145 = vmax.f32 %v7129, 0.0
      %v7146 = vmax.f32 %v7130, 0.0
      %v7147 = vmax.f32 %v7131, 0.0
      %v7148 = vmax.f32 %v7132, 0.0
      %v7149 = vmax.f32 %v7133, 0.0
      %v7150 = vmax.f32 %v7134, 0.0
      %v7151 = vmax.f32 %v7135, 0.0
      %v7152 = vmax.f32 %v7136, 0.0
      %v7153 = vmax.f32 %v7137, 0.0
      %v7154 = vmax.f32 %v7138, 0.0
      %v7155 = vmax.f32 %v7139, 0.0
      %v7156 = vmax.f32 %v7140, 0.0
      %v7157 = vmax.f32 %v7141, 0.0
      %v7158 = vmax.f32 %v7142, 0.0
      %v7159 = vmax.f32 %v7143, 0.0
      %v7160 = vmin.f32 %v7144, 17.0
      %v7161 = vmin.f32 %v7145, 17.0
      %v7162 = vmin.f32 %v7146, 17.0
      %v7163 = vmin.f32 %v7147, 17.0
      %v7164 = vmin.f32 %v7148, 17.0
      %v7165 = vmin.f32 %v7149, 17.0
      %v7166 = vmin.f32 %v7150, 17.0
      %v7167 = vmin.f32 %v7151, 17.0
      %v7168 = vmin.f32 %v7152, 17.0
      %v7169 = vmin.f32 %v7153, 17.0
      %v7170 = vmin.f32 %v7154, 17.0
      %v7171 = vmin.f32 %v7155, 17.0
      %v7172 = vmin.f32 %v7156, 17.0
      %v7173 = vmin.f32 %v7157, 17.0
      %v7174 = vmin.f32 %v7158, 17.0
      %v7175 = vmin.f32 %v7159, 17.0
      %7177 = vset.pattern.permute.xlu0 0
      %7178 = vperm.xlu0 %7177, %v7064
      %v7179 = vpop.permute.xlu0 %7178
      %7182 = vset.pattern.permute.xlu0 0
      %7183 = vperm.xlu0 %7182, %v7065
      %v7184 = vpop.permute.xlu0 %7183
      %7187 = vset.pattern.permute.xlu0 0
      %7188 = vperm.xlu0 %7187, %v7066
      %v7189 = vpop.permute.xlu0 %7188
      %7192 = vset.pattern.permute.xlu0 0
      %7193 = vperm.xlu0 %7192, %v7067
      %v7194 = vpop.permute.xlu0 %7193
      %7197 = vset.pattern.permute.xlu0 0
      %7198 = vperm.xlu0 %7197, %v7068
      %v7199 = vpop.permute.xlu0 %7198
      %7202 = vset.pattern.permute.xlu0 0
      %7203 = vperm.xlu0 %7202, %v7069
      %v7204 = vpop.permute.xlu0 %7203
      %7207 = vset.pattern.permute.xlu0 0
      %7208 = vperm.xlu0 %7207, %v7070
      %v7209 = vpop.permute.xlu0 %7208
      %7212 = vset.pattern.permute.xlu0 0
      %7213 = vperm.xlu0 %7212, %v7071
      %v7214 = vpop.permute.xlu0 %7213
      %7217 = vset.pattern.permute.xlu0 0
      %7218 = vperm.xlu0 %7217, %v7072
      %v7219 = vpop.permute.xlu0 %7218
      %7222 = vset.pattern.permute.xlu0 0
      %7223 = vperm.xlu0 %7222, %v7073
      %v7224 = vpop.permute.xlu0 %7223
      %7227 = vset.pattern.permute.xlu0 0
      %7228 = vperm.xlu0 %7227, %v7074
      %v7229 = vpop.permute.xlu0 %7228
      %7232 = vset.pattern.permute.xlu0 0
      %7233 = vperm.xlu0 %7232, %v7075
      %v7234 = vpop.permute.xlu0 %7233
      %7237 = vset.pattern.permute.xlu0 0
      %7238 = vperm.xlu0 %7237, %v7076
      %v7239 = vpop.permute.xlu0 %7238
      %7242 = vset.pattern.permute.xlu0 0
      %7243 = vperm.xlu0 %7242, %v7077
      %v7244 = vpop.permute.xlu0 %7243
      %7247 = vset.pattern.permute.xlu0 0
      %7248 = vperm.xlu0 %7247, %v7078
      %v7249 = vpop.permute.xlu0 %7248
      %7252 = vset.pattern.permute.xlu0 0
      %7253 = vperm.xlu0 %7252, %v7079
      %v7254 = vpop.permute.xlu0 %7253
      %v7256 = vsub.f32 %v312, %v7179
      %v7257 = vsub.f32 %v312, %v7184
      %v7258 = vsub.f32 %v312, %v7189
      %v7259 = vsub.f32 %v312, %v7194
      %v7260 = vsub.f32 %v312, %v7199
      %v7261 = vsub.f32 %v312, %v7204
      %v7262 = vsub.f32 %v312, %v7209
      %v7263 = vsub.f32 %v312, %v7214
      %v7264 = vsub.f32 %v312, %v7219
      %v7265 = vsub.f32 %v312, %v7224
      %v7266 = vsub.f32 %v312, %v7229
      %v7267 = vsub.f32 %v312, %v7234
      %v7268 = vsub.f32 %v312, %v7239
      %v7269 = vsub.f32 %v312, %v7244
      %v7270 = vsub.f32 %v312, %v7249
      %v7271 = vsub.f32 %v312, %v7254
      %v7272 = vand.u32 2147483647, %v7256
      %v7273 = vand.u32 2147483647, %v7257
      %v7274 = vand.u32 2147483647, %v7258
      %v7275 = vand.u32 2147483647, %v7259
      %v7276 = vand.u32 2147483647, %v7260
      %v7277 = vand.u32 2147483647, %v7261
      %v7278 = vand.u32 2147483647, %v7262
      %v7279 = vand.u32 2147483647, %v7263
      %v7280 = vand.u32 2147483647, %v7264
      %v7281 = vand.u32 2147483647, %v7265
      %v7282 = vand.u32 2147483647, %v7266
      %v7283 = vand.u32 2147483647, %v7267
      %v7284 = vand.u32 2147483647, %v7268
      %v7285 = vand.u32 2147483647, %v7269
      %v7286 = vand.u32 2147483647, %v7270
      %v7287 = vand.u32 2147483647, %v7271
      %v7288 = vsub.f32 1.0, %v7272
      %v7289 = vsub.f32 1.0, %v7273
      %v7290 = vsub.f32 1.0, %v7274
      %v7291 = vsub.f32 1.0, %v7275
      %v7292 = vsub.f32 1.0, %v7276
      %v7293 = vsub.f32 1.0, %v7277
      %v7294 = vsub.f32 1.0, %v7278
      %v7295 = vsub.f32 1.0, %v7279
      %v7296 = vsub.f32 1.0, %v7280
      %v7297 = vsub.f32 1.0, %v7281
      %v7298 = vsub.f32 1.0, %v7282
      %v7299 = vsub.f32 1.0, %v7283
      %v7300 = vsub.f32 1.0, %v7284
      %v7301 = vsub.f32 1.0, %v7285
      %v7302 = vsub.f32 1.0, %v7286
      %v7303 = vsub.f32 1.0, %v7287
      %v7304 = vmax.f32 %v7288, 0.0
      %v7305 = vmax.f32 %v7289, 0.0
      %v7306 = vmax.f32 %v7290, 0.0
      %v7307 = vmax.f32 %v7291, 0.0
      %v7308 = vmax.f32 %v7292, 0.0
      %v7309 = vmax.f32 %v7293, 0.0
      %v7310 = vmax.f32 %v7294, 0.0
      %v7311 = vmax.f32 %v7295, 0.0
      %v7312 = vmax.f32 %v7296, 0.0
      %v7313 = vmax.f32 %v7297, 0.0
      %v7314 = vmax.f32 %v7298, 0.0
      %v7315 = vmax.f32 %v7299, 0.0
      %v7316 = vmax.f32 %v7300, 0.0
      %v7317 = vmax.f32 %v7301, 0.0
      %v7318 = vmax.f32 %v7302, 0.0
      %v7319 = vmax.f32 %v7303, 0.0
      %7320 = vset.pattern.permute.xlu0 26
      %7321 = vperm.xlu0 %7320, %v409
      %v7322 = vpop.permute.xlu0 %7321
      %7324 = vset.pattern.permute.xlu0 26
      %7325 = vperm.xlu0 %7324, %v410
      %v7326 = vpop.permute.xlu0 %7325
      %7328 = vset.pattern.permute.xlu0 26
      %7329 = vperm.xlu0 %7328, %v411
      %v7330 = vpop.permute.xlu0 %7329
      %7332 = vset.pattern.permute.xlu0 26
      %7333 = vperm.xlu0 %7332, %v412
      %v7334 = vpop.permute.xlu0 %7333
      %7336 = vset.pattern.permute.xlu0 26
      %7337 = vperm.xlu0 %7336, %v413
      %v7338 = vpop.permute.xlu0 %7337
      %7340 = vset.pattern.permute.xlu0 26
      %7341 = vperm.xlu0 %7340, %v414
      %v7342 = vpop.permute.xlu0 %7341
      %7344 = vset.pattern.permute.xlu0 26
      %7345 = vperm.xlu0 %7344, %v415
      %v7346 = vpop.permute.xlu0 %7345
      %7348 = vset.pattern.permute.xlu0 26
      %7349 = vperm.xlu0 %7348, %v416
      %v7350 = vpop.permute.xlu0 %7349
      %7352 = vset.pattern.permute.xlu0 26
      %7353 = vperm.xlu0 %7352, %v417
      %v7354 = vpop.permute.xlu0 %7353
      %7356 = vset.pattern.permute.xlu0 26
      %7357 = vperm.xlu0 %7356, %v418
      %v7358 = vpop.permute.xlu0 %7357
      %7360 = vset.pattern.permute.xlu0 26
      %7361 = vperm.xlu0 %7360, %v419
      %v7362 = vpop.permute.xlu0 %7361
      %7364 = vset.pattern.permute.xlu0 26
      %7365 = vperm.xlu0 %7364, %v420
      %v7366 = vpop.permute.xlu0 %7365
      %7368 = vset.pattern.permute.xlu0 26
      %7369 = vperm.xlu0 %7368, %v421
      %v7370 = vpop.permute.xlu0 %7369
      %7372 = vset.pattern.permute.xlu0 26
      %7373 = vperm.xlu0 %7372, %v422
      %v7374 = vpop.permute.xlu0 %7373
      %7376 = vset.pattern.permute.xlu0 26
      %7377 = vperm.xlu0 %7376, %v423
      %v7378 = vpop.permute.xlu0 %7377
      %7380 = vset.pattern.permute.xlu0 26
      %7381 = vperm.xlu0 %7380, %v424
      %v7382 = vpop.permute.xlu0 %7381
      %v7384 = vmul.f32 %v7304, %v7322
      %v7385 = vmul.f32 %v7305, %v7326
      %v7386 = vmul.f32 %v7306, %v7330
      %v7387 = vmul.f32 %v7307, %v7334
      %v7388 = vmul.f32 %v7308, %v7338
      %v7389 = vmul.f32 %v7309, %v7342
      %v7390 = vmul.f32 %v7310, %v7346
      %v7391 = vmul.f32 %v7311, %v7350
      %v7392 = vmul.f32 %v7312, %v7354
      %v7393 = vmul.f32 %v7313, %v7358
      %v7394 = vmul.f32 %v7314, %v7362
      %v7395 = vmul.f32 %v7315, %v7366
      %v7396 = vmul.f32 %v7316, %v7370
      %v7397 = vmul.f32 %v7317, %v7374
      %v7398 = vmul.f32 %v7318, %v7378
      %v7399 = vmul.f32 %v7319, %v7382
      %v7401 = vsel %vm857, %v7384, 0
      %v7404 = vsel %vm857, %v7385, 0
      %v7407 = vsel %vm857, %v7386, 0
      %v7410 = vsel %vm857, %v7387, 0
      %v7413 = vsel %vm857, %v7388, 0
      %v7416 = vsel %vm857, %v7389, 0
      %v7419 = vsel %vm857, %v7390, 0
      %v7422 = vsel %vm857, %v7391, 0
      %v7425 = vsel %vm857, %v7392, 0
      %v7428 = vsel %vm857, %v7393, 0
      %v7431 = vsel %vm857, %v7394, 0
      %v7434 = vsel %vm857, %v7395, 0
      %v7437 = vsel %vm857, %v7396, 0
      %v7440 = vsel %vm857, %v7397, 0
      %v7443 = vsel %vm857, %v7398, 0
      %v7446 = vsel %vm857, %v7399, 0
      %7448 = vmatpush.msra.mxu0 0.0
      %7449 = vmatpush.msra.mxu0 0.0
      %7450 = vmatpush.msra.mxu0 0.0
      %7451 = vmatpush.msra.mxu0 0.0
      %7452 = vmatpush.msra.mxu0 0.0
      %7453 = vmatpush.msra.mxu0 0.0
      %7454 = vmatpush.msra.mxu0 0.0
      %7455 = vmatpush.msra.mxu0 0.0
      %7456 = vmatpush.msra.mxu0 0.0
      %7457 = vmatpush.msra.mxu0 0.0
      %7458 = vmatpush.msra.mxu0 0.0
      %7459 = vmatpush.msra.mxu0 0.0
      %7460 = vmatpush.msra.mxu0 0.0
      %7461 = vmatpush.msra.mxu0 %v908
      %7462 = vmatpush.msra.mxu0 %v307
      %7463 = vmatpush.msra.mxu0 %v306
      %7464 = vmatmul.f32.gmra.mxu0 %v7401
      %v7465 = vpop.f32.mrf.mxu0
      %v7466 = vadd.f32 0.0, %v7465
      %7467 = vmatmul.f32.gmra.mxu0 %v7404
      %v7468 = vpop.f32.mrf.mxu0
      %v7469 = vadd.f32 0.0, %v7468
      %7470 = vmatmul.f32.gmra.mxu0 %v7407
      %v7471 = vpop.f32.mrf.mxu0
      %v7472 = vadd.f32 0.0, %v7471
      %7473 = vmatmul.f32.gmra.mxu0 %v7410
      %v7474 = vpop.f32.mrf.mxu0
      %v7475 = vadd.f32 0.0, %v7474
      %7476 = vmatmul.f32.gmra.mxu0 %v7413
      %v7477 = vpop.f32.mrf.mxu0
      %v7478 = vadd.f32 0.0, %v7477
      %7479 = vmatmul.f32.gmra.mxu0 %v7416
      %v7480 = vpop.f32.mrf.mxu0
      %v7481 = vadd.f32 0.0, %v7480
      %7482 = vmatmul.f32.gmra.mxu0 %v7419
      %v7483 = vpop.f32.mrf.mxu0
      %v7484 = vadd.f32 0.0, %v7483
      %7485 = vmatmul.f32.gmra.mxu0 %v7422
      %v7486 = vpop.f32.mrf.mxu0
      %v7487 = vadd.f32 0.0, %v7486
      %7488 = vmatmul.f32.gmra.mxu0 %v7425
      %v7489 = vpop.f32.mrf.mxu0
      %v7490 = vadd.f32 0.0, %v7489
      %7491 = vmatmul.f32.gmra.mxu0 %v7428
      %v7492 = vpop.f32.mrf.mxu0
      %v7493 = vadd.f32 0.0, %v7492
      %7494 = vmatmul.f32.gmra.mxu0 %v7431
      %v7495 = vpop.f32.mrf.mxu0
      %v7496 = vadd.f32 0.0, %v7495
      %7497 = vmatmul.f32.gmra.mxu0 %v7434
      %v7498 = vpop.f32.mrf.mxu0
      %v7499 = vadd.f32 0.0, %v7498
      %7500 = vmatmul.f32.gmra.mxu0 %v7437
      %v7501 = vpop.f32.mrf.mxu0
      %v7502 = vadd.f32 0.0, %v7501
      %7503 = vmatmul.f32.gmra.mxu0 %v7440
      %v7504 = vpop.f32.mrf.mxu0
      %v7505 = vadd.f32 0.0, %v7504
      %7506 = vmatmul.f32.gmra.mxu0 %v7443
      %v7507 = vpop.f32.mrf.mxu0
      %v7508 = vadd.f32 0.0, %v7507
      %7509 = vmatmul.f32.gmra.mxu0 %v7446
      %v7510 = vpop.f32.mrf.mxu0
      %v7511 = vadd.f32 0.0, %v7510
      %7512 = vdwg.mxu0
      %7514 = vset.pattern.permute.xlu0 1
      %7515 = vperm.xlu0 %7514, %v7160
      %v7516 = vpop.permute.xlu0 %7515
      %7519 = vset.pattern.permute.xlu0 1
      %7520 = vperm.xlu0 %7519, %v7161
      %v7521 = vpop.permute.xlu0 %7520
      %7524 = vset.pattern.permute.xlu0 1
      %7525 = vperm.xlu0 %7524, %v7162
      %v7526 = vpop.permute.xlu0 %7525
      %7529 = vset.pattern.permute.xlu0 1
      %7530 = vperm.xlu0 %7529, %v7163
      %v7531 = vpop.permute.xlu0 %7530
      %7534 = vset.pattern.permute.xlu0 1
      %7535 = vperm.xlu0 %7534, %v7164
      %v7536 = vpop.permute.xlu0 %7535
      %7539 = vset.pattern.permute.xlu0 1
      %7540 = vperm.xlu0 %7539, %v7165
      %v7541 = vpop.permute.xlu0 %7540
      %7544 = vset.pattern.permute.xlu0 1
      %7545 = vperm.xlu0 %7544, %v7166
      %v7546 = vpop.permute.xlu0 %7545
      %7549 = vset.pattern.permute.xlu0 1
      %7550 = vperm.xlu0 %7549, %v7167
      %v7551 = vpop.permute.xlu0 %7550
      %7554 = vset.pattern.permute.xlu0 1
      %7555 = vperm.xlu0 %7554, %v7168
      %v7556 = vpop.permute.xlu0 %7555
      %7559 = vset.pattern.permute.xlu0 1
      %7560 = vperm.xlu0 %7559, %v7169
      %v7561 = vpop.permute.xlu0 %7560
      %7564 = vset.pattern.permute.xlu0 1
      %7565 = vperm.xlu0 %7564, %v7170
      %v7566 = vpop.permute.xlu0 %7565
      %7569 = vset.pattern.permute.xlu0 1
      %7570 = vperm.xlu0 %7569, %v7171
      %v7571 = vpop.permute.xlu0 %7570
      %7574 = vset.pattern.permute.xlu0 1
      %7575 = vperm.xlu0 %7574, %v7172
      %v7576 = vpop.permute.xlu0 %7575
      %7579 = vset.pattern.permute.xlu0 1
      %7580 = vperm.xlu0 %7579, %v7173
      %v7581 = vpop.permute.xlu0 %7580
      %7584 = vset.pattern.permute.xlu0 1
      %7585 = vperm.xlu0 %7584, %v7174
      %v7586 = vpop.permute.xlu0 %7585
      %7589 = vset.pattern.permute.xlu0 1
      %7590 = vperm.xlu0 %7589, %v7175
      %v7591 = vpop.permute.xlu0 %7590
      %v7593 = vsub.f32 %v976, %v7516
      %v7594 = vsub.f32 %v976, %v7521
      %v7595 = vsub.f32 %v976, %v7526
      %v7596 = vsub.f32 %v976, %v7531
      %v7597 = vsub.f32 %v976, %v7536
      %v7598 = vsub.f32 %v976, %v7541
      %v7599 = vsub.f32 %v976, %v7546
      %v7600 = vsub.f32 %v976, %v7551
      %v7601 = vsub.f32 %v976, %v7556
      %v7602 = vsub.f32 %v976, %v7561
      %v7603 = vsub.f32 %v976, %v7566
      %v7604 = vsub.f32 %v976, %v7571
      %v7605 = vsub.f32 %v976, %v7576
      %v7606 = vsub.f32 %v976, %v7581
      %v7607 = vsub.f32 %v976, %v7586
      %v7608 = vsub.f32 %v976, %v7591
      %v7609 = vand.u32 2147483647, %v7593
      %v7610 = vand.u32 2147483647, %v7594
      %v7611 = vand.u32 2147483647, %v7595
      %v7612 = vand.u32 2147483647, %v7596
      %v7613 = vand.u32 2147483647, %v7597
      %v7614 = vand.u32 2147483647, %v7598
      %v7615 = vand.u32 2147483647, %v7599
      %v7616 = vand.u32 2147483647, %v7600
      %v7617 = vand.u32 2147483647, %v7601
      %v7618 = vand.u32 2147483647, %v7602
      %v7619 = vand.u32 2147483647, %v7603
      %v7620 = vand.u32 2147483647, %v7604
      %v7621 = vand.u32 2147483647, %v7605
      %v7622 = vand.u32 2147483647, %v7606
      %v7623 = vand.u32 2147483647, %v7607
      %v7624 = vand.u32 2147483647, %v7608
      %v7625 = vsub.f32 1.0, %v7609
      %v7626 = vsub.f32 1.0, %v7610
      %v7627 = vsub.f32 1.0, %v7611
      %v7628 = vsub.f32 1.0, %v7612
      %v7629 = vsub.f32 1.0, %v7613
      %v7630 = vsub.f32 1.0, %v7614
      %v7631 = vsub.f32 1.0, %v7615
      %v7632 = vsub.f32 1.0, %v7616
      %v7633 = vsub.f32 1.0, %v7617
      %v7634 = vsub.f32 1.0, %v7618
      %v7635 = vsub.f32 1.0, %v7619
      %v7636 = vsub.f32 1.0, %v7620
      %v7637 = vsub.f32 1.0, %v7621
      %v7638 = vsub.f32 1.0, %v7622
      %v7639 = vsub.f32 1.0, %v7623
      %v7640 = vsub.f32 1.0, %v7624
      %v7641 = vmax.f32 %v7625, 0.0
      %v7642 = vmax.f32 %v7626, 0.0
      %v7643 = vmax.f32 %v7627, 0.0
      %v7644 = vmax.f32 %v7628, 0.0
      %v7645 = vmax.f32 %v7629, 0.0
      %v7646 = vmax.f32 %v7630, 0.0
      %v7647 = vmax.f32 %v7631, 0.0
      %v7648 = vmax.f32 %v7632, 0.0
      %v7649 = vmax.f32 %v7633, 0.0
      %v7650 = vmax.f32 %v7634, 0.0
      %v7651 = vmax.f32 %v7635, 0.0
      %v7652 = vmax.f32 %v7636, 0.0
      %v7653 = vmax.f32 %v7637, 0.0
      %v7654 = vmax.f32 %v7638, 0.0
      %v7655 = vmax.f32 %v7639, 0.0
      %v7656 = vmax.f32 %v7640, 0.0
      %v7657 = vld [vmem:[%s304] sm:$0xff]
      %v7658 = vld [vmem:[%s304 + $0x8] sm:$0xff]
      %v7659 = vld [vmem:[%s304 + $0x10] sm:$0xff]
      %v7660 = vld [vmem:[%s304 + $0x18] sm:$0xff]
      %v7661 = vld [vmem:[%s304 + $0x20] sm:$0xff]
      %v7662 = vld [vmem:[%s304 + $0x28] sm:$0xff]
      %v7663 = vld [vmem:[%s304 + $0x30] sm:$0xff]
      %v7664 = vld [vmem:[%s304 + $0x38] sm:$0xff]
      %v7665 = vld [vmem:[%s304 + $0x40] sm:$0xff]
      %v7666 = vld [vmem:[%s304 + $0x48] sm:$0xff]
      %v7667 = vld [vmem:[%s304 + $0x50] sm:$0xff]
      %v7668 = vld [vmem:[%s304 + $0x58] sm:$0xff]
      %v7669 = vld [vmem:[%s304 + $0x60] sm:$0xff]
      %v7670 = vld [vmem:[%s304 + $0x68] sm:$0xff]
      %v7671 = vld [vmem:[%s304 + $0x70] sm:$0xff]
      %v7672 = vld [vmem:[%s304 + $0x78] sm:$0xff]
      %v7673 = vmul.f32 %v7641, %v7466
      %v7674 = vmul.f32 %v7642, %v7469
      %v7675 = vmul.f32 %v7643, %v7472
      %v7676 = vmul.f32 %v7644, %v7475
      %v7677 = vmul.f32 %v7645, %v7478
      %v7678 = vmul.f32 %v7646, %v7481
      %v7679 = vmul.f32 %v7647, %v7484
      %v7680 = vmul.f32 %v7648, %v7487
      %v7681 = vmul.f32 %v7649, %v7490
      %v7682 = vmul.f32 %v7650, %v7493
      %v7683 = vmul.f32 %v7651, %v7496
      %v7684 = vmul.f32 %v7652, %v7499
      %v7685 = vmul.f32 %v7653, %v7502
      %v7686 = vmul.f32 %v7654, %v7505
      %v7687 = vmul.f32 %v7655, %v7508
      %v7688 = vmul.f32 %v7656, %v7511
      %s7689 = scalar_lea.vmem %s3, 1024
      %v7690 = vld [vmem:[%s7689] sm:$0xff]
      %v7691 = vld [vmem:[%s7689 + $0x8] sm:$0xff]
      %v7692 = vld [vmem:[%s7689 + $0x10] sm:$0xff]
      %v7693 = vld [vmem:[%s7689 + $0x18] sm:$0xff]
      %v7694 = vld [vmem:[%s7689 + $0x20] sm:$0xff]
      %v7695 = vld [vmem:[%s7689 + $0x28] sm:$0xff]
      %v7696 = vld [vmem:[%s7689 + $0x30] sm:$0xff]
      %v7697 = vld [vmem:[%s7689 + $0x38] sm:$0xff]
      %v7698 = vld [vmem:[%s7689 + $0x40] sm:$0xff]
      %v7699 = vld [vmem:[%s7689 + $0x48] sm:$0xff]
      %v7700 = vld [vmem:[%s7689 + $0x50] sm:$0xff]
      %v7701 = vld [vmem:[%s7689 + $0x58] sm:$0xff]
      %v7702 = vld [vmem:[%s7689 + $0x60] sm:$0xff]
      %v7703 = vld [vmem:[%s7689 + $0x68] sm:$0xff]
      %v7704 = vld [vmem:[%s7689 + $0x70] sm:$0xff]
      %v7705 = vld [vmem:[%s7689 + $0x78] sm:$0xff]
      %7706 = vmatpush.msra.mxu0 %v7705
      %7707 = vmatpush.msra.mxu0 %v7704
      %7708 = vmatpush.msra.mxu0 %v7703
      %7709 = vmatpush.msra.mxu0 %v7702
      %7710 = vmatpush.msra.mxu0 %v7701
      %7711 = vmatpush.msra.mxu0 %v7700
      %7712 = vmatpush.msra.mxu0 %v7699
      %7713 = vmatpush.msra.mxu0 %v7698
      %7714 = vmatpush.msra.mxu0 %v7697
      %7715 = vmatpush.msra.mxu0 %v7696
      %7716 = vmatpush.msra.mxu0 %v7695
      %7717 = vmatpush.msra.mxu0 %v7694
      %7718 = vmatpush.msra.mxu0 %v7693
      %7719 = vmatpush.msra.mxu0 %v7692
      %7720 = vmatpush.msra.mxu0 %v7691
      %7721 = vmatpush.msra.mxu0 %v7690
      %7722 = vmatmul.f32.gmra.mxu0 %v7673
      %v7723 = vpop.f32.mrf.mxu0
      %v7724 = vadd.f32 0.0, %v7723
      %7725 = vmatmul.f32.gmra.mxu0 %v7674
      %v7726 = vpop.f32.mrf.mxu0
      %v7727 = vadd.f32 0.0, %v7726
      %7728 = vmatmul.f32.gmra.mxu0 %v7675
      %v7729 = vpop.f32.mrf.mxu0
      %v7730 = vadd.f32 0.0, %v7729
      %7731 = vmatmul.f32.gmra.mxu0 %v7676
      %v7732 = vpop.f32.mrf.mxu0
      %v7733 = vadd.f32 0.0, %v7732
      %7734 = vmatmul.f32.gmra.mxu0 %v7677
      %v7735 = vpop.f32.mrf.mxu0
      %v7736 = vadd.f32 0.0, %v7735
      %7737 = vmatmul.f32.gmra.mxu0 %v7678
      %v7738 = vpop.f32.mrf.mxu0
      %v7739 = vadd.f32 0.0, %v7738
      %7740 = vmatmul.f32.gmra.mxu0 %v7679
      %v7741 = vpop.f32.mrf.mxu0
      %v7742 = vadd.f32 0.0, %v7741
      %7743 = vmatmul.f32.gmra.mxu0 %v7680
      %v7744 = vpop.f32.mrf.mxu0
      %v7745 = vadd.f32 0.0, %v7744
      %7746 = vmatmul.f32.gmra.mxu0 %v7681
      %v7747 = vpop.f32.mrf.mxu0
      %v7748 = vadd.f32 0.0, %v7747
      %7749 = vmatmul.f32.gmra.mxu0 %v7682
      %v7750 = vpop.f32.mrf.mxu0
      %v7751 = vadd.f32 0.0, %v7750
      %7752 = vmatmul.f32.gmra.mxu0 %v7683
      %v7753 = vpop.f32.mrf.mxu0
      %v7754 = vadd.f32 0.0, %v7753
      %7755 = vmatmul.f32.gmra.mxu0 %v7684
      %v7756 = vpop.f32.mrf.mxu0
      %v7757 = vadd.f32 0.0, %v7756
      %7758 = vmatmul.f32.gmra.mxu0 %v7685
      %v7759 = vpop.f32.mrf.mxu0
      %v7760 = vadd.f32 0.0, %v7759
      %7761 = vmatmul.f32.gmra.mxu0 %v7686
      %v7762 = vpop.f32.mrf.mxu0
      %v7763 = vadd.f32 0.0, %v7762
      %7764 = vmatmul.f32.gmra.mxu0 %v7687
      %v7765 = vpop.f32.mrf.mxu0
      %v7766 = vadd.f32 0.0, %v7765
      %7767 = vmatmul.f32.gmra.mxu0 %v7688
      %v7768 = vpop.f32.mrf.mxu0
      %v7769 = vadd.f32 0.0, %v7768
      %7770 = vdwg.mxu0
      %v7771 = vadd.f32 %v7657, %v7724
      %v7772 = vadd.f32 %v7658, %v7727
      %v7773 = vadd.f32 %v7659, %v7730
      %v7774 = vadd.f32 %v7660, %v7733
      %v7775 = vadd.f32 %v7661, %v7736
      %v7776 = vadd.f32 %v7662, %v7739
      %v7777 = vadd.f32 %v7663, %v7742
      %v7778 = vadd.f32 %v7664, %v7745
      %v7779 = vadd.f32 %v7665, %v7748
      %v7780 = vadd.f32 %v7666, %v7751
      %v7781 = vadd.f32 %v7667, %v7754
      %v7782 = vadd.f32 %v7668, %v7757
      %v7783 = vadd.f32 %v7669, %v7760
      %v7784 = vadd.f32 %v7670, %v7763
      %v7785 = vadd.f32 %v7671, %v7766
      %v7786 = vadd.f32 %v7672, %v7769
      %7787 = vst [vmem:[%s304] sm:$0xff] %v7771
      %7788 = vst [vmem:[%s304 + $0x8] sm:$0xff] %v7772
      %7789 = vst [vmem:[%s304 + $0x10] sm:$0xff] %v7773
      %7790 = vst [vmem:[%s304 + $0x18] sm:$0xff] %v7774
      %7791 = vst [vmem:[%s304 + $0x20] sm:$0xff] %v7775
      %7792 = vst [vmem:[%s304 + $0x28] sm:$0xff] %v7776
      %7793 = vst [vmem:[%s304 + $0x30] sm:$0xff] %v7777
      %7794 = vst [vmem:[%s304 + $0x38] sm:$0xff] %v7778
      %7795 = vst [vmem:[%s304 + $0x40] sm:$0xff] %v7779
      %7796 = vst [vmem:[%s304 + $0x48] sm:$0xff] %v7780
      %7797 = vst [vmem:[%s304 + $0x50] sm:$0xff] %v7781
      %7798 = vst [vmem:[%s304 + $0x58] sm:$0xff] %v7782
      %7799 = vst [vmem:[%s304 + $0x60] sm:$0xff] %v7783
      %7800 = vst [vmem:[%s304 + $0x68] sm:$0xff] %v7784
      %7801 = vst [vmem:[%s304 + $0x70] sm:$0xff] %v7785
      %7802 = vst [vmem:[%s304 + $0x78] sm:$0xff] %v7786
      %s7803 = smul.u32 16, %s21
      %p7804 = scmp.lt.s32.totalorder %s20, 1
      %s7805 = scalar_select %p7804, %s20, 1
      %p7806 = scmp.lt.s32.totalorder %s7803, 31
      %s7807 = scalar_select %p7806, %s7803, 31
      %s7808 = smul.addr %s7805, 32
      %s7809 = sadd.s32 %s7807, %s7808
      %s7810 = smul.addr %s7809, 8
      %s7811 = scalar_lea.vmem %s5, %s7810
      // Predicated region
      $region41: #{dcnv2_forward.1} parent=39 // pred_check
        %p7812 = pneg %p170
      $region42: #{dcnv2_forward.1} parent=39 // pred_check_branch
        %7814 = sbr.rel (%p7812) target = $region44
      $region43: #{dcnv2_forward.1} parent=39 // pred_region
        %s7815 = smul.u32 16, %s21
      $region44: #{dcnv2_forward.1} parent=39 // pred_fallthru
        _
    $region40: #{dcnv2_forward.1} parent=5 // pred_fallthru
      _
    %p7816 = scmp.le.s32.totalorder 2, %s11
    // Predicated region
    $region45: #{dcnv2_forward.1} parent=5 // pred_check
      %p7817 = pneg %p7816
    $region46: #{dcnv2_forward.1} parent=5 // pred_check_branch
      %7819 = sbr.rel (%p7817) target = $region48
    $region47: #{dcnv2_forward.1} parent=5 // pred_region
      %s7820 = ssub.s32 %s11, 2
      // Predicated region
      $region49: #{dcnv2_forward.1} parent=47 // pred_check
        %p7821 = pneg %p176
      $region50: #{dcnv2_forward.1} parent=47 // pred_check_branch
        %7823 = sbr.rel (%p7821) target = $region52
      $region51: #{dcnv2_forward.1} parent=47 // pred_region
        %s7824 = smul.u32 16, %s23
        %p7825 = scmp.lt.s32.totalorder %s22, 1
        %s7826 = scalar_select %p7825, %s22, 1
        %p7827 = scmp.lt.s32.totalorder %s7824, 31
        %s7828 = scalar_select %p7827, %s7824, 31
        %s7829 = smul.addr %s7826, 32
        %s7830 = sadd.s32 %s7828, %s7829
        %s7831 = smul.addr %s7830, 8
        %s7832 = scalar_lea.vmem %s5, %s7831
      $region52: #{dcnv2_forward.1} parent=47 // pred_fallthru
        _
    $region48: #{dcnv2_forward.1} parent=5 // pred_fallthru
      _
  $region6: #{dcnv2_forward.1} parent=0 // loop_footer
    %s15 = sadd.s32 1, %s11
  $region7: #{dcnv2_forward.1} parent=0 // loop_footer_branch
    %10 = sbr.rel target = $region3
  $region8: #{dcnv2_forward.1} parent=0 // loop_exit
    _

</llo_original>
